<compile_context>
chip_gen: v7x
topology: tpu7x:2x2x1
jax: 0.10.0
libtpu: 0.0.40
codegen_flags: <defaults>
</compile_context>

<pallas_src>
import jax
import jax.numpy as jnp
import numpy as np
from jax import lax
from jax.experimental import pallas as pl
from jax.experimental.pallas import tpu as pltpu


# ------------------------------ Fused kernel -------------------------------- #

def _make_fused_kernel(num_conv, num_gru):
    """Build the fused forward kernel for a fixed number of conv / GRU layers."""

    def kernel(*args):
        it = iter(args)
        x_ref = next(it)                                        # (N, T, Cin)
        conv_refs = [next(it) for _ in range(2 * num_conv)]     # [w, b] * num_conv
        gru_refs = [[next(it) for _ in range(10)] for _ in range(num_gru)]
        lin_w_ref = next(it)                                    # (H, Cout)
        lin_b_ref = next(it)                                    # (1, Cout)
        o_ref = next(it)                                        # (N, T, Cout)
        hn_ref = next(it)                                       # (L, N, H)
        x_tm_scr = next(it)                                     # (T, N, Cin)
        gi_r_scr = next(it)                                     # (T, N, H)
        gi_z_scr = next(it)                                     # (T, N, H)
        gi_n_scr = next(it)                                     # (T, N, H)
        y_scr = next(it)                                        # (T, N, H)
        h_scr = next(it)                                        # (N, H)

        N, T, _ = x_ref.shape
        H = h_scr.shape[-1]
        M = N * T

        # ---- one-time reorder of the raw input to time-major (rows = t*N + n) ----
        for t in range(T):                                      # static, tiny
            x_tm_scr[t] = x_ref[:, t, :]
        cur2d = x_tm_scr[...].reshape(M, -1)                    # (M, Cin)

        # ---- conv stack: 1x1 conv == per-token matmul (BN folded, eval mode) ----
        for i in range(num_conv):
            w = conv_refs[2 * i][...]
            b = conv_refs[2 * i + 1][...]
            cur2d = jnp.maximum(
                jnp.dot(cur2d, w, preferred_element_type=jnp.float32) + b, 0.0)

        # ---- GRU layers (PyTorch gate order r, z, n) ----
        for l in range(num_gru):
            wir, wiz, win, whr, whz, whn, br, bz, bi_n, bh_n = gru_refs[l]

            # Hoisted input projections (input-side biases folded in); stored
            # time-major so the recurrence only does leading-dim ref indexing.
            gi_r_scr[...] = (jnp.dot(cur2d, wir[...], preferred_element_type=jnp.float32)
                             + br[...]).reshape(T, N, H)
            gi_z_scr[...] = (jnp.dot(cur2d, wiz[...], preferred_element_type=jnp.float32)
                             + bz[...]).reshape(T, N, H)
            gi_n_scr[...] = (jnp.dot(cur2d, win[...], preferred_element_type=jnp.float32)
                             + bi_n[...]).reshape(T, N, H)

            # Hoist loop-invariant loads / broadcasts out of the time loop.
            whr_v = whr[...]
            whz_v = whz[...]
            whn_v = whn[...]
            bh_n_b = jnp.broadcast_to(bh_n[...], (N, H))

            h_scr[...] = jnp.zeros_like(h_scr)

            def step(t, carry):
                h_prev = h_scr[...]
                gh_r = jnp.dot(h_prev, whr_v, preferred_element_type=jnp.float32)
                gh_z = jnp.dot(h_prev, whz_v, preferred_element_type=jnp.float32)
                gh_n = jnp.dot(h_prev, whn_v, preferred_element_type=jnp.float32) + bh_n_b
                r = jax.nn.sigmoid(gi_r_scr[t] + gh_r)
                z = jax.nn.sigmoid(gi_z_scr[t] + gh_z)
                n = jnp.tanh(gi_n_scr[t] + r * gh_n)
                h_new = (1.0 - z) * n + z * h_prev
                h_scr[...] = h_new
                y_scr[t] = h_new
                return carry

            lax.fori_loop(0, T, step, 0, unroll=True)

            hn_ref[l] = h_scr[...]
            cur2d = y_scr[...].reshape(M, H)                    # time-major output

        # ---- final linear, then reorder back to batch-major (N, T, Cout) ----
        out_tm = (jnp.dot(cur2d, lin_w_ref[...], preferred_element_type=jnp.float32)
                  + lin_b_ref[...])                             # (M, Cout)
        out_3d = out_tm.reshape(T, N, -1)
        for t in range(T):                                      # static, tiny
            o_ref[:, t, :] = out_3d[t].astype(o_ref.dtype)

    return kernel


# ----------------------------- Params / forward ----------------------------- #

def init_params(key, input_size=3, conv_layers=3, rnn_layers=3,
                hidden_size=32, conv_ch=64):
    keys = iter(jax.random.split(key, 64))
    p = {'convs': [], 'gru': []}
    for i in range(conv_layers):
        cin = input_size if i == 0 else conv_ch
        p['convs'].append(dict(
            w=jax.random.normal(next(keys), (conv_ch, cin)) / np.sqrt(cin),
            b=0.05 * jax.random.normal(next(keys), (conv_ch,)),
            gamma=1.0 + 0.1 * jax.random.normal(next(keys), (conv_ch,)),
            beta=0.1 * jax.random.normal(next(keys), (conv_ch,)),
            rmean=jnp.zeros((conv_ch,)),
            rvar=jnp.ones((conv_ch,)),
        ))
    s = 1.0 / np.sqrt(hidden_size)
    for l in range(rnn_layers):
        din = conv_ch if l == 0 else hidden_size
        p['gru'].append(dict(
            w_ih=jax.random.uniform(next(keys), (3 * hidden_size, din), minval=-s, maxval=s),
            w_hh=jax.random.uniform(next(keys), (3 * hidden_size, hidden_size), minval=-s, maxval=s),
            b_ih=jax.random.uniform(next(keys), (3 * hidden_size,), minval=-s, maxval=s),
            b_hh=jax.random.uniform(next(keys), (3 * hidden_size,), minval=-s, maxval=s),
        ))
    p['lin_w'] = jax.random.uniform(next(keys), (input_size, hidden_size), minval=-s, maxval=s)
    p['lin_b'] = jax.random.uniform(next(keys), (input_size,), minval=-s, maxval=s)
    return jax.tree_util.tree_map(lambda a: a.astype(jnp.float32), p)


def fold_conv_bn(layer, eps=1e-5):
    scale = layer['gamma'] / jnp.sqrt(layer['rvar'] + eps)
    w_eff = (layer['w'] * scale[:, None]).T                        # (cin, 64)
    b_eff = (layer['b'] - layer['rmean']) * scale + layer['beta']  # (64,)
    return w_eff, b_eff.reshape(1, -1)


@jax.jit
def mortonnet_forward(sequences, params):
    B, D1, D2, C = sequences.shape
    N, T = B * D1, D2
    x = sequences.reshape(N, T, C).astype(jnp.float32)

    conv_args = []
    for l in params['convs']:
        w_eff, b_eff = fold_conv_bn(l)
        conv_args += [w_eff, b_eff]

    H = params['gru'][0]['w_hh'].shape[1]
    L = len(params['gru'])
    gru_args = []
    for layer in params['gru']:
        w_ih, w_hh = layer['w_ih'], layer['w_hh']
        b_ih, b_hh = layer['b_ih'], layer['b_hh']
        # PyTorch gate order along the 3H axis: [r, z, n]; split per gate so the
        # kernel never needs unaligned lane slices.
        gru_args += [
            w_ih[0:H, :].T, w_ih[H:2 * H, :].T, w_ih[2 * H:3 * H, :].T,   # (D_in, H)
            w_hh[0:H, :].T, w_hh[H:2 * H, :].T, w_hh[2 * H:3 * H, :].T,   # (H, H)
            (b_ih[0:H] + b_hh[0:H]).reshape(1, H),                        # b_r (folded)
            (b_ih[H:2 * H] + b_hh[H:2 * H]).reshape(1, H),                # b_z (folded)
            b_ih[2 * H:3 * H].reshape(1, H),                              # b_in
            b_hh[2 * H:3 * H].reshape(1, H),                              # b_hn
        ]

    lin_w = params['lin_w'].T                                    # (H, Cout)
    lin_b = params['lin_b'].reshape(1, -1)
    C_out = lin_w.shape[1]

    kernel = _make_fused_kernel(num_conv=len(params['convs']), num_gru=L)
    out, h_n = pl.pallas_call(
        kernel,
        out_shape=(jax.ShapeDtypeStruct((N, T, C_out), jnp.float32),
                   jax.ShapeDtypeStruct((L, N, H), jnp.float32)),
        scratch_shapes=[
            pltpu.VMEM((T, N, C), jnp.float32),   # time-major input
            pltpu.VMEM((T, N, H), jnp.float32),   # gi_r
            pltpu.VMEM((T, N, H), jnp.float32),   # gi_z
            pltpu.VMEM((T, N, H), jnp.float32),   # gi_n
            pltpu.VMEM((T, N, H), jnp.float32),   # per-layer GRU outputs
            pltpu.VMEM((N, H), jnp.float32),      # recurrence state
        ],
    )(x, *conv_args, *gru_args, lin_w, lin_b)
    return out, h_n


def mortonnet_ref(sequences, params):
    """Pure-JAX reference of the same semantics, for validation."""
    B, D1, D2, C = sequences.shape
    x = sequences.reshape(-1, C).astype(jnp.float32)
    for l in params['convs']:
        w_eff, b_eff = fold_conv_bn(l)
        x = jnp.maximum(x @ w_eff + b_eff, 0.0)
    N, T = B * D1, D2
    x = x.reshape(N, T, -1)
    h_lasts = []
    for layer in params['gru']:
        H = layer['w_hh'].shape[1]
        h = jnp.zeros((N, H), jnp.float32)
        outs = []
        for t in range(T):
            gi = x[:, t, :] @ layer['w_ih'].T + layer['b_ih']
            gh = h @ layer['w_hh'].T + layer['b_hh']
            r = jax.nn.sigmoid(gi[:, :H] + gh[:, :H])
            z = jax.nn.sigmoid(gi[:, H:2 * H] + gh[:, H:2 * H])
            n = jnp.tanh(gi[:, 2 * H:] + r * gh[:, 2 * H:])
            h = (1.0 - z) * n + z * h
            outs.append(h)
        x = jnp.stack(outs, axis=1)
        h_lasts.append(h)
    y = x @ params['lin_w'].T + params['lin_b']
    return y, jnp.stack(h_lasts, axis=0)


if __name__ == "__main__":
    key = jax.random.PRNGKey(0)
    pkey, xkey = jax.random.split(key)
    params = init_params(pkey, input_size=3, conv_layers=3, rnn_layers=3, hidden_size=32)
    # sequences: (B=2, D1=4, D2=8, input_size=3) -> 8 sequences of 8 points each
    sequences = jax.random.normal(xkey, (2, 4, 8, 3), dtype=jnp.float32)

    y, h_n = mortonnet_forward(sequences, params)
    y, h_n = jax.block_until_ready((y, h_n))

    y_ref, h_ref = mortonnet_ref(sequences, params)
    np.testing.assert_allclose(np.asarray(y), np.asarray(y_ref), rtol=2e-3, atol=2e-3)
    np.testing.assert_allclose(np.asarray(h_n), np.asarray(h_ref), rtol=2e-3, atol=2e-3)
    assert y.shape == (8, 8, 3) and h_n.shape == (3, 8, 32)
    print("KERNEL_OK")
</pallas_src>

<mosaic_0001>
module attributes {stable_mosaic.version = 11 : i64} {
  func.func @kernel(%arg0: memref<8x8x3xf32, #tpu.memory_space<vmem>>, %arg1: memref<3x64xf32, #tpu.memory_space<vmem>>, %arg2: memref<1x64xf32, #tpu.memory_space<vmem>>, %arg3: memref<64x64xf32, #tpu.memory_space<vmem>>, %arg4: memref<1x64xf32, #tpu.memory_space<vmem>>, %arg5: memref<64x64xf32, #tpu.memory_space<vmem>>, %arg6: memref<1x64xf32, #tpu.memory_space<vmem>>, %arg7: memref<64x32xf32, #tpu.memory_space<vmem>>, %arg8: memref<64x32xf32, #tpu.memory_space<vmem>>, %arg9: memref<64x32xf32, #tpu.memory_space<vmem>>, %arg10: memref<32x32xf32, #tpu.memory_space<vmem>>, %arg11: memref<32x32xf32, #tpu.memory_space<vmem>>, %arg12: memref<32x32xf32, #tpu.memory_space<vmem>>, %arg13: memref<1x32xf32, #tpu.memory_space<vmem>>, %arg14: memref<1x32xf32, #tpu.memory_space<vmem>>, %arg15: memref<1x32xf32, #tpu.memory_space<vmem>>, %arg16: memref<1x32xf32, #tpu.memory_space<vmem>>, %arg17: memref<32x32xf32, #tpu.memory_space<vmem>>, %arg18: memref<32x32xf32, #tpu.memory_space<vmem>>, %arg19: memref<32x32xf32, #tpu.memory_space<vmem>>, %arg20: memref<32x32xf32, #tpu.memory_space<vmem>>, %arg21: memref<32x32xf32, #tpu.memory_space<vmem>>, %arg22: memref<32x32xf32, #tpu.memory_space<vmem>>, %arg23: memref<1x32xf32, #tpu.memory_space<vmem>>, %arg24: memref<1x32xf32, #tpu.memory_space<vmem>>, %arg25: memref<1x32xf32, #tpu.memory_space<vmem>>, %arg26: memref<1x32xf32, #tpu.memory_space<vmem>>, %arg27: memref<32x32xf32, #tpu.memory_space<vmem>>, %arg28: memref<32x32xf32, #tpu.memory_space<vmem>>, %arg29: memref<32x32xf32, #tpu.memory_space<vmem>>, %arg30: memref<32x32xf32, #tpu.memory_space<vmem>>, %arg31: memref<32x32xf32, #tpu.memory_space<vmem>>, %arg32: memref<32x32xf32, #tpu.memory_space<vmem>>, %arg33: memref<1x32xf32, #tpu.memory_space<vmem>>, %arg34: memref<1x32xf32, #tpu.memory_space<vmem>>, %arg35: memref<1x32xf32, #tpu.memory_space<vmem>>, %arg36: memref<1x32xf32, #tpu.memory_space<vmem>>, %arg37: memref<32x3xf32, #tpu.memory_space<vmem>>, %arg38: memref<1x3xf32, #tpu.memory_space<vmem>>, %arg39: memref<8x8x3xf32, #tpu.memory_space<vmem>>, %arg40: memref<3x8x32xf32, #tpu.memory_space<vmem>>, %arg41: memref<8x8x3xf32, #tpu.memory_space<vmem>>, %arg42: memref<8x8x32xf32, #tpu.memory_space<vmem>>, %arg43: memref<8x8x32xf32, #tpu.memory_space<vmem>>, %arg44: memref<8x8x32xf32, #tpu.memory_space<vmem>>, %arg45: memref<8x8x32xf32, #tpu.memory_space<vmem>>, %arg46: memref<8x32xf32, #tpu.memory_space<vmem>>) attributes {dimension_semantics = [], scalar_prefetch = 0 : i64, scratch_operands = 6 : i64, tpu.core_type = #tpu.core_type<tc>} {
    %c0 = arith.constant 0 : index
    %c0_0 = arith.constant 0 : index
    %c0_1 = arith.constant 0 : index
    %0 = vector.load %arg0[%c0, %c0_0, %c0_1] : memref<8x8x3xf32, #tpu.memory_space<vmem>>, vector<8x1x3xf32>
    %1 = vector.shape_cast %0 : vector<8x1x3xf32> to vector<8x3xf32>
    %c0_2 = arith.constant 0 : index
    %c0_3 = arith.constant 0 : index
    %c0_4 = arith.constant 0 : index
    %2 = vector.load %arg41[%c0_2, %c0_3, %c0_4] : memref<8x8x3xf32, #tpu.memory_space<vmem>>, vector<1x8x3xf32>
    %3 = vector.shape_cast %2 : vector<1x8x3xf32> to vector<8x3xf32>
    %4 = vector.shape_cast %1 : vector<8x3xf32> to vector<1x8x3xf32>
    tpu.vector_store %arg41[%c0_2, %c0_3, %c0_4], %4 {strides = array<i32>} : memref<8x8x3xf32, #tpu.memory_space<vmem>>, vector<1x8x3xf32>,
    %c0_5 = arith.constant 0 : index
    %c1 = arith.constant 1 : index
    %c0_6 = arith.constant 0 : index
    %5 = vector.load %arg0[%c0_5, %c1, %c0_6] : memref<8x8x3xf32, #tpu.memory_space<vmem>>, vector<8x1x3xf32>
    %6 = vector.shape_cast %5 : vector<8x1x3xf32> to vector<8x3xf32>
    %c1_7 = arith.constant 1 : index
    %c0_8 = arith.constant 0 : index
    %c0_9 = arith.constant 0 : index
    %7 = vector.load %arg41[%c1_7, %c0_8, %c0_9] : memref<8x8x3xf32, #tpu.memory_space<vmem>>, vector<1x8x3xf32>
    %8 = vector.shape_cast %7 : vector<1x8x3xf32> to vector<8x3xf32>
    %9 = vector.shape_cast %6 : vector<8x3xf32> to vector<1x8x3xf32>
    tpu.vector_store %arg41[%c1_7, %c0_8, %c0_9], %9 {strides = array<i32>} : memref<8x8x3xf32, #tpu.memory_space<vmem>>, vector<1x8x3xf32>,
    %c0_10 = arith.constant 0 : index
    %c2 = arith.constant 2 : index
    %c0_11 = arith.constant 0 : index
    %10 = vector.load %arg0[%c0_10, %c2, %c0_11] : memref<8x8x3xf32, #tpu.memory_space<vmem>>, vector<8x1x3xf32>
    %11 = vector.shape_cast %10 : vector<8x1x3xf32> to vector<8x3xf32>
    %c2_12 = arith.constant 2 : index
    %c0_13 = arith.constant 0 : index
    %c0_14 = arith.constant 0 : index
    %12 = vector.load %arg41[%c2_12, %c0_13, %c0_14] : memref<8x8x3xf32, #tpu.memory_space<vmem>>, vector<1x8x3xf32>
    %13 = vector.shape_cast %12 : vector<1x8x3xf32> to vector<8x3xf32>
    %14 = vector.shape_cast %11 : vector<8x3xf32> to vector<1x8x3xf32>
    tpu.vector_store %arg41[%c2_12, %c0_13, %c0_14], %14 {strides = array<i32>} : memref<8x8x3xf32, #tpu.memory_space<vmem>>, vector<1x8x3xf32>,
    %c0_15 = arith.constant 0 : index
    %c3 = arith.constant 3 : index
    %c0_16 = arith.constant 0 : index
    %15 = vector.load %arg0[%c0_15, %c3, %c0_16] : memref<8x8x3xf32, #tpu.memory_space<vmem>>, vector<8x1x3xf32>
    %16 = vector.shape_cast %15 : vector<8x1x3xf32> to vector<8x3xf32>
    %c3_17 = arith.constant 3 : index
    %c0_18 = arith.constant 0 : index
    %c0_19 = arith.constant 0 : index
    %17 = vector.load %arg41[%c3_17, %c0_18, %c0_19] : memref<8x8x3xf32, #tpu.memory_space<vmem>>, vector<1x8x3xf32>
    %18 = vector.shape_cast %17 : vector<1x8x3xf32> to vector<8x3xf32>
    %19 = vector.shape_cast %16 : vector<8x3xf32> to vector<1x8x3xf32>
    tpu.vector_store %arg41[%c3_17, %c0_18, %c0_19], %19 {strides = array<i32>} : memref<8x8x3xf32, #tpu.memory_space<vmem>>, vector<1x8x3xf32>,
    %c0_20 = arith.constant 0 : index
    %c4 = arith.constant 4 : index
    %c0_21 = arith.constant 0 : index
    %20 = vector.load %arg0[%c0_20, %c4, %c0_21] : memref<8x8x3xf32, #tpu.memory_space<vmem>>, vector<8x1x3xf32>
    %21 = vector.shape_cast %20 : vector<8x1x3xf32> to vector<8x3xf32>
    %c4_22 = arith.constant 4 : index
    %c0_23 = arith.constant 0 : index
    %c0_24 = arith.constant 0 : index
    %22 = vector.load %arg41[%c4_22, %c0_23, %c0_24] : memref<8x8x3xf32, #tpu.memory_space<vmem>>, vector<1x8x3xf32>
    %23 = vector.shape_cast %22 : vector<1x8x3xf32> to vector<8x3xf32>
    %24 = vector.shape_cast %21 : vector<8x3xf32> to vector<1x8x3xf32>
    tpu.vector_store %arg41[%c4_22, %c0_23, %c0_24], %24 {strides = array<i32>} : memref<8x8x3xf32, #tpu.memory_space<vmem>>, vector<1x8x3xf32>,
    %c0_25 = arith.constant 0 : index
    %c5 = arith.constant 5 : index
    %c0_26 = arith.constant 0 : index
    %25 = vector.load %arg0[%c0_25, %c5, %c0_26] : memref<8x8x3xf32, #tpu.memory_space<vmem>>, vector<8x1x3xf32>
    %26 = vector.shape_cast %25 : vector<8x1x3xf32> to vector<8x3xf32>
    %c5_27 = arith.constant 5 : index
    %c0_28 = arith.constant 0 : index
    %c0_29 = arith.constant 0 : index
    %27 = vector.load %arg41[%c5_27, %c0_28, %c0_29] : memref<8x8x3xf32, #tpu.memory_space<vmem>>, vector<1x8x3xf32>
    %28 = vector.shape_cast %27 : vector<1x8x3xf32> to vector<8x3xf32>
    %29 = vector.shape_cast %26 : vector<8x3xf32> to vector<1x8x3xf32>
    tpu.vector_store %arg41[%c5_27, %c0_28, %c0_29], %29 {strides = array<i32>} : memref<8x8x3xf32, #tpu.memory_space<vmem>>, vector<1x8x3xf32>,
    %c0_30 = arith.constant 0 : index
    %c6 = arith.constant 6 : index
    %c0_31 = arith.constant 0 : index
    %30 = vector.load %arg0[%c0_30, %c6, %c0_31] : memref<8x8x3xf32, #tpu.memory_space<vmem>>, vector<8x1x3xf32>
    %31 = vector.shape_cast %30 : vector<8x1x3xf32> to vector<8x3xf32>
    %c6_32 = arith.constant 6 : index
    %c0_33 = arith.constant 0 : index
    %c0_34 = arith.constant 0 : index
    %32 = vector.load %arg41[%c6_32, %c0_33, %c0_34] : memref<8x8x3xf32, #tpu.memory_space<vmem>>, vector<1x8x3xf32>
    %33 = vector.shape_cast %32 : vector<1x8x3xf32> to vector<8x3xf32>
    %34 = vector.shape_cast %31 : vector<8x3xf32> to vector<1x8x3xf32>
    tpu.vector_store %arg41[%c6_32, %c0_33, %c0_34], %34 {strides = array<i32>} : memref<8x8x3xf32, #tpu.memory_space<vmem>>, vector<1x8x3xf32>,
    %c0_35 = arith.constant 0 : index
    %c7 = arith.constant 7 : index
    %c0_36 = arith.constant 0 : index
    %35 = vector.load %arg0[%c0_35, %c7, %c0_36] : memref<8x8x3xf32, #tpu.memory_space<vmem>>, vector<8x1x3xf32>
    %36 = vector.shape_cast %35 : vector<8x1x3xf32> to vector<8x3xf32>
    %c7_37 = arith.constant 7 : index
    %c0_38 = arith.constant 0 : index
    %c0_39 = arith.constant 0 : index
    %37 = vector.load %arg41[%c7_37, %c0_38, %c0_39] : memref<8x8x3xf32, #tpu.memory_space<vmem>>, vector<1x8x3xf32>
    %38 = vector.shape_cast %37 : vector<1x8x3xf32> to vector<8x3xf32>
    %39 = vector.shape_cast %36 : vector<8x3xf32> to vector<1x8x3xf32>
    tpu.vector_store %arg41[%c7_37, %c0_38, %c0_39], %39 {strides = array<i32>} : memref<8x8x3xf32, #tpu.memory_space<vmem>>, vector<1x8x3xf32>,
    %c0_40 = arith.constant 0 : index
    %c0_41 = arith.constant 0 : index
    %c0_42 = arith.constant 0 : index
    %40 = vector.load %arg41[%c0_40, %c0_41, %c0_42] : memref<8x8x3xf32, #tpu.memory_space<vmem>>, vector<8x8x3xf32>
    %41 = vector.shape_cast %40 : vector<8x8x3xf32> to vector<64x3xf32>
    %c0_43 = arith.constant 0 : index
    %c0_44 = arith.constant 0 : index
    %42 = vector.load %arg1[%c0_43, %c0_44] : memref<3x64xf32, #tpu.memory_space<vmem>>, vector<3x64xf32>
    %c0_45 = arith.constant 0 : index
    %c0_46 = arith.constant 0 : index
    %43 = vector.load %arg2[%c0_45, %c0_46] : memref<1x64xf32, #tpu.memory_space<vmem>>, vector<1x64xf32>
    %cst = arith.constant dense<0.000000e+00> : vector<64x64xf32>
    %44 = tpu.matmul %41, %42, %cst {dimension_numbers = #tpu.dot_dimension_numbers<[1], [0], [0], [1], [0, 0, 1, 1], [], []>} : vector<64x3xf32>, vector<3x64xf32>, vector<64x64xf32> -> vector<64x64xf32>
    %45 = vector.broadcast %43 : vector<1x64xf32> to vector<64x64xf32>
    %46 = arith.addf %44, %45 : vector<64x64xf32>
    %cst_47 = arith.constant 0.000000e+00 : f32
    %47 = vector.broadcast %cst_47 : f32 to vector<64x64xf32>
    %48 = arith.maximumf %46, %47 : vector<64x64xf32>
    %c0_48 = arith.constant 0 : index
    %c0_49 = arith.constant 0 : index
    %49 = vector.load %arg3[%c0_48, %c0_49] : memref<64x64xf32, #tpu.memory_space<vmem>>, vector<64x64xf32>
    %c0_50 = arith.constant 0 : index
    %c0_51 = arith.constant 0 : index
    %50 = vector.load %arg4[%c0_50, %c0_51] : memref<1x64xf32, #tpu.memory_space<vmem>>, vector<1x64xf32>
    %cst_52 = arith.constant dense<0.000000e+00> : vector<64x64xf32>
    %51 = tpu.matmul %48, %49, %cst_52 {dimension_numbers = #tpu.dot_dimension_numbers<[1], [0], [0], [1], [0, 0, 1, 1], [], []>} : vector<64x64xf32>, vector<64x64xf32>, vector<64x64xf32> -> vector<64x64xf32>
    %52 = vector.broadcast %50 : vector<1x64xf32> to vector<64x64xf32>
    %53 = arith.addf %51, %52 : vector<64x64xf32>
    %cst_53 = arith.constant 0.000000e+00 : f32
    %54 = vector.broadcast %cst_53 : f32 to vector<64x64xf32>
    %55 = arith.maximumf %53, %54 : vector<64x64xf32>
    %c0_54 = arith.constant 0 : index
    %c0_55 = arith.constant 0 : index
    %56 = vector.load %arg5[%c0_54, %c0_55] : memref<64x64xf32, #tpu.memory_space<vmem>>, vector<64x64xf32>
    %c0_56 = arith.constant 0 : index
    %c0_57 = arith.constant 0 : index
    %57 = vector.load %arg6[%c0_56, %c0_57] : memref<1x64xf32, #tpu.memory_space<vmem>>, vector<1x64xf32>
    %cst_58 = arith.constant dense<0.000000e+00> : vector<64x64xf32>
    %58 = tpu.matmul %55, %56, %cst_58 {dimension_numbers = #tpu.dot_dimension_numbers<[1], [0], [0], [1], [0, 0, 1, 1], [], []>} : vector<64x64xf32>, vector<64x64xf32>, vector<64x64xf32> -> vector<64x64xf32>
    %59 = vector.broadcast %57 : vector<1x64xf32> to vector<64x64xf32>
    %60 = arith.addf %58, %59 : vector<64x64xf32>
    %cst_59 = arith.constant 0.000000e+00 : f32
    %61 = vector.broadcast %cst_59 : f32 to vector<64x64xf32>
    %62 = arith.maximumf %60, %61 : vector<64x64xf32>
    %c0_60 = arith.constant 0 : index
    %c0_61 = arith.constant 0 : index
    %63 = vector.load %arg7[%c0_60, %c0_61] : memref<64x32xf32, #tpu.memory_space<vmem>>, vector<64x32xf32>
    %cst_62 = arith.constant dense<0.000000e+00> : vector<64x32xf32>
    %64 = tpu.matmul %62, %63, %cst_62 {dimension_numbers = #tpu.dot_dimension_numbers<[1], [0], [0], [1], [0, 0, 1, 1], [], []>} : vector<64x64xf32>, vector<64x32xf32>, vector<64x32xf32> -> vector<64x32xf32>
    %c0_63 = arith.constant 0 : index
    %c0_64 = arith.constant 0 : index
    %65 = vector.load %arg13[%c0_63, %c0_64] : memref<1x32xf32, #tpu.memory_space<vmem>>, vector<1x32xf32>
    %66 = vector.broadcast %65 : vector<1x32xf32> to vector<64x32xf32>
    %67 = arith.addf %64, %66 : vector<64x32xf32>
    %68 = vector.shape_cast %67 : vector<64x32xf32> to vector<8x8x32xf32>
    %c0_65 = arith.constant 0 : index
    %c0_66 = arith.constant 0 : index
    %c0_67 = arith.constant 0 : index
    %69 = vector.load %arg42[%c0_65, %c0_66, %c0_67] : memref<8x8x32xf32, #tpu.memory_space<vmem>>, vector<8x8x32xf32>
    tpu.vector_store %arg42[%c0_65, %c0_66, %c0_67], %68 {strides = array<i32>} : memref<8x8x32xf32, #tpu.memory_space<vmem>>, vector<8x8x32xf32>,
    %c0_68 = arith.constant 0 : index
    %c0_69 = arith.constant 0 : index
    %70 = vector.load %arg8[%c0_68, %c0_69] : memref<64x32xf32, #tpu.memory_space<vmem>>, vector<64x32xf32>
    %cst_70 = arith.constant dense<0.000000e+00> : vector<64x32xf32>
    %71 = tpu.matmul %62, %70, %cst_70 {dimension_numbers = #tpu.dot_dimension_numbers<[1], [0], [0], [1], [0, 0, 1, 1], [], []>} : vector<64x64xf32>, vector<64x32xf32>, vector<64x32xf32> -> vector<64x32xf32>
    %c0_71 = arith.constant 0 : index
    %c0_72 = arith.constant 0 : index
    %72 = vector.load %arg14[%c0_71, %c0_72] : memref<1x32xf32, #tpu.memory_space<vmem>>, vector<1x32xf32>
    %73 = vector.broadcast %72 : vector<1x32xf32> to vector<64x32xf32>
    %74 = arith.addf %71, %73 : vector<64x32xf32>
    %75 = vector.shape_cast %74 : vector<64x32xf32> to vector<8x8x32xf32>
    %c0_73 = arith.constant 0 : index
    %c0_74 = arith.constant 0 : index
    %c0_75 = arith.constant 0 : index
    %76 = vector.load %arg43[%c0_73, %c0_74, %c0_75] : memref<8x8x32xf32, #tpu.memory_space<vmem>>, vector<8x8x32xf32>
    tpu.vector_store %arg43[%c0_73, %c0_74, %c0_75], %75 {strides = array<i32>} : memref<8x8x32xf32, #tpu.memory_space<vmem>>, vector<8x8x32xf32>,
    %c0_76 = arith.constant 0 : index
    %c0_77 = arith.constant 0 : index
    %77 = vector.load %arg9[%c0_76, %c0_77] : memref<64x32xf32, #tpu.memory_space<vmem>>, vector<64x32xf32>
    %cst_78 = arith.constant dense<0.000000e+00> : vector<64x32xf32>
    %78 = tpu.matmul %62, %77, %cst_78 {dimension_numbers = #tpu.dot_dimension_numbers<[1], [0], [0], [1], [0, 0, 1, 1], [], []>} : vector<64x64xf32>, vector<64x32xf32>, vector<64x32xf32> -> vector<64x32xf32>
    %c0_79 = arith.constant 0 : index
    %c0_80 = arith.constant 0 : index
    %79 = vector.load %arg15[%c0_79, %c0_80] : memref<1x32xf32, #tpu.memory_space<vmem>>, vector<1x32xf32>
    %80 = vector.broadcast %79 : vector<1x32xf32> to vector<64x32xf32>
    %81 = arith.addf %78, %80 : vector<64x32xf32>
    %82 = vector.shape_cast %81 : vector<64x32xf32> to vector<8x8x32xf32>
    %c0_81 = arith.constant 0 : index
    %c0_82 = arith.constant 0 : index
    %c0_83 = arith.constant 0 : index
    %83 = vector.load %arg44[%c0_81, %c0_82, %c0_83] : memref<8x8x32xf32, #tpu.memory_space<vmem>>, vector<8x8x32xf32>
    tpu.vector_store %arg44[%c0_81, %c0_82, %c0_83], %82 {strides = array<i32>} : memref<8x8x32xf32, #tpu.memory_space<vmem>>, vector<8x8x32xf32>,
    %c0_84 = arith.constant 0 : index
    %c0_85 = arith.constant 0 : index
    %84 = vector.load %arg10[%c0_84, %c0_85] : memref<32x32xf32, #tpu.memory_space<vmem>>, vector<32x32xf32>
    %c0_86 = arith.constant 0 : index
    %c0_87 = arith.constant 0 : index
    %85 = vector.load %arg11[%c0_86, %c0_87] : memref<32x32xf32, #tpu.memory_space<vmem>>, vector<32x32xf32>
    %c0_88 = arith.constant 0 : index
    %c0_89 = arith.constant 0 : index
    %86 = vector.load %arg12[%c0_88, %c0_89] : memref<32x32xf32, #tpu.memory_space<vmem>>, vector<32x32xf32>
    %c0_90 = arith.constant 0 : index
    %c0_91 = arith.constant 0 : index
    %87 = vector.load %arg16[%c0_90, %c0_91] : memref<1x32xf32, #tpu.memory_space<vmem>>, vector<1x32xf32>
    %88 = vector.shape_cast %87 : vector<1x32xf32> to vector<1x32xf32>
    %89 = vector.broadcast %88 : vector<1x32xf32> to vector<8x32xf32>
    %cst_92 = arith.constant 0.000000e+00 : f32
    %90 = vector.broadcast %cst_92 : f32 to vector<8x32xf32>
    %c0_93 = arith.constant 0 : index
    %c0_94 = arith.constant 0 : index
    %91 = vector.load %arg46[%c0_93, %c0_94] : memref<8x32xf32, #tpu.memory_space<vmem>>, vector<8x32xf32>
    tpu.vector_store %arg46[%c0_93, %c0_94], %90 {strides = array<i32>} : memref<8x32xf32, #tpu.memory_space<vmem>>, vector<8x32xf32>,
    %c0_i32 = arith.constant 0 : i32
    %c0_95 = arith.constant 0 : index
    %c0_96 = arith.constant 0 : index
    %92 = vector.load %arg46[%c0_95, %c0_96] : memref<8x32xf32, #tpu.memory_space<vmem>>, vector<8x32xf32>
    %cst_97 = arith.constant dense<0.000000e+00> : vector<8x32xf32>
    %93 = tpu.matmul %92, %84, %cst_97 {dimension_numbers = #tpu.dot_dimension_numbers<[1], [0], [0], [1], [0, 0, 1, 1], [], []>} : vector<8x32xf32>, vector<32x32xf32>, vector<8x32xf32> -> vector<8x32xf32>
    %cst_98 = arith.constant dense<0.000000e+00> : vector<8x32xf32>
    %94 = tpu.matmul %92, %85, %cst_98 {dimension_numbers = #tpu.dot_dimension_numbers<[1], [0], [0], [1], [0, 0, 1, 1], [], []>} : vector<8x32xf32>, vector<32x32xf32>, vector<8x32xf32> -> vector<8x32xf32>
    %cst_99 = arith.constant dense<0.000000e+00> : vector<8x32xf32>
    %95 = tpu.matmul %92, %86, %cst_99 {dimension_numbers = #tpu.dot_dimension_numbers<[1], [0], [0], [1], [0, 0, 1, 1], [], []>} : vector<8x32xf32>, vector<32x32xf32>, vector<8x32xf32> -> vector<8x32xf32>
    %96 = arith.addf %95, %89 : vector<8x32xf32>
    %97 = arith.index_cast %c0_i32 : i32 to index
    %c0_100 = arith.constant 0 : index
    %c0_101 = arith.constant 0 : index
    %98 = vector.load %arg42[%97, %c0_100, %c0_101] : memref<8x8x32xf32, #tpu.memory_space<vmem>>, vector<1x8x32xf32>
    %99 = vector.shape_cast %98 : vector<1x8x32xf32> to vector<8x32xf32>
    %100 = arith.addf %99, %93 : vector<8x32xf32>
    %101 = arith.negf %100 : vector<8x32xf32>
    %102 = math.exp %101 : vector<8x32xf32>
    %cst_102 = arith.constant 1.000000e+00 : f32
    %103 = vector.broadcast %cst_102 : f32 to vector<8x32xf32>
    %104 = arith.addf %103, %102 : vector<8x32xf32>
    %105 = arith.divf %103, %104 : vector<8x32xf32>
    %106 = arith.index_cast %c0_i32 : i32 to index
    %c0_103 = arith.constant 0 : index
    %c0_104 = arith.constant 0 : index
    %107 = vector.load %arg43[%106, %c0_103, %c0_104] : memref<8x8x32xf32, #tpu.memory_space<vmem>>, vector<1x8x32xf32>
    %108 = vector.shape_cast %107 : vector<1x8x32xf32> to vector<8x32xf32>
    %109 = arith.addf %108, %94 : vector<8x32xf32>
    %110 = arith.negf %109 : vector<8x32xf32>
    %111 = math.exp %110 : vector<8x32xf32>
    %cst_105 = arith.constant 1.000000e+00 : f32
    %112 = vector.broadcast %cst_105 : f32 to vector<8x32xf32>
    %113 = arith.addf %112, %111 : vector<8x32xf32>
    %114 = arith.divf %112, %113 : vector<8x32xf32>
    %115 = arith.index_cast %c0_i32 : i32 to index
    %c0_106 = arith.constant 0 : index
    %c0_107 = arith.constant 0 : index
    %116 = vector.load %arg44[%115, %c0_106, %c0_107] : memref<8x8x32xf32, #tpu.memory_space<vmem>>, vector<1x8x32xf32>
    %117 = vector.shape_cast %116 : vector<1x8x32xf32> to vector<8x32xf32>
    %118 = arith.mulf %105, %96 : vector<8x32xf32>
    %119 = arith.addf %117, %118 : vector<8x32xf32>
    %120 = math.tanh %119 : vector<8x32xf32>
    %cst_108 = arith.constant 1.000000e+00 : f32
    %121 = vector.broadcast %cst_108 : f32 to vector<8x32xf32>
    %122 = arith.subf %121, %114 : vector<8x32xf32>
    %123 = arith.mulf %122, %120 : vector<8x32xf32>
    %124 = arith.mulf %114, %92 : vector<8x32xf32>
    %125 = arith.addf %123, %124 : vector<8x32xf32>
    %c0_109 = arith.constant 0 : index
    %c0_110 = arith.constant 0 : index
    %126 = vector.load %arg46[%c0_109, %c0_110] : memref<8x32xf32, #tpu.memory_space<vmem>>, vector<8x32xf32>
    tpu.vector_store %arg46[%c0_109, %c0_110], %125 {strides = array<i32>} : memref<8x32xf32, #tpu.memory_space<vmem>>, vector<8x32xf32>,
    %127 = arith.index_cast %c0_i32 : i32 to index
    %c0_111 = arith.constant 0 : index
    %c0_112 = arith.constant 0 : index
    %128 = vector.load %arg45[%127, %c0_111, %c0_112] : memref<8x8x32xf32, #tpu.memory_space<vmem>>, vector<1x8x32xf32>
    %129 = vector.shape_cast %128 : vector<1x8x32xf32> to vector<8x32xf32>
    %130 = vector.shape_cast %125 : vector<8x32xf32> to vector<1x8x32xf32>
    tpu.vector_store %arg45[%127, %c0_111, %c0_112], %130 {strides = array<i32>} : memref<8x8x32xf32, #tpu.memory_space<vmem>>, vector<1x8x32xf32>,
    %c1_i32 = arith.constant 1 : i32
    %c0_113 = arith.constant 0 : index
    %c0_114 = arith.constant 0 : index
    %131 = vector.load %arg46[%c0_113, %c0_114] : memref<8x32xf32, #tpu.memory_space<vmem>>, vector<8x32xf32>
    %cst_115 = arith.constant dense<0.000000e+00> : vector<8x32xf32>
    %132 = tpu.matmul %131, %84, %cst_115 {dimension_numbers = #tpu.dot_dimension_numbers<[1], [0], [0], [1], [0, 0, 1, 1], [], []>} : vector<8x32xf32>, vector<32x32xf32>, vector<8x32xf32> -> vector<8x32xf32>
    %cst_116 = arith.constant dense<0.000000e+00> : vector<8x32xf32>
    %133 = tpu.matmul %131, %85, %cst_116 {dimension_numbers = #tpu.dot_dimension_numbers<[1], [0], [0], [1], [0, 0, 1, 1], [], []>} : vector<8x32xf32>, vector<32x32xf32>, vector<8x32xf32> -> vector<8x32xf32>
    %cst_117 = arith.constant dense<0.000000e+00> : vector<8x32xf32>
    %134 = tpu.matmul %131, %86, %cst_117 {dimension_numbers = #tpu.dot_dimension_numbers<[1], [0], [0], [1], [0, 0, 1, 1], [], []>} : vector<8x32xf32>, vector<32x32xf32>, vector<8x32xf32> -> vector<8x32xf32>
    %135 = arith.addf %134, %89 : vector<8x32xf32>
    %136 = arith.index_cast %c1_i32 : i32 to index
    %c0_118 = arith.constant 0 : index
    %c0_119 = arith.constant 0 : index
    %137 = vector.load %arg42[%136, %c0_118, %c0_119] : memref<8x8x32xf32, #tpu.memory_space<vmem>>, vector<1x8x32xf32>
    %138 = vector.shape_cast %137 : vector<1x8x32xf32> to vector<8x32xf32>
    %139 = arith.addf %138, %132 : vector<8x32xf32>
    %140 = arith.negf %139 : vector<8x32xf32>
    %141 = math.exp %140 : vector<8x32xf32>
    %cst_120 = arith.constant 1.000000e+00 : f32
    %142 = vector.broadcast %cst_120 : f32 to vector<8x32xf32>
    %143 = arith.addf %142, %141 : vector<8x32xf32>
    %144 = arith.divf %142, %143 : vector<8x32xf32>
    %145 = arith.index_cast %c1_i32 : i32 to index
    %c0_121 = arith.constant 0 : index
    %c0_122 = arith.constant 0 : index
    %146 = vector.load %arg43[%145, %c0_121, %c0_122] : memref<8x8x32xf32, #tpu.memory_space<vmem>>, vector<1x8x32xf32>
    %147 = vector.shape_cast %146 : vector<1x8x32xf32> to vector<8x32xf32>
    %148 = arith.addf %147, %133 : vector<8x32xf32>
    %149 = arith.negf %148 : vector<8x32xf32>
    %150 = math.exp %149 : vector<8x32xf32>
    %cst_123 = arith.constant 1.000000e+00 : f32
    %151 = vector.broadcast %cst_123 : f32 to vector<8x32xf32>
    %152 = arith.addf %151, %150 : vector<8x32xf32>
    %153 = arith.divf %151, %152 : vector<8x32xf32>
    %154 = arith.index_cast %c1_i32 : i32 to index
    %c0_124 = arith.constant 0 : index
    %c0_125 = arith.constant 0 : index
    %155 = vector.load %arg44[%154, %c0_124, %c0_125] : memref<8x8x32xf32, #tpu.memory_space<vmem>>, vector<1x8x32xf32>
    %156 = vector.shape_cast %155 : vector<1x8x32xf32> to vector<8x32xf32>
    %157 = arith.mulf %144, %135 : vector<8x32xf32>
    %158 = arith.addf %156, %157 : vector<8x32xf32>
    %159 = math.tanh %158 : vector<8x32xf32>
    %cst_126 = arith.constant 1.000000e+00 : f32
    %160 = vector.broadcast %cst_126 : f32 to vector<8x32xf32>
    %161 = arith.subf %160, %153 : vector<8x32xf32>
    %162 = arith.mulf %161, %159 : vector<8x32xf32>
    %163 = arith.mulf %153, %131 : vector<8x32xf32>
    %164 = arith.addf %162, %163 : vector<8x32xf32>
    %c0_127 = arith.constant 0 : index
    %c0_128 = arith.constant 0 : index
    %165 = vector.load %arg46[%c0_127, %c0_128] : memref<8x32xf32, #tpu.memory_space<vmem>>, vector<8x32xf32>
    tpu.vector_store %arg46[%c0_127, %c0_128], %164 {strides = array<i32>} : memref<8x32xf32, #tpu.memory_space<vmem>>, vector<8x32xf32>,
    %166 = arith.index_cast %c1_i32 : i32 to index
    %c0_129 = arith.constant 0 : index
    %c0_130 = arith.constant 0 : index
    %167 = vector.load %arg45[%166, %c0_129, %c0_130] : memref<8x8x32xf32, #tpu.memory_space<vmem>>, vector<1x8x32xf32>
    %168 = vector.shape_cast %167 : vector<1x8x32xf32> to vector<8x32xf32>
    %169 = vector.shape_cast %164 : vector<8x32xf32> to vector<1x8x32xf32>
    tpu.vector_store %arg45[%166, %c0_129, %c0_130], %169 {strides = array<i32>} : memref<8x8x32xf32, #tpu.memory_space<vmem>>, vector<1x8x32xf32>,
    %c2_i32 = arith.constant 2 : i32
    %c0_131 = arith.constant 0 : index
    %c0_132 = arith.constant 0 : index
    %170 = vector.load %arg46[%c0_131, %c0_132] : memref<8x32xf32, #tpu.memory_space<vmem>>, vector<8x32xf32>
    %cst_133 = arith.constant dense<0.000000e+00> : vector<8x32xf32>
    %171 = tpu.matmul %170, %84, %cst_133 {dimension_numbers = #tpu.dot_dimension_numbers<[1], [0], [0], [1], [0, 0, 1, 1], [], []>} : vector<8x32xf32>, vector<32x32xf32>, vector<8x32xf32> -> vector<8x32xf32>
    %cst_134 = arith.constant dense<0.000000e+00> : vector<8x32xf32>
    %172 = tpu.matmul %170, %85, %cst_134 {dimension_numbers = #tpu.dot_dimension_numbers<[1], [0], [0], [1], [0, 0, 1, 1], [], []>} : vector<8x32xf32>, vector<32x32xf32>, vector<8x32xf32> -> vector<8x32xf32>
    %cst_135 = arith.constant dense<0.000000e+00> : vector<8x32xf32>
    %173 = tpu.matmul %170, %86, %cst_135 {dimension_numbers = #tpu.dot_dimension_numbers<[1], [0], [0], [1], [0, 0, 1, 1], [], []>} : vector<8x32xf32>, vector<32x32xf32>, vector<8x32xf32> -> vector<8x32xf32>
    %174 = arith.addf %173, %89 : vector<8x32xf32>
    %175 = arith.index_cast %c2_i32 : i32 to index
    %c0_136 = arith.constant 0 : index
    %c0_137 = arith.constant 0 : index
    %176 = vector.load %arg42[%175, %c0_136, %c0_137] : memref<8x8x32xf32, #tpu.memory_space<vmem>>, vector<1x8x32xf32>
    %177 = vector.shape_cast %176 : vector<1x8x32xf32> to vector<8x32xf32>
    %178 = arith.addf %177, %171 : vector<8x32xf32>
    %179 = arith.negf %178 : vector<8x32xf32>
    %180 = math.exp %179 : vector<8x32xf32>
    %cst_138 = arith.constant 1.000000e+00 : f32
    %181 = vector.broadcast %cst_138 : f32 to vector<8x32xf32>
    %182 = arith.addf %181, %180 : vector<8x32xf32>
    %183 = arith.divf %181, %182 : vector<8x32xf32>
    %184 = arith.index_cast %c2_i32 : i32 to index
    %c0_139 = arith.constant 0 : index
    %c0_140 = arith.constant 0 : index
    %185 = vector.load %arg43[%184, %c0_139, %c0_140] : memref<8x8x32xf32, #tpu.memory_space<vmem>>, vector<1x8x32xf32>
    %186 = vector.shape_cast %185 : vector<1x8x32xf32> to vector<8x32xf32>
    %187 = arith.addf %186, %172 : vector<8x32xf32>
    %188 = arith.negf %187 : vector<8x32xf32>
    %189 = math.exp %188 : vector<8x32xf32>
    %cst_141 = arith.constant 1.000000e+00 : f32
    %190 = vector.broadcast %cst_141 : f32 to vector<8x32xf32>
    %191 = arith.addf %190, %189 : vector<8x32xf32>
    %192 = arith.divf %190, %191 : vector<8x32xf32>
    %193 = arith.index_cast %c2_i32 : i32 to index
    %c0_142 = arith.constant 0 : index
    %c0_143 = arith.constant 0 : index
    %194 = vector.load %arg44[%193, %c0_142, %c0_143] : memref<8x8x32xf32, #tpu.memory_space<vmem>>, vector<1x8x32xf32>
    %195 = vector.shape_cast %194 : vector<1x8x32xf32> to vector<8x32xf32>
    %196 = arith.mulf %183, %174 : vector<8x32xf32>
    %197 = arith.addf %195, %196 : vector<8x32xf32>
    %198 = math.tanh %197 : vector<8x32xf32>
    %cst_144 = arith.constant 1.000000e+00 : f32
    %199 = vector.broadcast %cst_144 : f32 to vector<8x32xf32>
    %200 = arith.subf %199, %192 : vector<8x32xf32>
    %201 = arith.mulf %200, %198 : vector<8x32xf32>
    %202 = arith.mulf %192, %170 : vector<8x32xf32>
    %203 = arith.addf %201, %202 : vector<8x32xf32>
    %c0_145 = arith.constant 0 : index
    %c0_146 = arith.constant 0 : index
    %204 = vector.load %arg46[%c0_145, %c0_146] : memref<8x32xf32, #tpu.memory_space<vmem>>, vector<8x32xf32>
    tpu.vector_store %arg46[%c0_145, %c0_146], %203 {strides = array<i32>} : memref<8x32xf32, #tpu.memory_space<vmem>>, vector<8x32xf32>,
    %205 = arith.index_cast %c2_i32 : i32 to index
    %c0_147 = arith.constant 0 : index
    %c0_148 = arith.constant 0 : index
    %206 = vector.load %arg45[%205, %c0_147, %c0_148] : memref<8x8x32xf32, #tpu.memory_space<vmem>>, vector<1x8x32xf32>
    %207 = vector.shape_cast %206 : vector<1x8x32xf32> to vector<8x32xf32>
    %208 = vector.shape_cast %203 : vector<8x32xf32> to vector<1x8x32xf32>
    tpu.vector_store %arg45[%205, %c0_147, %c0_148], %208 {strides = array<i32>} : memref<8x8x32xf32, #tpu.memory_space<vmem>>, vector<1x8x32xf32>,
    %c3_i32 = arith.constant 3 : i32
    %c0_149 = arith.constant 0 : index
    %c0_150 = arith.constant 0 : index
    %209 = vector.load %arg46[%c0_149, %c0_150] : memref<8x32xf32, #tpu.memory_space<vmem>>, vector<8x32xf32>
    %cst_151 = arith.constant dense<0.000000e+00> : vector<8x32xf32>
    %210 = tpu.matmul %209, %84, %cst_151 {dimension_numbers = #tpu.dot_dimension_numbers<[1], [0], [0], [1], [0, 0, 1, 1], [], []>} : vector<8x32xf32>, vector<32x32xf32>, vector<8x32xf32> -> vector<8x32xf32>
    %cst_152 = arith.constant dense<0.000000e+00> : vector<8x32xf32>
    %211 = tpu.matmul %209, %85, %cst_152 {dimension_numbers = #tpu.dot_dimension_numbers<[1], [0], [0], [1], [0, 0, 1, 1], [], []>} : vector<8x32xf32>, vector<32x32xf32>, vector<8x32xf32> -> vector<8x32xf32>
    %cst_153 = arith.constant dense<0.000000e+00> : vector<8x32xf32>
    %212 = tpu.matmul %209, %86, %cst_153 {dimension_numbers = #tpu.dot_dimension_numbers<[1], [0], [0], [1], [0, 0, 1, 1], [], []>} : vector<8x32xf32>, vector<32x32xf32>, vector<8x32xf32> -> vector<8x32xf32>
    %213 = arith.addf %212, %89 : vector<8x32xf32>
    %214 = arith.index_cast %c3_i32 : i32 to index
    %c0_154 = arith.constant 0 : index
    %c0_155 = arith.constant 0 : index
    %215 = vector.load %arg42[%214, %c0_154, %c0_155] : memref<8x8x32xf32, #tpu.memory_space<vmem>>, vector<1x8x32xf32>
    %216 = vector.shape_cast %215 : vector<1x8x32xf32> to vector<8x32xf32>
    %217 = arith.addf %216, %210 : vector<8x32xf32>
    %218 = arith.negf %217 : vector<8x32xf32>
    %219 = math.exp %218 : vector<8x32xf32>
    %cst_156 = arith.constant 1.000000e+00 : f32
    %220 = vector.broadcast %cst_156 : f32 to vector<8x32xf32>
    %221 = arith.addf %220, %219 : vector<8x32xf32>
    %222 = arith.divf %220, %221 : vector<8x32xf32>
    %223 = arith.index_cast %c3_i32 : i32 to index
    %c0_157 = arith.constant 0 : index
    %c0_158 = arith.constant 0 : index
    %224 = vector.load %arg43[%223, %c0_157, %c0_158] : memref<8x8x32xf32, #tpu.memory_space<vmem>>, vector<1x8x32xf32>
    %225 = vector.shape_cast %224 : vector<1x8x32xf32> to vector<8x32xf32>
    %226 = arith.addf %225, %211 : vector<8x32xf32>
    %227 = arith.negf %226 : vector<8x32xf32>
    %228 = math.exp %227 : vector<8x32xf32>
    %cst_159 = arith.constant 1.000000e+00 : f32
    %229 = vector.broadcast %cst_159 : f32 to vector<8x32xf32>
    %230 = arith.addf %229, %228 : vector<8x32xf32>
    %231 = arith.divf %229, %230 : vector<8x32xf32>
    %232 = arith.index_cast %c3_i32 : i32 to index
    %c0_160 = arith.constant 0 : index
    %c0_161 = arith.constant 0 : index
    %233 = vector.load %arg44[%232, %c0_160, %c0_161] : memref<8x8x32xf32, #tpu.memory_space<vmem>>, vector<1x8x32xf32>
    %234 = vector.shape_cast %233 : vector<1x8x32xf32> to vector<8x32xf32>
    %235 = arith.mulf %222, %213 : vector<8x32xf32>
    %236 = arith.addf %234, %235 : vector<8x32xf32>
    %237 = math.tanh %236 : vector<8x32xf32>
    %cst_162 = arith.constant 1.000000e+00 : f32
    %238 = vector.broadcast %cst_162 : f32 to vector<8x32xf32>
    %239 = arith.subf %238, %231 : vector<8x32xf32>
    %240 = arith.mulf %239, %237 : vector<8x32xf32>
    %241 = arith.mulf %231, %209 : vector<8x32xf32>
    %242 = arith.addf %240, %241 : vector<8x32xf32>
    %c0_163 = arith.constant 0 : index
    %c0_164 = arith.constant 0 : index
    %243 = vector.load %arg46[%c0_163, %c0_164] : memref<8x32xf32, #tpu.memory_space<vmem>>, vector<8x32xf32>
    tpu.vector_store %arg46[%c0_163, %c0_164], %242 {strides = array<i32>} : memref<8x32xf32, #tpu.memory_space<vmem>>, vector<8x32xf32>,
    %244 = arith.index_cast %c3_i32 : i32 to index
    %c0_165 = arith.constant 0 : index
    %c0_166 = arith.constant 0 : index
    %245 = vector.load %arg45[%244, %c0_165, %c0_166] : memref<8x8x32xf32, #tpu.memory_space<vmem>>, vector<1x8x32xf32>
    %246 = vector.shape_cast %245 : vector<1x8x32xf32> to vector<8x32xf32>
    %247 = vector.shape_cast %242 : vector<8x32xf32> to vector<1x8x32xf32>
    tpu.vector_store %arg45[%244, %c0_165, %c0_166], %247 {strides = array<i32>} : memref<8x8x32xf32, #tpu.memory_space<vmem>>, vector<1x8x32xf32>,
    %c4_i32 = arith.constant 4 : i32
    %c0_167 = arith.constant 0 : index
    %c0_168 = arith.constant 0 : index
    %248 = vector.load %arg46[%c0_167, %c0_168] : memref<8x32xf32, #tpu.memory_space<vmem>>, vector<8x32xf32>
    %cst_169 = arith.constant dense<0.000000e+00> : vector<8x32xf32>
    %249 = tpu.matmul %248, %84, %cst_169 {dimension_numbers = #tpu.dot_dimension_numbers<[1], [0], [0], [1], [0, 0, 1, 1], [], []>} : vector<8x32xf32>, vector<32x32xf32>, vector<8x32xf32> -> vector<8x32xf32>
    %cst_170 = arith.constant dense<0.000000e+00> : vector<8x32xf32>
    %250 = tpu.matmul %248, %85, %cst_170 {dimension_numbers = #tpu.dot_dimension_numbers<[1], [0], [0], [1], [0, 0, 1, 1], [], []>} : vector<8x32xf32>, vector<32x32xf32>, vector<8x32xf32> -> vector<8x32xf32>
    %cst_171 = arith.constant dense<0.000000e+00> : vector<8x32xf32>
    %251 = tpu.matmul %248, %86, %cst_171 {dimension_numbers = #tpu.dot_dimension_numbers<[1], [0], [0], [1], [0, 0, 1, 1], [], []>} : vector<8x32xf32>, vector<32x32xf32>, vector<8x32xf32> -> vector<8x32xf32>
    %252 = arith.addf %251, %89 : vector<8x32xf32>
    %253 = arith.index_cast %c4_i32 : i32 to index
    %c0_172 = arith.constant 0 : index
    %c0_173 = arith.constant 0 : index
    %254 = vector.load %arg42[%253, %c0_172, %c0_173] : memref<8x8x32xf32, #tpu.memory_space<vmem>>, vector<1x8x32xf32>
    %255 = vector.shape_cast %254 : vector<1x8x32xf32> to vector<8x32xf32>
    %256 = arith.addf %255, %249 : vector<8x32xf32>
    %257 = arith.negf %256 : vector<8x32xf32>
    %258 = math.exp %257 : vector<8x32xf32>
    %cst_174 = arith.constant 1.000000e+00 : f32
    %259 = vector.broadcast %cst_174 : f32 to vector<8x32xf32>
    %260 = arith.addf %259, %258 : vector<8x32xf32>
    %261 = arith.divf %259, %260 : vector<8x32xf32>
    %262 = arith.index_cast %c4_i32 : i32 to index
    %c0_175 = arith.constant 0 : index
    %c0_176 = arith.constant 0 : index
    %263 = vector.load %arg43[%262, %c0_175, %c0_176] : memref<8x8x32xf32, #tpu.memory_space<vmem>>, vector<1x8x32xf32>
    %264 = vector.shape_cast %263 : vector<1x8x32xf32> to vector<8x32xf32>
    %265 = arith.addf %264, %250 : vector<8x32xf32>
    %266 = arith.negf %265 : vector<8x32xf32>
    %267 = math.exp %266 : vector<8x32xf32>
    %cst_177 = arith.constant 1.000000e+00 : f32
    %268 = vector.broadcast %cst_177 : f32 to vector<8x32xf32>
    %269 = arith.addf %268, %267 : vector<8x32xf32>
    %270 = arith.divf %268, %269 : vector<8x32xf32>
    %271 = arith.index_cast %c4_i32 : i32 to index
    %c0_178 = arith.constant 0 : index
    %c0_179 = arith.constant 0 : index
    %272 = vector.load %arg44[%271, %c0_178, %c0_179] : memref<8x8x32xf32, #tpu.memory_space<vmem>>, vector<1x8x32xf32>
    %273 = vector.shape_cast %272 : vector<1x8x32xf32> to vector<8x32xf32>
    %274 = arith.mulf %261, %252 : vector<8x32xf32>
    %275 = arith.addf %273, %274 : vector<8x32xf32>
    %276 = math.tanh %275 : vector<8x32xf32>
    %cst_180 = arith.constant 1.000000e+00 : f32
    %277 = vector.broadcast %cst_180 : f32 to vector<8x32xf32>
    %278 = arith.subf %277, %270 : vector<8x32xf32>
    %279 = arith.mulf %278, %276 : vector<8x32xf32>
    %280 = arith.mulf %270, %248 : vector<8x32xf32>
    %281 = arith.addf %279, %280 : vector<8x32xf32>
    %c0_181 = arith.constant 0 : index
    %c0_182 = arith.constant 0 : index
    %282 = vector.load %arg46[%c0_181, %c0_182] : memref<8x32xf32, #tpu.memory_space<vmem>>, vector<8x32xf32>
    tpu.vector_store %arg46[%c0_181, %c0_182], %281 {strides = array<i32>} : memref<8x32xf32, #tpu.memory_space<vmem>>, vector<8x32xf32>,
    %283 = arith.index_cast %c4_i32 : i32 to index
    %c0_183 = arith.constant 0 : index
    %c0_184 = arith.constant 0 : index
    %284 = vector.load %arg45[%283, %c0_183, %c0_184] : memref<8x8x32xf32, #tpu.memory_space<vmem>>, vector<1x8x32xf32>
    %285 = vector.shape_cast %284 : vector<1x8x32xf32> to vector<8x32xf32>
    %286 = vector.shape_cast %281 : vector<8x32xf32> to vector<1x8x32xf32>
    tpu.vector_store %arg45[%283, %c0_183, %c0_184], %286 {strides = array<i32>} : memref<8x8x32xf32, #tpu.memory_space<vmem>>, vector<1x8x32xf32>,
    %c5_i32 = arith.constant 5 : i32
    %c0_185 = arith.constant 0 : index
    %c0_186 = arith.constant 0 : index
    %287 = vector.load %arg46[%c0_185, %c0_186] : memref<8x32xf32, #tpu.memory_space<vmem>>, vector<8x32xf32>
    %cst_187 = arith.constant dense<0.000000e+00> : vector<8x32xf32>
    %288 = tpu.matmul %287, %84, %cst_187 {dimension_numbers = #tpu.dot_dimension_numbers<[1], [0], [0], [1], [0, 0, 1, 1], [], []>} : vector<8x32xf32>, vector<32x32xf32>, vector<8x32xf32> -> vector<8x32xf32>
    %cst_188 = arith.constant dense<0.000000e+00> : vector<8x32xf32>
    %289 = tpu.matmul %287, %85, %cst_188 {dimension_numbers = #tpu.dot_dimension_numbers<[1], [0], [0], [1], [0, 0, 1, 1], [], []>} : vector<8x32xf32>, vector<32x32xf32>, vector<8x32xf32> -> vector<8x32xf32>
    %cst_189 = arith.constant dense<0.000000e+00> : vector<8x32xf32>
    %290 = tpu.matmul %287, %86, %cst_189 {dimension_numbers = #tpu.dot_dimension_numbers<[1], [0], [0], [1], [0, 0, 1, 1], [], []>} : vector<8x32xf32>, vector<32x32xf32>, vector<8x32xf32> -> vector<8x32xf32>
    %291 = arith.addf %290, %89 : vector<8x32xf32>
    %292 = arith.index_cast %c5_i32 : i32 to index
    %c0_190 = arith.constant 0 : index
    %c0_191 = arith.constant 0 : index
    %293 = vector.load %arg42[%292, %c0_190, %c0_191] : memref<8x8x32xf32, #tpu.memory_space<vmem>>, vector<1x8x32xf32>
    %294 = vector.shape_cast %293 : vector<1x8x32xf32> to vector<8x32xf32>
    %295 = arith.addf %294, %288 : vector<8x32xf32>
    %296 = arith.negf %295 : vector<8x32xf32>
    %297 = math.exp %296 : vector<8x32xf32>
    %cst_192 = arith.constant 1.000000e+00 : f32
    %298 = vector.broadcast %cst_192 : f32 to vector<8x32xf32>
    %299 = arith.addf %298, %297 : vector<8x32xf32>
    %300 = arith.divf %298, %299 : vector<8x32xf32>
    %301 = arith.index_cast %c5_i32 : i32 to index
    %c0_193 = arith.constant 0 : index
    %c0_194 = arith.constant 0 : index
    %302 = vector.load %arg43[%301, %c0_193, %c0_194] : memref<8x8x32xf32, #tpu.memory_space<vmem>>, vector<1x8x32xf32>
    %303 = vector.shape_cast %302 : vector<1x8x32xf32> to vector<8x32xf32>
    %304 = arith.addf %303, %289 : vector<8x32xf32>
    %305 = arith.negf %304 : vector<8x32xf32>
    %306 = math.exp %305 : vector<8x32xf32>
    %cst_195 = arith.constant 1.000000e+00 : f32
    %307 = vector.broadcast %cst_195 : f32 to vector<8x32xf32>
    %308 = arith.addf %307, %306 : vector<8x32xf32>
    %309 = arith.divf %307, %308 : vector<8x32xf32>
    %310 = arith.index_cast %c5_i32 : i32 to index
    %c0_196 = arith.constant 0 : index
    %c0_197 = arith.constant 0 : index
    %311 = vector.load %arg44[%310, %c0_196, %c0_197] : memref<8x8x32xf32, #tpu.memory_space<vmem>>, vector<1x8x32xf32>
    %312 = vector.shape_cast %311 : vector<1x8x32xf32> to vector<8x32xf32>
    %313 = arith.mulf %300, %291 : vector<8x32xf32>
    %314 = arith.addf %312, %313 : vector<8x32xf32>
    %315 = math.tanh %314 : vector<8x32xf32>
    %cst_198 = arith.constant 1.000000e+00 : f32
    %316 = vector.broadcast %cst_198 : f32 to vector<8x32xf32>
    %317 = arith.subf %316, %309 : vector<8x32xf32>
    %318 = arith.mulf %317, %315 : vector<8x32xf32>
    %319 = arith.mulf %309, %287 : vector<8x32xf32>
    %320 = arith.addf %318, %319 : vector<8x32xf32>
    %c0_199 = arith.constant 0 : index
    %c0_200 = arith.constant 0 : index
    %321 = vector.load %arg46[%c0_199, %c0_200] : memref<8x32xf32, #tpu.memory_space<vmem>>, vector<8x32xf32>
    tpu.vector_store %arg46[%c0_199, %c0_200], %320 {strides = array<i32>} : memref<8x32xf32, #tpu.memory_space<vmem>>, vector<8x32xf32>,
    %322 = arith.index_cast %c5_i32 : i32 to index
    %c0_201 = arith.constant 0 : index
    %c0_202 = arith.constant 0 : index
    %323 = vector.load %arg45[%322, %c0_201, %c0_202] : memref<8x8x32xf32, #tpu.memory_space<vmem>>, vector<1x8x32xf32>
    %324 = vector.shape_cast %323 : vector<1x8x32xf32> to vector<8x32xf32>
    %325 = vector.shape_cast %320 : vector<8x32xf32> to vector<1x8x32xf32>
    tpu.vector_store %arg45[%322, %c0_201, %c0_202], %325 {strides = array<i32>} : memref<8x8x32xf32, #tpu.memory_space<vmem>>, vector<1x8x32xf32>,
    %c6_i32 = arith.constant 6 : i32
    %c0_203 = arith.constant 0 : index
    %c0_204 = arith.constant 0 : index
    %326 = vector.load %arg46[%c0_203, %c0_204] : memref<8x32xf32, #tpu.memory_space<vmem>>, vector<8x32xf32>
    %cst_205 = arith.constant dense<0.000000e+00> : vector<8x32xf32>
    %327 = tpu.matmul %326, %84, %cst_205 {dimension_numbers = #tpu.dot_dimension_numbers<[1], [0], [0], [1], [0, 0, 1, 1], [], []>} : vector<8x32xf32>, vector<32x32xf32>, vector<8x32xf32> -> vector<8x32xf32>
    %cst_206 = arith.constant dense<0.000000e+00> : vector<8x32xf32>
    %328 = tpu.matmul %326, %85, %cst_206 {dimension_numbers = #tpu.dot_dimension_numbers<[1], [0], [0], [1], [0, 0, 1, 1], [], []>} : vector<8x32xf32>, vector<32x32xf32>, vector<8x32xf32> -> vector<8x32xf32>
    %cst_207 = arith.constant dense<0.000000e+00> : vector<8x32xf32>
    %329 = tpu.matmul %326, %86, %cst_207 {dimension_numbers = #tpu.dot_dimension_numbers<[1], [0], [0], [1], [0, 0, 1, 1], [], []>} : vector<8x32xf32>, vector<32x32xf32>, vector<8x32xf32> -> vector<8x32xf32>
    %330 = arith.addf %329, %89 : vector<8x32xf32>
    %331 = arith.index_cast %c6_i32 : i32 to index
    %c0_208 = arith.constant 0 : index
    %c0_209 = arith.constant 0 : index
    %332 = vector.load %arg42[%331, %c0_208, %c0_209] : memref<8x8x32xf32, #tpu.memory_space<vmem>>, vector<1x8x32xf32>
    %333 = vector.shape_cast %332 : vector<1x8x32xf32> to vector<8x32xf32>
    %334 = arith.addf %333, %327 : vector<8x32xf32>
    %335 = arith.negf %334 : vector<8x32xf32>
    %336 = math.exp %335 : vector<8x32xf32>
    %cst_210 = arith.constant 1.000000e+00 : f32
    %337 = vector.broadcast %cst_210 : f32 to vector<8x32xf32>
    %338 = arith.addf %337, %336 : vector<8x32xf32>
    %339 = arith.divf %337, %338 : vector<8x32xf32>
    %340 = arith.index_cast %c6_i32 : i32 to index
    %c0_211 = arith.constant 0 : index
    %c0_212 = arith.constant 0 : index
    %341 = vector.load %arg43[%340, %c0_211, %c0_212] : memref<8x8x32xf32, #tpu.memory_space<vmem>>, vector<1x8x32xf32>
    %342 = vector.shape_cast %341 : vector<1x8x32xf32> to vector<8x32xf32>
    %343 = arith.addf %342, %328 : vector<8x32xf32>
    %344 = arith.negf %343 : vector<8x32xf32>
    %345 = math.exp %344 : vector<8x32xf32>
    %cst_213 = arith.constant 1.000000e+00 : f32
    %346 = vector.broadcast %cst_213 : f32 to vector<8x32xf32>
    %347 = arith.addf %346, %345 : vector<8x32xf32>
    %348 = arith.divf %346, %347 : vector<8x32xf32>
    %349 = arith.index_cast %c6_i32 : i32 to index
    %c0_214 = arith.constant 0 : index
    %c0_215 = arith.constant 0 : index
    %350 = vector.load %arg44[%349, %c0_214, %c0_215] : memref<8x8x32xf32, #tpu.memory_space<vmem>>, vector<1x8x32xf32>
    %351 = vector.shape_cast %350 : vector<1x8x32xf32> to vector<8x32xf32>
    %352 = arith.mulf %339, %330 : vector<8x32xf32>
    %353 = arith.addf %351, %352 : vector<8x32xf32>
    %354 = math.tanh %353 : vector<8x32xf32>
    %cst_216 = arith.constant 1.000000e+00 : f32
    %355 = vector.broadcast %cst_216 : f32 to vector<8x32xf32>
    %356 = arith.subf %355, %348 : vector<8x32xf32>
    %357 = arith.mulf %356, %354 : vector<8x32xf32>
    %358 = arith.mulf %348, %326 : vector<8x32xf32>
    %359 = arith.addf %357, %358 : vector<8x32xf32>
    %c0_217 = arith.constant 0 : index
    %c0_218 = arith.constant 0 : index
    %360 = vector.load %arg46[%c0_217, %c0_218] : memref<8x32xf32, #tpu.memory_space<vmem>>, vector<8x32xf32>
    tpu.vector_store %arg46[%c0_217, %c0_218], %359 {strides = array<i32>} : memref<8x32xf32, #tpu.memory_space<vmem>>, vector<8x32xf32>,
    %361 = arith.index_cast %c6_i32 : i32 to index
    %c0_219 = arith.constant 0 : index
    %c0_220 = arith.constant 0 : index
    %362 = vector.load %arg45[%361, %c0_219, %c0_220] : memref<8x8x32xf32, #tpu.memory_space<vmem>>, vector<1x8x32xf32>
    %363 = vector.shape_cast %362 : vector<1x8x32xf32> to vector<8x32xf32>
    %364 = vector.shape_cast %359 : vector<8x32xf32> to vector<1x8x32xf32>
    tpu.vector_store %arg45[%361, %c0_219, %c0_220], %364 {strides = array<i32>} : memref<8x8x32xf32, #tpu.memory_space<vmem>>, vector<1x8x32xf32>,
    %c7_i32 = arith.constant 7 : i32
    %c0_221 = arith.constant 0 : index
    %c0_222 = arith.constant 0 : index
    %365 = vector.load %arg46[%c0_221, %c0_222] : memref<8x32xf32, #tpu.memory_space<vmem>>, vector<8x32xf32>
    %cst_223 = arith.constant dense<0.000000e+00> : vector<8x32xf32>
    %366 = tpu.matmul %365, %84, %cst_223 {dimension_numbers = #tpu.dot_dimension_numbers<[1], [0], [0], [1], [0, 0, 1, 1], [], []>} : vector<8x32xf32>, vector<32x32xf32>, vector<8x32xf32> -> vector<8x32xf32>
    %cst_224 = arith.constant dense<0.000000e+00> : vector<8x32xf32>
    %367 = tpu.matmul %365, %85, %cst_224 {dimension_numbers = #tpu.dot_dimension_numbers<[1], [0], [0], [1], [0, 0, 1, 1], [], []>} : vector<8x32xf32>, vector<32x32xf32>, vector<8x32xf32> -> vector<8x32xf32>
    %cst_225 = arith.constant dense<0.000000e+00> : vector<8x32xf32>
    %368 = tpu.matmul %365, %86, %cst_225 {dimension_numbers = #tpu.dot_dimension_numbers<[1], [0], [0], [1], [0, 0, 1, 1], [], []>} : vector<8x32xf32>, vector<32x32xf32>, vector<8x32xf32> -> vector<8x32xf32>
    %369 = arith.addf %368, %89 : vector<8x32xf32>
    %370 = arith.index_cast %c7_i32 : i32 to index
    %c0_226 = arith.constant 0 : index
    %c0_227 = arith.constant 0 : index
    %371 = vector.load %arg42[%370, %c0_226, %c0_227] : memref<8x8x32xf32, #tpu.memory_space<vmem>>, vector<1x8x32xf32>
    %372 = vector.shape_cast %371 : vector<1x8x32xf32> to vector<8x32xf32>
    %373 = arith.addf %372, %366 : vector<8x32xf32>
    %374 = arith.negf %373 : vector<8x32xf32>
    %375 = math.exp %374 : vector<8x32xf32>
    %cst_228 = arith.constant 1.000000e+00 : f32
    %376 = vector.broadcast %cst_228 : f32 to vector<8x32xf32>
    %377 = arith.addf %376, %375 : vector<8x32xf32>
    %378 = arith.divf %376, %377 : vector<8x32xf32>
    %379 = arith.index_cast %c7_i32 : i32 to index
    %c0_229 = arith.constant 0 : index
    %c0_230 = arith.constant 0 : index
    %380 = vector.load %arg43[%379, %c0_229, %c0_230] : memref<8x8x32xf32, #tpu.memory_space<vmem>>, vector<1x8x32xf32>
    %381 = vector.shape_cast %380 : vector<1x8x32xf32> to vector<8x32xf32>
    %382 = arith.addf %381, %367 : vector<8x32xf32>
    %383 = arith.negf %382 : vector<8x32xf32>
    %384 = math.exp %383 : vector<8x32xf32>
    %cst_231 = arith.constant 1.000000e+00 : f32
    %385 = vector.broadcast %cst_231 : f32 to vector<8x32xf32>
    %386 = arith.addf %385, %384 : vector<8x32xf32>
    %387 = arith.divf %385, %386 : vector<8x32xf32>
    %388 = arith.index_cast %c7_i32 : i32 to index
    %c0_232 = arith.constant 0 : index
    %c0_233 = arith.constant 0 : index
    %389 = vector.load %arg44[%388, %c0_232, %c0_233] : memref<8x8x32xf32, #tpu.memory_space<vmem>>, vector<1x8x32xf32>
    %390 = vector.shape_cast %389 : vector<1x8x32xf32> to vector<8x32xf32>
    %391 = arith.mulf %378, %369 : vector<8x32xf32>
    %392 = arith.addf %390, %391 : vector<8x32xf32>
    %393 = math.tanh %392 : vector<8x32xf32>
    %cst_234 = arith.constant 1.000000e+00 : f32
    %394 = vector.broadcast %cst_234 : f32 to vector<8x32xf32>
    %395 = arith.subf %394, %387 : vector<8x32xf32>
    %396 = arith.mulf %395, %393 : vector<8x32xf32>
    %397 = arith.mulf %387, %365 : vector<8x32xf32>
    %398 = arith.addf %396, %397 : vector<8x32xf32>
    %c0_235 = arith.constant 0 : index
    %c0_236 = arith.constant 0 : index
    %399 = vector.load %arg46[%c0_235, %c0_236] : memref<8x32xf32, #tpu.memory_space<vmem>>, vector<8x32xf32>
    tpu.vector_store %arg46[%c0_235, %c0_236], %398 {strides = array<i32>} : memref<8x32xf32, #tpu.memory_space<vmem>>, vector<8x32xf32>,
    %400 = arith.index_cast %c7_i32 : i32 to index
    %c0_237 = arith.constant 0 : index
    %c0_238 = arith.constant 0 : index
    %401 = vector.load %arg45[%400, %c0_237, %c0_238] : memref<8x8x32xf32, #tpu.memory_space<vmem>>, vector<1x8x32xf32>
    %402 = vector.shape_cast %401 : vector<1x8x32xf32> to vector<8x32xf32>
    %403 = vector.shape_cast %398 : vector<8x32xf32> to vector<1x8x32xf32>
    tpu.vector_store %arg45[%400, %c0_237, %c0_238], %403 {strides = array<i32>} : memref<8x8x32xf32, #tpu.memory_space<vmem>>, vector<1x8x32xf32>,
    %c8_i32 = arith.constant 8 : i32
    %c0_239 = arith.constant 0 : index
    %c0_240 = arith.constant 0 : index
    %404 = vector.load %arg46[%c0_239, %c0_240] : memref<8x32xf32, #tpu.memory_space<vmem>>, vector<8x32xf32>
    %c0_241 = arith.constant 0 : index
    %c0_242 = arith.constant 0 : index
    %c0_243 = arith.constant 0 : index
    %405 = vector.load %arg40[%c0_241, %c0_242, %c0_243] : memref<3x8x32xf32, #tpu.memory_space<vmem>>, vector<1x8x32xf32>
    %406 = vector.shape_cast %405 : vector<1x8x32xf32> to vector<8x32xf32>
    %407 = vector.shape_cast %404 : vector<8x32xf32> to vector<1x8x32xf32>
    tpu.vector_store %arg40[%c0_241, %c0_242, %c0_243], %407 {strides = array<i32>} : memref<3x8x32xf32, #tpu.memory_space<vmem>>, vector<1x8x32xf32>,
    %c0_244 = arith.constant 0 : index
    %c0_245 = arith.constant 0 : index
    %c0_246 = arith.constant 0 : index
    %408 = vector.load %arg45[%c0_244, %c0_245, %c0_246] : memref<8x8x32xf32, #tpu.memory_space<vmem>>, vector<8x8x32xf32>
    %409 = vector.shape_cast %408 : vector<8x8x32xf32> to vector<64x32xf32>
    %c0_247 = arith.constant 0 : index
    %c0_248 = arith.constant 0 : index
    %410 = vector.load %arg17[%c0_247, %c0_248] : memref<32x32xf32, #tpu.memory_space<vmem>>, vector<32x32xf32>
    %cst_249 = arith.constant dense<0.000000e+00> : vector<64x32xf32>
    %411 = tpu.matmul %409, %410, %cst_249 {dimension_numbers = #tpu.dot_dimension_numbers<[1], [0], [0], [1], [0, 0, 1, 1], [], []>} : vector<64x32xf32>, vector<32x32xf32>, vector<64x32xf32> -> vector<64x32xf32>
    %c0_250 = arith.constant 0 : index
    %c0_251 = arith.constant 0 : index
    %412 = vector.load %arg23[%c0_250, %c0_251] : memref<1x32xf32, #tpu.memory_space<vmem>>, vector<1x32xf32>
    %413 = vector.broadcast %412 : vector<1x32xf32> to vector<64x32xf32>
    %414 = arith.addf %411, %413 : vector<64x32xf32>
    %415 = vector.shape_cast %414 : vector<64x32xf32> to vector<8x8x32xf32>
    %c0_252 = arith.constant 0 : index
    %c0_253 = arith.constant 0 : index
    %c0_254 = arith.constant 0 : index
    %416 = vector.load %arg42[%c0_252, %c0_253, %c0_254] : memref<8x8x32xf32, #tpu.memory_space<vmem>>, vector<8x8x32xf32>
    tpu.vector_store %arg42[%c0_252, %c0_253, %c0_254], %415 {strides = array<i32>} : memref<8x8x32xf32, #tpu.memory_space<vmem>>, vector<8x8x32xf32>,
    %c0_255 = arith.constant 0 : index
    %c0_256 = arith.constant 0 : index
    %417 = vector.load %arg18[%c0_255, %c0_256] : memref<32x32xf32, #tpu.memory_space<vmem>>, vector<32x32xf32>
    %cst_257 = arith.constant dense<0.000000e+00> : vector<64x32xf32>
    %418 = tpu.matmul %409, %417, %cst_257 {dimension_numbers = #tpu.dot_dimension_numbers<[1], [0], [0], [1], [0, 0, 1, 1], [], []>} : vector<64x32xf32>, vector<32x32xf32>, vector<64x32xf32> -> vector<64x32xf32>
    %c0_258 = arith.constant 0 : index
    %c0_259 = arith.constant 0 : index
    %419 = vector.load %arg24[%c0_258, %c0_259] : memref<1x32xf32, #tpu.memory_space<vmem>>, vector<1x32xf32>
    %420 = vector.broadcast %419 : vector<1x32xf32> to vector<64x32xf32>
    %421 = arith.addf %418, %420 : vector<64x32xf32>
    %422 = vector.shape_cast %421 : vector<64x32xf32> to vector<8x8x32xf32>
    %c0_260 = arith.constant 0 : index
    %c0_261 = arith.constant 0 : index
    %c0_262 = arith.constant 0 : index
    %423 = vector.load %arg43[%c0_260, %c0_261, %c0_262] : memref<8x8x32xf32, #tpu.memory_space<vmem>>, vector<8x8x32xf32>
    tpu.vector_store %arg43[%c0_260, %c0_261, %c0_262], %422 {strides = array<i32>} : memref<8x8x32xf32, #tpu.memory_space<vmem>>, vector<8x8x32xf32>,
    %c0_263 = arith.constant 0 : index
    %c0_264 = arith.constant 0 : index
    %424 = vector.load %arg19[%c0_263, %c0_264] : memref<32x32xf32, #tpu.memory_space<vmem>>, vector<32x32xf32>
    %cst_265 = arith.constant dense<0.000000e+00> : vector<64x32xf32>
    %425 = tpu.matmul %409, %424, %cst_265 {dimension_numbers = #tpu.dot_dimension_numbers<[1], [0], [0], [1], [0, 0, 1, 1], [], []>} : vector<64x32xf32>, vector<32x32xf32>, vector<64x32xf32> -> vector<64x32xf32>
    %c0_266 = arith.constant 0 : index
    %c0_267 = arith.constant 0 : index
    %426 = vector.load %arg25[%c0_266, %c0_267] : memref<1x32xf32, #tpu.memory_space<vmem>>, vector<1x32xf32>
    %427 = vector.broadcast %426 : vector<1x32xf32> to vector<64x32xf32>
    %428 = arith.addf %425, %427 : vector<64x32xf32>
    %429 = vector.shape_cast %428 : vector<64x32xf32> to vector<8x8x32xf32>
    %c0_268 = arith.constant 0 : index
    %c0_269 = arith.constant 0 : index
    %c0_270 = arith.constant 0 : index
    %430 = vector.load %arg44[%c0_268, %c0_269, %c0_270] : memref<8x8x32xf32, #tpu.memory_space<vmem>>, vector<8x8x32xf32>
    tpu.vector_store %arg44[%c0_268, %c0_269, %c0_270], %429 {strides = array<i32>} : memref<8x8x32xf32, #tpu.memory_space<vmem>>, vector<8x8x32xf32>,
    %c0_271 = arith.constant 0 : index
    %c0_272 = arith.constant 0 : index
    %431 = vector.load %arg20[%c0_271, %c0_272] : memref<32x32xf32, #tpu.memory_space<vmem>>, vector<32x32xf32>
    %c0_273 = arith.constant 0 : index
    %c0_274 = arith.constant 0 : index
    %432 = vector.load %arg21[%c0_273, %c0_274] : memref<32x32xf32, #tpu.memory_space<vmem>>, vector<32x32xf32>
    %c0_275 = arith.constant 0 : index
    %c0_276 = arith.constant 0 : index
    %433 = vector.load %arg22[%c0_275, %c0_276] : memref<32x32xf32, #tpu.memory_space<vmem>>, vector<32x32xf32>
    %c0_277 = arith.constant 0 : index
    %c0_278 = arith.constant 0 : index
    %434 = vector.load %arg26[%c0_277, %c0_278] : memref<1x32xf32, #tpu.memory_space<vmem>>, vector<1x32xf32>
    %435 = vector.shape_cast %434 : vector<1x32xf32> to vector<1x32xf32>
    %436 = vector.broadcast %435 : vector<1x32xf32> to vector<8x32xf32>
    %cst_279 = arith.constant 0.000000e+00 : f32
    %437 = vector.broadcast %cst_279 : f32 to vector<8x32xf32>
    %c0_280 = arith.constant 0 : index
    %c0_281 = arith.constant 0 : index
    %438 = vector.load %arg46[%c0_280, %c0_281] : memref<8x32xf32, #tpu.memory_space<vmem>>, vector<8x32xf32>
    tpu.vector_store %arg46[%c0_280, %c0_281], %437 {strides = array<i32>} : memref<8x32xf32, #tpu.memory_space<vmem>>, vector<8x32xf32>,
    %c0_i32_282 = arith.constant 0 : i32
    %c0_283 = arith.constant 0 : index
    %c0_284 = arith.constant 0 : index
    %439 = vector.load %arg46[%c0_283, %c0_284] : memref<8x32xf32, #tpu.memory_space<vmem>>, vector<8x32xf32>
    %cst_285 = arith.constant dense<0.000000e+00> : vector<8x32xf32>
    %440 = tpu.matmul %439, %431, %cst_285 {dimension_numbers = #tpu.dot_dimension_numbers<[1], [0], [0], [1], [0, 0, 1, 1], [], []>} : vector<8x32xf32>, vector<32x32xf32>, vector<8x32xf32> -> vector<8x32xf32>
    %cst_286 = arith.constant dense<0.000000e+00> : vector<8x32xf32>
    %441 = tpu.matmul %439, %432, %cst_286 {dimension_numbers = #tpu.dot_dimension_numbers<[1], [0], [0], [1], [0, 0, 1, 1], [], []>} : vector<8x32xf32>, vector<32x32xf32>, vector<8x32xf32> -> vector<8x32xf32>
    %cst_287 = arith.constant dense<0.000000e+00> : vector<8x32xf32>
    %442 = tpu.matmul %439, %433, %cst_287 {dimension_numbers = #tpu.dot_dimension_numbers<[1], [0], [0], [1], [0, 0, 1, 1], [], []>} : vector<8x32xf32>, vector<32x32xf32>, vector<8x32xf32> -> vector<8x32xf32>
    %443 = arith.addf %442, %436 : vector<8x32xf32>
    %444 = arith.index_cast %c0_i32_282 : i32 to index
    %c0_288 = arith.constant 0 : index
    %c0_289 = arith.constant 0 : index
    %445 = vector.load %arg42[%444, %c0_288, %c0_289] : memref<8x8x32xf32, #tpu.memory_space<vmem>>, vector<1x8x32xf32>
    %446 = vector.shape_cast %445 : vector<1x8x32xf32> to vector<8x32xf32>
    %447 = arith.addf %446, %440 : vector<8x32xf32>
    %448 = arith.negf %447 : vector<8x32xf32>
    %449 = math.exp %448 : vector<8x32xf32>
    %cst_290 = arith.constant 1.000000e+00 : f32
    %450 = vector.broadcast %cst_290 : f32 to vector<8x32xf32>
    %451 = arith.addf %450, %449 : vector<8x32xf32>
    %452 = arith.divf %450, %451 : vector<8x32xf32>
    %453 = arith.index_cast %c0_i32_282 : i32 to index
    %c0_291 = arith.constant 0 : index
    %c0_292 = arith.constant 0 : index
    %454 = vector.load %arg43[%453, %c0_291, %c0_292] : memref<8x8x32xf32, #tpu.memory_space<vmem>>, vector<1x8x32xf32>
    %455 = vector.shape_cast %454 : vector<1x8x32xf32> to vector<8x32xf32>
    %456 = arith.addf %455, %441 : vector<8x32xf32>
    %457 = arith.negf %456 : vector<8x32xf32>
    %458 = math.exp %457 : vector<8x32xf32>
    %cst_293 = arith.constant 1.000000e+00 : f32
    %459 = vector.broadcast %cst_293 : f32 to vector<8x32xf32>
    %460 = arith.addf %459, %458 : vector<8x32xf32>
    %461 = arith.divf %459, %460 : vector<8x32xf32>
    %462 = arith.index_cast %c0_i32_282 : i32 to index
    %c0_294 = arith.constant 0 : index
    %c0_295 = arith.constant 0 : index
    %463 = vector.load %arg44[%462, %c0_294, %c0_295] : memref<8x8x32xf32, #tpu.memory_space<vmem>>, vector<1x8x32xf32>
    %464 = vector.shape_cast %463 : vector<1x8x32xf32> to vector<8x32xf32>
    %465 = arith.mulf %452, %443 : vector<8x32xf32>
    %466 = arith.addf %464, %465 : vector<8x32xf32>
    %467 = math.tanh %466 : vector<8x32xf32>
    %cst_296 = arith.constant 1.000000e+00 : f32
    %468 = vector.broadcast %cst_296 : f32 to vector<8x32xf32>
    %469 = arith.subf %468, %461 : vector<8x32xf32>
    %470 = arith.mulf %469, %467 : vector<8x32xf32>
    %471 = arith.mulf %461, %439 : vector<8x32xf32>
    %472 = arith.addf %470, %471 : vector<8x32xf32>
    %c0_297 = arith.constant 0 : index
    %c0_298 = arith.constant 0 : index
    %473 = vector.load %arg46[%c0_297, %c0_298] : memref<8x32xf32, #tpu.memory_space<vmem>>, vector<8x32xf32>
    tpu.vector_store %arg46[%c0_297, %c0_298], %472 {strides = array<i32>} : memref<8x32xf32, #tpu.memory_space<vmem>>, vector<8x32xf32>,
    %474 = arith.index_cast %c0_i32_282 : i32 to index
    %c0_299 = arith.constant 0 : index
    %c0_300 = arith.constant 0 : index
    %475 = vector.load %arg45[%474, %c0_299, %c0_300] : memref<8x8x32xf32, #tpu.memory_space<vmem>>, vector<1x8x32xf32>
    %476 = vector.shape_cast %475 : vector<1x8x32xf32> to vector<8x32xf32>
    %477 = vector.shape_cast %472 : vector<8x32xf32> to vector<1x8x32xf32>
    tpu.vector_store %arg45[%474, %c0_299, %c0_300], %477 {strides = array<i32>} : memref<8x8x32xf32, #tpu.memory_space<vmem>>, vector<1x8x32xf32>,
    %c1_i32_301 = arith.constant 1 : i32
    %c0_302 = arith.constant 0 : index
    %c0_303 = arith.constant 0 : index
    %478 = vector.load %arg46[%c0_302, %c0_303] : memref<8x32xf32, #tpu.memory_space<vmem>>, vector<8x32xf32>
    %cst_304 = arith.constant dense<0.000000e+00> : vector<8x32xf32>
    %479 = tpu.matmul %478, %431, %cst_304 {dimension_numbers = #tpu.dot_dimension_numbers<[1], [0], [0], [1], [0, 0, 1, 1], [], []>} : vector<8x32xf32>, vector<32x32xf32>, vector<8x32xf32> -> vector<8x32xf32>
    %cst_305 = arith.constant dense<0.000000e+00> : vector<8x32xf32>
    %480 = tpu.matmul %478, %432, %cst_305 {dimension_numbers = #tpu.dot_dimension_numbers<[1], [0], [0], [1], [0, 0, 1, 1], [], []>} : vector<8x32xf32>, vector<32x32xf32>, vector<8x32xf32> -> vector<8x32xf32>
    %cst_306 = arith.constant dense<0.000000e+00> : vector<8x32xf32>
    %481 = tpu.matmul %478, %433, %cst_306 {dimension_numbers = #tpu.dot_dimension_numbers<[1], [0], [0], [1], [0, 0, 1, 1], [], []>} : vector<8x32xf32>, vector<32x32xf32>, vector<8x32xf32> -> vector<8x32xf32>
    %482 = arith.addf %481, %436 : vector<8x32xf32>
    %483 = arith.index_cast %c1_i32_301 : i32 to index
    %c0_307 = arith.constant 0 : index
    %c0_308 = arith.constant 0 : index
    %484 = vector.load %arg42[%483, %c0_307, %c0_308] : memref<8x8x32xf32, #tpu.memory_space<vmem>>, vector<1x8x32xf32>
    %485 = vector.shape_cast %484 : vector<1x8x32xf32> to vector<8x32xf32>
    %486 = arith.addf %485, %479 : vector<8x32xf32>
    %487 = arith.negf %486 : vector<8x32xf32>
    %488 = math.exp %487 : vector<8x32xf32>
    %cst_309 = arith.constant 1.000000e+00 : f32
    %489 = vector.broadcast %cst_309 : f32 to vector<8x32xf32>
    %490 = arith.addf %489, %488 : vector<8x32xf32>
    %491 = arith.divf %489, %490 : vector<8x32xf32>
    %492 = arith.index_cast %c1_i32_301 : i32 to index
    %c0_310 = arith.constant 0 : index
    %c0_311 = arith.constant 0 : index
    %493 = vector.load %arg43[%492, %c0_310, %c0_311] : memref<8x8x32xf32, #tpu.memory_space<vmem>>, vector<1x8x32xf32>
    %494 = vector.shape_cast %493 : vector<1x8x32xf32> to vector<8x32xf32>
    %495 = arith.addf %494, %480 : vector<8x32xf32>
    %496 = arith.negf %495 : vector<8x32xf32>
    %497 = math.exp %496 : vector<8x32xf32>
    %cst_312 = arith.constant 1.000000e+00 : f32
    %498 = vector.broadcast %cst_312 : f32 to vector<8x32xf32>
    %499 = arith.addf %498, %497 : vector<8x32xf32>
    %500 = arith.divf %498, %499 : vector<8x32xf32>
    %501 = arith.index_cast %c1_i32_301 : i32 to index
    %c0_313 = arith.constant 0 : index
    %c0_314 = arith.constant 0 : index
    %502 = vector.load %arg44[%501, %c0_313, %c0_314] : memref<8x8x32xf32, #tpu.memory_space<vmem>>, vector<1x8x32xf32>
    %503 = vector.shape_cast %502 : vector<1x8x32xf32> to vector<8x32xf32>
    %504 = arith.mulf %491, %482 : vector<8x32xf32>
    %505 = arith.addf %503, %504 : vector<8x32xf32>
    %506 = math.tanh %505 : vector<8x32xf32>
    %cst_315 = arith.constant 1.000000e+00 : f32
    %507 = vector.broadcast %cst_315 : f32 to vector<8x32xf32>
    %508 = arith.subf %507, %500 : vector<8x32xf32>
    %509 = arith.mulf %508, %506 : vector<8x32xf32>
    %510 = arith.mulf %500, %478 : vector<8x32xf32>
    %511 = arith.addf %509, %510 : vector<8x32xf32>
    %c0_316 = arith.constant 0 : index
    %c0_317 = arith.constant 0 : index
    %512 = vector.load %arg46[%c0_316, %c0_317] : memref<8x32xf32, #tpu.memory_space<vmem>>, vector<8x32xf32>
    tpu.vector_store %arg46[%c0_316, %c0_317], %511 {strides = array<i32>} : memref<8x32xf32, #tpu.memory_space<vmem>>, vector<8x32xf32>,
    %513 = arith.index_cast %c1_i32_301 : i32 to index
    %c0_318 = arith.constant 0 : index
    %c0_319 = arith.constant 0 : index
    %514 = vector.load %arg45[%513, %c0_318, %c0_319] : memref<8x8x32xf32, #tpu.memory_space<vmem>>, vector<1x8x32xf32>
    %515 = vector.shape_cast %514 : vector<1x8x32xf32> to vector<8x32xf32>
    %516 = vector.shape_cast %511 : vector<8x32xf32> to vector<1x8x32xf32>
    tpu.vector_store %arg45[%513, %c0_318, %c0_319], %516 {strides = array<i32>} : memref<8x8x32xf32, #tpu.memory_space<vmem>>, vector<1x8x32xf32>,
    %c2_i32_320 = arith.constant 2 : i32
    %c0_321 = arith.constant 0 : index
    %c0_322 = arith.constant 0 : index
    %517 = vector.load %arg46[%c0_321, %c0_322] : memref<8x32xf32, #tpu.memory_space<vmem>>, vector<8x32xf32>
    %cst_323 = arith.constant dense<0.000000e+00> : vector<8x32xf32>
    %518 = tpu.matmul %517, %431, %cst_323 {dimension_numbers = #tpu.dot_dimension_numbers<[1], [0], [0], [1], [0, 0, 1, 1], [], []>} : vector<8x32xf32>, vector<32x32xf32>, vector<8x32xf32> -> vector<8x32xf32>
    %cst_324 = arith.constant dense<0.000000e+00> : vector<8x32xf32>
    %519 = tpu.matmul %517, %432, %cst_324 {dimension_numbers = #tpu.dot_dimension_numbers<[1], [0], [0], [1], [0, 0, 1, 1], [], []>} : vector<8x32xf32>, vector<32x32xf32>, vector<8x32xf32> -> vector<8x32xf32>
    %cst_325 = arith.constant dense<0.000000e+00> : vector<8x32xf32>
    %520 = tpu.matmul %517, %433, %cst_325 {dimension_numbers = #tpu.dot_dimension_numbers<[1], [0], [0], [1], [0, 0, 1, 1], [], []>} : vector<8x32xf32>, vector<32x32xf32>, vector<8x32xf32> -> vector<8x32xf32>
    %521 = arith.addf %520, %436 : vector<8x32xf32>
    %522 = arith.index_cast %c2_i32_320 : i32 to index
    %c0_326 = arith.constant 0 : index
    %c0_327 = arith.constant 0 : index
    %523 = vector.load %arg42[%522, %c0_326, %c0_327] : memref<8x8x32xf32, #tpu.memory_space<vmem>>, vector<1x8x32xf32>
    %524 = vector.shape_cast %523 : vector<1x8x32xf32> to vector<8x32xf32>
    %525 = arith.addf %524, %518 : vector<8x32xf32>
    %526 = arith.negf %525 : vector<8x32xf32>
    %527 = math.exp %526 : vector<8x32xf32>
    %cst_328 = arith.constant 1.000000e+00 : f32
    %528 = vector.broadcast %cst_328 : f32 to vector<8x32xf32>
    %529 = arith.addf %528, %527 : vector<8x32xf32>
    %530 = arith.divf %528, %529 : vector<8x32xf32>
    %531 = arith.index_cast %c2_i32_320 : i32 to index
    %c0_329 = arith.constant 0 : index
    %c0_330 = arith.constant 0 : index
    %532 = vector.load %arg43[%531, %c0_329, %c0_330] : memref<8x8x32xf32, #tpu.memory_space<vmem>>, vector<1x8x32xf32>
    %533 = vector.shape_cast %532 : vector<1x8x32xf32> to vector<8x32xf32>
    %534 = arith.addf %533, %519 : vector<8x32xf32>
    %535 = arith.negf %534 : vector<8x32xf32>
    %536 = math.exp %535 : vector<8x32xf32>
    %cst_331 = arith.constant 1.000000e+00 : f32
    %537 = vector.broadcast %cst_331 : f32 to vector<8x32xf32>
    %538 = arith.addf %537, %536 : vector<8x32xf32>
    %539 = arith.divf %537, %538 : vector<8x32xf32>
    %540 = arith.index_cast %c2_i32_320 : i32 to index
    %c0_332 = arith.constant 0 : index
    %c0_333 = arith.constant 0 : index
    %541 = vector.load %arg44[%540, %c0_332, %c0_333] : memref<8x8x32xf32, #tpu.memory_space<vmem>>, vector<1x8x32xf32>
    %542 = vector.shape_cast %541 : vector<1x8x32xf32> to vector<8x32xf32>
    %543 = arith.mulf %530, %521 : vector<8x32xf32>
    %544 = arith.addf %542, %543 : vector<8x32xf32>
    %545 = math.tanh %544 : vector<8x32xf32>
    %cst_334 = arith.constant 1.000000e+00 : f32
    %546 = vector.broadcast %cst_334 : f32 to vector<8x32xf32>
    %547 = arith.subf %546, %539 : vector<8x32xf32>
    %548 = arith.mulf %547, %545 : vector<8x32xf32>
    %549 = arith.mulf %539, %517 : vector<8x32xf32>
    %550 = arith.addf %548, %549 : vector<8x32xf32>
    %c0_335 = arith.constant 0 : index
    %c0_336 = arith.constant 0 : index
    %551 = vector.load %arg46[%c0_335, %c0_336] : memref<8x32xf32, #tpu.memory_space<vmem>>, vector<8x32xf32>
    tpu.vector_store %arg46[%c0_335, %c0_336], %550 {strides = array<i32>} : memref<8x32xf32, #tpu.memory_space<vmem>>, vector<8x32xf32>,
    %552 = arith.index_cast %c2_i32_320 : i32 to index
    %c0_337 = arith.constant 0 : index
    %c0_338 = arith.constant 0 : index
    %553 = vector.load %arg45[%552, %c0_337, %c0_338] : memref<8x8x32xf32, #tpu.memory_space<vmem>>, vector<1x8x32xf32>
    %554 = vector.shape_cast %553 : vector<1x8x32xf32> to vector<8x32xf32>
    %555 = vector.shape_cast %550 : vector<8x32xf32> to vector<1x8x32xf32>
    tpu.vector_store %arg45[%552, %c0_337, %c0_338], %555 {strides = array<i32>} : memref<8x8x32xf32, #tpu.memory_space<vmem>>, vector<1x8x32xf32>,
    %c3_i32_339 = arith.constant 3 : i32
    %c0_340 = arith.constant 0 : index
    %c0_341 = arith.constant 0 : index
    %556 = vector.load %arg46[%c0_340, %c0_341] : memref<8x32xf32, #tpu.memory_space<vmem>>, vector<8x32xf32>
    %cst_342 = arith.constant dense<0.000000e+00> : vector<8x32xf32>
    %557 = tpu.matmul %556, %431, %cst_342 {dimension_numbers = #tpu.dot_dimension_numbers<[1], [0], [0], [1], [0, 0, 1, 1], [], []>} : vector<8x32xf32>, vector<32x32xf32>, vector<8x32xf32> -> vector<8x32xf32>
    %cst_343 = arith.constant dense<0.000000e+00> : vector<8x32xf32>
    %558 = tpu.matmul %556, %432, %cst_343 {dimension_numbers = #tpu.dot_dimension_numbers<[1], [0], [0], [1], [0, 0, 1, 1], [], []>} : vector<8x32xf32>, vector<32x32xf32>, vector<8x32xf32> -> vector<8x32xf32>
    %cst_344 = arith.constant dense<0.000000e+00> : vector<8x32xf32>
    %559 = tpu.matmul %556, %433, %cst_344 {dimension_numbers = #tpu.dot_dimension_numbers<[1], [0], [0], [1], [0, 0, 1, 1], [], []>} : vector<8x32xf32>, vector<32x32xf32>, vector<8x32xf32> -> vector<8x32xf32>
    %560 = arith.addf %559, %436 : vector<8x32xf32>
    %561 = arith.index_cast %c3_i32_339 : i32 to index
    %c0_345 = arith.constant 0 : index
    %c0_346 = arith.constant 0 : index
    %562 = vector.load %arg42[%561, %c0_345, %c0_346] : memref<8x8x32xf32, #tpu.memory_space<vmem>>, vector<1x8x32xf32>
    %563 = vector.shape_cast %562 : vector<1x8x32xf32> to vector<8x32xf32>
    %564 = arith.addf %563, %557 : vector<8x32xf32>
    %565 = arith.negf %564 : vector<8x32xf32>
    %566 = math.exp %565 : vector<8x32xf32>
    %cst_347 = arith.constant 1.000000e+00 : f32
    %567 = vector.broadcast %cst_347 : f32 to vector<8x32xf32>
    %568 = arith.addf %567, %566 : vector<8x32xf32>
    %569 = arith.divf %567, %568 : vector<8x32xf32>
    %570 = arith.index_cast %c3_i32_339 : i32 to index
    %c0_348 = arith.constant 0 : index
    %c0_349 = arith.constant 0 : index
    %571 = vector.load %arg43[%570, %c0_348, %c0_349] : memref<8x8x32xf32, #tpu.memory_space<vmem>>, vector<1x8x32xf32>
    %572 = vector.shape_cast %571 : vector<1x8x32xf32> to vector<8x32xf32>
    %573 = arith.addf %572, %558 : vector<8x32xf32>
    %574 = arith.negf %573 : vector<8x32xf32>
    %575 = math.exp %574 : vector<8x32xf32>
    %cst_350 = arith.constant 1.000000e+00 : f32
    %576 = vector.broadcast %cst_350 : f32 to vector<8x32xf32>
    %577 = arith.addf %576, %575 : vector<8x32xf32>
    %578 = arith.divf %576, %577 : vector<8x32xf32>
    %579 = arith.index_cast %c3_i32_339 : i32 to index
    %c0_351 = arith.constant 0 : index
    %c0_352 = arith.constant 0 : index
    %580 = vector.load %arg44[%579, %c0_351, %c0_352] : memref<8x8x32xf32, #tpu.memory_space<vmem>>, vector<1x8x32xf32>
    %581 = vector.shape_cast %580 : vector<1x8x32xf32> to vector<8x32xf32>
    %582 = arith.mulf %569, %560 : vector<8x32xf32>
    %583 = arith.addf %581, %582 : vector<8x32xf32>
    %584 = math.tanh %583 : vector<8x32xf32>
    %cst_353 = arith.constant 1.000000e+00 : f32
    %585 = vector.broadcast %cst_353 : f32 to vector<8x32xf32>
    %586 = arith.subf %585, %578 : vector<8x32xf32>
    %587 = arith.mulf %586, %584 : vector<8x32xf32>
    %588 = arith.mulf %578, %556 : vector<8x32xf32>
    %589 = arith.addf %587, %588 : vector<8x32xf32>
    %c0_354 = arith.constant 0 : index
    %c0_355 = arith.constant 0 : index
    %590 = vector.load %arg46[%c0_354, %c0_355] : memref<8x32xf32, #tpu.memory_space<vmem>>, vector<8x32xf32>
    tpu.vector_store %arg46[%c0_354, %c0_355], %589 {strides = array<i32>} : memref<8x32xf32, #tpu.memory_space<vmem>>, vector<8x32xf32>,
    %591 = arith.index_cast %c3_i32_339 : i32 to index
    %c0_356 = arith.constant 0 : index
    %c0_357 = arith.constant 0 : index
    %592 = vector.load %arg45[%591, %c0_356, %c0_357] : memref<8x8x32xf32, #tpu.memory_space<vmem>>, vector<1x8x32xf32>
    %593 = vector.shape_cast %592 : vector<1x8x32xf32> to vector<8x32xf32>
    %594 = vector.shape_cast %589 : vector<8x32xf32> to vector<1x8x32xf32>
    tpu.vector_store %arg45[%591, %c0_356, %c0_357], %594 {strides = array<i32>} : memref<8x8x32xf32, #tpu.memory_space<vmem>>, vector<1x8x32xf32>,
    %c4_i32_358 = arith.constant 4 : i32
    %c0_359 = arith.constant 0 : index
    %c0_360 = arith.constant 0 : index
    %595 = vector.load %arg46[%c0_359, %c0_360] : memref<8x32xf32, #tpu.memory_space<vmem>>, vector<8x32xf32>
    %cst_361 = arith.constant dense<0.000000e+00> : vector<8x32xf32>
    %596 = tpu.matmul %595, %431, %cst_361 {dimension_numbers = #tpu.dot_dimension_numbers<[1], [0], [0], [1], [0, 0, 1, 1], [], []>} : vector<8x32xf32>, vector<32x32xf32>, vector<8x32xf32> -> vector<8x32xf32>
    %cst_362 = arith.constant dense<0.000000e+00> : vector<8x32xf32>
    %597 = tpu.matmul %595, %432, %cst_362 {dimension_numbers = #tpu.dot_dimension_numbers<[1], [0], [0], [1], [0, 0, 1, 1], [], []>} : vector<8x32xf32>, vector<32x32xf32>, vector<8x32xf32> -> vector<8x32xf32>
    %cst_363 = arith.constant dense<0.000000e+00> : vector<8x32xf32>
    %598 = tpu.matmul %595, %433, %cst_363 {dimension_numbers = #tpu.dot_dimension_numbers<[1], [0], [0], [1], [0, 0, 1, 1], [], []>} : vector<8x32xf32>, vector<32x32xf32>, vector<8x32xf32> -> vector<8x32xf32>
    %599 = arith.addf %598, %436 : vector<8x32xf32>
    %600 = arith.index_cast %c4_i32_358 : i32 to index
    %c0_364 = arith.constant 0 : index
    %c0_365 = arith.constant 0 : index
    %601 = vector.load %arg42[%600, %c0_364, %c0_365] : memref<8x8x32xf32, #tpu.memory_space<vmem>>, vector<1x8x32xf32>
    %602 = vector.shape_cast %601 : vector<1x8x32xf32> to vector<8x32xf32>
    %603 = arith.addf %602, %596 : vector<8x32xf32>
    %604 = arith.negf %603 : vector<8x32xf32>
    %605 = math.exp %604 : vector<8x32xf32>
    %cst_366 = arith.constant 1.000000e+00 : f32
    %606 = vector.broadcast %cst_366 : f32 to vector<8x32xf32>
    %607 = arith.addf %606, %605 : vector<8x32xf32>
    %608 = arith.divf %606, %607 : vector<8x32xf32>
    %609 = arith.index_cast %c4_i32_358 : i32 to index
    %c0_367 = arith.constant 0 : index
    %c0_368 = arith.constant 0 : index
    %610 = vector.load %arg43[%609, %c0_367, %c0_368] : memref<8x8x32xf32, #tpu.memory_space<vmem>>, vector<1x8x32xf32>
    %611 = vector.shape_cast %610 : vector<1x8x32xf32> to vector<8x32xf32>
    %612 = arith.addf %611, %597 : vector<8x32xf32>
    %613 = arith.negf %612 : vector<8x32xf32>
    %614 = math.exp %613 : vector<8x32xf32>
    %cst_369 = arith.constant 1.000000e+00 : f32
    %615 = vector.broadcast %cst_369 : f32 to vector<8x32xf32>
    %616 = arith.addf %615, %614 : vector<8x32xf32>
    %617 = arith.divf %615, %616 : vector<8x32xf32>
    %618 = arith.index_cast %c4_i32_358 : i32 to index
    %c0_370 = arith.constant 0 : index
    %c0_371 = arith.constant 0 : index
    %619 = vector.load %arg44[%618, %c0_370, %c0_371] : memref<8x8x32xf32, #tpu.memory_space<vmem>>, vector<1x8x32xf32>
    %620 = vector.shape_cast %619 : vector<1x8x32xf32> to vector<8x32xf32>
    %621 = arith.mulf %608, %599 : vector<8x32xf32>
    %622 = arith.addf %620, %621 : vector<8x32xf32>
    %623 = math.tanh %622 : vector<8x32xf32>
    %cst_372 = arith.constant 1.000000e+00 : f32
    %624 = vector.broadcast %cst_372 : f32 to vector<8x32xf32>
    %625 = arith.subf %624, %617 : vector<8x32xf32>
    %626 = arith.mulf %625, %623 : vector<8x32xf32>
    %627 = arith.mulf %617, %595 : vector<8x32xf32>
    %628 = arith.addf %626, %627 : vector<8x32xf32>
    %c0_373 = arith.constant 0 : index
    %c0_374 = arith.constant 0 : index
    %629 = vector.load %arg46[%c0_373, %c0_374] : memref<8x32xf32, #tpu.memory_space<vmem>>, vector<8x32xf32>
    tpu.vector_store %arg46[%c0_373, %c0_374], %628 {strides = array<i32>} : memref<8x32xf32, #tpu.memory_space<vmem>>, vector<8x32xf32>,
    %630 = arith.index_cast %c4_i32_358 : i32 to index
    %c0_375 = arith.constant 0 : index
    %c0_376 = arith.constant 0 : index
    %631 = vector.load %arg45[%630, %c0_375, %c0_376] : memref<8x8x32xf32, #tpu.memory_space<vmem>>, vector<1x8x32xf32>
    %632 = vector.shape_cast %631 : vector<1x8x32xf32> to vector<8x32xf32>
    %633 = vector.shape_cast %628 : vector<8x32xf32> to vector<1x8x32xf32>
    tpu.vector_store %arg45[%630, %c0_375, %c0_376], %633 {strides = array<i32>} : memref<8x8x32xf32, #tpu.memory_space<vmem>>, vector<1x8x32xf32>,
    %c5_i32_377 = arith.constant 5 : i32
    %c0_378 = arith.constant 0 : index
    %c0_379 = arith.constant 0 : index
    %634 = vector.load %arg46[%c0_378, %c0_379] : memref<8x32xf32, #tpu.memory_space<vmem>>, vector<8x32xf32>
    %cst_380 = arith.constant dense<0.000000e+00> : vector<8x32xf32>
    %635 = tpu.matmul %634, %431, %cst_380 {dimension_numbers = #tpu.dot_dimension_numbers<[1], [0], [0], [1], [0, 0, 1, 1], [], []>} : vector<8x32xf32>, vector<32x32xf32>, vector<8x32xf32> -> vector<8x32xf32>
    %cst_381 = arith.constant dense<0.000000e+00> : vector<8x32xf32>
    %636 = tpu.matmul %634, %432, %cst_381 {dimension_numbers = #tpu.dot_dimension_numbers<[1], [0], [0], [1], [0, 0, 1, 1], [], []>} : vector<8x32xf32>, vector<32x32xf32>, vector<8x32xf32> -> vector<8x32xf32>
    %cst_382 = arith.constant dense<0.000000e+00> : vector<8x32xf32>
    %637 = tpu.matmul %634, %433, %cst_382 {dimension_numbers = #tpu.dot_dimension_numbers<[1], [0], [0], [1], [0, 0, 1, 1], [], []>} : vector<8x32xf32>, vector<32x32xf32>, vector<8x32xf32> -> vector<8x32xf32>
    %638 = arith.addf %637, %436 : vector<8x32xf32>
    %639 = arith.index_cast %c5_i32_377 : i32 to index
    %c0_383 = arith.constant 0 : index
    %c0_384 = arith.constant 0 : index
    %640 = vector.load %arg42[%639, %c0_383, %c0_384] : memref<8x8x32xf32, #tpu.memory_space<vmem>>, vector<1x8x32xf32>
    %641 = vector.shape_cast %640 : vector<1x8x32xf32> to vector<8x32xf32>
    %642 = arith.addf %641, %635 : vector<8x32xf32>
    %643 = arith.negf %642 : vector<8x32xf32>
    %644 = math.exp %643 : vector<8x32xf32>
    %cst_385 = arith.constant 1.000000e+00 : f32
    %645 = vector.broadcast %cst_385 : f32 to vector<8x32xf32>
    %646 = arith.addf %645, %644 : vector<8x32xf32>
    %647 = arith.divf %645, %646 : vector<8x32xf32>
    %648 = arith.index_cast %c5_i32_377 : i32 to index
    %c0_386 = arith.constant 0 : index
    %c0_387 = arith.constant 0 : index
    %649 = vector.load %arg43[%648, %c0_386, %c0_387] : memref<8x8x32xf32, #tpu.memory_space<vmem>>, vector<1x8x32xf32>
    %650 = vector.shape_cast %649 : vector<1x8x32xf32> to vector<8x32xf32>
    %651 = arith.addf %650, %636 : vector<8x32xf32>
    %652 = arith.negf %651 : vector<8x32xf32>
    %653 = math.exp %652 : vector<8x32xf32>
    %cst_388 = arith.constant 1.000000e+00 : f32
    %654 = vector.broadcast %cst_388 : f32 to vector<8x32xf32>
    %655 = arith.addf %654, %653 : vector<8x32xf32>
    %656 = arith.divf %654, %655 : vector<8x32xf32>
    %657 = arith.index_cast %c5_i32_377 : i32 to index
    %c0_389 = arith.constant 0 : index
    %c0_390 = arith.constant 0 : index
    %658 = vector.load %arg44[%657, %c0_389, %c0_390] : memref<8x8x32xf32, #tpu.memory_space<vmem>>, vector<1x8x32xf32>
    %659 = vector.shape_cast %658 : vector<1x8x32xf32> to vector<8x32xf32>
    %660 = arith.mulf %647, %638 : vector<8x32xf32>
    %661 = arith.addf %659, %660 : vector<8x32xf32>
    %662 = math.tanh %661 : vector<8x32xf32>
    %cst_391 = arith.constant 1.000000e+00 : f32
    %663 = vector.broadcast %cst_391 : f32 to vector<8x32xf32>
    %664 = arith.subf %663, %656 : vector<8x32xf32>
    %665 = arith.mulf %664, %662 : vector<8x32xf32>
    %666 = arith.mulf %656, %634 : vector<8x32xf32>
    %667 = arith.addf %665, %666 : vector<8x32xf32>
    %c0_392 = arith.constant 0 : index
    %c0_393 = arith.constant 0 : index
    %668 = vector.load %arg46[%c0_392, %c0_393] : memref<8x32xf32, #tpu.memory_space<vmem>>, vector<8x32xf32>
    tpu.vector_store %arg46[%c0_392, %c0_393], %667 {strides = array<i32>} : memref<8x32xf32, #tpu.memory_space<vmem>>, vector<8x32xf32>,
    %669 = arith.index_cast %c5_i32_377 : i32 to index
    %c0_394 = arith.constant 0 : index
    %c0_395 = arith.constant 0 : index
    %670 = vector.load %arg45[%669, %c0_394, %c0_395] : memref<8x8x32xf32, #tpu.memory_space<vmem>>, vector<1x8x32xf32>
    %671 = vector.shape_cast %670 : vector<1x8x32xf32> to vector<8x32xf32>
    %672 = vector.shape_cast %667 : vector<8x32xf32> to vector<1x8x32xf32>
    tpu.vector_store %arg45[%669, %c0_394, %c0_395], %672 {strides = array<i32>} : memref<8x8x32xf32, #tpu.memory_space<vmem>>, vector<1x8x32xf32>,
    %c6_i32_396 = arith.constant 6 : i32
    %c0_397 = arith.constant 0 : index
    %c0_398 = arith.constant 0 : index
    %673 = vector.load %arg46[%c0_397, %c0_398] : memref<8x32xf32, #tpu.memory_space<vmem>>, vector<8x32xf32>
    %cst_399 = arith.constant dense<0.000000e+00> : vector<8x32xf32>
    %674 = tpu.matmul %673, %431, %cst_399 {dimension_numbers = #tpu.dot_dimension_numbers<[1], [0], [0], [1], [0, 0, 1, 1], [], []>} : vector<8x32xf32>, vector<32x32xf32>, vector<8x32xf32> -> vector<8x32xf32>
    %cst_400 = arith.constant dense<0.000000e+00> : vector<8x32xf32>
    %675 = tpu.matmul %673, %432, %cst_400 {dimension_numbers = #tpu.dot_dimension_numbers<[1], [0], [0], [1], [0, 0, 1, 1], [], []>} : vector<8x32xf32>, vector<32x32xf32>, vector<8x32xf32> -> vector<8x32xf32>
    %cst_401 = arith.constant dense<0.000000e+00> : vector<8x32xf32>
    %676 = tpu.matmul %673, %433, %cst_401 {dimension_numbers = #tpu.dot_dimension_numbers<[1], [0], [0], [1], [0, 0, 1, 1], [], []>} : vector<8x32xf32>, vector<32x32xf32>, vector<8x32xf32> -> vector<8x32xf32>
    %677 = arith.addf %676, %436 : vector<8x32xf32>
    %678 = arith.index_cast %c6_i32_396 : i32 to index
    %c0_402 = arith.constant 0 : index
    %c0_403 = arith.constant 0 : index
    %679 = vector.load %arg42[%678, %c0_402, %c0_403] : memref<8x8x32xf32, #tpu.memory_space<vmem>>, vector<1x8x32xf32>
    %680 = vector.shape_cast %679 : vector<1x8x32xf32> to vector<8x32xf32>
    %681 = arith.addf %680, %674 : vector<8x32xf32>
    %682 = arith.negf %681 : vector<8x32xf32>
    %683 = math.exp %682 : vector<8x32xf32>
    %cst_404 = arith.constant 1.000000e+00 : f32
    %684 = vector.broadcast %cst_404 : f32 to vector<8x32xf32>
    %685 = arith.addf %684, %683 : vector<8x32xf32>
    %686 = arith.divf %684, %685 : vector<8x32xf32>
    %687 = arith.index_cast %c6_i32_396 : i32 to index
    %c0_405 = arith.constant 0 : index
    %c0_406 = arith.constant 0 : index
    %688 = vector.load %arg43[%687, %c0_405, %c0_406] : memref<8x8x32xf32, #tpu.memory_space<vmem>>, vector<1x8x32xf32>
    %689 = vector.shape_cast %688 : vector<1x8x32xf32> to vector<8x32xf32>
    %690 = arith.addf %689, %675 : vector<8x32xf32>
    %691 = arith.negf %690 : vector<8x32xf32>
    %692 = math.exp %691 : vector<8x32xf32>
    %cst_407 = arith.constant 1.000000e+00 : f32
    %693 = vector.broadcast %cst_407 : f32 to vector<8x32xf32>
    %694 = arith.addf %693, %692 : vector<8x32xf32>
    %695 = arith.divf %693, %694 : vector<8x32xf32>
    %696 = arith.index_cast %c6_i32_396 : i32 to index
    %c0_408 = arith.constant 0 : index
    %c0_409 = arith.constant 0 : index
    %697 = vector.load %arg44[%696, %c0_408, %c0_409] : memref<8x8x32xf32, #tpu.memory_space<vmem>>, vector<1x8x32xf32>
    %698 = vector.shape_cast %697 : vector<1x8x32xf32> to vector<8x32xf32>
    %699 = arith.mulf %686, %677 : vector<8x32xf32>
    %700 = arith.addf %698, %699 : vector<8x32xf32>
    %701 = math.tanh %700 : vector<8x32xf32>
    %cst_410 = arith.constant 1.000000e+00 : f32
    %702 = vector.broadcast %cst_410 : f32 to vector<8x32xf32>
    %703 = arith.subf %702, %695 : vector<8x32xf32>
    %704 = arith.mulf %703, %701 : vector<8x32xf32>
    %705 = arith.mulf %695, %673 : vector<8x32xf32>
    %706 = arith.addf %704, %705 : vector<8x32xf32>
    %c0_411 = arith.constant 0 : index
    %c0_412 = arith.constant 0 : index
    %707 = vector.load %arg46[%c0_411, %c0_412] : memref<8x32xf32, #tpu.memory_space<vmem>>, vector<8x32xf32>
    tpu.vector_store %arg46[%c0_411, %c0_412], %706 {strides = array<i32>} : memref<8x32xf32, #tpu.memory_space<vmem>>, vector<8x32xf32>,
    %708 = arith.index_cast %c6_i32_396 : i32 to index
    %c0_413 = arith.constant 0 : index
    %c0_414 = arith.constant 0 : index
    %709 = vector.load %arg45[%708, %c0_413, %c0_414] : memref<8x8x32xf32, #tpu.memory_space<vmem>>, vector<1x8x32xf32>
    %710 = vector.shape_cast %709 : vector<1x8x32xf32> to vector<8x32xf32>
    %711 = vector.shape_cast %706 : vector<8x32xf32> to vector<1x8x32xf32>
    tpu.vector_store %arg45[%708, %c0_413, %c0_414], %711 {strides = array<i32>} : memref<8x8x32xf32, #tpu.memory_space<vmem>>, vector<1x8x32xf32>,
    %c7_i32_415 = arith.constant 7 : i32
    %c0_416 = arith.constant 0 : index
    %c0_417 = arith.constant 0 : index
    %712 = vector.load %arg46[%c0_416, %c0_417] : memref<8x32xf32, #tpu.memory_space<vmem>>, vector<8x32xf32>
    %cst_418 = arith.constant dense<0.000000e+00> : vector<8x32xf32>
    %713 = tpu.matmul %712, %431, %cst_418 {dimension_numbers = #tpu.dot_dimension_numbers<[1], [0], [0], [1], [0, 0, 1, 1], [], []>} : vector<8x32xf32>, vector<32x32xf32>, vector<8x32xf32> -> vector<8x32xf32>
    %cst_419 = arith.constant dense<0.000000e+00> : vector<8x32xf32>
    %714 = tpu.matmul %712, %432, %cst_419 {dimension_numbers = #tpu.dot_dimension_numbers<[1], [0], [0], [1], [0, 0, 1, 1], [], []>} : vector<8x32xf32>, vector<32x32xf32>, vector<8x32xf32> -> vector<8x32xf32>
    %cst_420 = arith.constant dense<0.000000e+00> : vector<8x32xf32>
    %715 = tpu.matmul %712, %433, %cst_420 {dimension_numbers = #tpu.dot_dimension_numbers<[1], [0], [0], [1], [0, 0, 1, 1], [], []>} : vector<8x32xf32>, vector<32x32xf32>, vector<8x32xf32> -> vector<8x32xf32>
    %716 = arith.addf %715, %436 : vector<8x32xf32>
    %717 = arith.index_cast %c7_i32_415 : i32 to index
    %c0_421 = arith.constant 0 : index
    %c0_422 = arith.constant 0 : index
    %718 = vector.load %arg42[%717, %c0_421, %c0_422] : memref<8x8x32xf32, #tpu.memory_space<vmem>>, vector<1x8x32xf32>
    %719 = vector.shape_cast %718 : vector<1x8x32xf32> to vector<8x32xf32>
    %720 = arith.addf %719, %713 : vector<8x32xf32>
    %721 = arith.negf %720 : vector<8x32xf32>
    %722 = math.exp %721 : vector<8x32xf32>
    %cst_423 = arith.constant 1.000000e+00 : f32
    %723 = vector.broadcast %cst_423 : f32 to vector<8x32xf32>
    %724 = arith.addf %723, %722 : vector<8x32xf32>
    %725 = arith.divf %723, %724 : vector<8x32xf32>
    %726 = arith.index_cast %c7_i32_415 : i32 to index
    %c0_424 = arith.constant 0 : index
    %c0_425 = arith.constant 0 : index
    %727 = vector.load %arg43[%726, %c0_424, %c0_425] : memref<8x8x32xf32, #tpu.memory_space<vmem>>, vector<1x8x32xf32>
    %728 = vector.shape_cast %727 : vector<1x8x32xf32> to vector<8x32xf32>
    %729 = arith.addf %728, %714 : vector<8x32xf32>
    %730 = arith.negf %729 : vector<8x32xf32>
    %731 = math.exp %730 : vector<8x32xf32>
    %cst_426 = arith.constant 1.000000e+00 : f32
    %732 = vector.broadcast %cst_426 : f32 to vector<8x32xf32>
    %733 = arith.addf %732, %731 : vector<8x32xf32>
    %734 = arith.divf %732, %733 : vector<8x32xf32>
    %735 = arith.index_cast %c7_i32_415 : i32 to index
    %c0_427 = arith.constant 0 : index
    %c0_428 = arith.constant 0 : index
    %736 = vector.load %arg44[%735, %c0_427, %c0_428] : memref<8x8x32xf32, #tpu.memory_space<vmem>>, vector<1x8x32xf32>
    %737 = vector.shape_cast %736 : vector<1x8x32xf32> to vector<8x32xf32>
    %738 = arith.mulf %725, %716 : vector<8x32xf32>
    %739 = arith.addf %737, %738 : vector<8x32xf32>
    %740 = math.tanh %739 : vector<8x32xf32>
    %cst_429 = arith.constant 1.000000e+00 : f32
    %741 = vector.broadcast %cst_429 : f32 to vector<8x32xf32>
    %742 = arith.subf %741, %734 : vector<8x32xf32>
    %743 = arith.mulf %742, %740 : vector<8x32xf32>
    %744 = arith.mulf %734, %712 : vector<8x32xf32>
    %745 = arith.addf %743, %744 : vector<8x32xf32>
    %c0_430 = arith.constant 0 : index
    %c0_431 = arith.constant 0 : index
    %746 = vector.load %arg46[%c0_430, %c0_431] : memref<8x32xf32, #tpu.memory_space<vmem>>, vector<8x32xf32>
    tpu.vector_store %arg46[%c0_430, %c0_431], %745 {strides = array<i32>} : memref<8x32xf32, #tpu.memory_space<vmem>>, vector<8x32xf32>,
    %747 = arith.index_cast %c7_i32_415 : i32 to index
    %c0_432 = arith.constant 0 : index
    %c0_433 = arith.constant 0 : index
    %748 = vector.load %arg45[%747, %c0_432, %c0_433] : memref<8x8x32xf32, #tpu.memory_space<vmem>>, vector<1x8x32xf32>
    %749 = vector.shape_cast %748 : vector<1x8x32xf32> to vector<8x32xf32>
    %750 = vector.shape_cast %745 : vector<8x32xf32> to vector<1x8x32xf32>
    tpu.vector_store %arg45[%747, %c0_432, %c0_433], %750 {strides = array<i32>} : memref<8x8x32xf32, #tpu.memory_space<vmem>>, vector<1x8x32xf32>,
    %c8_i32_434 = arith.constant 8 : i32
    %c0_435 = arith.constant 0 : index
    %c0_436 = arith.constant 0 : index
    %751 = vector.load %arg46[%c0_435, %c0_436] : memref<8x32xf32, #tpu.memory_space<vmem>>, vector<8x32xf32>
    %c1_437 = arith.constant 1 : index
    %c0_438 = arith.constant 0 : index
    %c0_439 = arith.constant 0 : index
    %752 = vector.load %arg40[%c1_437, %c0_438, %c0_439] : memref<3x8x32xf32, #tpu.memory_space<vmem>>, vector<1x8x32xf32>
    %753 = vector.shape_cast %752 : vector<1x8x32xf32> to vector<8x32xf32>
    %754 = vector.shape_cast %751 : vector<8x32xf32> to vector<1x8x32xf32>
    tpu.vector_store %arg40[%c1_437, %c0_438, %c0_439], %754 {strides = array<i32>} : memref<3x8x32xf32, #tpu.memory_space<vmem>>, vector<1x8x32xf32>,
    %c0_440 = arith.constant 0 : index
    %c0_441 = arith.constant 0 : index
    %c0_442 = arith.constant 0 : index
    %755 = vector.load %arg45[%c0_440, %c0_441, %c0_442] : memref<8x8x32xf32, #tpu.memory_space<vmem>>, vector<8x8x32xf32>
    %756 = vector.shape_cast %755 : vector<8x8x32xf32> to vector<64x32xf32>
    %c0_443 = arith.constant 0 : index
    %c0_444 = arith.constant 0 : index
    %757 = vector.load %arg27[%c0_443, %c0_444] : memref<32x32xf32, #tpu.memory_space<vmem>>, vector<32x32xf32>
    %cst_445 = arith.constant dense<0.000000e+00> : vector<64x32xf32>
    %758 = tpu.matmul %756, %757, %cst_445 {dimension_numbers = #tpu.dot_dimension_numbers<[1], [0], [0], [1], [0, 0, 1, 1], [], []>} : vector<64x32xf32>, vector<32x32xf32>, vector<64x32xf32> -> vector<64x32xf32>
    %c0_446 = arith.constant 0 : index
    %c0_447 = arith.constant 0 : index
    %759 = vector.load %arg33[%c0_446, %c0_447] : memref<1x32xf32, #tpu.memory_space<vmem>>, vector<1x32xf32>
    %760 = vector.broadcast %759 : vector<1x32xf32> to vector<64x32xf32>
    %761 = arith.addf %758, %760 : vector<64x32xf32>
    %762 = vector.shape_cast %761 : vector<64x32xf32> to vector<8x8x32xf32>
    %c0_448 = arith.constant 0 : index
    %c0_449 = arith.constant 0 : index
    %c0_450 = arith.constant 0 : index
    %763 = vector.load %arg42[%c0_448, %c0_449, %c0_450] : memref<8x8x32xf32, #tpu.memory_space<vmem>>, vector<8x8x32xf32>
    tpu.vector_store %arg42[%c0_448, %c0_449, %c0_450], %762 {strides = array<i32>} : memref<8x8x32xf32, #tpu.memory_space<vmem>>, vector<8x8x32xf32>,
    %c0_451 = arith.constant 0 : index
    %c0_452 = arith.constant 0 : index
    %764 = vector.load %arg28[%c0_451, %c0_452] : memref<32x32xf32, #tpu.memory_space<vmem>>, vector<32x32xf32>
    %cst_453 = arith.constant dense<0.000000e+00> : vector<64x32xf32>
    %765 = tpu.matmul %756, %764, %cst_453 {dimension_numbers = #tpu.dot_dimension_numbers<[1], [0], [0], [1], [0, 0, 1, 1], [], []>} : vector<64x32xf32>, vector<32x32xf32>, vector<64x32xf32> -> vector<64x32xf32>
    %c0_454 = arith.constant 0 : index
    %c0_455 = arith.constant 0 : index
    %766 = vector.load %arg34[%c0_454, %c0_455] : memref<1x32xf32, #tpu.memory_space<vmem>>, vector<1x32xf32>
    %767 = vector.broadcast %766 : vector<1x32xf32> to vector<64x32xf32>
    %768 = arith.addf %765, %767 : vector<64x32xf32>
    %769 = vector.shape_cast %768 : vector<64x32xf32> to vector<8x8x32xf32>
    %c0_456 = arith.constant 0 : index
    %c0_457 = arith.constant 0 : index
    %c0_458 = arith.constant 0 : index
    %770 = vector.load %arg43[%c0_456, %c0_457, %c0_458] : memref<8x8x32xf32, #tpu.memory_space<vmem>>, vector<8x8x32xf32>
    tpu.vector_store %arg43[%c0_456, %c0_457, %c0_458], %769 {strides = array<i32>} : memref<8x8x32xf32, #tpu.memory_space<vmem>>, vector<8x8x32xf32>,
    %c0_459 = arith.constant 0 : index
    %c0_460 = arith.constant 0 : index
    %771 = vector.load %arg29[%c0_459, %c0_460] : memref<32x32xf32, #tpu.memory_space<vmem>>, vector<32x32xf32>
    %cst_461 = arith.constant dense<0.000000e+00> : vector<64x32xf32>
    %772 = tpu.matmul %756, %771, %cst_461 {dimension_numbers = #tpu.dot_dimension_numbers<[1], [0], [0], [1], [0, 0, 1, 1], [], []>} : vector<64x32xf32>, vector<32x32xf32>, vector<64x32xf32> -> vector<64x32xf32>
    %c0_462 = arith.constant 0 : index
    %c0_463 = arith.constant 0 : index
    %773 = vector.load %arg35[%c0_462, %c0_463] : memref<1x32xf32, #tpu.memory_space<vmem>>, vector<1x32xf32>
    %774 = vector.broadcast %773 : vector<1x32xf32> to vector<64x32xf32>
    %775 = arith.addf %772, %774 : vector<64x32xf32>
    %776 = vector.shape_cast %775 : vector<64x32xf32> to vector<8x8x32xf32>
    %c0_464 = arith.constant 0 : index
    %c0_465 = arith.constant 0 : index
    %c0_466 = arith.constant 0 : index
    %777 = vector.load %arg44[%c0_464, %c0_465, %c0_466] : memref<8x8x32xf32, #tpu.memory_space<vmem>>, vector<8x8x32xf32>
    tpu.vector_store %arg44[%c0_464, %c0_465, %c0_466], %776 {strides = array<i32>} : memref<8x8x32xf32, #tpu.memory_space<vmem>>, vector<8x8x32xf32>,
    %c0_467 = arith.constant 0 : index
    %c0_468 = arith.constant 0 : index
    %778 = vector.load %arg30[%c0_467, %c0_468] : memref<32x32xf32, #tpu.memory_space<vmem>>, vector<32x32xf32>
    %c0_469 = arith.constant 0 : index
    %c0_470 = arith.constant 0 : index
    %779 = vector.load %arg31[%c0_469, %c0_470] : memref<32x32xf32, #tpu.memory_space<vmem>>, vector<32x32xf32>
    %c0_471 = arith.constant 0 : index
    %c0_472 = arith.constant 0 : index
    %780 = vector.load %arg32[%c0_471, %c0_472] : memref<32x32xf32, #tpu.memory_space<vmem>>, vector<32x32xf32>
    %c0_473 = arith.constant 0 : index
    %c0_474 = arith.constant 0 : index
    %781 = vector.load %arg36[%c0_473, %c0_474] : memref<1x32xf32, #tpu.memory_space<vmem>>, vector<1x32xf32>
    %782 = vector.shape_cast %781 : vector<1x32xf32> to vector<1x32xf32>
    %783 = vector.broadcast %782 : vector<1x32xf32> to vector<8x32xf32>
    %cst_475 = arith.constant 0.000000e+00 : f32
    %784 = vector.broadcast %cst_475 : f32 to vector<8x32xf32>
    %c0_476 = arith.constant 0 : index
    %c0_477 = arith.constant 0 : index
    %785 = vector.load %arg46[%c0_476, %c0_477] : memref<8x32xf32, #tpu.memory_space<vmem>>, vector<8x32xf32>
    tpu.vector_store %arg46[%c0_476, %c0_477], %784 {strides = array<i32>} : memref<8x32xf32, #tpu.memory_space<vmem>>, vector<8x32xf32>,
    %c0_i32_478 = arith.constant 0 : i32
    %c0_479 = arith.constant 0 : index
    %c0_480 = arith.constant 0 : index
    %786 = vector.load %arg46[%c0_479, %c0_480] : memref<8x32xf32, #tpu.memory_space<vmem>>, vector<8x32xf32>
    %cst_481 = arith.constant dense<0.000000e+00> : vector<8x32xf32>
    %787 = tpu.matmul %786, %778, %cst_481 {dimension_numbers = #tpu.dot_dimension_numbers<[1], [0], [0], [1], [0, 0, 1, 1], [], []>} : vector<8x32xf32>, vector<32x32xf32>, vector<8x32xf32> -> vector<8x32xf32>
    %cst_482 = arith.constant dense<0.000000e+00> : vector<8x32xf32>
    %788 = tpu.matmul %786, %779, %cst_482 {dimension_numbers = #tpu.dot_dimension_numbers<[1], [0], [0], [1], [0, 0, 1, 1], [], []>} : vector<8x32xf32>, vector<32x32xf32>, vector<8x32xf32> -> vector<8x32xf32>
    %cst_483 = arith.constant dense<0.000000e+00> : vector<8x32xf32>
    %789 = tpu.matmul %786, %780, %cst_483 {dimension_numbers = #tpu.dot_dimension_numbers<[1], [0], [0], [1], [0, 0, 1, 1], [], []>} : vector<8x32xf32>, vector<32x32xf32>, vector<8x32xf32> -> vector<8x32xf32>
    %790 = arith.addf %789, %783 : vector<8x32xf32>
    %791 = arith.index_cast %c0_i32_478 : i32 to index
    %c0_484 = arith.constant 0 : index
    %c0_485 = arith.constant 0 : index
    %792 = vector.load %arg42[%791, %c0_484, %c0_485] : memref<8x8x32xf32, #tpu.memory_space<vmem>>, vector<1x8x32xf32>
    %793 = vector.shape_cast %792 : vector<1x8x32xf32> to vector<8x32xf32>
    %794 = arith.addf %793, %787 : vector<8x32xf32>
    %795 = arith.negf %794 : vector<8x32xf32>
    %796 = math.exp %795 : vector<8x32xf32>
    %cst_486 = arith.constant 1.000000e+00 : f32
    %797 = vector.broadcast %cst_486 : f32 to vector<8x32xf32>
    %798 = arith.addf %797, %796 : vector<8x32xf32>
    %799 = arith.divf %797, %798 : vector<8x32xf32>
    %800 = arith.index_cast %c0_i32_478 : i32 to index
    %c0_487 = arith.constant 0 : index
    %c0_488 = arith.constant 0 : index
    %801 = vector.load %arg43[%800, %c0_487, %c0_488] : memref<8x8x32xf32, #tpu.memory_space<vmem>>, vector<1x8x32xf32>
    %802 = vector.shape_cast %801 : vector<1x8x32xf32> to vector<8x32xf32>
    %803 = arith.addf %802, %788 : vector<8x32xf32>
    %804 = arith.negf %803 : vector<8x32xf32>
    %805 = math.exp %804 : vector<8x32xf32>
    %cst_489 = arith.constant 1.000000e+00 : f32
    %806 = vector.broadcast %cst_489 : f32 to vector<8x32xf32>
    %807 = arith.addf %806, %805 : vector<8x32xf32>
    %808 = arith.divf %806, %807 : vector<8x32xf32>
    %809 = arith.index_cast %c0_i32_478 : i32 to index
    %c0_490 = arith.constant 0 : index
    %c0_491 = arith.constant 0 : index
    %810 = vector.load %arg44[%809, %c0_490, %c0_491] : memref<8x8x32xf32, #tpu.memory_space<vmem>>, vector<1x8x32xf32>
    %811 = vector.shape_cast %810 : vector<1x8x32xf32> to vector<8x32xf32>
    %812 = arith.mulf %799, %790 : vector<8x32xf32>
    %813 = arith.addf %811, %812 : vector<8x32xf32>
    %814 = math.tanh %813 : vector<8x32xf32>
    %cst_492 = arith.constant 1.000000e+00 : f32
    %815 = vector.broadcast %cst_492 : f32 to vector<8x32xf32>
    %816 = arith.subf %815, %808 : vector<8x32xf32>
    %817 = arith.mulf %816, %814 : vector<8x32xf32>
    %818 = arith.mulf %808, %786 : vector<8x32xf32>
    %819 = arith.addf %817, %818 : vector<8x32xf32>
    %c0_493 = arith.constant 0 : index
    %c0_494 = arith.constant 0 : index
    %820 = vector.load %arg46[%c0_493, %c0_494] : memref<8x32xf32, #tpu.memory_space<vmem>>, vector<8x32xf32>
    tpu.vector_store %arg46[%c0_493, %c0_494], %819 {strides = array<i32>} : memref<8x32xf32, #tpu.memory_space<vmem>>, vector<8x32xf32>,
    %821 = arith.index_cast %c0_i32_478 : i32 to index
    %c0_495 = arith.constant 0 : index
    %c0_496 = arith.constant 0 : index
    %822 = vector.load %arg45[%821, %c0_495, %c0_496] : memref<8x8x32xf32, #tpu.memory_space<vmem>>, vector<1x8x32xf32>
    %823 = vector.shape_cast %822 : vector<1x8x32xf32> to vector<8x32xf32>
    %824 = vector.shape_cast %819 : vector<8x32xf32> to vector<1x8x32xf32>
    tpu.vector_store %arg45[%821, %c0_495, %c0_496], %824 {strides = array<i32>} : memref<8x8x32xf32, #tpu.memory_space<vmem>>, vector<1x8x32xf32>,
    %c1_i32_497 = arith.constant 1 : i32
    %c0_498 = arith.constant 0 : index
    %c0_499 = arith.constant 0 : index
    %825 = vector.load %arg46[%c0_498, %c0_499] : memref<8x32xf32, #tpu.memory_space<vmem>>, vector<8x32xf32>
    %cst_500 = arith.constant dense<0.000000e+00> : vector<8x32xf32>
    %826 = tpu.matmul %825, %778, %cst_500 {dimension_numbers = #tpu.dot_dimension_numbers<[1], [0], [0], [1], [0, 0, 1, 1], [], []>} : vector<8x32xf32>, vector<32x32xf32>, vector<8x32xf32> -> vector<8x32xf32>
    %cst_501 = arith.constant dense<0.000000e+00> : vector<8x32xf32>
    %827 = tpu.matmul %825, %779, %cst_501 {dimension_numbers = #tpu.dot_dimension_numbers<[1], [0], [0], [1], [0, 0, 1, 1], [], []>} : vector<8x32xf32>, vector<32x32xf32>, vector<8x32xf32> -> vector<8x32xf32>
    %cst_502 = arith.constant dense<0.000000e+00> : vector<8x32xf32>
    %828 = tpu.matmul %825, %780, %cst_502 {dimension_numbers = #tpu.dot_dimension_numbers<[1], [0], [0], [1], [0, 0, 1, 1], [], []>} : vector<8x32xf32>, vector<32x32xf32>, vector<8x32xf32> -> vector<8x32xf32>
    %829 = arith.addf %828, %783 : vector<8x32xf32>
    %830 = arith.index_cast %c1_i32_497 : i32 to index
    %c0_503 = arith.constant 0 : index
    %c0_504 = arith.constant 0 : index
    %831 = vector.load %arg42[%830, %c0_503, %c0_504] : memref<8x8x32xf32, #tpu.memory_space<vmem>>, vector<1x8x32xf32>
    %832 = vector.shape_cast %831 : vector<1x8x32xf32> to vector<8x32xf32>
    %833 = arith.addf %832, %826 : vector<8x32xf32>
    %834 = arith.negf %833 : vector<8x32xf32>
    %835 = math.exp %834 : vector<8x32xf32>
    %cst_505 = arith.constant 1.000000e+00 : f32
    %836 = vector.broadcast %cst_505 : f32 to vector<8x32xf32>
    %837 = arith.addf %836, %835 : vector<8x32xf32>
    %838 = arith.divf %836, %837 : vector<8x32xf32>
    %839 = arith.index_cast %c1_i32_497 : i32 to index
    %c0_506 = arith.constant 0 : index
    %c0_507 = arith.constant 0 : index
    %840 = vector.load %arg43[%839, %c0_506, %c0_507] : memref<8x8x32xf32, #tpu.memory_space<vmem>>, vector<1x8x32xf32>
    %841 = vector.shape_cast %840 : vector<1x8x32xf32> to vector<8x32xf32>
    %842 = arith.addf %841, %827 : vector<8x32xf32>
    %843 = arith.negf %842 : vector<8x32xf32>
    %844 = math.exp %843 : vector<8x32xf32>
    %cst_508 = arith.constant 1.000000e+00 : f32
    %845 = vector.broadcast %cst_508 : f32 to vector<8x32xf32>
    %846 = arith.addf %845, %844 : vector<8x32xf32>
    %847 = arith.divf %845, %846 : vector<8x32xf32>
    %848 = arith.index_cast %c1_i32_497 : i32 to index
    %c0_509 = arith.constant 0 : index
    %c0_510 = arith.constant 0 : index
    %849 = vector.load %arg44[%848, %c0_509, %c0_510] : memref<8x8x32xf32, #tpu.memory_space<vmem>>, vector<1x8x32xf32>
    %850 = vector.shape_cast %849 : vector<1x8x32xf32> to vector<8x32xf32>
    %851 = arith.mulf %838, %829 : vector<8x32xf32>
    %852 = arith.addf %850, %851 : vector<8x32xf32>
    %853 = math.tanh %852 : vector<8x32xf32>
    %cst_511 = arith.constant 1.000000e+00 : f32
    %854 = vector.broadcast %cst_511 : f32 to vector<8x32xf32>
    %855 = arith.subf %854, %847 : vector<8x32xf32>
    %856 = arith.mulf %855, %853 : vector<8x32xf32>
    %857 = arith.mulf %847, %825 : vector<8x32xf32>
    %858 = arith.addf %856, %857 : vector<8x32xf32>
    %c0_512 = arith.constant 0 : index
    %c0_513 = arith.constant 0 : index
    %859 = vector.load %arg46[%c0_512, %c0_513] : memref<8x32xf32, #tpu.memory_space<vmem>>, vector<8x32xf32>
    tpu.vector_store %arg46[%c0_512, %c0_513], %858 {strides = array<i32>} : memref<8x32xf32, #tpu.memory_space<vmem>>, vector<8x32xf32>,
    %860 = arith.index_cast %c1_i32_497 : i32 to index
    %c0_514 = arith.constant 0 : index
    %c0_515 = arith.constant 0 : index
    %861 = vector.load %arg45[%860, %c0_514, %c0_515] : memref<8x8x32xf32, #tpu.memory_space<vmem>>, vector<1x8x32xf32>
    %862 = vector.shape_cast %861 : vector<1x8x32xf32> to vector<8x32xf32>
    %863 = vector.shape_cast %858 : vector<8x32xf32> to vector<1x8x32xf32>
    tpu.vector_store %arg45[%860, %c0_514, %c0_515], %863 {strides = array<i32>} : memref<8x8x32xf32, #tpu.memory_space<vmem>>, vector<1x8x32xf32>,
    %c2_i32_516 = arith.constant 2 : i32
    %c0_517 = arith.constant 0 : index
    %c0_518 = arith.constant 0 : index
    %864 = vector.load %arg46[%c0_517, %c0_518] : memref<8x32xf32, #tpu.memory_space<vmem>>, vector<8x32xf32>
    %cst_519 = arith.constant dense<0.000000e+00> : vector<8x32xf32>
    %865 = tpu.matmul %864, %778, %cst_519 {dimension_numbers = #tpu.dot_dimension_numbers<[1], [0], [0], [1], [0, 0, 1, 1], [], []>} : vector<8x32xf32>, vector<32x32xf32>, vector<8x32xf32> -> vector<8x32xf32>
    %cst_520 = arith.constant dense<0.000000e+00> : vector<8x32xf32>
    %866 = tpu.matmul %864, %779, %cst_520 {dimension_numbers = #tpu.dot_dimension_numbers<[1], [0], [0], [1], [0, 0, 1, 1], [], []>} : vector<8x32xf32>, vector<32x32xf32>, vector<8x32xf32> -> vector<8x32xf32>
    %cst_521 = arith.constant dense<0.000000e+00> : vector<8x32xf32>
    %867 = tpu.matmul %864, %780, %cst_521 {dimension_numbers = #tpu.dot_dimension_numbers<[1], [0], [0], [1], [0, 0, 1, 1], [], []>} : vector<8x32xf32>, vector<32x32xf32>, vector<8x32xf32> -> vector<8x32xf32>
    %868 = arith.addf %867, %783 : vector<8x32xf32>
    %869 = arith.index_cast %c2_i32_516 : i32 to index
    %c0_522 = arith.constant 0 : index
    %c0_523 = arith.constant 0 : index
    %870 = vector.load %arg42[%869, %c0_522, %c0_523] : memref<8x8x32xf32, #tpu.memory_space<vmem>>, vector<1x8x32xf32>
    %871 = vector.shape_cast %870 : vector<1x8x32xf32> to vector<8x32xf32>
    %872 = arith.addf %871, %865 : vector<8x32xf32>
    %873 = arith.negf %872 : vector<8x32xf32>
    %874 = math.exp %873 : vector<8x32xf32>
    %cst_524 = arith.constant 1.000000e+00 : f32
    %875 = vector.broadcast %cst_524 : f32 to vector<8x32xf32>
    %876 = arith.addf %875, %874 : vector<8x32xf32>
    %877 = arith.divf %875, %876 : vector<8x32xf32>
    %878 = arith.index_cast %c2_i32_516 : i32 to index
    %c0_525 = arith.constant 0 : index
    %c0_526 = arith.constant 0 : index
    %879 = vector.load %arg43[%878, %c0_525, %c0_526] : memref<8x8x32xf32, #tpu.memory_space<vmem>>, vector<1x8x32xf32>
    %880 = vector.shape_cast %879 : vector<1x8x32xf32> to vector<8x32xf32>
    %881 = arith.addf %880, %866 : vector<8x32xf32>
    %882 = arith.negf %881 : vector<8x32xf32>
    %883 = math.exp %882 : vector<8x32xf32>
    %cst_527 = arith.constant 1.000000e+00 : f32
    %884 = vector.broadcast %cst_527 : f32 to vector<8x32xf32>
    %885 = arith.addf %884, %883 : vector<8x32xf32>
    %886 = arith.divf %884, %885 : vector<8x32xf32>
    %887 = arith.index_cast %c2_i32_516 : i32 to index
    %c0_528 = arith.constant 0 : index
    %c0_529 = arith.constant 0 : index
    %888 = vector.load %arg44[%887, %c0_528, %c0_529] : memref<8x8x32xf32, #tpu.memory_space<vmem>>, vector<1x8x32xf32>
    %889 = vector.shape_cast %888 : vector<1x8x32xf32> to vector<8x32xf32>
    %890 = arith.mulf %877, %868 : vector<8x32xf32>
    %891 = arith.addf %889, %890 : vector<8x32xf32>
    %892 = math.tanh %891 : vector<8x32xf32>
    %cst_530 = arith.constant 1.000000e+00 : f32
    %893 = vector.broadcast %cst_530 : f32 to vector<8x32xf32>
    %894 = arith.subf %893, %886 : vector<8x32xf32>
    %895 = arith.mulf %894, %892 : vector<8x32xf32>
    %896 = arith.mulf %886, %864 : vector<8x32xf32>
    %897 = arith.addf %895, %896 : vector<8x32xf32>
    %c0_531 = arith.constant 0 : index
    %c0_532 = arith.constant 0 : index
    %898 = vector.load %arg46[%c0_531, %c0_532] : memref<8x32xf32, #tpu.memory_space<vmem>>, vector<8x32xf32>
    tpu.vector_store %arg46[%c0_531, %c0_532], %897 {strides = array<i32>} : memref<8x32xf32, #tpu.memory_space<vmem>>, vector<8x32xf32>,
    %899 = arith.index_cast %c2_i32_516 : i32 to index
    %c0_533 = arith.constant 0 : index
    %c0_534 = arith.constant 0 : index
    %900 = vector.load %arg45[%899, %c0_533, %c0_534] : memref<8x8x32xf32, #tpu.memory_space<vmem>>, vector<1x8x32xf32>
    %901 = vector.shape_cast %900 : vector<1x8x32xf32> to vector<8x32xf32>
    %902 = vector.shape_cast %897 : vector<8x32xf32> to vector<1x8x32xf32>
    tpu.vector_store %arg45[%899, %c0_533, %c0_534], %902 {strides = array<i32>} : memref<8x8x32xf32, #tpu.memory_space<vmem>>, vector<1x8x32xf32>,
    %c3_i32_535 = arith.constant 3 : i32
    %c0_536 = arith.constant 0 : index
    %c0_537 = arith.constant 0 : index
    %903 = vector.load %arg46[%c0_536, %c0_537] : memref<8x32xf32, #tpu.memory_space<vmem>>, vector<8x32xf32>
    %cst_538 = arith.constant dense<0.000000e+00> : vector<8x32xf32>
    %904 = tpu.matmul %903, %778, %cst_538 {dimension_numbers = #tpu.dot_dimension_numbers<[1], [0], [0], [1], [0, 0, 1, 1], [], []>} : vector<8x32xf32>, vector<32x32xf32>, vector<8x32xf32> -> vector<8x32xf32>
    %cst_539 = arith.constant dense<0.000000e+00> : vector<8x32xf32>
    %905 = tpu.matmul %903, %779, %cst_539 {dimension_numbers = #tpu.dot_dimension_numbers<[1], [0], [0], [1], [0, 0, 1, 1], [], []>} : vector<8x32xf32>, vector<32x32xf32>, vector<8x32xf32> -> vector<8x32xf32>
    %cst_540 = arith.constant dense<0.000000e+00> : vector<8x32xf32>
    %906 = tpu.matmul %903, %780, %cst_540 {dimension_numbers = #tpu.dot_dimension_numbers<[1], [0], [0], [1], [0, 0, 1, 1], [], []>} : vector<8x32xf32>, vector<32x32xf32>, vector<8x32xf32> -> vector<8x32xf32>
    %907 = arith.addf %906, %783 : vector<8x32xf32>
    %908 = arith.index_cast %c3_i32_535 : i32 to index
    %c0_541 = arith.constant 0 : index
    %c0_542 = arith.constant 0 : index
    %909 = vector.load %arg42[%908, %c0_541, %c0_542] : memref<8x8x32xf32, #tpu.memory_space<vmem>>, vector<1x8x32xf32>
    %910 = vector.shape_cast %909 : vector<1x8x32xf32> to vector<8x32xf32>
    %911 = arith.addf %910, %904 : vector<8x32xf32>
    %912 = arith.negf %911 : vector<8x32xf32>
    %913 = math.exp %912 : vector<8x32xf32>
    %cst_543 = arith.constant 1.000000e+00 : f32
    %914 = vector.broadcast %cst_543 : f32 to vector<8x32xf32>
    %915 = arith.addf %914, %913 : vector<8x32xf32>
    %916 = arith.divf %914, %915 : vector<8x32xf32>
    %917 = arith.index_cast %c3_i32_535 : i32 to index
    %c0_544 = arith.constant 0 : index
    %c0_545 = arith.constant 0 : index
    %918 = vector.load %arg43[%917, %c0_544, %c0_545] : memref<8x8x32xf32, #tpu.memory_space<vmem>>, vector<1x8x32xf32>
    %919 = vector.shape_cast %918 : vector<1x8x32xf32> to vector<8x32xf32>
    %920 = arith.addf %919, %905 : vector<8x32xf32>
    %921 = arith.negf %920 : vector<8x32xf32>
    %922 = math.exp %921 : vector<8x32xf32>
    %cst_546 = arith.constant 1.000000e+00 : f32
    %923 = vector.broadcast %cst_546 : f32 to vector<8x32xf32>
    %924 = arith.addf %923, %922 : vector<8x32xf32>
    %925 = arith.divf %923, %924 : vector<8x32xf32>
    %926 = arith.index_cast %c3_i32_535 : i32 to index
    %c0_547 = arith.constant 0 : index
    %c0_548 = arith.constant 0 : index
    %927 = vector.load %arg44[%926, %c0_547, %c0_548] : memref<8x8x32xf32, #tpu.memory_space<vmem>>, vector<1x8x32xf32>
    %928 = vector.shape_cast %927 : vector<1x8x32xf32> to vector<8x32xf32>
    %929 = arith.mulf %916, %907 : vector<8x32xf32>
    %930 = arith.addf %928, %929 : vector<8x32xf32>
    %931 = math.tanh %930 : vector<8x32xf32>
    %cst_549 = arith.constant 1.000000e+00 : f32
    %932 = vector.broadcast %cst_549 : f32 to vector<8x32xf32>
    %933 = arith.subf %932, %925 : vector<8x32xf32>
    %934 = arith.mulf %933, %931 : vector<8x32xf32>
    %935 = arith.mulf %925, %903 : vector<8x32xf32>
    %936 = arith.addf %934, %935 : vector<8x32xf32>
    %c0_550 = arith.constant 0 : index
    %c0_551 = arith.constant 0 : index
    %937 = vector.load %arg46[%c0_550, %c0_551] : memref<8x32xf32, #tpu.memory_space<vmem>>, vector<8x32xf32>
    tpu.vector_store %arg46[%c0_550, %c0_551], %936 {strides = array<i32>} : memref<8x32xf32, #tpu.memory_space<vmem>>, vector<8x32xf32>,
    %938 = arith.index_cast %c3_i32_535 : i32 to index
    %c0_552 = arith.constant 0 : index
    %c0_553 = arith.constant 0 : index
    %939 = vector.load %arg45[%938, %c0_552, %c0_553] : memref<8x8x32xf32, #tpu.memory_space<vmem>>, vector<1x8x32xf32>
    %940 = vector.shape_cast %939 : vector<1x8x32xf32> to vector<8x32xf32>
    %941 = vector.shape_cast %936 : vector<8x32xf32> to vector<1x8x32xf32>
    tpu.vector_store %arg45[%938, %c0_552, %c0_553], %941 {strides = array<i32>} : memref<8x8x32xf32, #tpu.memory_space<vmem>>, vector<1x8x32xf32>,
    %c4_i32_554 = arith.constant 4 : i32
    %c0_555 = arith.constant 0 : index
    %c0_556 = arith.constant 0 : index
    %942 = vector.load %arg46[%c0_555, %c0_556] : memref<8x32xf32, #tpu.memory_space<vmem>>, vector<8x32xf32>
    %cst_557 = arith.constant dense<0.000000e+00> : vector<8x32xf32>
    %943 = tpu.matmul %942, %778, %cst_557 {dimension_numbers = #tpu.dot_dimension_numbers<[1], [0], [0], [1], [0, 0, 1, 1], [], []>} : vector<8x32xf32>, vector<32x32xf32>, vector<8x32xf32> -> vector<8x32xf32>
    %cst_558 = arith.constant dense<0.000000e+00> : vector<8x32xf32>
    %944 = tpu.matmul %942, %779, %cst_558 {dimension_numbers = #tpu.dot_dimension_numbers<[1], [0], [0], [1], [0, 0, 1, 1], [], []>} : vector<8x32xf32>, vector<32x32xf32>, vector<8x32xf32> -> vector<8x32xf32>
    %cst_559 = arith.constant dense<0.000000e+00> : vector<8x32xf32>
    %945 = tpu.matmul %942, %780, %cst_559 {dimension_numbers = #tpu.dot_dimension_numbers<[1], [0], [0], [1], [0, 0, 1, 1], [], []>} : vector<8x32xf32>, vector<32x32xf32>, vector<8x32xf32> -> vector<8x32xf32>
    %946 = arith.addf %945, %783 : vector<8x32xf32>
    %947 = arith.index_cast %c4_i32_554 : i32 to index
    %c0_560 = arith.constant 0 : index
    %c0_561 = arith.constant 0 : index
    %948 = vector.load %arg42[%947, %c0_560, %c0_561] : memref<8x8x32xf32, #tpu.memory_space<vmem>>, vector<1x8x32xf32>
    %949 = vector.shape_cast %948 : vector<1x8x32xf32> to vector<8x32xf32>
    %950 = arith.addf %949, %943 : vector<8x32xf32>
    %951 = arith.negf %950 : vector<8x32xf32>
    %952 = math.exp %951 : vector<8x32xf32>
    %cst_562 = arith.constant 1.000000e+00 : f32
    %953 = vector.broadcast %cst_562 : f32 to vector<8x32xf32>
    %954 = arith.addf %953, %952 : vector<8x32xf32>
    %955 = arith.divf %953, %954 : vector<8x32xf32>
    %956 = arith.index_cast %c4_i32_554 : i32 to index
    %c0_563 = arith.constant 0 : index
    %c0_564 = arith.constant 0 : index
    %957 = vector.load %arg43[%956, %c0_563, %c0_564] : memref<8x8x32xf32, #tpu.memory_space<vmem>>, vector<1x8x32xf32>
    %958 = vector.shape_cast %957 : vector<1x8x32xf32> to vector<8x32xf32>
    %959 = arith.addf %958, %944 : vector<8x32xf32>
    %960 = arith.negf %959 : vector<8x32xf32>
    %961 = math.exp %960 : vector<8x32xf32>
    %cst_565 = arith.constant 1.000000e+00 : f32
    %962 = vector.broadcast %cst_565 : f32 to vector<8x32xf32>
    %963 = arith.addf %962, %961 : vector<8x32xf32>
    %964 = arith.divf %962, %963 : vector<8x32xf32>
    %965 = arith.index_cast %c4_i32_554 : i32 to index
    %c0_566 = arith.constant 0 : index
    %c0_567 = arith.constant 0 : index
    %966 = vector.load %arg44[%965, %c0_566, %c0_567] : memref<8x8x32xf32, #tpu.memory_space<vmem>>, vector<1x8x32xf32>
    %967 = vector.shape_cast %966 : vector<1x8x32xf32> to vector<8x32xf32>
    %968 = arith.mulf %955, %946 : vector<8x32xf32>
    %969 = arith.addf %967, %968 : vector<8x32xf32>
    %970 = math.tanh %969 : vector<8x32xf32>
    %cst_568 = arith.constant 1.000000e+00 : f32
    %971 = vector.broadcast %cst_568 : f32 to vector<8x32xf32>
    %972 = arith.subf %971, %964 : vector<8x32xf32>
    %973 = arith.mulf %972, %970 : vector<8x32xf32>
    %974 = arith.mulf %964, %942 : vector<8x32xf32>
    %975 = arith.addf %973, %974 : vector<8x32xf32>
    %c0_569 = arith.constant 0 : index
    %c0_570 = arith.constant 0 : index
    %976 = vector.load %arg46[%c0_569, %c0_570] : memref<8x32xf32, #tpu.memory_space<vmem>>, vector<8x32xf32>
    tpu.vector_store %arg46[%c0_569, %c0_570], %975 {strides = array<i32>} : memref<8x32xf32, #tpu.memory_space<vmem>>, vector<8x32xf32>,
    %977 = arith.index_cast %c4_i32_554 : i32 to index
    %c0_571 = arith.constant 0 : index
    %c0_572 = arith.constant 0 : index
    %978 = vector.load %arg45[%977, %c0_571, %c0_572] : memref<8x8x32xf32, #tpu.memory_space<vmem>>, vector<1x8x32xf32>
    %979 = vector.shape_cast %978 : vector<1x8x32xf32> to vector<8x32xf32>
    %980 = vector.shape_cast %975 : vector<8x32xf32> to vector<1x8x32xf32>
    tpu.vector_store %arg45[%977, %c0_571, %c0_572], %980 {strides = array<i32>} : memref<8x8x32xf32, #tpu.memory_space<vmem>>, vector<1x8x32xf32>,
    %c5_i32_573 = arith.constant 5 : i32
    %c0_574 = arith.constant 0 : index
    %c0_575 = arith.constant 0 : index
    %981 = vector.load %arg46[%c0_574, %c0_575] : memref<8x32xf32, #tpu.memory_space<vmem>>, vector<8x32xf32>
    %cst_576 = arith.constant dense<0.000000e+00> : vector<8x32xf32>
    %982 = tpu.matmul %981, %778, %cst_576 {dimension_numbers = #tpu.dot_dimension_numbers<[1], [0], [0], [1], [0, 0, 1, 1], [], []>} : vector<8x32xf32>, vector<32x32xf32>, vector<8x32xf32> -> vector<8x32xf32>
    %cst_577 = arith.constant dense<0.000000e+00> : vector<8x32xf32>
    %983 = tpu.matmul %981, %779, %cst_577 {dimension_numbers = #tpu.dot_dimension_numbers<[1], [0], [0], [1], [0, 0, 1, 1], [], []>} : vector<8x32xf32>, vector<32x32xf32>, vector<8x32xf32> -> vector<8x32xf32>
    %cst_578 = arith.constant dense<0.000000e+00> : vector<8x32xf32>
    %984 = tpu.matmul %981, %780, %cst_578 {dimension_numbers = #tpu.dot_dimension_numbers<[1], [0], [0], [1], [0, 0, 1, 1], [], []>} : vector<8x32xf32>, vector<32x32xf32>, vector<8x32xf32> -> vector<8x32xf32>
    %985 = arith.addf %984, %783 : vector<8x32xf32>
    %986 = arith.index_cast %c5_i32_573 : i32 to index
    %c0_579 = arith.constant 0 : index
    %c0_580 = arith.constant 0 : index
    %987 = vector.load %arg42[%986, %c0_579, %c0_580] : memref<8x8x32xf32, #tpu.memory_space<vmem>>, vector<1x8x32xf32>
    %988 = vector.shape_cast %987 : vector<1x8x32xf32> to vector<8x32xf32>
    %989 = arith.addf %988, %982 : vector<8x32xf32>
    %990 = arith.negf %989 : vector<8x32xf32>
    %991 = math.exp %990 : vector<8x32xf32>
    %cst_581 = arith.constant 1.000000e+00 : f32
    %992 = vector.broadcast %cst_581 : f32 to vector<8x32xf32>
    %993 = arith.addf %992, %991 : vector<8x32xf32>
    %994 = arith.divf %992, %993 : vector<8x32xf32>
    %995 = arith.index_cast %c5_i32_573 : i32 to index
    %c0_582 = arith.constant 0 : index
    %c0_583 = arith.constant 0 : index
    %996 = vector.load %arg43[%995, %c0_582, %c0_583] : memref<8x8x32xf32, #tpu.memory_space<vmem>>, vector<1x8x32xf32>
    %997 = vector.shape_cast %996 : vector<1x8x32xf32> to vector<8x32xf32>
    %998 = arith.addf %997, %983 : vector<8x32xf32>
    %999 = arith.negf %998 : vector<8x32xf32>
    %1000 = math.exp %999 : vector<8x32xf32>
    %cst_584 = arith.constant 1.000000e+00 : f32
    %1001 = vector.broadcast %cst_584 : f32 to vector<8x32xf32>
    %1002 = arith.addf %1001, %1000 : vector<8x32xf32>
    %1003 = arith.divf %1001, %1002 : vector<8x32xf32>
    %1004 = arith.index_cast %c5_i32_573 : i32 to index
    %c0_585 = arith.constant 0 : index
    %c0_586 = arith.constant 0 : index
    %1005 = vector.load %arg44[%1004, %c0_585, %c0_586] : memref<8x8x32xf32, #tpu.memory_space<vmem>>, vector<1x8x32xf32>
    %1006 = vector.shape_cast %1005 : vector<1x8x32xf32> to vector<8x32xf32>
    %1007 = arith.mulf %994, %985 : vector<8x32xf32>
    %1008 = arith.addf %1006, %1007 : vector<8x32xf32>
    %1009 = math.tanh %1008 : vector<8x32xf32>
    %cst_587 = arith.constant 1.000000e+00 : f32
    %1010 = vector.broadcast %cst_587 : f32 to vector<8x32xf32>
    %1011 = arith.subf %1010, %1003 : vector<8x32xf32>
    %1012 = arith.mulf %1011, %1009 : vector<8x32xf32>
    %1013 = arith.mulf %1003, %981 : vector<8x32xf32>
    %1014 = arith.addf %1012, %1013 : vector<8x32xf32>
    %c0_588 = arith.constant 0 : index
    %c0_589 = arith.constant 0 : index
    %1015 = vector.load %arg46[%c0_588, %c0_589] : memref<8x32xf32, #tpu.memory_space<vmem>>, vector<8x32xf32>
    tpu.vector_store %arg46[%c0_588, %c0_589], %1014 {strides = array<i32>} : memref<8x32xf32, #tpu.memory_space<vmem>>, vector<8x32xf32>,
    %1016 = arith.index_cast %c5_i32_573 : i32 to index
    %c0_590 = arith.constant 0 : index
    %c0_591 = arith.constant 0 : index
    %1017 = vector.load %arg45[%1016, %c0_590, %c0_591] : memref<8x8x32xf32, #tpu.memory_space<vmem>>, vector<1x8x32xf32>
    %1018 = vector.shape_cast %1017 : vector<1x8x32xf32> to vector<8x32xf32>
    %1019 = vector.shape_cast %1014 : vector<8x32xf32> to vector<1x8x32xf32>
    tpu.vector_store %arg45[%1016, %c0_590, %c0_591], %1019 {strides = array<i32>} : memref<8x8x32xf32, #tpu.memory_space<vmem>>, vector<1x8x32xf32>,
    %c6_i32_592 = arith.constant 6 : i32
    %c0_593 = arith.constant 0 : index
    %c0_594 = arith.constant 0 : index
    %1020 = vector.load %arg46[%c0_593, %c0_594] : memref<8x32xf32, #tpu.memory_space<vmem>>, vector<8x32xf32>
    %cst_595 = arith.constant dense<0.000000e+00> : vector<8x32xf32>
    %1021 = tpu.matmul %1020, %778, %cst_595 {dimension_numbers = #tpu.dot_dimension_numbers<[1], [0], [0], [1], [0, 0, 1, 1], [], []>} : vector<8x32xf32>, vector<32x32xf32>, vector<8x32xf32> -> vector<8x32xf32>
    %cst_596 = arith.constant dense<0.000000e+00> : vector<8x32xf32>
    %1022 = tpu.matmul %1020, %779, %cst_596 {dimension_numbers = #tpu.dot_dimension_numbers<[1], [0], [0], [1], [0, 0, 1, 1], [], []>} : vector<8x32xf32>, vector<32x32xf32>, vector<8x32xf32> -> vector<8x32xf32>
    %cst_597 = arith.constant dense<0.000000e+00> : vector<8x32xf32>
    %1023 = tpu.matmul %1020, %780, %cst_597 {dimension_numbers = #tpu.dot_dimension_numbers<[1], [0], [0], [1], [0, 0, 1, 1], [], []>} : vector<8x32xf32>, vector<32x32xf32>, vector<8x32xf32> -> vector<8x32xf32>
    %1024 = arith.addf %1023, %783 : vector<8x32xf32>
    %1025 = arith.index_cast %c6_i32_592 : i32 to index
    %c0_598 = arith.constant 0 : index
    %c0_599 = arith.constant 0 : index
    %1026 = vector.load %arg42[%1025, %c0_598, %c0_599] : memref<8x8x32xf32, #tpu.memory_space<vmem>>, vector<1x8x32xf32>
    %1027 = vector.shape_cast %1026 : vector<1x8x32xf32> to vector<8x32xf32>
    %1028 = arith.addf %1027, %1021 : vector<8x32xf32>
    %1029 = arith.negf %1028 : vector<8x32xf32>
    %1030 = math.exp %1029 : vector<8x32xf32>
    %cst_600 = arith.constant 1.000000e+00 : f32
    %1031 = vector.broadcast %cst_600 : f32 to vector<8x32xf32>
    %1032 = arith.addf %1031, %1030 : vector<8x32xf32>
    %1033 = arith.divf %1031, %1032 : vector<8x32xf32>
    %1034 = arith.index_cast %c6_i32_592 : i32 to index
    %c0_601 = arith.constant 0 : index
    %c0_602 = arith.constant 0 : index
    %1035 = vector.load %arg43[%1034, %c0_601, %c0_602] : memref<8x8x32xf32, #tpu.memory_space<vmem>>, vector<1x8x32xf32>
    %1036 = vector.shape_cast %1035 : vector<1x8x32xf32> to vector<8x32xf32>
    %1037 = arith.addf %1036, %1022 : vector<8x32xf32>
    %1038 = arith.negf %1037 : vector<8x32xf32>
    %1039 = math.exp %1038 : vector<8x32xf32>
    %cst_603 = arith.constant 1.000000e+00 : f32
    %1040 = vector.broadcast %cst_603 : f32 to vector<8x32xf32>
    %1041 = arith.addf %1040, %1039 : vector<8x32xf32>
    %1042 = arith.divf %1040, %1041 : vector<8x32xf32>
    %1043 = arith.index_cast %c6_i32_592 : i32 to index
    %c0_604 = arith.constant 0 : index
    %c0_605 = arith.constant 0 : index
    %1044 = vector.load %arg44[%1043, %c0_604, %c0_605] : memref<8x8x32xf32, #tpu.memory_space<vmem>>, vector<1x8x32xf32>
    %1045 = vector.shape_cast %1044 : vector<1x8x32xf32> to vector<8x32xf32>
    %1046 = arith.mulf %1033, %1024 : vector<8x32xf32>
    %1047 = arith.addf %1045, %1046 : vector<8x32xf32>
    %1048 = math.tanh %1047 : vector<8x32xf32>
    %cst_606 = arith.constant 1.000000e+00 : f32
    %1049 = vector.broadcast %cst_606 : f32 to vector<8x32xf32>
    %1050 = arith.subf %1049, %1042 : vector<8x32xf32>
    %1051 = arith.mulf %1050, %1048 : vector<8x32xf32>
    %1052 = arith.mulf %1042, %1020 : vector<8x32xf32>
    %1053 = arith.addf %1051, %1052 : vector<8x32xf32>
    %c0_607 = arith.constant 0 : index
    %c0_608 = arith.constant 0 : index
    %1054 = vector.load %arg46[%c0_607, %c0_608] : memref<8x32xf32, #tpu.memory_space<vmem>>, vector<8x32xf32>
    tpu.vector_store %arg46[%c0_607, %c0_608], %1053 {strides = array<i32>} : memref<8x32xf32, #tpu.memory_space<vmem>>, vector<8x32xf32>,
    %1055 = arith.index_cast %c6_i32_592 : i32 to index
    %c0_609 = arith.constant 0 : index
    %c0_610 = arith.constant 0 : index
    %1056 = vector.load %arg45[%1055, %c0_609, %c0_610] : memref<8x8x32xf32, #tpu.memory_space<vmem>>, vector<1x8x32xf32>
    %1057 = vector.shape_cast %1056 : vector<1x8x32xf32> to vector<8x32xf32>
    %1058 = vector.shape_cast %1053 : vector<8x32xf32> to vector<1x8x32xf32>
    tpu.vector_store %arg45[%1055, %c0_609, %c0_610], %1058 {strides = array<i32>} : memref<8x8x32xf32, #tpu.memory_space<vmem>>, vector<1x8x32xf32>,
    %c7_i32_611 = arith.constant 7 : i32
    %c0_612 = arith.constant 0 : index
    %c0_613 = arith.constant 0 : index
    %1059 = vector.load %arg46[%c0_612, %c0_613] : memref<8x32xf32, #tpu.memory_space<vmem>>, vector<8x32xf32>
    %cst_614 = arith.constant dense<0.000000e+00> : vector<8x32xf32>
    %1060 = tpu.matmul %1059, %778, %cst_614 {dimension_numbers = #tpu.dot_dimension_numbers<[1], [0], [0], [1], [0, 0, 1, 1], [], []>} : vector<8x32xf32>, vector<32x32xf32>, vector<8x32xf32> -> vector<8x32xf32>
    %cst_615 = arith.constant dense<0.000000e+00> : vector<8x32xf32>
    %1061 = tpu.matmul %1059, %779, %cst_615 {dimension_numbers = #tpu.dot_dimension_numbers<[1], [0], [0], [1], [0, 0, 1, 1], [], []>} : vector<8x32xf32>, vector<32x32xf32>, vector<8x32xf32> -> vector<8x32xf32>
    %cst_616 = arith.constant dense<0.000000e+00> : vector<8x32xf32>
    %1062 = tpu.matmul %1059, %780, %cst_616 {dimension_numbers = #tpu.dot_dimension_numbers<[1], [0], [0], [1], [0, 0, 1, 1], [], []>} : vector<8x32xf32>, vector<32x32xf32>, vector<8x32xf32> -> vector<8x32xf32>
    %1063 = arith.addf %1062, %783 : vector<8x32xf32>
    %1064 = arith.index_cast %c7_i32_611 : i32 to index
    %c0_617 = arith.constant 0 : index
    %c0_618 = arith.constant 0 : index
    %1065 = vector.load %arg42[%1064, %c0_617, %c0_618] : memref<8x8x32xf32, #tpu.memory_space<vmem>>, vector<1x8x32xf32>
    %1066 = vector.shape_cast %1065 : vector<1x8x32xf32> to vector<8x32xf32>
    %1067 = arith.addf %1066, %1060 : vector<8x32xf32>
    %1068 = arith.negf %1067 : vector<8x32xf32>
    %1069 = math.exp %1068 : vector<8x32xf32>
    %cst_619 = arith.constant 1.000000e+00 : f32
    %1070 = vector.broadcast %cst_619 : f32 to vector<8x32xf32>
    %1071 = arith.addf %1070, %1069 : vector<8x32xf32>
    %1072 = arith.divf %1070, %1071 : vector<8x32xf32>
    %1073 = arith.index_cast %c7_i32_611 : i32 to index
    %c0_620 = arith.constant 0 : index
    %c0_621 = arith.constant 0 : index
    %1074 = vector.load %arg43[%1073, %c0_620, %c0_621] : memref<8x8x32xf32, #tpu.memory_space<vmem>>, vector<1x8x32xf32>
    %1075 = vector.shape_cast %1074 : vector<1x8x32xf32> to vector<8x32xf32>
    %1076 = arith.addf %1075, %1061 : vector<8x32xf32>
    %1077 = arith.negf %1076 : vector<8x32xf32>
    %1078 = math.exp %1077 : vector<8x32xf32>
    %cst_622 = arith.constant 1.000000e+00 : f32
    %1079 = vector.broadcast %cst_622 : f32 to vector<8x32xf32>
    %1080 = arith.addf %1079, %1078 : vector<8x32xf32>
    %1081 = arith.divf %1079, %1080 : vector<8x32xf32>
    %1082 = arith.index_cast %c7_i32_611 : i32 to index
    %c0_623 = arith.constant 0 : index
    %c0_624 = arith.constant 0 : index
    %1083 = vector.load %arg44[%1082, %c0_623, %c0_624] : memref<8x8x32xf32, #tpu.memory_space<vmem>>, vector<1x8x32xf32>
    %1084 = vector.shape_cast %1083 : vector<1x8x32xf32> to vector<8x32xf32>
    %1085 = arith.mulf %1072, %1063 : vector<8x32xf32>
    %1086 = arith.addf %1084, %1085 : vector<8x32xf32>
    %1087 = math.tanh %1086 : vector<8x32xf32>
    %cst_625 = arith.constant 1.000000e+00 : f32
    %1088 = vector.broadcast %cst_625 : f32 to vector<8x32xf32>
    %1089 = arith.subf %1088, %1081 : vector<8x32xf32>
    %1090 = arith.mulf %1089, %1087 : vector<8x32xf32>
    %1091 = arith.mulf %1081, %1059 : vector<8x32xf32>
    %1092 = arith.addf %1090, %1091 : vector<8x32xf32>
    %c0_626 = arith.constant 0 : index
    %c0_627 = arith.constant 0 : index
    %1093 = vector.load %arg46[%c0_626, %c0_627] : memref<8x32xf32, #tpu.memory_space<vmem>>, vector<8x32xf32>
    tpu.vector_store %arg46[%c0_626, %c0_627], %1092 {strides = array<i32>} : memref<8x32xf32, #tpu.memory_space<vmem>>, vector<8x32xf32>,
    %1094 = arith.index_cast %c7_i32_611 : i32 to index
    %c0_628 = arith.constant 0 : index
    %c0_629 = arith.constant 0 : index
    %1095 = vector.load %arg45[%1094, %c0_628, %c0_629] : memref<8x8x32xf32, #tpu.memory_space<vmem>>, vector<1x8x32xf32>
    %1096 = vector.shape_cast %1095 : vector<1x8x32xf32> to vector<8x32xf32>
    %1097 = vector.shape_cast %1092 : vector<8x32xf32> to vector<1x8x32xf32>
    tpu.vector_store %arg45[%1094, %c0_628, %c0_629], %1097 {strides = array<i32>} : memref<8x8x32xf32, #tpu.memory_space<vmem>>, vector<1x8x32xf32>,
    %c8_i32_630 = arith.constant 8 : i32
    %c0_631 = arith.constant 0 : index
    %c0_632 = arith.constant 0 : index
    %1098 = vector.load %arg46[%c0_631, %c0_632] : memref<8x32xf32, #tpu.memory_space<vmem>>, vector<8x32xf32>
    %c2_633 = arith.constant 2 : index
    %c0_634 = arith.constant 0 : index
    %c0_635 = arith.constant 0 : index
    %1099 = vector.load %arg40[%c2_633, %c0_634, %c0_635] : memref<3x8x32xf32, #tpu.memory_space<vmem>>, vector<1x8x32xf32>
    %1100 = vector.shape_cast %1099 : vector<1x8x32xf32> to vector<8x32xf32>
    %1101 = vector.shape_cast %1098 : vector<8x32xf32> to vector<1x8x32xf32>
    tpu.vector_store %arg40[%c2_633, %c0_634, %c0_635], %1101 {strides = array<i32>} : memref<3x8x32xf32, #tpu.memory_space<vmem>>, vector<1x8x32xf32>,
    %c0_636 = arith.constant 0 : index
    %c0_637 = arith.constant 0 : index
    %c0_638 = arith.constant 0 : index
    %1102 = vector.load %arg45[%c0_636, %c0_637, %c0_638] : memref<8x8x32xf32, #tpu.memory_space<vmem>>, vector<8x8x32xf32>
    %1103 = vector.shape_cast %1102 : vector<8x8x32xf32> to vector<64x32xf32>
    %c0_639 = arith.constant 0 : index
    %c0_640 = arith.constant 0 : index
    %1104 = vector.load %arg37[%c0_639, %c0_640] : memref<32x3xf32, #tpu.memory_space<vmem>>, vector<32x3xf32>
    %cst_641 = arith.constant dense<0.000000e+00> : vector<64x3xf32>
    %1105 = tpu.matmul %1103, %1104, %cst_641 {dimension_numbers = #tpu.dot_dimension_numbers<[1], [0], [0], [1], [0, 0, 1, 1], [], []>} : vector<64x32xf32>, vector<32x3xf32>, vector<64x3xf32> -> vector<64x3xf32>
    %c0_642 = arith.constant 0 : index
    %c0_643 = arith.constant 0 : index
    %1106 = vector.load %arg38[%c0_642, %c0_643] : memref<1x3xf32, #tpu.memory_space<vmem>>, vector<1x3xf32>
    %1107 = vector.broadcast %1106 : vector<1x3xf32> to vector<64x3xf32>
    %1108 = arith.addf %1105, %1107 : vector<64x3xf32>
    %1109 = vector.shape_cast %1108 : vector<64x3xf32> to vector<8x8x3xf32>
    %1110 = vector.extract_strided_slice %1109 {offsets = [0, 0, 0], sizes = [1, 8, 3], strides = [1, 1, 1]} : vector<8x8x3xf32> to vector<1x8x3xf32>
    %1111 = vector.shape_cast %1110 : vector<1x8x3xf32> to vector<8x3xf32>
    %c0_644 = arith.constant 0 : index
    %c0_645 = arith.constant 0 : index
    %c0_646 = arith.constant 0 : index
    %1112 = vector.load %arg39[%c0_644, %c0_645, %c0_646] : memref<8x8x3xf32, #tpu.memory_space<vmem>>, vector<8x1x3xf32>
    %1113 = vector.shape_cast %1112 : vector<8x1x3xf32> to vector<8x3xf32>
    %1114 = vector.shape_cast %1111 : vector<8x3xf32> to vector<8x1x3xf32>
    tpu.vector_store %arg39[%c0_644, %c0_645, %c0_646], %1114 {strides = array<i32>} : memref<8x8x3xf32, #tpu.memory_space<vmem>>, vector<8x1x3xf32>,
    %1115 = vector.extract_strided_slice %1109 {offsets = [1, 0, 0], sizes = [1, 8, 3], strides = [1, 1, 1]} : vector<8x8x3xf32> to vector<1x8x3xf32>
    %1116 = vector.shape_cast %1115 : vector<1x8x3xf32> to vector<8x3xf32>
    %c0_647 = arith.constant 0 : index
    %c1_648 = arith.constant 1 : index
    %c0_649 = arith.constant 0 : index
    %1117 = vector.load %arg39[%c0_647, %c1_648, %c0_649] : memref<8x8x3xf32, #tpu.memory_space<vmem>>, vector<8x1x3xf32>
    %1118 = vector.shape_cast %1117 : vector<8x1x3xf32> to vector<8x3xf32>
    %1119 = vector.shape_cast %1116 : vector<8x3xf32> to vector<8x1x3xf32>
    tpu.vector_store %arg39[%c0_647, %c1_648, %c0_649], %1119 {strides = array<i32>} : memref<8x8x3xf32, #tpu.memory_space<vmem>>, vector<8x1x3xf32>,
    %1120 = vector.extract_strided_slice %1109 {offsets = [2, 0, 0], sizes = [1, 8, 3], strides = [1, 1, 1]} : vector<8x8x3xf32> to vector<1x8x3xf32>
    %1121 = vector.shape_cast %1120 : vector<1x8x3xf32> to vector<8x3xf32>
    %c0_650 = arith.constant 0 : index
    %c2_651 = arith.constant 2 : index
    %c0_652 = arith.constant 0 : index
    %1122 = vector.load %arg39[%c0_650, %c2_651, %c0_652] : memref<8x8x3xf32, #tpu.memory_space<vmem>>, vector<8x1x3xf32>
    %1123 = vector.shape_cast %1122 : vector<8x1x3xf32> to vector<8x3xf32>
    %1124 = vector.shape_cast %1121 : vector<8x3xf32> to vector<8x1x3xf32>
    tpu.vector_store %arg39[%c0_650, %c2_651, %c0_652], %1124 {strides = array<i32>} : memref<8x8x3xf32, #tpu.memory_space<vmem>>, vector<8x1x3xf32>,
    %1125 = vector.extract_strided_slice %1109 {offsets = [3, 0, 0], sizes = [1, 8, 3], strides = [1, 1, 1]} : vector<8x8x3xf32> to vector<1x8x3xf32>
    %1126 = vector.shape_cast %1125 : vector<1x8x3xf32> to vector<8x3xf32>
    %c0_653 = arith.constant 0 : index
    %c3_654 = arith.constant 3 : index
    %c0_655 = arith.constant 0 : index
    %1127 = vector.load %arg39[%c0_653, %c3_654, %c0_655] : memref<8x8x3xf32, #tpu.memory_space<vmem>>, vector<8x1x3xf32>
    %1128 = vector.shape_cast %1127 : vector<8x1x3xf32> to vector<8x3xf32>
    %1129 = vector.shape_cast %1126 : vector<8x3xf32> to vector<8x1x3xf32>
    tpu.vector_store %arg39[%c0_653, %c3_654, %c0_655], %1129 {strides = array<i32>} : memref<8x8x3xf32, #tpu.memory_space<vmem>>, vector<8x1x3xf32>,
    %1130 = vector.extract_strided_slice %1109 {offsets = [4, 0, 0], sizes = [1, 8, 3], strides = [1, 1, 1]} : vector<8x8x3xf32> to vector<1x8x3xf32>
    %1131 = vector.shape_cast %1130 : vector<1x8x3xf32> to vector<8x3xf32>
    %c0_656 = arith.constant 0 : index
    %c4_657 = arith.constant 4 : index
    %c0_658 = arith.constant 0 : index
    %1132 = vector.load %arg39[%c0_656, %c4_657, %c0_658] : memref<8x8x3xf32, #tpu.memory_space<vmem>>, vector<8x1x3xf32>
    %1133 = vector.shape_cast %1132 : vector<8x1x3xf32> to vector<8x3xf32>
    %1134 = vector.shape_cast %1131 : vector<8x3xf32> to vector<8x1x3xf32>
    tpu.vector_store %arg39[%c0_656, %c4_657, %c0_658], %1134 {strides = array<i32>} : memref<8x8x3xf32, #tpu.memory_space<vmem>>, vector<8x1x3xf32>,
    %1135 = vector.extract_strided_slice %1109 {offsets = [5, 0, 0], sizes = [1, 8, 3], strides = [1, 1, 1]} : vector<8x8x3xf32> to vector<1x8x3xf32>
    %1136 = vector.shape_cast %1135 : vector<1x8x3xf32> to vector<8x3xf32>
    %c0_659 = arith.constant 0 : index
    %c5_660 = arith.constant 5 : index
    %c0_661 = arith.constant 0 : index
    %1137 = vector.load %arg39[%c0_659, %c5_660, %c0_661] : memref<8x8x3xf32, #tpu.memory_space<vmem>>, vector<8x1x3xf32>
    %1138 = vector.shape_cast %1137 : vector<8x1x3xf32> to vector<8x3xf32>
    %1139 = vector.shape_cast %1136 : vector<8x3xf32> to vector<8x1x3xf32>
    tpu.vector_store %arg39[%c0_659, %c5_660, %c0_661], %1139 {strides = array<i32>} : memref<8x8x3xf32, #tpu.memory_space<vmem>>, vector<8x1x3xf32>,
    %1140 = vector.extract_strided_slice %1109 {offsets = [6, 0, 0], sizes = [1, 8, 3], strides = [1, 1, 1]} : vector<8x8x3xf32> to vector<1x8x3xf32>
    %1141 = vector.shape_cast %1140 : vector<1x8x3xf32> to vector<8x3xf32>
    %c0_662 = arith.constant 0 : index
    %c6_663 = arith.constant 6 : index
    %c0_664 = arith.constant 0 : index
    %1142 = vector.load %arg39[%c0_662, %c6_663, %c0_664] : memref<8x8x3xf32, #tpu.memory_space<vmem>>, vector<8x1x3xf32>
    %1143 = vector.shape_cast %1142 : vector<8x1x3xf32> to vector<8x3xf32>
    %1144 = vector.shape_cast %1141 : vector<8x3xf32> to vector<8x1x3xf32>
    tpu.vector_store %arg39[%c0_662, %c6_663, %c0_664], %1144 {strides = array<i32>} : memref<8x8x3xf32, #tpu.memory_space<vmem>>, vector<8x1x3xf32>,
    %1145 = vector.extract_strided_slice %1109 {offsets = [7, 0, 0], sizes = [1, 8, 3], strides = [1, 1, 1]} : vector<8x8x3xf32> to vector<1x8x3xf32>
    %1146 = vector.shape_cast %1145 : vector<1x8x3xf32> to vector<8x3xf32>
    %c0_665 = arith.constant 0 : index
    %c7_666 = arith.constant 7 : index
    %c0_667 = arith.constant 0 : index
    %1147 = vector.load %arg39[%c0_665, %c7_666, %c0_667] : memref<8x8x3xf32, #tpu.memory_space<vmem>>, vector<8x1x3xf32>
    %1148 = vector.shape_cast %1147 : vector<8x1x3xf32> to vector<8x3xf32>
    %1149 = vector.shape_cast %1146 : vector<8x3xf32> to vector<8x1x3xf32>
    tpu.vector_store %arg39[%c0_665, %c7_666, %c0_667], %1149 {strides = array<i32>} : memref<8x8x3xf32, #tpu.memory_space<vmem>>, vector<8x1x3xf32>,
    return
  }
}

</mosaic_0001>

<llo_original>
// kernel: mortonnet_forward.1
$region0: #{mortonnet_forward.1}
  #allocation0 [shape = 'u32[]', space=smem, size = 0x4, offset = 0x4, fixed_abs, tag = 'smem constant byte address 0x4 - core index']
  #allocation1 [shape = 'u32[144,128]{1,0:T(1,128)}', space=vmem, size = 0x12000, scoped, tag = 'internal scratch']
  #allocation2 [shape = 'f32[8,8,3]{2,1,0:T(8,128)}', space=vmem, size = 0x8000, scoped, tag = 'scratch operand']
  #allocation3 [shape = 'f32[8,8,32]{2,1,0:T(8,128)}', space=vmem, size = 0x8000, scoped, tag = 'scratch operand']
  #allocation4 [shape = 'f32[8,8,32]{2,1,0:T(8,128)}', space=vmem, size = 0x8000, scoped, tag = 'scratch operand']
  #allocation5 [shape = 'f32[8,8,32]{2,1,0:T(8,128)}', space=vmem, size = 0x8000, scoped, tag = 'scratch operand']
  #allocation6 [shape = 'f32[8,8,32]{2,1,0:T(8,128)}', space=vmem, size = 0x8000, scoped, tag = 'scratch operand']
  #allocation7 [shape = 'f32[8,32]{1,0:T(8,128)}', space=vmem, size = 0x1000, scoped, tag = 'scratch operand']
  %s0 = inlined_call_operand.smem [shape: u32[41], index: -1, kind: input, shape index: {}]
  %s1 = sld [smem:[%s0]]
  %s2 = scalar_lea.smem %s0, 1
  %s3 = sld [smem:[%s2]]
  %s4 = scalar_lea.smem %s0, 2
  %s5 = sld [smem:[%s4]]
  %s6 = scalar_lea.smem %s0, 3
  %s7 = sld [smem:[%s6]]
  %s8 = scalar_lea.smem %s0, 4
  %s9 = sld [smem:[%s8]]
  %s10 = scalar_lea.smem %s0, 5
  %s11 = sld [smem:[%s10]]
  %s12 = scalar_lea.smem %s0, 6
  %s13 = sld [smem:[%s12]]
  %s14 = scalar_lea.smem %s0, 7
  %s15 = sld [smem:[%s14]]
  %s16 = scalar_lea.smem %s0, 8
  %s17 = sld [smem:[%s16]]
  %s18 = scalar_lea.smem %s0, 9
  %s19 = sld [smem:[%s18]]
  %s20 = scalar_lea.smem %s0, 10
  %s21 = sld [smem:[%s20]]
  %s22 = scalar_lea.smem %s0, 11
  %s23 = sld [smem:[%s22]]
  %s24 = scalar_lea.smem %s0, 12
  %s25 = sld [smem:[%s24]]
  %s26 = scalar_lea.smem %s0, 13
  %s27 = sld [smem:[%s26]]
  %s28 = scalar_lea.smem %s0, 14
  %s29 = sld [smem:[%s28]]
  %s30 = scalar_lea.smem %s0, 15
  %s31 = sld [smem:[%s30]]
  %s32 = scalar_lea.smem %s0, 16
  %s33 = sld [smem:[%s32]]
  %s34 = scalar_lea.smem %s0, 17
  %s35 = sld [smem:[%s34]]
  %s36 = scalar_lea.smem %s0, 18
  %s37 = sld [smem:[%s36]]
  %s38 = scalar_lea.smem %s0, 19
  %s39 = sld [smem:[%s38]]
  %s40 = scalar_lea.smem %s0, 20
  %s41 = sld [smem:[%s40]]
  %s42 = scalar_lea.smem %s0, 21
  %s43 = sld [smem:[%s42]]
  %s44 = scalar_lea.smem %s0, 22
  %s45 = sld [smem:[%s44]]
  %s46 = scalar_lea.smem %s0, 23
  %s47 = sld [smem:[%s46]]
  %s48 = scalar_lea.smem %s0, 24
  %s49 = sld [smem:[%s48]]
  %s50 = scalar_lea.smem %s0, 25
  %s51 = sld [smem:[%s50]]
  %s52 = scalar_lea.smem %s0, 26
  %s53 = sld [smem:[%s52]]
  %s54 = scalar_lea.smem %s0, 27
  %s55 = sld [smem:[%s54]]
  %s56 = scalar_lea.smem %s0, 28
  %s57 = sld [smem:[%s56]]
  %s58 = scalar_lea.smem %s0, 29
  %s59 = sld [smem:[%s58]]
  %s60 = scalar_lea.smem %s0, 30
  %s61 = sld [smem:[%s60]]
  %s62 = scalar_lea.smem %s0, 31
  %s63 = sld [smem:[%s62]]
  %s64 = scalar_lea.smem %s0, 32
  %s65 = sld [smem:[%s64]]
  %s66 = scalar_lea.smem %s0, 33
  %s67 = sld [smem:[%s66]]
  %s68 = scalar_lea.smem %s0, 34
  %s69 = sld [smem:[%s68]]
  %s70 = scalar_lea.smem %s0, 35
  %s71 = sld [smem:[%s70]]
  %s72 = scalar_lea.smem %s0, 36
  %s73 = sld [smem:[%s72]]
  %s74 = scalar_lea.smem %s0, 37
  %s75 = sld [smem:[%s74]]
  %s76 = scalar_lea.smem %s0, 38
  %s77 = sld [smem:[%s76]]
  %s78 = scalar_lea.smem %s0, 39
  %s79 = sld [smem:[%s78]]
  %s80 = scalar_lea.smem %s0, 40
  %s81 = sld [smem:[%s80]]
  %82 = xla_tuple %s79, %s81
  %s83 = sld [smem:[#allocation0]]
  $region174: #{mortonnet_forward.1} parent=0
    _
  %s85 = ssub.s32 1, %s83
  %s86 = scalar_select 0, %s85, %s83
  $region1: #{mortonnet_forward.1} parent=0
    #allocation8 [shape = 'u8[12288]{0}', space=vmem, size = 0x3000, scoped, tag = 'output window, operand 1, single buffered']
    #allocation9 [shape = 's32[1]{0}', space=sflag, size = 0x4, scoped, tag = 'scoped memory for mortonnet_forward.1']
    %87 = vsyncpa [#allocation9], 0
    // Predicated region
    $region2: #{mortonnet_forward.1} parent=1 // pred_check
      _
    $region3: #{mortonnet_forward.1} parent=1 // pred_check_branch
      %89 = sbr.rel (0) target = $region5
    $region4: #{mortonnet_forward.1} parent=1 // pred_region
      _
    $region5: #{mortonnet_forward.1} parent=1 // pred_fallthru
      _
    // Predicated region
    $region6: #{mortonnet_forward.1} parent=1 // pred_check
      _
    $region7: #{mortonnet_forward.1} parent=1 // pred_check_branch
      %91 = sbr.rel (0) target = $region9
    $region8: #{mortonnet_forward.1} parent=1 // pred_region
      _
    $region9: #{mortonnet_forward.1} parent=1 // pred_fallthru
      _
    // Predicated region
    $region10: #{mortonnet_forward.1} parent=1 // pred_check
      _
    $region11: #{mortonnet_forward.1} parent=1 // pred_check_branch
      %93 = sbr.rel (0) target = $region13
    $region12: #{mortonnet_forward.1} parent=1 // pred_region
      _
    $region13: #{mortonnet_forward.1} parent=1 // pred_fallthru
      _
    // Predicated region
    $region14: #{mortonnet_forward.1} parent=1 // pred_check
      _
    $region15: #{mortonnet_forward.1} parent=1 // pred_check_branch
      %95 = sbr.rel (0) target = $region17
    $region16: #{mortonnet_forward.1} parent=1 // pred_region
      _
    $region17: #{mortonnet_forward.1} parent=1 // pred_fallthru
      _
    // Predicated region
    $region18: #{mortonnet_forward.1} parent=1 // pred_check
      _
    $region19: #{mortonnet_forward.1} parent=1 // pred_check_branch
      %97 = sbr.rel (0) target = $region21
    $region20: #{mortonnet_forward.1} parent=1 // pred_region
      _
    $region21: #{mortonnet_forward.1} parent=1 // pred_fallthru
      _
    // Predicated region
    $region22: #{mortonnet_forward.1} parent=1 // pred_check
      _
    $region23: #{mortonnet_forward.1} parent=1 // pred_check_branch
      %99 = sbr.rel (0) target = $region25
    $region24: #{mortonnet_forward.1} parent=1 // pred_region
      _
    $region25: #{mortonnet_forward.1} parent=1 // pred_fallthru
      _
    // Predicated region
    $region26: #{mortonnet_forward.1} parent=1 // pred_check
      _
    $region27: #{mortonnet_forward.1} parent=1 // pred_check_branch
      %101 = sbr.rel (0) target = $region29
    $region28: #{mortonnet_forward.1} parent=1 // pred_region
      _
    $region29: #{mortonnet_forward.1} parent=1 // pred_fallthru
      _
    // Predicated region
    $region30: #{mortonnet_forward.1} parent=1 // pred_check
      _
    $region31: #{mortonnet_forward.1} parent=1 // pred_check_branch
      %103 = sbr.rel (0) target = $region33
    $region32: #{mortonnet_forward.1} parent=1 // pred_region
      _
    $region33: #{mortonnet_forward.1} parent=1 // pred_fallthru
      _
    // Predicated region
    $region34: #{mortonnet_forward.1} parent=1 // pred_check
      _
    $region35: #{mortonnet_forward.1} parent=1 // pred_check_branch
      %105 = sbr.rel (0) target = $region37
    $region36: #{mortonnet_forward.1} parent=1 // pred_region
      _
    $region37: #{mortonnet_forward.1} parent=1 // pred_fallthru
      _
    // Predicated region
    $region38: #{mortonnet_forward.1} parent=1 // pred_check
      _
    $region39: #{mortonnet_forward.1} parent=1 // pred_check_branch
      %107 = sbr.rel (0) target = $region41
    $region40: #{mortonnet_forward.1} parent=1 // pred_region
      _
    $region41: #{mortonnet_forward.1} parent=1 // pred_fallthru
      _
    // Predicated region
    $region42: #{mortonnet_forward.1} parent=1 // pred_check
      _
    $region43: #{mortonnet_forward.1} parent=1 // pred_check_branch
      %109 = sbr.rel (0) target = $region45
    $region44: #{mortonnet_forward.1} parent=1 // pred_region
      _
    $region45: #{mortonnet_forward.1} parent=1 // pred_fallthru
      _
    // Predicated region
    $region46: #{mortonnet_forward.1} parent=1 // pred_check
      _
    $region47: #{mortonnet_forward.1} parent=1 // pred_check_branch
      %111 = sbr.rel (0) target = $region49
    $region48: #{mortonnet_forward.1} parent=1 // pred_region
      _
    $region49: #{mortonnet_forward.1} parent=1 // pred_fallthru
      _
    // Predicated region
    $region50: #{mortonnet_forward.1} parent=1 // pred_check
      _
    $region51: #{mortonnet_forward.1} parent=1 // pred_check_branch
      %113 = sbr.rel (0) target = $region53
    $region52: #{mortonnet_forward.1} parent=1 // pred_region
      _
    $region53: #{mortonnet_forward.1} parent=1 // pred_fallthru
      _
    // Predicated region
    $region54: #{mortonnet_forward.1} parent=1 // pred_check
      _
    $region55: #{mortonnet_forward.1} parent=1 // pred_check_branch
      %115 = sbr.rel (0) target = $region57
    $region56: #{mortonnet_forward.1} parent=1 // pred_region
      _
    $region57: #{mortonnet_forward.1} parent=1 // pred_fallthru
      _
    // Predicated region
    $region58: #{mortonnet_forward.1} parent=1 // pred_check
      _
    $region59: #{mortonnet_forward.1} parent=1 // pred_check_branch
      %117 = sbr.rel (0) target = $region61
    $region60: #{mortonnet_forward.1} parent=1 // pred_region
      _
    $region61: #{mortonnet_forward.1} parent=1 // pred_fallthru
      _
    // Predicated region
    $region62: #{mortonnet_forward.1} parent=1 // pred_check
      _
    $region63: #{mortonnet_forward.1} parent=1 // pred_check_branch
      %119 = sbr.rel (0) target = $region65
    $region64: #{mortonnet_forward.1} parent=1 // pred_region
      _
    $region65: #{mortonnet_forward.1} parent=1 // pred_fallthru
      _
    // Predicated region
    $region66: #{mortonnet_forward.1} parent=1 // pred_check
      _
    $region67: #{mortonnet_forward.1} parent=1 // pred_check_branch
      %121 = sbr.rel (0) target = $region69
    $region68: #{mortonnet_forward.1} parent=1 // pred_region
      _
    $region69: #{mortonnet_forward.1} parent=1 // pred_fallthru
      _
    // Predicated region
    $region70: #{mortonnet_forward.1} parent=1 // pred_check
      _
    $region71: #{mortonnet_forward.1} parent=1 // pred_check_branch
      %123 = sbr.rel (0) target = $region73
    $region72: #{mortonnet_forward.1} parent=1 // pred_region
      _
    $region73: #{mortonnet_forward.1} parent=1 // pred_fallthru
      _
    // Predicated region
    $region74: #{mortonnet_forward.1} parent=1 // pred_check
      _
    $region75: #{mortonnet_forward.1} parent=1 // pred_check_branch
      %125 = sbr.rel (0) target = $region77
    $region76: #{mortonnet_forward.1} parent=1 // pred_region
      _
    $region77: #{mortonnet_forward.1} parent=1 // pred_fallthru
      _
    // Predicated region
    $region78: #{mortonnet_forward.1} parent=1 // pred_check
      _
    $region79: #{mortonnet_forward.1} parent=1 // pred_check_branch
      %127 = sbr.rel (0) target = $region81
    $region80: #{mortonnet_forward.1} parent=1 // pred_region
      _
    $region81: #{mortonnet_forward.1} parent=1 // pred_fallthru
      _
    // Predicated region
    $region82: #{mortonnet_forward.1} parent=1 // pred_check
      _
    $region83: #{mortonnet_forward.1} parent=1 // pred_check_branch
      %129 = sbr.rel (0) target = $region85
    $region84: #{mortonnet_forward.1} parent=1 // pred_region
      _
    $region85: #{mortonnet_forward.1} parent=1 // pred_fallthru
      _
    // Predicated region
    $region86: #{mortonnet_forward.1} parent=1 // pred_check
      _
    $region87: #{mortonnet_forward.1} parent=1 // pred_check_branch
      %131 = sbr.rel (0) target = $region89
    $region88: #{mortonnet_forward.1} parent=1 // pred_region
      _
    $region89: #{mortonnet_forward.1} parent=1 // pred_fallthru
      _
    // Predicated region
    $region90: #{mortonnet_forward.1} parent=1 // pred_check
      _
    $region91: #{mortonnet_forward.1} parent=1 // pred_check_branch
      %133 = sbr.rel (0) target = $region93
    $region92: #{mortonnet_forward.1} parent=1 // pred_region
      _
    $region93: #{mortonnet_forward.1} parent=1 // pred_fallthru
      _
    // Predicated region
    $region94: #{mortonnet_forward.1} parent=1 // pred_check
      _
    $region95: #{mortonnet_forward.1} parent=1 // pred_check_branch
      %135 = sbr.rel (0) target = $region97
    $region96: #{mortonnet_forward.1} parent=1 // pred_region
      _
    $region97: #{mortonnet_forward.1} parent=1 // pred_fallthru
      _
    // Predicated region
    $region98: #{mortonnet_forward.1} parent=1 // pred_check
      _
    $region99: #{mortonnet_forward.1} parent=1 // pred_check_branch
      %137 = sbr.rel (0) target = $region101
    $region100: #{mortonnet_forward.1} parent=1 // pred_region
      _
    $region101: #{mortonnet_forward.1} parent=1 // pred_fallthru
      _
    // Predicated region
    $region102: #{mortonnet_forward.1} parent=1 // pred_check
      _
    $region103: #{mortonnet_forward.1} parent=1 // pred_check_branch
      %139 = sbr.rel (0) target = $region105
    $region104: #{mortonnet_forward.1} parent=1 // pred_region
      _
    $region105: #{mortonnet_forward.1} parent=1 // pred_fallthru
      _
    // Predicated region
    $region106: #{mortonnet_forward.1} parent=1 // pred_check
      _
    $region107: #{mortonnet_forward.1} parent=1 // pred_check_branch
      %141 = sbr.rel (0) target = $region109
    $region108: #{mortonnet_forward.1} parent=1 // pred_region
      _
    $region109: #{mortonnet_forward.1} parent=1 // pred_fallthru
      _
    // Predicated region
    $region110: #{mortonnet_forward.1} parent=1 // pred_check
      _
    $region111: #{mortonnet_forward.1} parent=1 // pred_check_branch
      %143 = sbr.rel (0) target = $region113
    $region112: #{mortonnet_forward.1} parent=1 // pred_region
      _
    $region113: #{mortonnet_forward.1} parent=1 // pred_fallthru
      _
    // Predicated region
    $region114: #{mortonnet_forward.1} parent=1 // pred_check
      _
    $region115: #{mortonnet_forward.1} parent=1 // pred_check_branch
      %145 = sbr.rel (0) target = $region117
    $region116: #{mortonnet_forward.1} parent=1 // pred_region
      _
    $region117: #{mortonnet_forward.1} parent=1 // pred_fallthru
      _
    // Predicated region
    $region118: #{mortonnet_forward.1} parent=1 // pred_check
      _
    $region119: #{mortonnet_forward.1} parent=1 // pred_check_branch
      %147 = sbr.rel (0) target = $region121
    $region120: #{mortonnet_forward.1} parent=1 // pred_region
      _
    $region121: #{mortonnet_forward.1} parent=1 // pred_fallthru
      _
    // Predicated region
    $region122: #{mortonnet_forward.1} parent=1 // pred_check
      _
    $region123: #{mortonnet_forward.1} parent=1 // pred_check_branch
      %149 = sbr.rel (0) target = $region125
    $region124: #{mortonnet_forward.1} parent=1 // pred_region
      _
    $region125: #{mortonnet_forward.1} parent=1 // pred_fallthru
      _
    // Predicated region
    $region126: #{mortonnet_forward.1} parent=1 // pred_check
      _
    $region127: #{mortonnet_forward.1} parent=1 // pred_check_branch
      %151 = sbr.rel (0) target = $region129
    $region128: #{mortonnet_forward.1} parent=1 // pred_region
      _
    $region129: #{mortonnet_forward.1} parent=1 // pred_fallthru
      _
    // Predicated region
    $region130: #{mortonnet_forward.1} parent=1 // pred_check
      _
    $region131: #{mortonnet_forward.1} parent=1 // pred_check_branch
      %153 = sbr.rel (0) target = $region133
    $region132: #{mortonnet_forward.1} parent=1 // pred_region
      _
    $region133: #{mortonnet_forward.1} parent=1 // pred_fallthru
      _
    // Predicated region
    $region134: #{mortonnet_forward.1} parent=1 // pred_check
      _
    $region135: #{mortonnet_forward.1} parent=1 // pred_check_branch
      %155 = sbr.rel (0) target = $region137
    $region136: #{mortonnet_forward.1} parent=1 // pred_region
      _
    $region137: #{mortonnet_forward.1} parent=1 // pred_fallthru
      _
    // Predicated region
    $region138: #{mortonnet_forward.1} parent=1 // pred_check
      _
    $region139: #{mortonnet_forward.1} parent=1 // pred_check_branch
      %157 = sbr.rel (0) target = $region141
    $region140: #{mortonnet_forward.1} parent=1 // pred_region
      _
    $region141: #{mortonnet_forward.1} parent=1 // pred_fallthru
      _
    // Predicated region
    $region142: #{mortonnet_forward.1} parent=1 // pred_check
      _
    $region143: #{mortonnet_forward.1} parent=1 // pred_check_branch
      %159 = sbr.rel (0) target = $region145
    $region144: #{mortonnet_forward.1} parent=1 // pred_region
      _
    $region145: #{mortonnet_forward.1} parent=1 // pred_fallthru
      _
    // Predicated region
    $region146: #{mortonnet_forward.1} parent=1 // pred_check
      _
    $region147: #{mortonnet_forward.1} parent=1 // pred_check_branch
      %161 = sbr.rel (0) target = $region149
    $region148: #{mortonnet_forward.1} parent=1 // pred_region
      _
    $region149: #{mortonnet_forward.1} parent=1 // pred_fallthru
      _
    // Predicated region
    $region150: #{mortonnet_forward.1} parent=1 // pred_check
      _
    $region151: #{mortonnet_forward.1} parent=1 // pred_check_branch
      %163 = sbr.rel (0) target = $region153
    $region152: #{mortonnet_forward.1} parent=1 // pred_region
      _
    $region153: #{mortonnet_forward.1} parent=1 // pred_fallthru
      _
    // Predicated region
    $region154: #{mortonnet_forward.1} parent=1 // pred_check
      _
    $region155: #{mortonnet_forward.1} parent=1 // pred_check_branch
      %165 = sbr.rel (0) target = $region157
    $region156: #{mortonnet_forward.1} parent=1 // pred_region
      _
    $region157: #{mortonnet_forward.1} parent=1 // pred_fallthru
      _
    %v166 = vld [vmem:[%s1] sm:$0x1]
    %v167 = vld [vmem:[%s1 + $0x8] sm:$0x1]
    %v168 = vld [vmem:[%s1 + $0x10] sm:$0x1]
    %v169 = vld [vmem:[%s1 + $0x18] sm:$0x1]
    %v170 = vld [vmem:[%s1 + $0x20] sm:$0x1]
    %v171 = vld [vmem:[%s1 + $0x28] sm:$0x1]
    %v172 = vld [vmem:[%s1 + $0x30] sm:$0x1]
    %v173 = vld [vmem:[%s1 + $0x38] sm:$0x1]
    %v182 = vrot.slane %v167, 7
    %vm183 = vcmask 1041409
    %v184 = vsel %vm183, %v182, %v166
    %v185 = vrot.slane %v168, 6
    %vm186 = vcmask 1042434
    %v187 = vsel %vm186, %v185, %v184
    %v188 = vrot.slane %v169, 5
    %vm189 = vcmask 1043459
    %v190 = vsel %vm189, %v188, %v187
    %v191 = vrot.slane %v170, 4
    %vm192 = vcmask 1044484
    %v193 = vsel %vm192, %v191, %v190
    %v194 = vrot.slane %v171, 3
    %vm195 = vcmask 1045509
    %v196 = vsel %vm195, %v194, %v193
    %v197 = vrot.slane %v172, 2
    %vm198 = vcmask 1046534
    %v199 = vsel %vm198, %v197, %v196
    %v200 = vrot.slane %v173, 1
    %vm201 = vcmask 1047559
    %v202 = vsel %vm201, %v200, %v199
    %vm204 = vcmask 23552
    %205 = vst.msk [vmem:[#allocation2] sm:$0xff] %vm204, %v202
    %v206 = vld [vmem:[%s1 + $0x1] sm:$0x1]
    %v207 = vld [vmem:[%s1 + $0x9] sm:$0x1]
    %v208 = vld [vmem:[%s1 + $0x11] sm:$0x1]
    %v209 = vld [vmem:[%s1 + $0x19] sm:$0x1]
    %v210 = vld [vmem:[%s1 + $0x21] sm:$0x1]
    %v211 = vld [vmem:[%s1 + $0x29] sm:$0x1]
    %v212 = vld [vmem:[%s1 + $0x31] sm:$0x1]
    %v213 = vld [vmem:[%s1 + $0x39] sm:$0x1]
    %v222 = vrot.slane %v207, 7
    %v223 = vsel %vm183, %v222, %v206
    %v224 = vrot.slane %v208, 6
    %v225 = vsel %vm186, %v224, %v223
    %v226 = vrot.slane %v209, 5
    %v227 = vsel %vm189, %v226, %v225
    %v228 = vrot.slane %v210, 4
    %v229 = vsel %vm192, %v228, %v227
    %v230 = vrot.slane %v211, 3
    %v231 = vsel %vm195, %v230, %v229
    %v232 = vrot.slane %v212, 2
    %v233 = vsel %vm198, %v232, %v231
    %v234 = vrot.slane %v213, 1
    %v235 = vsel %vm201, %v234, %v233
    %s237 = scalar_lea.vmem [#allocation2], 8
    %238 = vst.msk [vmem:[%s237] sm:$0xff] %vm204, %v235
    %v239 = vld [vmem:[%s1 + $0x2] sm:$0x1]
    %v240 = vld [vmem:[%s1 + $0xa] sm:$0x1]
    %v241 = vld [vmem:[%s1 + $0x12] sm:$0x1]
    %v242 = vld [vmem:[%s1 + $0x1a] sm:$0x1]
    %v243 = vld [vmem:[%s1 + $0x22] sm:$0x1]
    %v244 = vld [vmem:[%s1 + $0x2a] sm:$0x1]
    %v245 = vld [vmem:[%s1 + $0x32] sm:$0x1]
    %v246 = vld [vmem:[%s1 + $0x3a] sm:$0x1]
    %v255 = vrot.slane %v240, 7
    %v256 = vsel %vm183, %v255, %v239
    %v257 = vrot.slane %v241, 6
    %v258 = vsel %vm186, %v257, %v256
    %v259 = vrot.slane %v242, 5
    %v260 = vsel %vm189, %v259, %v258
    %v261 = vrot.slane %v243, 4
    %v262 = vsel %vm192, %v261, %v260
    %v263 = vrot.slane %v244, 3
    %v264 = vsel %vm195, %v263, %v262
    %v265 = vrot.slane %v245, 2
    %v266 = vsel %vm198, %v265, %v264
    %v267 = vrot.slane %v246, 1
    %v268 = vsel %vm201, %v267, %v266
    %s270 = scalar_lea.vmem [#allocation2], 16
    %271 = vst.msk [vmem:[%s270] sm:$0xff] %vm204, %v268
    %v272 = vld [vmem:[%s1 + $0x3] sm:$0x1]
    %v273 = vld [vmem:[%s1 + $0xb] sm:$0x1]
    %v274 = vld [vmem:[%s1 + $0x13] sm:$0x1]
    %v275 = vld [vmem:[%s1 + $0x1b] sm:$0x1]
    %v276 = vld [vmem:[%s1 + $0x23] sm:$0x1]
    %v277 = vld [vmem:[%s1 + $0x2b] sm:$0x1]
    %v278 = vld [vmem:[%s1 + $0x33] sm:$0x1]
    %v279 = vld [vmem:[%s1 + $0x3b] sm:$0x1]
    %v288 = vrot.slane %v273, 7
    %v289 = vsel %vm183, %v288, %v272
    %v290 = vrot.slane %v274, 6
    %v291 = vsel %vm186, %v290, %v289
    %v292 = vrot.slane %v275, 5
    %v293 = vsel %vm189, %v292, %v291
    %v294 = vrot.slane %v276, 4
    %v295 = vsel %vm192, %v294, %v293
    %v296 = vrot.slane %v277, 3
    %v297 = vsel %vm195, %v296, %v295
    %v298 = vrot.slane %v278, 2
    %v299 = vsel %vm198, %v298, %v297
    %v300 = vrot.slane %v279, 1
    %v301 = vsel %vm201, %v300, %v299
    %s303 = scalar_lea.vmem [#allocation2], 24
    %304 = vst.msk [vmem:[%s303] sm:$0xff] %vm204, %v301
    %v305 = vld [vmem:[%s1 + $0x4] sm:$0x1]
    %v306 = vld [vmem:[%s1 + $0xc] sm:$0x1]
    %v307 = vld [vmem:[%s1 + $0x14] sm:$0x1]
    %v308 = vld [vmem:[%s1 + $0x1c] sm:$0x1]
    %v309 = vld [vmem:[%s1 + $0x24] sm:$0x1]
    %v310 = vld [vmem:[%s1 + $0x2c] sm:$0x1]
    %v311 = vld [vmem:[%s1 + $0x34] sm:$0x1]
    %v312 = vld [vmem:[%s1 + $0x3c] sm:$0x1]
    %v321 = vrot.slane %v306, 7
    %v322 = vsel %vm183, %v321, %v305
    %v323 = vrot.slane %v307, 6
    %v324 = vsel %vm186, %v323, %v322
    %v325 = vrot.slane %v308, 5
    %v326 = vsel %vm189, %v325, %v324
    %v327 = vrot.slane %v309, 4
    %v328 = vsel %vm192, %v327, %v326
    %v329 = vrot.slane %v310, 3
    %v330 = vsel %vm195, %v329, %v328
    %v331 = vrot.slane %v311, 2
    %v332 = vsel %vm198, %v331, %v330
    %v333 = vrot.slane %v312, 1
    %v334 = vsel %vm201, %v333, %v332
    %s336 = scalar_lea.vmem [#allocation2], 32
    %337 = vst.msk [vmem:[%s336] sm:$0xff] %vm204, %v334
    %v338 = vld [vmem:[%s1 + $0x5] sm:$0x1]
    %v339 = vld [vmem:[%s1 + $0xd] sm:$0x1]
    %v340 = vld [vmem:[%s1 + $0x15] sm:$0x1]
    %v341 = vld [vmem:[%s1 + $0x1d] sm:$0x1]
    %v342 = vld [vmem:[%s1 + $0x25] sm:$0x1]
    %v343 = vld [vmem:[%s1 + $0x2d] sm:$0x1]
    %v344 = vld [vmem:[%s1 + $0x35] sm:$0x1]
    %v345 = vld [vmem:[%s1 + $0x3d] sm:$0x1]
    %v354 = vrot.slane %v339, 7
    %v355 = vsel %vm183, %v354, %v338
    %v356 = vrot.slane %v340, 6
    %v357 = vsel %vm186, %v356, %v355
    %v358 = vrot.slane %v341, 5
    %v359 = vsel %vm189, %v358, %v357
    %v360 = vrot.slane %v342, 4
    %v361 = vsel %vm192, %v360, %v359
    %v362 = vrot.slane %v343, 3
    %v363 = vsel %vm195, %v362, %v361
    %v364 = vrot.slane %v344, 2
    %v365 = vsel %vm198, %v364, %v363
    %v366 = vrot.slane %v345, 1
    %v367 = vsel %vm201, %v366, %v365
    %s369 = scalar_lea.vmem [#allocation2], 40
    %370 = vst.msk [vmem:[%s369] sm:$0xff] %vm204, %v367
    %v371 = vld [vmem:[%s1 + $0x6] sm:$0x1]
    %v372 = vld [vmem:[%s1 + $0xe] sm:$0x1]
    %v373 = vld [vmem:[%s1 + $0x16] sm:$0x1]
    %v374 = vld [vmem:[%s1 + $0x1e] sm:$0x1]
    %v375 = vld [vmem:[%s1 + $0x26] sm:$0x1]
    %v376 = vld [vmem:[%s1 + $0x2e] sm:$0x1]
    %v377 = vld [vmem:[%s1 + $0x36] sm:$0x1]
    %v378 = vld [vmem:[%s1 + $0x3e] sm:$0x1]
    %v387 = vrot.slane %v372, 7
    %v388 = vsel %vm183, %v387, %v371
    %v389 = vrot.slane %v373, 6
    %v390 = vsel %vm186, %v389, %v388
    %v391 = vrot.slane %v374, 5
    %v392 = vsel %vm189, %v391, %v390
    %v393 = vrot.slane %v375, 4
    %v394 = vsel %vm192, %v393, %v392
    %v395 = vrot.slane %v376, 3
    %v396 = vsel %vm195, %v395, %v394
    %v397 = vrot.slane %v377, 2
    %v398 = vsel %vm198, %v397, %v396
    %v399 = vrot.slane %v378, 1
    %v400 = vsel %vm201, %v399, %v398
    %s402 = scalar_lea.vmem [#allocation2], 48
    %403 = vst.msk [vmem:[%s402] sm:$0xff] %vm204, %v400
    %v404 = vld [vmem:[%s1 + $0x7] sm:$0x1]
    %v405 = vld [vmem:[%s1 + $0xf] sm:$0x1]
    %v406 = vld [vmem:[%s1 + $0x17] sm:$0x1]
    %v407 = vld [vmem:[%s1 + $0x1f] sm:$0x1]
    %v408 = vld [vmem:[%s1 + $0x27] sm:$0x1]
    %v409 = vld [vmem:[%s1 + $0x2f] sm:$0x1]
    %v410 = vld [vmem:[%s1 + $0x37] sm:$0x1]
    %v411 = vld [vmem:[%s1 + $0x3f] sm:$0x1]
    %v420 = vrot.slane %v405, 7
    %v421 = vsel %vm183, %v420, %v404
    %v422 = vrot.slane %v406, 6
    %v423 = vsel %vm186, %v422, %v421
    %v424 = vrot.slane %v407, 5
    %v425 = vsel %vm189, %v424, %v423
    %v426 = vrot.slane %v408, 4
    %v427 = vsel %vm192, %v426, %v425
    %v428 = vrot.slane %v409, 3
    %v429 = vsel %vm195, %v428, %v427
    %v430 = vrot.slane %v410, 2
    %v431 = vsel %vm198, %v430, %v429
    %v432 = vrot.slane %v411, 1
    %v433 = vsel %vm201, %v432, %v431
    %s435 = scalar_lea.vmem [#allocation2], 56
    %436 = vst.msk [vmem:[%s435] sm:$0xff] %vm204, %v433
    %v437 = vld [vmem:[#allocation2] sm:$0xff]
    %v438 = vld [vmem:[#allocation2 + $0x8] sm:$0xff]
    %v439 = vld [vmem:[#allocation2 + $0x10] sm:$0xff]
    %v440 = vld [vmem:[#allocation2 + $0x18] sm:$0xff]
    %v441 = vld [vmem:[#allocation2 + $0x20] sm:$0xff]
    %v442 = vld [vmem:[#allocation2 + $0x28] sm:$0xff]
    %v443 = vld [vmem:[#allocation2 + $0x30] sm:$0xff]
    %v444 = vld [vmem:[#allocation2 + $0x38] sm:$0xff]
    %v445 = vld [vmem:[%s3] sm:$0x7]
    %v446 = vld [vmem:[%s5] sm:$0x1]
    %v448 = vlaneseq
    %v449 = vshrl.u32 %v448, 7
    %v450 = vsub.s32 0, %v449
    %v451 = vrot.slane %v446, %v450
    %v454 = vsel %vm204, %v437, 0
    %v457 = vsel %vm204, %v438, 0
    %v460 = vsel %vm204, %v439, 0
    %v463 = vsel %vm204, %v440, 0
    %v466 = vsel %vm204, %v441, 0
    %v469 = vsel %vm204, %v442, 0
    %v472 = vsel %vm204, %v443, 0
    %v475 = vsel %vm204, %v444, 0
    %vm477 = vcmask 1042432
    %v479 = vsel %vm477, %v445, 0
    %481 = vmatprep.subr.mxu0 0.0
    %482 = vmatpush1.msra.mxu0 %v479
    %483 = vmatprep.subr.mxu0 0.0
    %484 = vmatpush1.msra.mxu0 0.0
    %485 = vmatprep.subr.mxu0 0.0
    %486 = vmatpush1.msra.mxu0 0.0
    %487 = vmatprep.subr.mxu0 0.0
    %488 = vmatpush1.msra.mxu0 0.0
    %489 = vmatprep.subr.mxu0 0.0
    %490 = vmatpush1.msra.mxu0 0.0
    %491 = vmatprep.subr.mxu0 0.0
    %492 = vmatpush1.msra.mxu0 0.0
    %493 = vmatprep.subr.mxu0 0.0
    %494 = vmatpush1.msra.mxu0 0.0
    %495 = vmatprep.subr.mxu0 0.0
    %496 = vmatpush1.msra.mxu0 0.0
    %497 = vmatprep.subr.mxu0 0.0
    %498 = vmatpush1.msra.mxu0 0.0
    %499 = vmatprep.subr.mxu0 0.0
    %500 = vmatpush1.msra.mxu0 0.0
    %501 = vmatprep.subr.mxu0 0.0
    %502 = vmatpush1.msra.mxu0 0.0
    %503 = vmatprep.subr.mxu0 0.0
    %504 = vmatpush1.msra.mxu0 0.0
    %505 = vmatprep.subr.mxu0 0.0
    %506 = vmatpush1.msra.mxu0 0.0
    %507 = vmatprep.subr.mxu0 0.0
    %508 = vmatpush1.msra.mxu0 0.0
    %509 = vmatprep.subr.mxu0 0.0
    %510 = vmatpush1.msra.mxu0 0.0
    %511 = vmatprep.subr.mxu0 0.0
    %512 = vmatpush1.msra.mxu0 0.0
    %513 = vmatprep.subr.mxu0 0.0
    %514 = vmatpush1.msra.mxu0 0.0
    %515 = vmatprep.subr.mxu0 0.0
    %516 = vmatpush1.msra.mxu0 0.0
    %517 = vmatprep.subr.mxu0 0.0
    %518 = vmatpush1.msra.mxu0 0.0
    %519 = vmatprep.subr.mxu0 0.0
    %520 = vmatpush1.msra.mxu0 0.0
    %521 = vmatprep.subr.mxu0 0.0
    %522 = vmatpush1.msra.mxu0 0.0
    %523 = vmatprep.subr.mxu0 0.0
    %524 = vmatpush1.msra.mxu0 0.0
    %525 = vmatprep.subr.mxu0 0.0
    %526 = vmatpush1.msra.mxu0 0.0
    %527 = vmatprep.subr.mxu0 0.0
    %528 = vmatpush1.msra.mxu0 0.0
    %529 = vmatprep.subr.mxu0 0.0
    %530 = vmatpush1.msra.mxu0 0.0
    %531 = vmatprep.subr.mxu0 0.0
    %532 = vmatpush1.msra.mxu0 0.0
    %533 = vmatprep.subr.mxu0 0.0
    %534 = vmatpush1.msra.mxu0 0.0
    %535 = vmatprep.subr.mxu0 0.0
    %536 = vmatpush1.msra.mxu0 0.0
    %537 = vmatprep.subr.mxu0 0.0
    %538 = vmatpush1.msra.mxu0 0.0
    %539 = vmatprep.subr.mxu0 0.0
    %540 = vmatpush1.msra.mxu0 0.0
    %541 = vmatprep.subr.mxu0 0.0
    %542 = vmatpush1.msra.mxu0 0.0
    %543 = vmatprep.subr.mxu0 0.0
    %544 = vmatpush1.msra.mxu0 0.0
    %545 = vmatprep.mubr.f32.mxu0 0.0
    %546 = vmatmul.mubr.f32.gmra.mrb[0].mxu0 %v454
    %v547 = vpop.f32.mrb[0].mxu0
    %v548 = vadd.f32 %v451, %v547
    %v549 = vpop.f32.mrb[0].mxu0
    %550 = vmatprep.mubr.f32.mxu0 0.0
    %551 = vmatmul.mubr.f32.gmra.mrb[0].mxu0 %v457
    %v552 = vpop.f32.mrb[0].mxu0
    %v553 = vadd.f32 %v451, %v552
    %v554 = vpop.f32.mrb[0].mxu0
    %555 = vmatprep.mubr.f32.mxu0 0.0
    %556 = vmatmul.mubr.f32.gmra.mrb[0].mxu0 %v460
    %v557 = vpop.f32.mrb[0].mxu0
    %v558 = vadd.f32 %v451, %v557
    %v559 = vpop.f32.mrb[0].mxu0
    %560 = vmatprep.mubr.f32.mxu0 0.0
    %561 = vmatmul.mubr.f32.gmra.mrb[0].mxu0 %v463
    %v562 = vpop.f32.mrb[0].mxu0
    %v563 = vadd.f32 %v451, %v562
    %v564 = vpop.f32.mrb[0].mxu0
    %565 = vmatprep.mubr.f32.mxu0 0.0
    %566 = vmatmul.mubr.f32.gmra.mrb[0].mxu0 %v466
    %v567 = vpop.f32.mrb[0].mxu0
    %v568 = vadd.f32 %v451, %v567
    %v569 = vpop.f32.mrb[0].mxu0
    %570 = vmatprep.mubr.f32.mxu0 0.0
    %571 = vmatmul.mubr.f32.gmra.mrb[0].mxu0 %v469
    %v572 = vpop.f32.mrb[0].mxu0
    %v573 = vadd.f32 %v451, %v572
    %v574 = vpop.f32.mrb[0].mxu0
    %575 = vmatprep.mubr.f32.mxu0 0.0
    %576 = vmatmul.mubr.f32.gmra.mrb[0].mxu0 %v472
    %v577 = vpop.f32.mrb[0].mxu0
    %v578 = vadd.f32 %v451, %v577
    %v579 = vpop.f32.mrb[0].mxu0
    %580 = vmatprep.mubr.f32.mxu0 0.0
    %581 = vmatmul.mubr.f32.gmra.mrb[0].mxu0 %v475
    %v582 = vpop.f32.mrb[0].mxu0
    %v583 = vadd.f32 %v451, %v582
    %v584 = vpop.f32.mrb[0].mxu0
    %585 = vdwg.mxu0
    %v586 = vmax.f32 %v548, 0.0
    %v587 = vmax.f32 %v553, 0.0
    %v588 = vmax.f32 %v558, 0.0
    %v589 = vmax.f32 %v563, 0.0
    %v590 = vmax.f32 %v568, 0.0
    %v591 = vmax.f32 %v573, 0.0
    %v592 = vmax.f32 %v578, 0.0
    %v593 = vmax.f32 %v583, 0.0
    %v594 = vld [vmem:[%s7] sm:$0xff]
    %v595 = vld [vmem:[%s7 + $0x8] sm:$0xff]
    %v596 = vld [vmem:[%s7 + $0x10] sm:$0xff]
    %v597 = vld [vmem:[%s7 + $0x18] sm:$0xff]
    %v598 = vld [vmem:[%s7 + $0x20] sm:$0xff]
    %v599 = vld [vmem:[%s7 + $0x28] sm:$0xff]
    %v600 = vld [vmem:[%s7 + $0x30] sm:$0xff]
    %v601 = vld [vmem:[%s7 + $0x38] sm:$0xff]
    %v602 = vld [vmem:[%s9] sm:$0x1]
    %v604 = vlaneseq
    %v605 = vshrl.u32 %v604, 7
    %v606 = vsub.s32 0, %v605
    %v607 = vrot.slane %v602, %v606
    %vm609 = vcmask 523264
    %v611 = vsel %vm609, %v586, 0
    %v614 = vsel %vm609, %v587, 0
    %v617 = vsel %vm609, %v588, 0
    %v620 = vsel %vm609, %v589, 0
    %v623 = vsel %vm609, %v590, 0
    %v626 = vsel %vm609, %v591, 0
    %v629 = vsel %vm609, %v592, 0
    %v632 = vsel %vm609, %v593, 0
    %634 = vmatprep.subr.mxu0 0.0
    %635 = vmatpush1.msra.mxu0 %v594
    %636 = vmatprep.subr.mxu0 0.0
    %637 = vmatpush1.msra.mxu0 %v595
    %638 = vmatprep.subr.mxu0 0.0
    %639 = vmatpush1.msra.mxu0 %v596
    %640 = vmatprep.subr.mxu0 0.0
    %641 = vmatpush1.msra.mxu0 %v597
    %642 = vmatprep.subr.mxu0 0.0
    %643 = vmatpush1.msra.mxu0 %v598
    %644 = vmatprep.subr.mxu0 0.0
    %645 = vmatpush1.msra.mxu0 %v599
    %646 = vmatprep.subr.mxu0 0.0
    %647 = vmatpush1.msra.mxu0 %v600
    %648 = vmatprep.subr.mxu0 0.0
    %649 = vmatpush1.msra.mxu0 %v601
    %650 = vmatprep.subr.mxu0 0.0
    %651 = vmatpush1.msra.mxu0 0.0
    %652 = vmatprep.subr.mxu0 0.0
    %653 = vmatpush1.msra.mxu0 0.0
    %654 = vmatprep.subr.mxu0 0.0
    %655 = vmatpush1.msra.mxu0 0.0
    %656 = vmatprep.subr.mxu0 0.0
    %657 = vmatpush1.msra.mxu0 0.0
    %658 = vmatprep.subr.mxu0 0.0
    %659 = vmatpush1.msra.mxu0 0.0
    %660 = vmatprep.subr.mxu0 0.0
    %661 = vmatpush1.msra.mxu0 0.0
    %662 = vmatprep.subr.mxu0 0.0
    %663 = vmatpush1.msra.mxu0 0.0
    %664 = vmatprep.subr.mxu0 0.0
    %665 = vmatpush1.msra.mxu0 0.0
    %666 = vmatprep.subr.mxu0 0.0
    %667 = vmatpush1.msra.mxu0 0.0
    %668 = vmatprep.subr.mxu0 0.0
    %669 = vmatpush1.msra.mxu0 0.0
    %670 = vmatprep.subr.mxu0 0.0
    %671 = vmatpush1.msra.mxu0 0.0
    %672 = vmatprep.subr.mxu0 0.0
    %673 = vmatpush1.msra.mxu0 0.0
    %674 = vmatprep.subr.mxu0 0.0
    %675 = vmatpush1.msra.mxu0 0.0
    %676 = vmatprep.subr.mxu0 0.0
    %677 = vmatpush1.msra.mxu0 0.0
    %678 = vmatprep.subr.mxu0 0.0
    %679 = vmatpush1.msra.mxu0 0.0
    %680 = vmatprep.subr.mxu0 0.0
    %681 = vmatpush1.msra.mxu0 0.0
    %682 = vmatprep.subr.mxu0 0.0
    %683 = vmatpush1.msra.mxu0 0.0
    %684 = vmatprep.subr.mxu0 0.0
    %685 = vmatpush1.msra.mxu0 0.0
    %686 = vmatprep.subr.mxu0 0.0
    %687 = vmatpush1.msra.mxu0 0.0
    %688 = vmatprep.subr.mxu0 0.0
    %689 = vmatpush1.msra.mxu0 0.0
    %690 = vmatprep.subr.mxu0 0.0
    %691 = vmatpush1.msra.mxu0 0.0
    %692 = vmatprep.subr.mxu0 0.0
    %693 = vmatpush1.msra.mxu0 0.0
    %694 = vmatprep.subr.mxu0 0.0
    %695 = vmatpush1.msra.mxu0 0.0
    %696 = vmatprep.subr.mxu0 0.0
    %697 = vmatpush1.msra.mxu0 0.0
    %698 = vmatprep.mubr.f32.mxu0 0.0
    %699 = vmatmul.mubr.f32.gmra.mrb[0].mxu0 %v611
    %v700 = vpop.f32.mrb[0].mxu0
    %v701 = vadd.f32 %v607, %v700
    %v702 = vpop.f32.mrb[0].mxu0
    %703 = vmatprep.mubr.f32.mxu0 0.0
    %704 = vmatmul.mubr.f32.gmra.mrb[0].mxu0 %v614
    %v705 = vpop.f32.mrb[0].mxu0
    %v706 = vadd.f32 %v607, %v705
    %v707 = vpop.f32.mrb[0].mxu0
    %708 = vmatprep.mubr.f32.mxu0 0.0
    %709 = vmatmul.mubr.f32.gmra.mrb[0].mxu0 %v617
    %v710 = vpop.f32.mrb[0].mxu0
    %v711 = vadd.f32 %v607, %v710
    %v712 = vpop.f32.mrb[0].mxu0
    %713 = vmatprep.mubr.f32.mxu0 0.0
    %714 = vmatmul.mubr.f32.gmra.mrb[0].mxu0 %v620
    %v715 = vpop.f32.mrb[0].mxu0
    %v716 = vadd.f32 %v607, %v715
    %v717 = vpop.f32.mrb[0].mxu0
    %718 = vmatprep.mubr.f32.mxu0 0.0
    %719 = vmatmul.mubr.f32.gmra.mrb[0].mxu0 %v623
    %v720 = vpop.f32.mrb[0].mxu0
    %v721 = vadd.f32 %v607, %v720
    %v722 = vpop.f32.mrb[0].mxu0
    %723 = vmatprep.mubr.f32.mxu0 0.0
    %724 = vmatmul.mubr.f32.gmra.mrb[0].mxu0 %v626
    %v725 = vpop.f32.mrb[0].mxu0
    %v726 = vadd.f32 %v607, %v725
    %v727 = vpop.f32.mrb[0].mxu0
    %728 = vmatprep.mubr.f32.mxu0 0.0
    %729 = vmatmul.mubr.f32.gmra.mrb[0].mxu0 %v629
    %v730 = vpop.f32.mrb[0].mxu0
    %v731 = vadd.f32 %v607, %v730
    %v732 = vpop.f32.mrb[0].mxu0
    %733 = vmatprep.mubr.f32.mxu0 0.0
    %734 = vmatmul.mubr.f32.gmra.mrb[0].mxu0 %v632
    %v735 = vpop.f32.mrb[0].mxu0
    %v736 = vadd.f32 %v607, %v735
    %v737 = vpop.f32.mrb[0].mxu0
    %738 = vdwg.mxu0
    %v739 = vmax.f32 %v701, 0.0
    %v740 = vmax.f32 %v706, 0.0
    %v741 = vmax.f32 %v711, 0.0
    %v742 = vmax.f32 %v716, 0.0
    %v743 = vmax.f32 %v721, 0.0
    %v744 = vmax.f32 %v726, 0.0
    %v745 = vmax.f32 %v731, 0.0
    %v746 = vmax.f32 %v736, 0.0
    %v747 = vld [vmem:[%s11] sm:$0xff]
    %v748 = vld [vmem:[%s11 + $0x8] sm:$0xff]
    %v749 = vld [vmem:[%s11 + $0x10] sm:$0xff]
    %v750 = vld [vmem:[%s11 + $0x18] sm:$0xff]
    %v751 = vld [vmem:[%s11 + $0x20] sm:$0xff]
    %v752 = vld [vmem:[%s11 + $0x28] sm:$0xff]
    %v753 = vld [vmem:[%s11 + $0x30] sm:$0xff]
    %v754 = vld [vmem:[%s11 + $0x38] sm:$0xff]
    %v755 = vld [vmem:[%s13] sm:$0x1]
    %v757 = vlaneseq
    %v758 = vshrl.u32 %v757, 7
    %v759 = vsub.s32 0, %v758
    %v760 = vrot.slane %v755, %v759
    %v763 = vsel %vm609, %v739, 0
    %v766 = vsel %vm609, %v740, 0
    %v769 = vsel %vm609, %v741, 0
    %v772 = vsel %vm609, %v742, 0
    %v775 = vsel %vm609, %v743, 0
    %v778 = vsel %vm609, %v744, 0
    %v781 = vsel %vm609, %v745, 0
    %v784 = vsel %vm609, %v746, 0
    %786 = vmatprep.subr.mxu0 0.0
    %787 = vmatpush1.msra.mxu0 %v747
    %788 = vmatprep.subr.mxu0 0.0
    %789 = vmatpush1.msra.mxu0 %v748
    %790 = vmatprep.subr.mxu0 0.0
    %791 = vmatpush1.msra.mxu0 %v749
    %792 = vmatprep.subr.mxu0 0.0
    %793 = vmatpush1.msra.mxu0 %v750
    %794 = vmatprep.subr.mxu0 0.0
    %795 = vmatpush1.msra.mxu0 %v751
    %796 = vmatprep.subr.mxu0 0.0
    %797 = vmatpush1.msra.mxu0 %v752
    %798 = vmatprep.subr.mxu0 0.0
    %799 = vmatpush1.msra.mxu0 %v753
    %800 = vmatprep.subr.mxu0 0.0
    %801 = vmatpush1.msra.mxu0 %v754
    %802 = vmatprep.subr.mxu0 0.0
    %803 = vmatpush1.msra.mxu0 0.0
    %804 = vmatprep.subr.mxu0 0.0
    %805 = vmatpush1.msra.mxu0 0.0
    %806 = vmatprep.subr.mxu0 0.0
    %807 = vmatpush1.msra.mxu0 0.0
    %808 = vmatprep.subr.mxu0 0.0
    %809 = vmatpush1.msra.mxu0 0.0
    %810 = vmatprep.subr.mxu0 0.0
    %811 = vmatpush1.msra.mxu0 0.0
    %812 = vmatprep.subr.mxu0 0.0
    %813 = vmatpush1.msra.mxu0 0.0
    %814 = vmatprep.subr.mxu0 0.0
    %815 = vmatpush1.msra.mxu0 0.0
    %816 = vmatprep.subr.mxu0 0.0
    %817 = vmatpush1.msra.mxu0 0.0
    %818 = vmatprep.subr.mxu0 0.0
    %819 = vmatpush1.msra.mxu0 0.0
    %820 = vmatprep.subr.mxu0 0.0
    %821 = vmatpush1.msra.mxu0 0.0
    %822 = vmatprep.subr.mxu0 0.0
    %823 = vmatpush1.msra.mxu0 0.0
    %824 = vmatprep.subr.mxu0 0.0
    %825 = vmatpush1.msra.mxu0 0.0
    %826 = vmatprep.subr.mxu0 0.0
    %827 = vmatpush1.msra.mxu0 0.0
    %828 = vmatprep.subr.mxu0 0.0
    %829 = vmatpush1.msra.mxu0 0.0
    %830 = vmatprep.subr.mxu0 0.0
    %831 = vmatpush1.msra.mxu0 0.0
    %832 = vmatprep.subr.mxu0 0.0
    %833 = vmatpush1.msra.mxu0 0.0
    %834 = vmatprep.subr.mxu0 0.0
    %835 = vmatpush1.msra.mxu0 0.0
    %836 = vmatprep.subr.mxu0 0.0
    %837 = vmatpush1.msra.mxu0 0.0
    %838 = vmatprep.subr.mxu0 0.0
    %839 = vmatpush1.msra.mxu0 0.0
    %840 = vmatprep.subr.mxu0 0.0
    %841 = vmatpush1.msra.mxu0 0.0
    %842 = vmatprep.subr.mxu0 0.0
    %843 = vmatpush1.msra.mxu0 0.0
    %844 = vmatprep.subr.mxu0 0.0
    %845 = vmatpush1.msra.mxu0 0.0
    %846 = vmatprep.subr.mxu0 0.0
    %847 = vmatpush1.msra.mxu0 0.0
    %848 = vmatprep.subr.mxu0 0.0
    %849 = vmatpush1.msra.mxu0 0.0
    %850 = vmatprep.mubr.f32.mxu0 0.0
    %851 = vmatmul.mubr.f32.gmra.mrb[0].mxu0 %v763
    %v852 = vpop.f32.mrb[0].mxu0
    %v853 = vadd.f32 %v760, %v852
    %v854 = vpop.f32.mrb[0].mxu0
    %855 = vmatprep.mubr.f32.mxu0 0.0
    %856 = vmatmul.mubr.f32.gmra.mrb[0].mxu0 %v766
    %v857 = vpop.f32.mrb[0].mxu0
    %v858 = vadd.f32 %v760, %v857
    %v859 = vpop.f32.mrb[0].mxu0
    %860 = vmatprep.mubr.f32.mxu0 0.0
    %861 = vmatmul.mubr.f32.gmra.mrb[0].mxu0 %v769
    %v862 = vpop.f32.mrb[0].mxu0
    %v863 = vadd.f32 %v760, %v862
    %v864 = vpop.f32.mrb[0].mxu0
    %865 = vmatprep.mubr.f32.mxu0 0.0
    %866 = vmatmul.mubr.f32.gmra.mrb[0].mxu0 %v772
    %v867 = vpop.f32.mrb[0].mxu0
    %v868 = vadd.f32 %v760, %v867
    %v869 = vpop.f32.mrb[0].mxu0
    %870 = vmatprep.mubr.f32.mxu0 0.0
    %871 = vmatmul.mubr.f32.gmra.mrb[0].mxu0 %v775
    %v872 = vpop.f32.mrb[0].mxu0
    %v873 = vadd.f32 %v760, %v872
    %v874 = vpop.f32.mrb[0].mxu0
    %875 = vmatprep.mubr.f32.mxu0 0.0
    %876 = vmatmul.mubr.f32.gmra.mrb[0].mxu0 %v778
    %v877 = vpop.f32.mrb[0].mxu0
    %v878 = vadd.f32 %v760, %v877
    %v879 = vpop.f32.mrb[0].mxu0
    %880 = vmatprep.mubr.f32.mxu0 0.0
    %881 = vmatmul.mubr.f32.gmra.mrb[0].mxu0 %v781
    %v882 = vpop.f32.mrb[0].mxu0
    %v883 = vadd.f32 %v760, %v882
    %v884 = vpop.f32.mrb[0].mxu0
    %885 = vmatprep.mubr.f32.mxu0 0.0
    %886 = vmatmul.mubr.f32.gmra.mrb[0].mxu0 %v784
    %v887 = vpop.f32.mrb[0].mxu0
    %v888 = vadd.f32 %v760, %v887
    %v889 = vpop.f32.mrb[0].mxu0
    %890 = vdwg.mxu0
    %v891 = vmax.f32 %v853, 0.0
    %v892 = vmax.f32 %v858, 0.0
    %v893 = vmax.f32 %v863, 0.0
    %v894 = vmax.f32 %v868, 0.0
    %v895 = vmax.f32 %v873, 0.0
    %v896 = vmax.f32 %v878, 0.0
    %v897 = vmax.f32 %v883, 0.0
    %v898 = vmax.f32 %v888, 0.0
    %v899 = vld [vmem:[%s15] sm:$0xff]
    %v900 = vld [vmem:[%s15 + $0x8] sm:$0xff]
    %v901 = vld [vmem:[%s15 + $0x10] sm:$0xff]
    %v902 = vld [vmem:[%s15 + $0x18] sm:$0xff]
    %v903 = vld [vmem:[%s15 + $0x20] sm:$0xff]
    %v904 = vld [vmem:[%s15 + $0x28] sm:$0xff]
    %v905 = vld [vmem:[%s15 + $0x30] sm:$0xff]
    %v906 = vld [vmem:[%s15 + $0x38] sm:$0xff]
    %v907 = vld [vmem:[%s27] sm:$0x1]
    %v909 = vlaneseq
    %v910 = vshrl.u32 %v909, 7
    %v911 = vsub.s32 0, %v910
    %v912 = vrot.slane %v907, %v911
    %v915 = vsel %vm609, %v891, 0
    %v918 = vsel %vm609, %v892, 0
    %v921 = vsel %vm609, %v893, 0
    %v924 = vsel %vm609, %v894, 0
    %v927 = vsel %vm609, %v895, 0
    %v930 = vsel %vm609, %v896, 0
    %v933 = vsel %vm609, %v897, 0
    %v936 = vsel %vm609, %v898, 0
    %938 = vmatprep.subr.mxu0 0.0
    %939 = vmatpush1.msra.mxu0 %v899
    %940 = vmatprep.subr.mxu0 0.0
    %941 = vmatpush1.msra.mxu0 %v900
    %942 = vmatprep.subr.mxu0 0.0
    %943 = vmatpush1.msra.mxu0 %v901
    %944 = vmatprep.subr.mxu0 0.0
    %945 = vmatpush1.msra.mxu0 %v902
    %946 = vmatprep.subr.mxu0 0.0
    %947 = vmatpush1.msra.mxu0 %v903
    %948 = vmatprep.subr.mxu0 0.0
    %949 = vmatpush1.msra.mxu0 %v904
    %950 = vmatprep.subr.mxu0 0.0
    %951 = vmatpush1.msra.mxu0 %v905
    %952 = vmatprep.subr.mxu0 0.0
    %953 = vmatpush1.msra.mxu0 %v906
    %954 = vmatprep.subr.mxu0 0.0
    %955 = vmatpush1.msra.mxu0 0.0
    %956 = vmatprep.subr.mxu0 0.0
    %957 = vmatpush1.msra.mxu0 0.0
    %958 = vmatprep.subr.mxu0 0.0
    %959 = vmatpush1.msra.mxu0 0.0
    %960 = vmatprep.subr.mxu0 0.0
    %961 = vmatpush1.msra.mxu0 0.0
    %962 = vmatprep.subr.mxu0 0.0
    %963 = vmatpush1.msra.mxu0 0.0
    %964 = vmatprep.subr.mxu0 0.0
    %965 = vmatpush1.msra.mxu0 0.0
    %966 = vmatprep.subr.mxu0 0.0
    %967 = vmatpush1.msra.mxu0 0.0
    %968 = vmatprep.subr.mxu0 0.0
    %969 = vmatpush1.msra.mxu0 0.0
    %970 = vmatprep.subr.mxu0 0.0
    %971 = vmatpush1.msra.mxu0 0.0
    %972 = vmatprep.subr.mxu0 0.0
    %973 = vmatpush1.msra.mxu0 0.0
    %974 = vmatprep.subr.mxu0 0.0
    %975 = vmatpush1.msra.mxu0 0.0
    %976 = vmatprep.subr.mxu0 0.0
    %977 = vmatpush1.msra.mxu0 0.0
    %978 = vmatprep.subr.mxu0 0.0
    %979 = vmatpush1.msra.mxu0 0.0
    %980 = vmatprep.subr.mxu0 0.0
    %981 = vmatpush1.msra.mxu0 0.0
    %982 = vmatprep.subr.mxu0 0.0
    %983 = vmatpush1.msra.mxu0 0.0
    %984 = vmatprep.subr.mxu0 0.0
    %985 = vmatpush1.msra.mxu0 0.0
    %986 = vmatprep.subr.mxu0 0.0
    %987 = vmatpush1.msra.mxu0 0.0
    %988 = vmatprep.subr.mxu0 0.0
    %989 = vmatpush1.msra.mxu0 0.0
    %990 = vmatprep.subr.mxu0 0.0
    %991 = vmatpush1.msra.mxu0 0.0
    %992 = vmatprep.subr.mxu0 0.0
    %993 = vmatpush1.msra.mxu0 0.0
    %994 = vmatprep.subr.mxu0 0.0
    %995 = vmatpush1.msra.mxu0 0.0
    %996 = vmatprep.subr.mxu0 0.0
    %997 = vmatpush1.msra.mxu0 0.0
    %998 = vmatprep.subr.mxu0 0.0
    %999 = vmatpush1.msra.mxu0 0.0
    %1000 = vmatprep.subr.mxu0 0.0
    %1001 = vmatpush1.msra.mxu0 0.0
    %1002 = vmatprep.mubr.f32.mxu0 0.0
    %1003 = vmatmul.mubr.f32.gmra.mrb[0].mxu0 %v915
    %v1004 = vpop.f32.mrb[0].mxu0
    %v1005 = vadd.f32 %v912, %v1004
    %v1006 = vpop.f32.mrb[0].mxu0
    %1007 = vmatprep.mubr.f32.mxu0 0.0
    %1008 = vmatmul.mubr.f32.gmra.mrb[0].mxu0 %v918
    %v1009 = vpop.f32.mrb[0].mxu0
    %v1010 = vadd.f32 %v912, %v1009
    %v1011 = vpop.f32.mrb[0].mxu0
    %1012 = vmatprep.mubr.f32.mxu0 0.0
    %1013 = vmatmul.mubr.f32.gmra.mrb[0].mxu0 %v921
    %v1014 = vpop.f32.mrb[0].mxu0
    %v1015 = vadd.f32 %v912, %v1014
    %v1016 = vpop.f32.mrb[0].mxu0
    %1017 = vmatprep.mubr.f32.mxu0 0.0
    %1018 = vmatmul.mubr.f32.gmra.mrb[0].mxu0 %v924
    %v1019 = vpop.f32.mrb[0].mxu0
    %v1020 = vadd.f32 %v912, %v1019
    %v1021 = vpop.f32.mrb[0].mxu0
    %1022 = vmatprep.mubr.f32.mxu0 0.0
    %1023 = vmatmul.mubr.f32.gmra.mrb[0].mxu0 %v927
    %v1024 = vpop.f32.mrb[0].mxu0
    %v1025 = vadd.f32 %v912, %v1024
    %v1026 = vpop.f32.mrb[0].mxu0
    %1027 = vmatprep.mubr.f32.mxu0 0.0
    %1028 = vmatmul.mubr.f32.gmra.mrb[0].mxu0 %v930
    %v1029 = vpop.f32.mrb[0].mxu0
    %v1030 = vadd.f32 %v912, %v1029
    %v1031 = vpop.f32.mrb[0].mxu0
    %1032 = vmatprep.mubr.f32.mxu0 0.0
    %1033 = vmatmul.mubr.f32.gmra.mrb[0].mxu0 %v933
    %v1034 = vpop.f32.mrb[0].mxu0
    %v1035 = vadd.f32 %v912, %v1034
    %v1036 = vpop.f32.mrb[0].mxu0
    %1037 = vmatprep.mubr.f32.mxu0 0.0
    %1038 = vmatmul.mubr.f32.gmra.mrb[0].mxu0 %v936
    %v1039 = vpop.f32.mrb[0].mxu0
    %v1040 = vadd.f32 %v912, %v1039
    %v1041 = vpop.f32.mrb[0].mxu0
    %1042 = vdwg.mxu0
    %vm1043 = vcmask 261120
    %1044 = vst.msk [vmem:[#allocation3] sm:$0xff] %vm1043, %v1005
    %1045 = vst.msk [vmem:[#allocation3 + $0x8] sm:$0xff] %vm1043, %v1010
    %1046 = vst.msk [vmem:[#allocation3 + $0x10] sm:$0xff] %vm1043, %v1015
    %1047 = vst.msk [vmem:[#allocation3 + $0x18] sm:$0xff] %vm1043, %v1020
    %1048 = vst.msk [vmem:[#allocation3 + $0x20] sm:$0xff] %vm1043, %v1025
    %1049 = vst.msk [vmem:[#allocation3 + $0x28] sm:$0xff] %vm1043, %v1030
    %1050 = vst.msk [vmem:[#allocation3 + $0x30] sm:$0xff] %vm1043, %v1035
    %1051 = vst.msk [vmem:[#allocation3 + $0x38] sm:$0xff] %vm1043, %v1040
    %v1052 = vld [vmem:[%s17] sm:$0xff]
    %v1053 = vld [vmem:[%s17 + $0x8] sm:$0xff]
    %v1054 = vld [vmem:[%s17 + $0x10] sm:$0xff]
    %v1055 = vld [vmem:[%s17 + $0x18] sm:$0xff]
    %v1056 = vld [vmem:[%s17 + $0x20] sm:$0xff]
    %v1057 = vld [vmem:[%s17 + $0x28] sm:$0xff]
    %v1058 = vld [vmem:[%s17 + $0x30] sm:$0xff]
    %v1059 = vld [vmem:[%s17 + $0x38] sm:$0xff]
    %v1060 = vld [vmem:[%s29] sm:$0x1]
    %v1062 = vlaneseq
    %v1063 = vshrl.u32 %v1062, 7
    %v1064 = vsub.s32 0, %v1063
    %v1065 = vrot.slane %v1060, %v1064
    %1067 = vmatprep.subr.mxu0 0.0
    %1068 = vmatpush1.msra.mxu0 %v1052
    %1069 = vmatprep.subr.mxu0 0.0
    %1070 = vmatpush1.msra.mxu0 %v1053
    %1071 = vmatprep.subr.mxu0 0.0
    %1072 = vmatpush1.msra.mxu0 %v1054
    %1073 = vmatprep.subr.mxu0 0.0
    %1074 = vmatpush1.msra.mxu0 %v1055
    %1075 = vmatprep.subr.mxu0 0.0
    %1076 = vmatpush1.msra.mxu0 %v1056
    %1077 = vmatprep.subr.mxu0 0.0
    %1078 = vmatpush1.msra.mxu0 %v1057
    %1079 = vmatprep.subr.mxu0 0.0
    %1080 = vmatpush1.msra.mxu0 %v1058
    %1081 = vmatprep.subr.mxu0 0.0
    %1082 = vmatpush1.msra.mxu0 %v1059
    %1083 = vmatprep.subr.mxu0 0.0
    %1084 = vmatpush1.msra.mxu0 0.0
    %1085 = vmatprep.subr.mxu0 0.0
    %1086 = vmatpush1.msra.mxu0 0.0
    %1087 = vmatprep.subr.mxu0 0.0
    %1088 = vmatpush1.msra.mxu0 0.0
    %1089 = vmatprep.subr.mxu0 0.0
    %1090 = vmatpush1.msra.mxu0 0.0
    %1091 = vmatprep.subr.mxu0 0.0
    %1092 = vmatpush1.msra.mxu0 0.0
    %1093 = vmatprep.subr.mxu0 0.0
    %1094 = vmatpush1.msra.mxu0 0.0
    %1095 = vmatprep.subr.mxu0 0.0
    %1096 = vmatpush1.msra.mxu0 0.0
    %1097 = vmatprep.subr.mxu0 0.0
    %1098 = vmatpush1.msra.mxu0 0.0
    %1099 = vmatprep.subr.mxu0 0.0
    %1100 = vmatpush1.msra.mxu0 0.0
    %1101 = vmatprep.subr.mxu0 0.0
    %1102 = vmatpush1.msra.mxu0 0.0
    %1103 = vmatprep.subr.mxu0 0.0
    %1104 = vmatpush1.msra.mxu0 0.0
    %1105 = vmatprep.subr.mxu0 0.0
    %1106 = vmatpush1.msra.mxu0 0.0
    %1107 = vmatprep.subr.mxu0 0.0
    %1108 = vmatpush1.msra.mxu0 0.0
    %1109 = vmatprep.subr.mxu0 0.0
    %1110 = vmatpush1.msra.mxu0 0.0
    %1111 = vmatprep.subr.mxu0 0.0
    %1112 = vmatpush1.msra.mxu0 0.0
    %1113 = vmatprep.subr.mxu0 0.0
    %1114 = vmatpush1.msra.mxu0 0.0
    %1115 = vmatprep.subr.mxu0 0.0
    %1116 = vmatpush1.msra.mxu0 0.0
    %1117 = vmatprep.subr.mxu0 0.0
    %1118 = vmatpush1.msra.mxu0 0.0
    %1119 = vmatprep.subr.mxu0 0.0
    %1120 = vmatpush1.msra.mxu0 0.0
    %1121 = vmatprep.subr.mxu0 0.0
    %1122 = vmatpush1.msra.mxu0 0.0
    %1123 = vmatprep.subr.mxu0 0.0
    %1124 = vmatpush1.msra.mxu0 0.0
    %1125 = vmatprep.subr.mxu0 0.0
    %1126 = vmatpush1.msra.mxu0 0.0
    %1127 = vmatprep.subr.mxu0 0.0
    %1128 = vmatpush1.msra.mxu0 0.0
    %1129 = vmatprep.subr.mxu0 0.0
    %1130 = vmatpush1.msra.mxu0 0.0
    %1131 = vmatprep.mubr.f32.mxu0 0.0
    %1132 = vmatmul.mubr.f32.gmra.mrb[0].mxu0 %v915
    %v1133 = vpop.f32.mrb[0].mxu0
    %v1134 = vadd.f32 %v1065, %v1133
    %v1135 = vpop.f32.mrb[0].mxu0
    %1136 = vmatprep.mubr.f32.mxu0 0.0
    %1137 = vmatmul.mubr.f32.gmra.mrb[0].mxu0 %v918
    %v1138 = vpop.f32.mrb[0].mxu0
    %v1139 = vadd.f32 %v1065, %v1138
    %v1140 = vpop.f32.mrb[0].mxu0
    %1141 = vmatprep.mubr.f32.mxu0 0.0
    %1142 = vmatmul.mubr.f32.gmra.mrb[0].mxu0 %v921
    %v1143 = vpop.f32.mrb[0].mxu0
    %v1144 = vadd.f32 %v1065, %v1143
    %v1145 = vpop.f32.mrb[0].mxu0
    %1146 = vmatprep.mubr.f32.mxu0 0.0
    %1147 = vmatmul.mubr.f32.gmra.mrb[0].mxu0 %v924
    %v1148 = vpop.f32.mrb[0].mxu0
    %v1149 = vadd.f32 %v1065, %v1148
    %v1150 = vpop.f32.mrb[0].mxu0
    %1151 = vmatprep.mubr.f32.mxu0 0.0
    %1152 = vmatmul.mubr.f32.gmra.mrb[0].mxu0 %v927
    %v1153 = vpop.f32.mrb[0].mxu0
    %v1154 = vadd.f32 %v1065, %v1153
    %v1155 = vpop.f32.mrb[0].mxu0
    %1156 = vmatprep.mubr.f32.mxu0 0.0
    %1157 = vmatmul.mubr.f32.gmra.mrb[0].mxu0 %v930
    %v1158 = vpop.f32.mrb[0].mxu0
    %v1159 = vadd.f32 %v1065, %v1158
    %v1160 = vpop.f32.mrb[0].mxu0
    %1161 = vmatprep.mubr.f32.mxu0 0.0
    %1162 = vmatmul.mubr.f32.gmra.mrb[0].mxu0 %v933
    %v1163 = vpop.f32.mrb[0].mxu0
    %v1164 = vadd.f32 %v1065, %v1163
    %v1165 = vpop.f32.mrb[0].mxu0
    %1166 = vmatprep.mubr.f32.mxu0 0.0
    %1167 = vmatmul.mubr.f32.gmra.mrb[0].mxu0 %v936
    %v1168 = vpop.f32.mrb[0].mxu0
    %v1169 = vadd.f32 %v1065, %v1168
    %v1170 = vpop.f32.mrb[0].mxu0
    %1171 = vdwg.mxu0
    %1172 = vst.msk [vmem:[#allocation4] sm:$0xff] %vm1043, %v1134
    %1173 = vst.msk [vmem:[#allocation4 + $0x8] sm:$0xff] %vm1043, %v1139
    %1174 = vst.msk [vmem:[#allocation4 + $0x10] sm:$0xff] %vm1043, %v1144
    %1175 = vst.msk [vmem:[#allocation4 + $0x18] sm:$0xff] %vm1043, %v1149
    %1176 = vst.msk [vmem:[#allocation4 + $0x20] sm:$0xff] %vm1043, %v1154
    %1177 = vst.msk [vmem:[#allocation4 + $0x28] sm:$0xff] %vm1043, %v1159
    %1178 = vst.msk [vmem:[#allocation4 + $0x30] sm:$0xff] %vm1043, %v1164
    %1179 = vst.msk [vmem:[#allocation4 + $0x38] sm:$0xff] %vm1043, %v1169
    %v1180 = vld [vmem:[%s19] sm:$0xff]
    %v1181 = vld [vmem:[%s19 + $0x8] sm:$0xff]
    %v1182 = vld [vmem:[%s19 + $0x10] sm:$0xff]
    %v1183 = vld [vmem:[%s19 + $0x18] sm:$0xff]
    %v1184 = vld [vmem:[%s19 + $0x20] sm:$0xff]
    %v1185 = vld [vmem:[%s19 + $0x28] sm:$0xff]
    %v1186 = vld [vmem:[%s19 + $0x30] sm:$0xff]
    %v1187 = vld [vmem:[%s19 + $0x38] sm:$0xff]
    %v1188 = vld [vmem:[%s31] sm:$0x1]
    %v1190 = vlaneseq
    %v1191 = vshrl.u32 %v1190, 7
    %v1192 = vsub.s32 0, %v1191
    %v1193 = vrot.slane %v1188, %v1192
    %1195 = vmatprep.subr.mxu0 0.0
    %1196 = vmatpush1.msra.mxu0 %v1180
    %1197 = vmatprep.subr.mxu0 0.0
    %1198 = vmatpush1.msra.mxu0 %v1181
    %1199 = vmatprep.subr.mxu0 0.0
    %1200 = vmatpush1.msra.mxu0 %v1182
    %1201 = vmatprep.subr.mxu0 0.0
    %1202 = vmatpush1.msra.mxu0 %v1183
    %1203 = vmatprep.subr.mxu0 0.0
    %1204 = vmatpush1.msra.mxu0 %v1184
    %1205 = vmatprep.subr.mxu0 0.0
    %1206 = vmatpush1.msra.mxu0 %v1185
    %1207 = vmatprep.subr.mxu0 0.0
    %1208 = vmatpush1.msra.mxu0 %v1186
    %1209 = vmatprep.subr.mxu0 0.0
    %1210 = vmatpush1.msra.mxu0 %v1187
    %1211 = vmatprep.subr.mxu0 0.0
    %1212 = vmatpush1.msra.mxu0 0.0
    %1213 = vmatprep.subr.mxu0 0.0
    %1214 = vmatpush1.msra.mxu0 0.0
    %1215 = vmatprep.subr.mxu0 0.0
    %1216 = vmatpush1.msra.mxu0 0.0
    %1217 = vmatprep.subr.mxu0 0.0
    %1218 = vmatpush1.msra.mxu0 0.0
    %1219 = vmatprep.subr.mxu0 0.0
    %1220 = vmatpush1.msra.mxu0 0.0
    %1221 = vmatprep.subr.mxu0 0.0
    %1222 = vmatpush1.msra.mxu0 0.0
    %1223 = vmatprep.subr.mxu0 0.0
    %1224 = vmatpush1.msra.mxu0 0.0
    %1225 = vmatprep.subr.mxu0 0.0
    %1226 = vmatpush1.msra.mxu0 0.0
    %1227 = vmatprep.subr.mxu0 0.0
    %1228 = vmatpush1.msra.mxu0 0.0
    %1229 = vmatprep.subr.mxu0 0.0
    %1230 = vmatpush1.msra.mxu0 0.0
    %1231 = vmatprep.subr.mxu0 0.0
    %1232 = vmatpush1.msra.mxu0 0.0
    %1233 = vmatprep.subr.mxu0 0.0
    %1234 = vmatpush1.msra.mxu0 0.0
    %1235 = vmatprep.subr.mxu0 0.0
    %1236 = vmatpush1.msra.mxu0 0.0
    %1237 = vmatprep.subr.mxu0 0.0
    %1238 = vmatpush1.msra.mxu0 0.0
    %1239 = vmatprep.subr.mxu0 0.0
    %1240 = vmatpush1.msra.mxu0 0.0
    %1241 = vmatprep.subr.mxu0 0.0
    %1242 = vmatpush1.msra.mxu0 0.0
    %1243 = vmatprep.subr.mxu0 0.0
    %1244 = vmatpush1.msra.mxu0 0.0
    %1245 = vmatprep.subr.mxu0 0.0
    %1246 = vmatpush1.msra.mxu0 0.0
    %1247 = vmatprep.subr.mxu0 0.0
    %1248 = vmatpush1.msra.mxu0 0.0
    %1249 = vmatprep.subr.mxu0 0.0
    %1250 = vmatpush1.msra.mxu0 0.0
    %1251 = vmatprep.subr.mxu0 0.0
    %1252 = vmatpush1.msra.mxu0 0.0
    %1253 = vmatprep.subr.mxu0 0.0
    %1254 = vmatpush1.msra.mxu0 0.0
    %1255 = vmatprep.subr.mxu0 0.0
    %1256 = vmatpush1.msra.mxu0 0.0
    %1257 = vmatprep.subr.mxu0 0.0
    %1258 = vmatpush1.msra.mxu0 0.0
    %1259 = vmatprep.mubr.f32.mxu0 0.0
    %1260 = vmatmul.mubr.f32.gmra.mrb[0].mxu0 %v915
    %v1261 = vpop.f32.mrb[0].mxu0
    %v1262 = vadd.f32 %v1193, %v1261
    %v1263 = vpop.f32.mrb[0].mxu0
    %1264 = vmatprep.mubr.f32.mxu0 0.0
    %1265 = vmatmul.mubr.f32.gmra.mrb[0].mxu0 %v918
    %v1266 = vpop.f32.mrb[0].mxu0
    %v1267 = vadd.f32 %v1193, %v1266
    %v1268 = vpop.f32.mrb[0].mxu0
    %1269 = vmatprep.mubr.f32.mxu0 0.0
    %1270 = vmatmul.mubr.f32.gmra.mrb[0].mxu0 %v921
    %v1271 = vpop.f32.mrb[0].mxu0
    %v1272 = vadd.f32 %v1193, %v1271
    %v1273 = vpop.f32.mrb[0].mxu0
    %1274 = vmatprep.mubr.f32.mxu0 0.0
    %1275 = vmatmul.mubr.f32.gmra.mrb[0].mxu0 %v924
    %v1276 = vpop.f32.mrb[0].mxu0
    %v1277 = vadd.f32 %v1193, %v1276
    %v1278 = vpop.f32.mrb[0].mxu0
    %1279 = vmatprep.mubr.f32.mxu0 0.0
    %1280 = vmatmul.mubr.f32.gmra.mrb[0].mxu0 %v927
    %v1281 = vpop.f32.mrb[0].mxu0
    %v1282 = vadd.f32 %v1193, %v1281
    %v1283 = vpop.f32.mrb[0].mxu0
    %1284 = vmatprep.mubr.f32.mxu0 0.0
    %1285 = vmatmul.mubr.f32.gmra.mrb[0].mxu0 %v930
    %v1286 = vpop.f32.mrb[0].mxu0
    %v1287 = vadd.f32 %v1193, %v1286
    %v1288 = vpop.f32.mrb[0].mxu0
    %1289 = vmatprep.mubr.f32.mxu0 0.0
    %1290 = vmatmul.mubr.f32.gmra.mrb[0].mxu0 %v933
    %v1291 = vpop.f32.mrb[0].mxu0
    %v1292 = vadd.f32 %v1193, %v1291
    %v1293 = vpop.f32.mrb[0].mxu0
    %1294 = vmatprep.mubr.f32.mxu0 0.0
    %1295 = vmatmul.mubr.f32.gmra.mrb[0].mxu0 %v936
    %v1296 = vpop.f32.mrb[0].mxu0
    %v1297 = vadd.f32 %v1193, %v1296
    %v1298 = vpop.f32.mrb[0].mxu0
    %1299 = vdwg.mxu0
    %1300 = vst.msk [vmem:[#allocation5] sm:$0xff] %vm1043, %v1262
    %1301 = vst.msk [vmem:[#allocation5 + $0x8] sm:$0xff] %vm1043, %v1267
    %1302 = vst.msk [vmem:[#allocation5 + $0x10] sm:$0xff] %vm1043, %v1272
    %1303 = vst.msk [vmem:[#allocation5 + $0x18] sm:$0xff] %vm1043, %v1277
    %1304 = vst.msk [vmem:[#allocation5 + $0x20] sm:$0xff] %vm1043, %v1282
    %1305 = vst.msk [vmem:[#allocation5 + $0x28] sm:$0xff] %vm1043, %v1287
    %1306 = vst.msk [vmem:[#allocation5 + $0x30] sm:$0xff] %vm1043, %v1292
    %1307 = vst.msk [vmem:[#allocation5 + $0x38] sm:$0xff] %vm1043, %v1297
    %v1308 = vld [vmem:[%s21] sm:$0xff]
    %v1309 = vld [vmem:[%s21 + $0x8] sm:$0xff]
    %v1310 = vld [vmem:[%s21 + $0x10] sm:$0xff]
    %v1311 = vld [vmem:[%s21 + $0x18] sm:$0xff]
    %v1312 = vld [vmem:[%s23] sm:$0xff]
    %v1313 = vld [vmem:[%s23 + $0x8] sm:$0xff]
    %v1314 = vld [vmem:[%s23 + $0x10] sm:$0xff]
    %v1315 = vld [vmem:[%s23 + $0x18] sm:$0xff]
    %v1316 = vld [vmem:[%s25] sm:$0xff]
    %v1317 = vld [vmem:[%s25 + $0x8] sm:$0xff]
    %v1318 = vld [vmem:[%s25 + $0x10] sm:$0xff]
    %v1319 = vld [vmem:[%s25 + $0x18] sm:$0xff]
    %v1320 = vld [vmem:[%s33] sm:$0x1]
    %v1322 = vlaneseq
    %v1323 = vshrl.u32 %v1322, 7
    %v1324 = vsub.s32 0, %v1323
    %v1325 = vrot.slane %v1320, %v1324
    %1327 = vst.msk [vmem:[#allocation7] sm:$0xff] %vm1043, 0.0
    %v1328 = vld [vmem:[#allocation7] sm:$0xff]
    %v1330 = vsel %vm1043, %v1328, 0
    %1332 = vmatprep.subr.mxu0 0.0
    %1333 = vmatpush1.msra.mxu0 %v1308
    %1334 = vmatprep.subr.mxu0 0.0
    %1335 = vmatpush1.msra.mxu0 %v1309
    %1336 = vmatprep.subr.mxu0 0.0
    %1337 = vmatpush1.msra.mxu0 %v1310
    %1338 = vmatprep.subr.mxu0 0.0
    %1339 = vmatpush1.msra.mxu0 %v1311
    %1340 = vmatprep.subr.mxu0 0.0
    %1341 = vmatpush1.msra.mxu0 0.0
    %1342 = vmatprep.subr.mxu0 0.0
    %1343 = vmatpush1.msra.mxu0 0.0
    %1344 = vmatprep.subr.mxu0 0.0
    %1345 = vmatpush1.msra.mxu0 0.0
    %1346 = vmatprep.subr.mxu0 0.0
    %1347 = vmatpush1.msra.mxu0 0.0
    %1348 = vmatprep.subr.mxu0 0.0
    %1349 = vmatpush1.msra.mxu0 0.0
    %1350 = vmatprep.subr.mxu0 0.0
    %1351 = vmatpush1.msra.mxu0 0.0
    %1352 = vmatprep.subr.mxu0 0.0
    %1353 = vmatpush1.msra.mxu0 0.0
    %1354 = vmatprep.subr.mxu0 0.0
    %1355 = vmatpush1.msra.mxu0 0.0
    %1356 = vmatprep.subr.mxu0 0.0
    %1357 = vmatpush1.msra.mxu0 0.0
    %1358 = vmatprep.subr.mxu0 0.0
    %1359 = vmatpush1.msra.mxu0 0.0
    %1360 = vmatprep.subr.mxu0 0.0
    %1361 = vmatpush1.msra.mxu0 0.0
    %1362 = vmatprep.subr.mxu0 0.0
    %1363 = vmatpush1.msra.mxu0 0.0
    %1364 = vmatprep.subr.mxu0 0.0
    %1365 = vmatpush1.msra.mxu0 0.0
    %1366 = vmatprep.subr.mxu0 0.0
    %1367 = vmatpush1.msra.mxu0 0.0
    %1368 = vmatprep.subr.mxu0 0.0
    %1369 = vmatpush1.msra.mxu0 0.0
    %1370 = vmatprep.subr.mxu0 0.0
    %1371 = vmatpush1.msra.mxu0 0.0
    %1372 = vmatprep.subr.mxu0 0.0
    %1373 = vmatpush1.msra.mxu0 0.0
    %1374 = vmatprep.subr.mxu0 0.0
    %1375 = vmatpush1.msra.mxu0 0.0
    %1376 = vmatprep.subr.mxu0 0.0
    %1377 = vmatpush1.msra.mxu0 0.0
    %1378 = vmatprep.subr.mxu0 0.0
    %1379 = vmatpush1.msra.mxu0 0.0
    %1380 = vmatprep.subr.mxu0 0.0
    %1381 = vmatpush1.msra.mxu0 0.0
    %1382 = vmatprep.subr.mxu0 0.0
    %1383 = vmatpush1.msra.mxu0 0.0
    %1384 = vmatprep.subr.mxu0 0.0
    %1385 = vmatpush1.msra.mxu0 0.0
    %1386 = vmatprep.subr.mxu0 0.0
    %1387 = vmatpush1.msra.mxu0 0.0
    %1388 = vmatprep.subr.mxu0 0.0
    %1389 = vmatpush1.msra.mxu0 0.0
    %1390 = vmatprep.subr.mxu0 0.0
    %1391 = vmatpush1.msra.mxu0 0.0
    %1392 = vmatprep.subr.mxu0 0.0
    %1393 = vmatpush1.msra.mxu0 0.0
    %1394 = vmatprep.subr.mxu0 0.0
    %1395 = vmatpush1.msra.mxu0 0.0
    %1396 = vmatprep.mubr.f32.mxu0 0.0
    %1397 = vmatmul.mubr.f32.gmra.mrb[0].mxu0 %v1330
    %v1398 = vpop.f32.mrb[0].mxu0
    %v1399 = vadd.f32 0.0, %v1398
    %v1400 = vpop.f32.mrb[0].mxu0
    %1401 = vdwg.mxu0
    %1402 = vmatprep.subr.mxu0 0.0
    %1403 = vmatpush1.msra.mxu0 %v1312
    %1404 = vmatprep.subr.mxu0 0.0
    %1405 = vmatpush1.msra.mxu0 %v1313
    %1406 = vmatprep.subr.mxu0 0.0
    %1407 = vmatpush1.msra.mxu0 %v1314
    %1408 = vmatprep.subr.mxu0 0.0
    %1409 = vmatpush1.msra.mxu0 %v1315
    %1410 = vmatprep.subr.mxu0 0.0
    %1411 = vmatpush1.msra.mxu0 0.0
    %1412 = vmatprep.subr.mxu0 0.0
    %1413 = vmatpush1.msra.mxu0 0.0
    %1414 = vmatprep.subr.mxu0 0.0
    %1415 = vmatpush1.msra.mxu0 0.0
    %1416 = vmatprep.subr.mxu0 0.0
    %1417 = vmatpush1.msra.mxu0 0.0
    %1418 = vmatprep.subr.mxu0 0.0
    %1419 = vmatpush1.msra.mxu0 0.0
    %1420 = vmatprep.subr.mxu0 0.0
    %1421 = vmatpush1.msra.mxu0 0.0
    %1422 = vmatprep.subr.mxu0 0.0
    %1423 = vmatpush1.msra.mxu0 0.0
    %1424 = vmatprep.subr.mxu0 0.0
    %1425 = vmatpush1.msra.mxu0 0.0
    %1426 = vmatprep.subr.mxu0 0.0
    %1427 = vmatpush1.msra.mxu0 0.0
    %1428 = vmatprep.subr.mxu0 0.0
    %1429 = vmatpush1.msra.mxu0 0.0
    %1430 = vmatprep.subr.mxu0 0.0
    %1431 = vmatpush1.msra.mxu0 0.0
    %1432 = vmatprep.subr.mxu0 0.0
    %1433 = vmatpush1.msra.mxu0 0.0
    %1434 = vmatprep.subr.mxu0 0.0
    %1435 = vmatpush1.msra.mxu0 0.0
    %1436 = vmatprep.subr.mxu0 0.0
    %1437 = vmatpush1.msra.mxu0 0.0
    %1438 = vmatprep.subr.mxu0 0.0
    %1439 = vmatpush1.msra.mxu0 0.0
    %1440 = vmatprep.subr.mxu0 0.0
    %1441 = vmatpush1.msra.mxu0 0.0
    %1442 = vmatprep.subr.mxu0 0.0
    %1443 = vmatpush1.msra.mxu0 0.0
    %1444 = vmatprep.subr.mxu0 0.0
    %1445 = vmatpush1.msra.mxu0 0.0
    %1446 = vmatprep.subr.mxu0 0.0
    %1447 = vmatpush1.msra.mxu0 0.0
    %1448 = vmatprep.subr.mxu0 0.0
    %1449 = vmatpush1.msra.mxu0 0.0
    %1450 = vmatprep.subr.mxu0 0.0
    %1451 = vmatpush1.msra.mxu0 0.0
    %1452 = vmatprep.subr.mxu0 0.0
    %1453 = vmatpush1.msra.mxu0 0.0
    %1454 = vmatprep.subr.mxu0 0.0
    %1455 = vmatpush1.msra.mxu0 0.0
    %1456 = vmatprep.subr.mxu0 0.0
    %1457 = vmatpush1.msra.mxu0 0.0
    %1458 = vmatprep.subr.mxu0 0.0
    %1459 = vmatpush1.msra.mxu0 0.0
    %1460 = vmatprep.subr.mxu0 0.0
    %1461 = vmatpush1.msra.mxu0 0.0
    %1462 = vmatprep.subr.mxu0 0.0
    %1463 = vmatpush1.msra.mxu0 0.0
    %1464 = vmatprep.subr.mxu0 0.0
    %1465 = vmatpush1.msra.mxu0 0.0
    %1466 = vmatprep.mubr.f32.mxu0 0.0
    %1467 = vmatmul.mubr.f32.gmra.mrb[0].mxu0 %v1330
    %v1468 = vpop.f32.mrb[0].mxu0
    %v1469 = vadd.f32 0.0, %v1468
    %v1470 = vpop.f32.mrb[0].mxu0
    %1471 = vdwg.mxu0
    %1472 = vmatprep.subr.mxu0 0.0
    %1473 = vmatpush1.msra.mxu0 %v1316
    %1474 = vmatprep.subr.mxu0 0.0
    %1475 = vmatpush1.msra.mxu0 %v1317
    %1476 = vmatprep.subr.mxu0 0.0
    %1477 = vmatpush1.msra.mxu0 %v1318
    %1478 = vmatprep.subr.mxu0 0.0
    %1479 = vmatpush1.msra.mxu0 %v1319
    %1480 = vmatprep.subr.mxu0 0.0
    %1481 = vmatpush1.msra.mxu0 0.0
    %1482 = vmatprep.subr.mxu0 0.0
    %1483 = vmatpush1.msra.mxu0 0.0
    %1484 = vmatprep.subr.mxu0 0.0
    %1485 = vmatpush1.msra.mxu0 0.0
    %1486 = vmatprep.subr.mxu0 0.0
    %1487 = vmatpush1.msra.mxu0 0.0
    %1488 = vmatprep.subr.mxu0 0.0
    %1489 = vmatpush1.msra.mxu0 0.0
    %1490 = vmatprep.subr.mxu0 0.0
    %1491 = vmatpush1.msra.mxu0 0.0
    %1492 = vmatprep.subr.mxu0 0.0
    %1493 = vmatpush1.msra.mxu0 0.0
    %1494 = vmatprep.subr.mxu0 0.0
    %1495 = vmatpush1.msra.mxu0 0.0
    %1496 = vmatprep.subr.mxu0 0.0
    %1497 = vmatpush1.msra.mxu0 0.0
    %1498 = vmatprep.subr.mxu0 0.0
    %1499 = vmatpush1.msra.mxu0 0.0
    %1500 = vmatprep.subr.mxu0 0.0
    %1501 = vmatpush1.msra.mxu0 0.0
    %1502 = vmatprep.subr.mxu0 0.0
    %1503 = vmatpush1.msra.mxu0 0.0
    %1504 = vmatprep.subr.mxu0 0.0
    %1505 = vmatpush1.msra.mxu0 0.0
    %1506 = vmatprep.subr.mxu0 0.0
    %1507 = vmatpush1.msra.mxu0 0.0
    %1508 = vmatprep.subr.mxu0 0.0
    %1509 = vmatpush1.msra.mxu0 0.0
    %1510 = vmatprep.subr.mxu0 0.0
    %1511 = vmatpush1.msra.mxu0 0.0
    %1512 = vmatprep.subr.mxu0 0.0
    %1513 = vmatpush1.msra.mxu0 0.0
    %1514 = vmatprep.subr.mxu0 0.0
    %1515 = vmatpush1.msra.mxu0 0.0
    %1516 = vmatprep.subr.mxu0 0.0
    %1517 = vmatpush1.msra.mxu0 0.0
    %1518 = vmatprep.subr.mxu0 0.0
    %1519 = vmatpush1.msra.mxu0 0.0
    %1520 = vmatprep.subr.mxu0 0.0
    %1521 = vmatpush1.msra.mxu0 0.0
    %1522 = vmatprep.subr.mxu0 0.0
    %1523 = vmatpush1.msra.mxu0 0.0
    %1524 = vmatprep.subr.mxu0 0.0
    %1525 = vmatpush1.msra.mxu0 0.0
    %1526 = vmatprep.subr.mxu0 0.0
    %1527 = vmatpush1.msra.mxu0 0.0
    %1528 = vmatprep.subr.mxu0 0.0
    %1529 = vmatpush1.msra.mxu0 0.0
    %1530 = vmatprep.subr.mxu0 0.0
    %1531 = vmatpush1.msra.mxu0 0.0
    %1532 = vmatprep.subr.mxu0 0.0
    %1533 = vmatpush1.msra.mxu0 0.0
    %1534 = vmatprep.subr.mxu0 0.0
    %1535 = vmatpush1.msra.mxu0 0.0
    %1536 = vmatprep.mubr.f32.mxu0 0.0
    %1537 = vmatmul.mubr.f32.gmra.mrb[0].mxu0 %v1330
    %v1538 = vpop.f32.mrb[0].mxu0
    %v1539 = vadd.f32 %v1325, %v1538
    %v1540 = vpop.f32.mrb[0].mxu0
    %1541 = vdwg.mxu0
    %v1542 = vld [vmem:[#allocation3] sm:$0xff]
    %v1543 = vadd.f32 %v1542, %v1399
    %v1544 = vxor.u32 %v1543, 2147483648
    %v1545 = vmul.f32 %v1544, 1.442695
    %v1546 = vpow.pop %v1545
    %v1547 = vadd.f32 %v1546, 1.0
    %v1548 = vrcp.pop %v1547
    %v1549 = vmul.f32 1.0, %v1548
    %v1550 = vld [vmem:[#allocation4] sm:$0xff]
    %v1551 = vadd.f32 %v1550, %v1469
    %v1552 = vxor.u32 %v1551, 2147483648
    %v1553 = vmul.f32 %v1552, 1.442695
    %v1554 = vpow.pop %v1553
    %v1555 = vadd.f32 %v1554, 1.0
    %v1556 = vrcp.pop %v1555
    %v1557 = vmul.f32 1.0, %v1556
    %v1558 = vld [vmem:[#allocation5] sm:$0xff]
    %v1559 = vmul.f32 %v1549, %v1539
    %v1560 = vadd.f32 %v1558, %v1559
    %v1561 = vtanh.pop %v1560
    %v1562 = vsub.f32 1.0, %v1557
    %v1563 = vmul.f32 %v1562, %v1561
    %v1564 = vmul.f32 %v1557, %v1328
    %v1565 = vadd.f32 %v1563, %v1564
    %1566 = vst.msk [vmem:[#allocation7] sm:$0xff] %vm1043, %v1565
    %1567 = vst.msk [vmem:[#allocation6] sm:$0xff] %vm1043, %v1565
    %v1568 = vld [vmem:[#allocation7] sm:$0xff]
    %v1570 = vsel %vm1043, %v1568, 0
    %1572 = vmatprep.subr.mxu0 0.0
    %1573 = vmatpush1.msra.mxu0 %v1308
    %1574 = vmatprep.subr.mxu0 0.0
    %1575 = vmatpush1.msra.mxu0 %v1309
    %1576 = vmatprep.subr.mxu0 0.0
    %1577 = vmatpush1.msra.mxu0 %v1310
    %1578 = vmatprep.subr.mxu0 0.0
    %1579 = vmatpush1.msra.mxu0 %v1311
    %1580 = vmatprep.subr.mxu0 0.0
    %1581 = vmatpush1.msra.mxu0 0.0
    %1582 = vmatprep.subr.mxu0 0.0
    %1583 = vmatpush1.msra.mxu0 0.0
    %1584 = vmatprep.subr.mxu0 0.0
    %1585 = vmatpush1.msra.mxu0 0.0
    %1586 = vmatprep.subr.mxu0 0.0
    %1587 = vmatpush1.msra.mxu0 0.0
    %1588 = vmatprep.subr.mxu0 0.0
    %1589 = vmatpush1.msra.mxu0 0.0
    %1590 = vmatprep.subr.mxu0 0.0
    %1591 = vmatpush1.msra.mxu0 0.0
    %1592 = vmatprep.subr.mxu0 0.0
    %1593 = vmatpush1.msra.mxu0 0.0
    %1594 = vmatprep.subr.mxu0 0.0
    %1595 = vmatpush1.msra.mxu0 0.0
    %1596 = vmatprep.subr.mxu0 0.0
    %1597 = vmatpush1.msra.mxu0 0.0
    %1598 = vmatprep.subr.mxu0 0.0
    %1599 = vmatpush1.msra.mxu0 0.0
    %1600 = vmatprep.subr.mxu0 0.0
    %1601 = vmatpush1.msra.mxu0 0.0
    %1602 = vmatprep.subr.mxu0 0.0
    %1603 = vmatpush1.msra.mxu0 0.0
    %1604 = vmatprep.subr.mxu0 0.0
    %1605 = vmatpush1.msra.mxu0 0.0
    %1606 = vmatprep.subr.mxu0 0.0
    %1607 = vmatpush1.msra.mxu0 0.0
    %1608 = vmatprep.subr.mxu0 0.0
    %1609 = vmatpush1.msra.mxu0 0.0
    %1610 = vmatprep.subr.mxu0 0.0
    %1611 = vmatpush1.msra.mxu0 0.0
    %1612 = vmatprep.subr.mxu0 0.0
    %1613 = vmatpush1.msra.mxu0 0.0
    %1614 = vmatprep.subr.mxu0 0.0
    %1615 = vmatpush1.msra.mxu0 0.0
    %1616 = vmatprep.subr.mxu0 0.0
    %1617 = vmatpush1.msra.mxu0 0.0
    %1618 = vmatprep.subr.mxu0 0.0
    %1619 = vmatpush1.msra.mxu0 0.0
    %1620 = vmatprep.subr.mxu0 0.0
    %1621 = vmatpush1.msra.mxu0 0.0
    %1622 = vmatprep.subr.mxu0 0.0
    %1623 = vmatpush1.msra.mxu0 0.0
    %1624 = vmatprep.subr.mxu0 0.0
    %1625 = vmatpush1.msra.mxu0 0.0
    %1626 = vmatprep.subr.mxu0 0.0
    %1627 = vmatpush1.msra.mxu0 0.0
    %1628 = vmatprep.subr.mxu0 0.0
    %1629 = vmatpush1.msra.mxu0 0.0
    %1630 = vmatprep.subr.mxu0 0.0
    %1631 = vmatpush1.msra.mxu0 0.0
    %1632 = vmatprep.subr.mxu0 0.0
    %1633 = vmatpush1.msra.mxu0 0.0
    %1634 = vmatprep.subr.mxu0 0.0
    %1635 = vmatpush1.msra.mxu0 0.0
    %1636 = vmatprep.mubr.f32.mxu0 0.0
    %1637 = vmatmul.mubr.f32.gmra.mrb[0].mxu0 %v1570
    %v1638 = vpop.f32.mrb[0].mxu0
    %v1639 = vadd.f32 0.0, %v1638
    %v1640 = vpop.f32.mrb[0].mxu0
    %1641 = vdwg.mxu0
    %1642 = vmatprep.subr.mxu0 0.0
    %1643 = vmatpush1.msra.mxu0 %v1312
    %1644 = vmatprep.subr.mxu0 0.0
    %1645 = vmatpush1.msra.mxu0 %v1313
    %1646 = vmatprep.subr.mxu0 0.0
    %1647 = vmatpush1.msra.mxu0 %v1314
    %1648 = vmatprep.subr.mxu0 0.0
    %1649 = vmatpush1.msra.mxu0 %v1315
    %1650 = vmatprep.subr.mxu0 0.0
    %1651 = vmatpush1.msra.mxu0 0.0
    %1652 = vmatprep.subr.mxu0 0.0
    %1653 = vmatpush1.msra.mxu0 0.0
    %1654 = vmatprep.subr.mxu0 0.0
    %1655 = vmatpush1.msra.mxu0 0.0
    %1656 = vmatprep.subr.mxu0 0.0
    %1657 = vmatpush1.msra.mxu0 0.0
    %1658 = vmatprep.subr.mxu0 0.0
    %1659 = vmatpush1.msra.mxu0 0.0
    %1660 = vmatprep.subr.mxu0 0.0
    %1661 = vmatpush1.msra.mxu0 0.0
    %1662 = vmatprep.subr.mxu0 0.0
    %1663 = vmatpush1.msra.mxu0 0.0
    %1664 = vmatprep.subr.mxu0 0.0
    %1665 = vmatpush1.msra.mxu0 0.0
    %1666 = vmatprep.subr.mxu0 0.0
    %1667 = vmatpush1.msra.mxu0 0.0
    %1668 = vmatprep.subr.mxu0 0.0
    %1669 = vmatpush1.msra.mxu0 0.0
    %1670 = vmatprep.subr.mxu0 0.0
    %1671 = vmatpush1.msra.mxu0 0.0
    %1672 = vmatprep.subr.mxu0 0.0
    %1673 = vmatpush1.msra.mxu0 0.0
    %1674 = vmatprep.subr.mxu0 0.0
    %1675 = vmatpush1.msra.mxu0 0.0
    %1676 = vmatprep.subr.mxu0 0.0
    %1677 = vmatpush1.msra.mxu0 0.0
    %1678 = vmatprep.subr.mxu0 0.0
    %1679 = vmatpush1.msra.mxu0 0.0
    %1680 = vmatprep.subr.mxu0 0.0
    %1681 = vmatpush1.msra.mxu0 0.0
    %1682 = vmatprep.subr.mxu0 0.0
    %1683 = vmatpush1.msra.mxu0 0.0
    %1684 = vmatprep.subr.mxu0 0.0
    %1685 = vmatpush1.msra.mxu0 0.0
    %1686 = vmatprep.subr.mxu0 0.0
    %1687 = vmatpush1.msra.mxu0 0.0
    %1688 = vmatprep.subr.mxu0 0.0
    %1689 = vmatpush1.msra.mxu0 0.0
    %1690 = vmatprep.subr.mxu0 0.0
    %1691 = vmatpush1.msra.mxu0 0.0
    %1692 = vmatprep.subr.mxu0 0.0
    %1693 = vmatpush1.msra.mxu0 0.0
    %1694 = vmatprep.subr.mxu0 0.0
    %1695 = vmatpush1.msra.mxu0 0.0
    %1696 = vmatprep.subr.mxu0 0.0
    %1697 = vmatpush1.msra.mxu0 0.0
    %1698 = vmatprep.subr.mxu0 0.0
    %1699 = vmatpush1.msra.mxu0 0.0
    %1700 = vmatprep.subr.mxu0 0.0
    %1701 = vmatpush1.msra.mxu0 0.0
    %1702 = vmatprep.subr.mxu0 0.0
    %1703 = vmatpush1.msra.mxu0 0.0
    %1704 = vmatprep.subr.mxu0 0.0
    %1705 = vmatpush1.msra.mxu0 0.0
    %1706 = vmatprep.mubr.f32.mxu0 0.0
    %1707 = vmatmul.mubr.f32.gmra.mrb[0].mxu0 %v1570
    %v1708 = vpop.f32.mrb[0].mxu0
    %v1709 = vadd.f32 0.0, %v1708
    %v1710 = vpop.f32.mrb[0].mxu0
    %1711 = vdwg.mxu0
    %1712 = vmatprep.subr.mxu0 0.0
    %1713 = vmatpush1.msra.mxu0 %v1316
    %1714 = vmatprep.subr.mxu0 0.0
    %1715 = vmatpush1.msra.mxu0 %v1317
    %1716 = vmatprep.subr.mxu0 0.0
    %1717 = vmatpush1.msra.mxu0 %v1318
    %1718 = vmatprep.subr.mxu0 0.0
    %1719 = vmatpush1.msra.mxu0 %v1319
    %1720 = vmatprep.subr.mxu0 0.0
    %1721 = vmatpush1.msra.mxu0 0.0
    %1722 = vmatprep.subr.mxu0 0.0
    %1723 = vmatpush1.msra.mxu0 0.0
    %1724 = vmatprep.subr.mxu0 0.0
    %1725 = vmatpush1.msra.mxu0 0.0
    %1726 = vmatprep.subr.mxu0 0.0
    %1727 = vmatpush1.msra.mxu0 0.0
    %1728 = vmatprep.subr.mxu0 0.0
    %1729 = vmatpush1.msra.mxu0 0.0
    %1730 = vmatprep.subr.mxu0 0.0
    %1731 = vmatpush1.msra.mxu0 0.0
    %1732 = vmatprep.subr.mxu0 0.0
    %1733 = vmatpush1.msra.mxu0 0.0
    %1734 = vmatprep.subr.mxu0 0.0
    %1735 = vmatpush1.msra.mxu0 0.0
    %1736 = vmatprep.subr.mxu0 0.0
    %1737 = vmatpush1.msra.mxu0 0.0
    %1738 = vmatprep.subr.mxu0 0.0
    %1739 = vmatpush1.msra.mxu0 0.0
    %1740 = vmatprep.subr.mxu0 0.0
    %1741 = vmatpush1.msra.mxu0 0.0
    %1742 = vmatprep.subr.mxu0 0.0
    %1743 = vmatpush1.msra.mxu0 0.0
    %1744 = vmatprep.subr.mxu0 0.0
    %1745 = vmatpush1.msra.mxu0 0.0
    %1746 = vmatprep.subr.mxu0 0.0
    %1747 = vmatpush1.msra.mxu0 0.0
    %1748 = vmatprep.subr.mxu0 0.0
    %1749 = vmatpush1.msra.mxu0 0.0
    %1750 = vmatprep.subr.mxu0 0.0
    %1751 = vmatpush1.msra.mxu0 0.0
    %1752 = vmatprep.subr.mxu0 0.0
    %1753 = vmatpush1.msra.mxu0 0.0
    %1754 = vmatprep.subr.mxu0 0.0
    %1755 = vmatpush1.msra.mxu0 0.0
    %1756 = vmatprep.subr.mxu0 0.0
    %1757 = vmatpush1.msra.mxu0 0.0
    %1758 = vmatprep.subr.mxu0 0.0
    %1759 = vmatpush1.msra.mxu0 0.0
    %1760 = vmatprep.subr.mxu0 0.0
    %1761 = vmatpush1.msra.mxu0 0.0
    %1762 = vmatprep.subr.mxu0 0.0
    %1763 = vmatpush1.msra.mxu0 0.0
    %1764 = vmatprep.subr.mxu0 0.0
    %1765 = vmatpush1.msra.mxu0 0.0
    %1766 = vmatprep.subr.mxu0 0.0
    %1767 = vmatpush1.msra.mxu0 0.0
    %1768 = vmatprep.subr.mxu0 0.0
    %1769 = vmatpush1.msra.mxu0 0.0
    %1770 = vmatprep.subr.mxu0 0.0
    %1771 = vmatpush1.msra.mxu0 0.0
    %1772 = vmatprep.subr.mxu0 0.0
    %1773 = vmatpush1.msra.mxu0 0.0
    %1774 = vmatprep.subr.mxu0 0.0
    %1775 = vmatpush1.msra.mxu0 0.0
    %1776 = vmatprep.mubr.f32.mxu0 0.0
    %1777 = vmatmul.mubr.f32.gmra.mrb[0].mxu0 %v1570
    %v1778 = vpop.f32.mrb[0].mxu0
    %v1779 = vadd.f32 %v1325, %v1778
    %v1780 = vpop.f32.mrb[0].mxu0
    %1781 = vdwg.mxu0
    %s1782 = scalar_lea.vmem [#allocation3], 8
    %v1783 = vld [vmem:[%s1782] sm:$0xff]
    %v1784 = vadd.f32 %v1783, %v1639
    %v1785 = vxor.u32 %v1784, 2147483648
    %v1786 = vmul.f32 %v1785, 1.442695
    %v1787 = vpow.pop %v1786
    %v1788 = vadd.f32 %v1787, 1.0
    %v1789 = vrcp.pop %v1788
    %v1790 = vmul.f32 1.0, %v1789
    %s1791 = scalar_lea.vmem [#allocation4], 8
    %v1792 = vld [vmem:[%s1791] sm:$0xff]
    %v1793 = vadd.f32 %v1792, %v1709
    %v1794 = vxor.u32 %v1793, 2147483648
    %v1795 = vmul.f32 %v1794, 1.442695
    %v1796 = vpow.pop %v1795
    %v1797 = vadd.f32 %v1796, 1.0
    %v1798 = vrcp.pop %v1797
    %v1799 = vmul.f32 1.0, %v1798
    %s1800 = scalar_lea.vmem [#allocation5], 8
    %v1801 = vld [vmem:[%s1800] sm:$0xff]
    %v1802 = vmul.f32 %v1790, %v1779
    %v1803 = vadd.f32 %v1801, %v1802
    %v1804 = vtanh.pop %v1803
    %v1805 = vsub.f32 1.0, %v1799
    %v1806 = vmul.f32 %v1805, %v1804
    %v1807 = vmul.f32 %v1799, %v1568
    %v1808 = vadd.f32 %v1806, %v1807
    %1809 = vst.msk [vmem:[#allocation7] sm:$0xff] %vm1043, %v1808
    %s1810 = scalar_lea.vmem [#allocation6], 8
    %1811 = vst.msk [vmem:[%s1810] sm:$0xff] %vm1043, %v1808
    %v1812 = vld [vmem:[#allocation7] sm:$0xff]
    %v1814 = vsel %vm1043, %v1812, 0
    %1816 = vmatprep.subr.mxu0 0.0
    %1817 = vmatpush1.msra.mxu0 %v1308
    %1818 = vmatprep.subr.mxu0 0.0
    %1819 = vmatpush1.msra.mxu0 %v1309
    %1820 = vmatprep.subr.mxu0 0.0
    %1821 = vmatpush1.msra.mxu0 %v1310
    %1822 = vmatprep.subr.mxu0 0.0
    %1823 = vmatpush1.msra.mxu0 %v1311
    %1824 = vmatprep.subr.mxu0 0.0
    %1825 = vmatpush1.msra.mxu0 0.0
    %1826 = vmatprep.subr.mxu0 0.0
    %1827 = vmatpush1.msra.mxu0 0.0
    %1828 = vmatprep.subr.mxu0 0.0
    %1829 = vmatpush1.msra.mxu0 0.0
    %1830 = vmatprep.subr.mxu0 0.0
    %1831 = vmatpush1.msra.mxu0 0.0
    %1832 = vmatprep.subr.mxu0 0.0
    %1833 = vmatpush1.msra.mxu0 0.0
    %1834 = vmatprep.subr.mxu0 0.0
    %1835 = vmatpush1.msra.mxu0 0.0
    %1836 = vmatprep.subr.mxu0 0.0
    %1837 = vmatpush1.msra.mxu0 0.0
    %1838 = vmatprep.subr.mxu0 0.0
    %1839 = vmatpush1.msra.mxu0 0.0
    %1840 = vmatprep.subr.mxu0 0.0
    %1841 = vmatpush1.msra.mxu0 0.0
    %1842 = vmatprep.subr.mxu0 0.0
    %1843 = vmatpush1.msra.mxu0 0.0
    %1844 = vmatprep.subr.mxu0 0.0
    %1845 = vmatpush1.msra.mxu0 0.0
    %1846 = vmatprep.subr.mxu0 0.0
    %1847 = vmatpush1.msra.mxu0 0.0
    %1848 = vmatprep.subr.mxu0 0.0
    %1849 = vmatpush1.msra.mxu0 0.0
    %1850 = vmatprep.subr.mxu0 0.0
    %1851 = vmatpush1.msra.mxu0 0.0
    %1852 = vmatprep.subr.mxu0 0.0
    %1853 = vmatpush1.msra.mxu0 0.0
    %1854 = vmatprep.subr.mxu0 0.0
    %1855 = vmatpush1.msra.mxu0 0.0
    %1856 = vmatprep.subr.mxu0 0.0
    %1857 = vmatpush1.msra.mxu0 0.0
    %1858 = vmatprep.subr.mxu0 0.0
    %1859 = vmatpush1.msra.mxu0 0.0
    %1860 = vmatprep.subr.mxu0 0.0
    %1861 = vmatpush1.msra.mxu0 0.0
    %1862 = vmatprep.subr.mxu0 0.0
    %1863 = vmatpush1.msra.mxu0 0.0
    %1864 = vmatprep.subr.mxu0 0.0
    %1865 = vmatpush1.msra.mxu0 0.0
    %1866 = vmatprep.subr.mxu0 0.0
    %1867 = vmatpush1.msra.mxu0 0.0
    %1868 = vmatprep.subr.mxu0 0.0
    %1869 = vmatpush1.msra.mxu0 0.0
    %1870 = vmatprep.subr.mxu0 0.0
    %1871 = vmatpush1.msra.mxu0 0.0
    %1872 = vmatprep.subr.mxu0 0.0
    %1873 = vmatpush1.msra.mxu0 0.0
    %1874 = vmatprep.subr.mxu0 0.0
    %1875 = vmatpush1.msra.mxu0 0.0
    %1876 = vmatprep.subr.mxu0 0.0
    %1877 = vmatpush1.msra.mxu0 0.0
    %1878 = vmatprep.subr.mxu0 0.0
    %1879 = vmatpush1.msra.mxu0 0.0
    %1880 = vmatprep.mubr.f32.mxu0 0.0
    %1881 = vmatmul.mubr.f32.gmra.mrb[0].mxu0 %v1814
    %v1882 = vpop.f32.mrb[0].mxu0
    %v1883 = vadd.f32 0.0, %v1882
    %v1884 = vpop.f32.mrb[0].mxu0
    %1885 = vdwg.mxu0
    %1886 = vmatprep.subr.mxu0 0.0
    %1887 = vmatpush1.msra.mxu0 %v1312
    %1888 = vmatprep.subr.mxu0 0.0
    %1889 = vmatpush1.msra.mxu0 %v1313
    %1890 = vmatprep.subr.mxu0 0.0
    %1891 = vmatpush1.msra.mxu0 %v1314
    %1892 = vmatprep.subr.mxu0 0.0
    %1893 = vmatpush1.msra.mxu0 %v1315
    %1894 = vmatprep.subr.mxu0 0.0
    %1895 = vmatpush1.msra.mxu0 0.0
    %1896 = vmatprep.subr.mxu0 0.0
    %1897 = vmatpush1.msra.mxu0 0.0
    %1898 = vmatprep.subr.mxu0 0.0
    %1899 = vmatpush1.msra.mxu0 0.0
    %1900 = vmatprep.subr.mxu0 0.0
    %1901 = vmatpush1.msra.mxu0 0.0
    %1902 = vmatprep.subr.mxu0 0.0
    %1903 = vmatpush1.msra.mxu0 0.0
    %1904 = vmatprep.subr.mxu0 0.0
    %1905 = vmatpush1.msra.mxu0 0.0
    %1906 = vmatprep.subr.mxu0 0.0
    %1907 = vmatpush1.msra.mxu0 0.0
    %1908 = vmatprep.subr.mxu0 0.0
    %1909 = vmatpush1.msra.mxu0 0.0
    %1910 = vmatprep.subr.mxu0 0.0
    %1911 = vmatpush1.msra.mxu0 0.0
    %1912 = vmatprep.subr.mxu0 0.0
    %1913 = vmatpush1.msra.mxu0 0.0
    %1914 = vmatprep.subr.mxu0 0.0
    %1915 = vmatpush1.msra.mxu0 0.0
    %1916 = vmatprep.subr.mxu0 0.0
    %1917 = vmatpush1.msra.mxu0 0.0
    %1918 = vmatprep.subr.mxu0 0.0
    %1919 = vmatpush1.msra.mxu0 0.0
    %1920 = vmatprep.subr.mxu0 0.0
    %1921 = vmatpush1.msra.mxu0 0.0
    %1922 = vmatprep.subr.mxu0 0.0
    %1923 = vmatpush1.msra.mxu0 0.0
    %1924 = vmatprep.subr.mxu0 0.0
    %1925 = vmatpush1.msra.mxu0 0.0
    %1926 = vmatprep.subr.mxu0 0.0
    %1927 = vmatpush1.msra.mxu0 0.0
    %1928 = vmatprep.subr.mxu0 0.0
    %1929 = vmatpush1.msra.mxu0 0.0
    %1930 = vmatprep.subr.mxu0 0.0
    %1931 = vmatpush1.msra.mxu0 0.0
    %1932 = vmatprep.subr.mxu0 0.0
    %1933 = vmatpush1.msra.mxu0 0.0
    %1934 = vmatprep.subr.mxu0 0.0
    %1935 = vmatpush1.msra.mxu0 0.0
    %1936 = vmatprep.subr.mxu0 0.0
    %1937 = vmatpush1.msra.mxu0 0.0
    %1938 = vmatprep.subr.mxu0 0.0
    %1939 = vmatpush1.msra.mxu0 0.0
    %1940 = vmatprep.subr.mxu0 0.0
    %1941 = vmatpush1.msra.mxu0 0.0
    %1942 = vmatprep.subr.mxu0 0.0
    %1943 = vmatpush1.msra.mxu0 0.0
    %1944 = vmatprep.subr.mxu0 0.0
    %1945 = vmatpush1.msra.mxu0 0.0
    %1946 = vmatprep.subr.mxu0 0.0
    %1947 = vmatpush1.msra.mxu0 0.0
    %1948 = vmatprep.subr.mxu0 0.0
    %1949 = vmatpush1.msra.mxu0 0.0
    %1950 = vmatprep.mubr.f32.mxu0 0.0
    %1951 = vmatmul.mubr.f32.gmra.mrb[0].mxu0 %v1814
    %v1952 = vpop.f32.mrb[0].mxu0
    %v1953 = vadd.f32 0.0, %v1952
    %v1954 = vpop.f32.mrb[0].mxu0
    %1955 = vdwg.mxu0
    %1956 = vmatprep.subr.mxu0 0.0
    %1957 = vmatpush1.msra.mxu0 %v1316
    %1958 = vmatprep.subr.mxu0 0.0
    %1959 = vmatpush1.msra.mxu0 %v1317
    %1960 = vmatprep.subr.mxu0 0.0
    %1961 = vmatpush1.msra.mxu0 %v1318
    %1962 = vmatprep.subr.mxu0 0.0
    %1963 = vmatpush1.msra.mxu0 %v1319
    %1964 = vmatprep.subr.mxu0 0.0
    %1965 = vmatpush1.msra.mxu0 0.0
    %1966 = vmatprep.subr.mxu0 0.0
    %1967 = vmatpush1.msra.mxu0 0.0
    %1968 = vmatprep.subr.mxu0 0.0
    %1969 = vmatpush1.msra.mxu0 0.0
    %1970 = vmatprep.subr.mxu0 0.0
    %1971 = vmatpush1.msra.mxu0 0.0
    %1972 = vmatprep.subr.mxu0 0.0
    %1973 = vmatpush1.msra.mxu0 0.0
    %1974 = vmatprep.subr.mxu0 0.0
    %1975 = vmatpush1.msra.mxu0 0.0
    %1976 = vmatprep.subr.mxu0 0.0
    %1977 = vmatpush1.msra.mxu0 0.0
    %1978 = vmatprep.subr.mxu0 0.0
    %1979 = vmatpush1.msra.mxu0 0.0
    %1980 = vmatprep.subr.mxu0 0.0
    %1981 = vmatpush1.msra.mxu0 0.0
    %1982 = vmatprep.subr.mxu0 0.0
    %1983 = vmatpush1.msra.mxu0 0.0
    %1984 = vmatprep.subr.mxu0 0.0
    %1985 = vmatpush1.msra.mxu0 0.0
    %1986 = vmatprep.subr.mxu0 0.0
    %1987 = vmatpush1.msra.mxu0 0.0
    %1988 = vmatprep.subr.mxu0 0.0
    %1989 = vmatpush1.msra.mxu0 0.0
    %1990 = vmatprep.subr.mxu0 0.0
    %1991 = vmatpush1.msra.mxu0 0.0
    %1992 = vmatprep.subr.mxu0 0.0
    %1993 = vmatpush1.msra.mxu0 0.0
    %1994 = vmatprep.subr.mxu0 0.0
    %1995 = vmatpush1.msra.mxu0 0.0
    %1996 = vmatprep.subr.mxu0 0.0
    %1997 = vmatpush1.msra.mxu0 0.0
    %1998 = vmatprep.subr.mxu0 0.0
    %1999 = vmatpush1.msra.mxu0 0.0
    %2000 = vmatprep.subr.mxu0 0.0
    %2001 = vmatpush1.msra.mxu0 0.0
    %2002 = vmatprep.subr.mxu0 0.0
    %2003 = vmatpush1.msra.mxu0 0.0
    %2004 = vmatprep.subr.mxu0 0.0
    %2005 = vmatpush1.msra.mxu0 0.0
    %2006 = vmatprep.subr.mxu0 0.0
    %2007 = vmatpush1.msra.mxu0 0.0
    %2008 = vmatprep.subr.mxu0 0.0
    %2009 = vmatpush1.msra.mxu0 0.0
    %2010 = vmatprep.subr.mxu0 0.0
    %2011 = vmatpush1.msra.mxu0 0.0
    %2012 = vmatprep.subr.mxu0 0.0
    %2013 = vmatpush1.msra.mxu0 0.0
    %2014 = vmatprep.subr.mxu0 0.0
    %2015 = vmatpush1.msra.mxu0 0.0
    %2016 = vmatprep.subr.mxu0 0.0
    %2017 = vmatpush1.msra.mxu0 0.0
    %2018 = vmatprep.subr.mxu0 0.0
    %2019 = vmatpush1.msra.mxu0 0.0
    %2020 = vmatprep.mubr.f32.mxu0 0.0
    %2021 = vmatmul.mubr.f32.gmra.mrb[0].mxu0 %v1814
    %v2022 = vpop.f32.mrb[0].mxu0
    %v2023 = vadd.f32 %v1325, %v2022
    %v2024 = vpop.f32.mrb[0].mxu0
    %2025 = vdwg.mxu0
    %s2026 = scalar_lea.vmem [#allocation3], 16
    %v2027 = vld [vmem:[%s2026] sm:$0xff]
    %v2028 = vadd.f32 %v2027, %v1883
    %v2029 = vxor.u32 %v2028, 2147483648
    %v2030 = vmul.f32 %v2029, 1.442695
    %v2031 = vpow.pop %v2030
    %v2032 = vadd.f32 %v2031, 1.0
    %v2033 = vrcp.pop %v2032
    %v2034 = vmul.f32 1.0, %v2033
    %s2035 = scalar_lea.vmem [#allocation4], 16
    %v2036 = vld [vmem:[%s2035] sm:$0xff]
    %v2037 = vadd.f32 %v2036, %v1953
    %v2038 = vxor.u32 %v2037, 2147483648
    %v2039 = vmul.f32 %v2038, 1.442695
    %v2040 = vpow.pop %v2039
    %v2041 = vadd.f32 %v2040, 1.0
    %v2042 = vrcp.pop %v2041
    %v2043 = vmul.f32 1.0, %v2042
    %s2044 = scalar_lea.vmem [#allocation5], 16
    %v2045 = vld [vmem:[%s2044] sm:$0xff]
    %v2046 = vmul.f32 %v2034, %v2023
    %v2047 = vadd.f32 %v2045, %v2046
    %v2048 = vtanh.pop %v2047
    %v2049 = vsub.f32 1.0, %v2043
    %v2050 = vmul.f32 %v2049, %v2048
    %v2051 = vmul.f32 %v2043, %v1812
    %v2052 = vadd.f32 %v2050, %v2051
    %2053 = vst.msk [vmem:[#allocation7] sm:$0xff] %vm1043, %v2052
    %s2054 = scalar_lea.vmem [#allocation6], 16
    %2055 = vst.msk [vmem:[%s2054] sm:$0xff] %vm1043, %v2052
    %v2056 = vld [vmem:[#allocation7] sm:$0xff]
    %v2058 = vsel %vm1043, %v2056, 0
    %2060 = vmatprep.subr.mxu0 0.0
    %2061 = vmatpush1.msra.mxu0 %v1308
    %2062 = vmatprep.subr.mxu0 0.0
    %2063 = vmatpush1.msra.mxu0 %v1309
    %2064 = vmatprep.subr.mxu0 0.0
    %2065 = vmatpush1.msra.mxu0 %v1310
    %2066 = vmatprep.subr.mxu0 0.0
    %2067 = vmatpush1.msra.mxu0 %v1311
    %2068 = vmatprep.subr.mxu0 0.0
    %2069 = vmatpush1.msra.mxu0 0.0
    %2070 = vmatprep.subr.mxu0 0.0
    %2071 = vmatpush1.msra.mxu0 0.0
    %2072 = vmatprep.subr.mxu0 0.0
    %2073 = vmatpush1.msra.mxu0 0.0
    %2074 = vmatprep.subr.mxu0 0.0
    %2075 = vmatpush1.msra.mxu0 0.0
    %2076 = vmatprep.subr.mxu0 0.0
    %2077 = vmatpush1.msra.mxu0 0.0
    %2078 = vmatprep.subr.mxu0 0.0
    %2079 = vmatpush1.msra.mxu0 0.0
    %2080 = vmatprep.subr.mxu0 0.0
    %2081 = vmatpush1.msra.mxu0 0.0
    %2082 = vmatprep.subr.mxu0 0.0
    %2083 = vmatpush1.msra.mxu0 0.0
    %2084 = vmatprep.subr.mxu0 0.0
    %2085 = vmatpush1.msra.mxu0 0.0
    %2086 = vmatprep.subr.mxu0 0.0
    %2087 = vmatpush1.msra.mxu0 0.0
    %2088 = vmatprep.subr.mxu0 0.0
    %2089 = vmatpush1.msra.mxu0 0.0
    %2090 = vmatprep.subr.mxu0 0.0
    %2091 = vmatpush1.msra.mxu0 0.0
    %2092 = vmatprep.subr.mxu0 0.0
    %2093 = vmatpush1.msra.mxu0 0.0
    %2094 = vmatprep.subr.mxu0 0.0
    %2095 = vmatpush1.msra.mxu0 0.0
    %2096 = vmatprep.subr.mxu0 0.0
    %2097 = vmatpush1.msra.mxu0 0.0
    %2098 = vmatprep.subr.mxu0 0.0
    %2099 = vmatpush1.msra.mxu0 0.0
    %2100 = vmatprep.subr.mxu0 0.0
    %2101 = vmatpush1.msra.mxu0 0.0
    %2102 = vmatprep.subr.mxu0 0.0
    %2103 = vmatpush1.msra.mxu0 0.0
    %2104 = vmatprep.subr.mxu0 0.0
    %2105 = vmatpush1.msra.mxu0 0.0
    %2106 = vmatprep.subr.mxu0 0.0
    %2107 = vmatpush1.msra.mxu0 0.0
    %2108 = vmatprep.subr.mxu0 0.0
    %2109 = vmatpush1.msra.mxu0 0.0
    %2110 = vmatprep.subr.mxu0 0.0
    %2111 = vmatpush1.msra.mxu0 0.0
    %2112 = vmatprep.subr.mxu0 0.0
    %2113 = vmatpush1.msra.mxu0 0.0
    %2114 = vmatprep.subr.mxu0 0.0
    %2115 = vmatpush1.msra.mxu0 0.0
    %2116 = vmatprep.subr.mxu0 0.0
    %2117 = vmatpush1.msra.mxu0 0.0
    %2118 = vmatprep.subr.mxu0 0.0
    %2119 = vmatpush1.msra.mxu0 0.0
    %2120 = vmatprep.subr.mxu0 0.0
    %2121 = vmatpush1.msra.mxu0 0.0
    %2122 = vmatprep.subr.mxu0 0.0
    %2123 = vmatpush1.msra.mxu0 0.0
    %2124 = vmatprep.mubr.f32.mxu0 0.0
    %2125 = vmatmul.mubr.f32.gmra.mrb[0].mxu0 %v2058
    %v2126 = vpop.f32.mrb[0].mxu0
    %v2127 = vadd.f32 0.0, %v2126
    %v2128 = vpop.f32.mrb[0].mxu0
    %2129 = vdwg.mxu0
    %2130 = vmatprep.subr.mxu0 0.0
    %2131 = vmatpush1.msra.mxu0 %v1312
    %2132 = vmatprep.subr.mxu0 0.0
    %2133 = vmatpush1.msra.mxu0 %v1313
    %2134 = vmatprep.subr.mxu0 0.0
    %2135 = vmatpush1.msra.mxu0 %v1314
    %2136 = vmatprep.subr.mxu0 0.0
    %2137 = vmatpush1.msra.mxu0 %v1315
    %2138 = vmatprep.subr.mxu0 0.0
    %2139 = vmatpush1.msra.mxu0 0.0
    %2140 = vmatprep.subr.mxu0 0.0
    %2141 = vmatpush1.msra.mxu0 0.0
    %2142 = vmatprep.subr.mxu0 0.0
    %2143 = vmatpush1.msra.mxu0 0.0
    %2144 = vmatprep.subr.mxu0 0.0
    %2145 = vmatpush1.msra.mxu0 0.0
    %2146 = vmatprep.subr.mxu0 0.0
    %2147 = vmatpush1.msra.mxu0 0.0
    %2148 = vmatprep.subr.mxu0 0.0
    %2149 = vmatpush1.msra.mxu0 0.0
    %2150 = vmatprep.subr.mxu0 0.0
    %2151 = vmatpush1.msra.mxu0 0.0
    %2152 = vmatprep.subr.mxu0 0.0
    %2153 = vmatpush1.msra.mxu0 0.0
    %2154 = vmatprep.subr.mxu0 0.0
    %2155 = vmatpush1.msra.mxu0 0.0
    %2156 = vmatprep.subr.mxu0 0.0
    %2157 = vmatpush1.msra.mxu0 0.0
    %2158 = vmatprep.subr.mxu0 0.0
    %2159 = vmatpush1.msra.mxu0 0.0
    %2160 = vmatprep.subr.mxu0 0.0
    %2161 = vmatpush1.msra.mxu0 0.0
    %2162 = vmatprep.subr.mxu0 0.0
    %2163 = vmatpush1.msra.mxu0 0.0
    %2164 = vmatprep.subr.mxu0 0.0
    %2165 = vmatpush1.msra.mxu0 0.0
    %2166 = vmatprep.subr.mxu0 0.0
    %2167 = vmatpush1.msra.mxu0 0.0
    %2168 = vmatprep.subr.mxu0 0.0
    %2169 = vmatpush1.msra.mxu0 0.0
    %2170 = vmatprep.subr.mxu0 0.0
    %2171 = vmatpush1.msra.mxu0 0.0
    %2172 = vmatprep.subr.mxu0 0.0
    %2173 = vmatpush1.msra.mxu0 0.0
    %2174 = vmatprep.subr.mxu0 0.0
    %2175 = vmatpush1.msra.mxu0 0.0
    %2176 = vmatprep.subr.mxu0 0.0
    %2177 = vmatpush1.msra.mxu0 0.0
    %2178 = vmatprep.subr.mxu0 0.0
    %2179 = vmatpush1.msra.mxu0 0.0
    %2180 = vmatprep.subr.mxu0 0.0
    %2181 = vmatpush1.msra.mxu0 0.0
    %2182 = vmatprep.subr.mxu0 0.0
    %2183 = vmatpush1.msra.mxu0 0.0
    %2184 = vmatprep.subr.mxu0 0.0
    %2185 = vmatpush1.msra.mxu0 0.0
    %2186 = vmatprep.subr.mxu0 0.0
    %2187 = vmatpush1.msra.mxu0 0.0
    %2188 = vmatprep.subr.mxu0 0.0
    %2189 = vmatpush1.msra.mxu0 0.0
    %2190 = vmatprep.subr.mxu0 0.0
    %2191 = vmatpush1.msra.mxu0 0.0
    %2192 = vmatprep.subr.mxu0 0.0
    %2193 = vmatpush1.msra.mxu0 0.0
    %2194 = vmatprep.mubr.f32.mxu0 0.0
    %2195 = vmatmul.mubr.f32.gmra.mrb[0].mxu0 %v2058
    %v2196 = vpop.f32.mrb[0].mxu0
    %v2197 = vadd.f32 0.0, %v2196
    %v2198 = vpop.f32.mrb[0].mxu0
    %2199 = vdwg.mxu0
    %2200 = vmatprep.subr.mxu0 0.0
    %2201 = vmatpush1.msra.mxu0 %v1316
    %2202 = vmatprep.subr.mxu0 0.0
    %2203 = vmatpush1.msra.mxu0 %v1317
    %2204 = vmatprep.subr.mxu0 0.0
    %2205 = vmatpush1.msra.mxu0 %v1318
    %2206 = vmatprep.subr.mxu0 0.0
    %2207 = vmatpush1.msra.mxu0 %v1319
    %2208 = vmatprep.subr.mxu0 0.0
    %2209 = vmatpush1.msra.mxu0 0.0
    %2210 = vmatprep.subr.mxu0 0.0
    %2211 = vmatpush1.msra.mxu0 0.0
    %2212 = vmatprep.subr.mxu0 0.0
    %2213 = vmatpush1.msra.mxu0 0.0
    %2214 = vmatprep.subr.mxu0 0.0
    %2215 = vmatpush1.msra.mxu0 0.0
    %2216 = vmatprep.subr.mxu0 0.0
    %2217 = vmatpush1.msra.mxu0 0.0
    %2218 = vmatprep.subr.mxu0 0.0
    %2219 = vmatpush1.msra.mxu0 0.0
    %2220 = vmatprep.subr.mxu0 0.0
    %2221 = vmatpush1.msra.mxu0 0.0
    %2222 = vmatprep.subr.mxu0 0.0
    %2223 = vmatpush1.msra.mxu0 0.0
    %2224 = vmatprep.subr.mxu0 0.0
    %2225 = vmatpush1.msra.mxu0 0.0
    %2226 = vmatprep.subr.mxu0 0.0
    %2227 = vmatpush1.msra.mxu0 0.0
    %2228 = vmatprep.subr.mxu0 0.0
    %2229 = vmatpush1.msra.mxu0 0.0
    %2230 = vmatprep.subr.mxu0 0.0
    %2231 = vmatpush1.msra.mxu0 0.0
    %2232 = vmatprep.subr.mxu0 0.0
    %2233 = vmatpush1.msra.mxu0 0.0
    %2234 = vmatprep.subr.mxu0 0.0
    %2235 = vmatpush1.msra.mxu0 0.0
    %2236 = vmatprep.subr.mxu0 0.0
    %2237 = vmatpush1.msra.mxu0 0.0
    %2238 = vmatprep.subr.mxu0 0.0
    %2239 = vmatpush1.msra.mxu0 0.0
    %2240 = vmatprep.subr.mxu0 0.0
    %2241 = vmatpush1.msra.mxu0 0.0
    %2242 = vmatprep.subr.mxu0 0.0
    %2243 = vmatpush1.msra.mxu0 0.0
    %2244 = vmatprep.subr.mxu0 0.0
    %2245 = vmatpush1.msra.mxu0 0.0
    %2246 = vmatprep.subr.mxu0 0.0
    %2247 = vmatpush1.msra.mxu0 0.0
    %2248 = vmatprep.subr.mxu0 0.0
    %2249 = vmatpush1.msra.mxu0 0.0
    %2250 = vmatprep.subr.mxu0 0.0
    %2251 = vmatpush1.msra.mxu0 0.0
    %2252 = vmatprep.subr.mxu0 0.0
    %2253 = vmatpush1.msra.mxu0 0.0
    %2254 = vmatprep.subr.mxu0 0.0
    %2255 = vmatpush1.msra.mxu0 0.0
    %2256 = vmatprep.subr.mxu0 0.0
    %2257 = vmatpush1.msra.mxu0 0.0
    %2258 = vmatprep.subr.mxu0 0.0
    %2259 = vmatpush1.msra.mxu0 0.0
    %2260 = vmatprep.subr.mxu0 0.0
    %2261 = vmatpush1.msra.mxu0 0.0
    %2262 = vmatprep.subr.mxu0 0.0
    %2263 = vmatpush1.msra.mxu0 0.0
    %2264 = vmatprep.mubr.f32.mxu0 0.0
    %2265 = vmatmul.mubr.f32.gmra.mrb[0].mxu0 %v2058
    %v2266 = vpop.f32.mrb[0].mxu0
    %v2267 = vadd.f32 %v1325, %v2266
    %v2268 = vpop.f32.mrb[0].mxu0
    %2269 = vdwg.mxu0
    %s2270 = scalar_lea.vmem [#allocation3], 24
    %v2271 = vld [vmem:[%s2270] sm:$0xff]
    %v2272 = vadd.f32 %v2271, %v2127
    %v2273 = vxor.u32 %v2272, 2147483648
    %v2274 = vmul.f32 %v2273, 1.442695
    %v2275 = vpow.pop %v2274
    %v2276 = vadd.f32 %v2275, 1.0
    %v2277 = vrcp.pop %v2276
    %v2278 = vmul.f32 1.0, %v2277
    %s2279 = scalar_lea.vmem [#allocation4], 24
    %v2280 = vld [vmem:[%s2279] sm:$0xff]
    %v2281 = vadd.f32 %v2280, %v2197
    %v2282 = vxor.u32 %v2281, 2147483648
    %v2283 = vmul.f32 %v2282, 1.442695
    %v2284 = vpow.pop %v2283
    %v2285 = vadd.f32 %v2284, 1.0
    %v2286 = vrcp.pop %v2285
    %v2287 = vmul.f32 1.0, %v2286
    %s2288 = scalar_lea.vmem [#allocation5], 24
    %v2289 = vld [vmem:[%s2288] sm:$0xff]
    %v2290 = vmul.f32 %v2278, %v2267
    %v2291 = vadd.f32 %v2289, %v2290
    %v2292 = vtanh.pop %v2291
    %v2293 = vsub.f32 1.0, %v2287
    %v2294 = vmul.f32 %v2293, %v2292
    %v2295 = vmul.f32 %v2287, %v2056
    %v2296 = vadd.f32 %v2294, %v2295
    %2297 = vst.msk [vmem:[#allocation7] sm:$0xff] %vm1043, %v2296
    %s2298 = scalar_lea.vmem [#allocation6], 24
    %2299 = vst.msk [vmem:[%s2298] sm:$0xff] %vm1043, %v2296
    %v2300 = vld [vmem:[#allocation7] sm:$0xff]
    %v2302 = vsel %vm1043, %v2300, 0
    %2304 = vmatprep.subr.mxu0 0.0
    %2305 = vmatpush1.msra.mxu0 %v1308
    %2306 = vmatprep.subr.mxu0 0.0
    %2307 = vmatpush1.msra.mxu0 %v1309
    %2308 = vmatprep.subr.mxu0 0.0
    %2309 = vmatpush1.msra.mxu0 %v1310
    %2310 = vmatprep.subr.mxu0 0.0
    %2311 = vmatpush1.msra.mxu0 %v1311
    %2312 = vmatprep.subr.mxu0 0.0
    %2313 = vmatpush1.msra.mxu0 0.0
    %2314 = vmatprep.subr.mxu0 0.0
    %2315 = vmatpush1.msra.mxu0 0.0
    %2316 = vmatprep.subr.mxu0 0.0
    %2317 = vmatpush1.msra.mxu0 0.0
    %2318 = vmatprep.subr.mxu0 0.0
    %2319 = vmatpush1.msra.mxu0 0.0
    %2320 = vmatprep.subr.mxu0 0.0
    %2321 = vmatpush1.msra.mxu0 0.0
    %2322 = vmatprep.subr.mxu0 0.0
    %2323 = vmatpush1.msra.mxu0 0.0
    %2324 = vmatprep.subr.mxu0 0.0
    %2325 = vmatpush1.msra.mxu0 0.0
    %2326 = vmatprep.subr.mxu0 0.0
    %2327 = vmatpush1.msra.mxu0 0.0
    %2328 = vmatprep.subr.mxu0 0.0
    %2329 = vmatpush1.msra.mxu0 0.0
    %2330 = vmatprep.subr.mxu0 0.0
    %2331 = vmatpush1.msra.mxu0 0.0
    %2332 = vmatprep.subr.mxu0 0.0
    %2333 = vmatpush1.msra.mxu0 0.0
    %2334 = vmatprep.subr.mxu0 0.0
    %2335 = vmatpush1.msra.mxu0 0.0
    %2336 = vmatprep.subr.mxu0 0.0
    %2337 = vmatpush1.msra.mxu0 0.0
    %2338 = vmatprep.subr.mxu0 0.0
    %2339 = vmatpush1.msra.mxu0 0.0
    %2340 = vmatprep.subr.mxu0 0.0
    %2341 = vmatpush1.msra.mxu0 0.0
    %2342 = vmatprep.subr.mxu0 0.0
    %2343 = vmatpush1.msra.mxu0 0.0
    %2344 = vmatprep.subr.mxu0 0.0
    %2345 = vmatpush1.msra.mxu0 0.0
    %2346 = vmatprep.subr.mxu0 0.0
    %2347 = vmatpush1.msra.mxu0 0.0
    %2348 = vmatprep.subr.mxu0 0.0
    %2349 = vmatpush1.msra.mxu0 0.0
    %2350 = vmatprep.subr.mxu0 0.0
    %2351 = vmatpush1.msra.mxu0 0.0
    %2352 = vmatprep.subr.mxu0 0.0
    %2353 = vmatpush1.msra.mxu0 0.0
    %2354 = vmatprep.subr.mxu0 0.0
    %2355 = vmatpush1.msra.mxu0 0.0
    %2356 = vmatprep.subr.mxu0 0.0
    %2357 = vmatpush1.msra.mxu0 0.0
    %2358 = vmatprep.subr.mxu0 0.0
    %2359 = vmatpush1.msra.mxu0 0.0
    %2360 = vmatprep.subr.mxu0 0.0
    %2361 = vmatpush1.msra.mxu0 0.0
    %2362 = vmatprep.subr.mxu0 0.0
    %2363 = vmatpush1.msra.mxu0 0.0
    %2364 = vmatprep.subr.mxu0 0.0
    %2365 = vmatpush1.msra.mxu0 0.0
    %2366 = vmatprep.subr.mxu0 0.0
    %2367 = vmatpush1.msra.mxu0 0.0
    %2368 = vmatprep.mubr.f32.mxu0 0.0
    %2369 = vmatmul.mubr.f32.gmra.mrb[0].mxu0 %v2302
    %v2370 = vpop.f32.mrb[0].mxu0
    %v2371 = vadd.f32 0.0, %v2370
    %v2372 = vpop.f32.mrb[0].mxu0
    %2373 = vdwg.mxu0
    %2374 = vmatprep.subr.mxu0 0.0
    %2375 = vmatpush1.msra.mxu0 %v1312
    %2376 = vmatprep.subr.mxu0 0.0
    %2377 = vmatpush1.msra.mxu0 %v1313
    %2378 = vmatprep.subr.mxu0 0.0
    %2379 = vmatpush1.msra.mxu0 %v1314
    %2380 = vmatprep.subr.mxu0 0.0
    %2381 = vmatpush1.msra.mxu0 %v1315
    %2382 = vmatprep.subr.mxu0 0.0
    %2383 = vmatpush1.msra.mxu0 0.0
    %2384 = vmatprep.subr.mxu0 0.0
    %2385 = vmatpush1.msra.mxu0 0.0
    %2386 = vmatprep.subr.mxu0 0.0
    %2387 = vmatpush1.msra.mxu0 0.0
    %2388 = vmatprep.subr.mxu0 0.0
    %2389 = vmatpush1.msra.mxu0 0.0
    %2390 = vmatprep.subr.mxu0 0.0
    %2391 = vmatpush1.msra.mxu0 0.0
    %2392 = vmatprep.subr.mxu0 0.0
    %2393 = vmatpush1.msra.mxu0 0.0
    %2394 = vmatprep.subr.mxu0 0.0
    %2395 = vmatpush1.msra.mxu0 0.0
    %2396 = vmatprep.subr.mxu0 0.0
    %2397 = vmatpush1.msra.mxu0 0.0
    %2398 = vmatprep.subr.mxu0 0.0
    %2399 = vmatpush1.msra.mxu0 0.0
    %2400 = vmatprep.subr.mxu0 0.0
    %2401 = vmatpush1.msra.mxu0 0.0
    %2402 = vmatprep.subr.mxu0 0.0
    %2403 = vmatpush1.msra.mxu0 0.0
    %2404 = vmatprep.subr.mxu0 0.0
    %2405 = vmatpush1.msra.mxu0 0.0
    %2406 = vmatprep.subr.mxu0 0.0
    %2407 = vmatpush1.msra.mxu0 0.0
    %2408 = vmatprep.subr.mxu0 0.0
    %2409 = vmatpush1.msra.mxu0 0.0
    %2410 = vmatprep.subr.mxu0 0.0
    %2411 = vmatpush1.msra.mxu0 0.0
    %2412 = vmatprep.subr.mxu0 0.0
    %2413 = vmatpush1.msra.mxu0 0.0
    %2414 = vmatprep.subr.mxu0 0.0
    %2415 = vmatpush1.msra.mxu0 0.0
    %2416 = vmatprep.subr.mxu0 0.0
    %2417 = vmatpush1.msra.mxu0 0.0
    %2418 = vmatprep.subr.mxu0 0.0
    %2419 = vmatpush1.msra.mxu0 0.0
    %2420 = vmatprep.subr.mxu0 0.0
    %2421 = vmatpush1.msra.mxu0 0.0
    %2422 = vmatprep.subr.mxu0 0.0
    %2423 = vmatpush1.msra.mxu0 0.0
    %2424 = vmatprep.subr.mxu0 0.0
    %2425 = vmatpush1.msra.mxu0 0.0
    %2426 = vmatprep.subr.mxu0 0.0
    %2427 = vmatpush1.msra.mxu0 0.0
    %2428 = vmatprep.subr.mxu0 0.0
    %2429 = vmatpush1.msra.mxu0 0.0
    %2430 = vmatprep.subr.mxu0 0.0
    %2431 = vmatpush1.msra.mxu0 0.0
    %2432 = vmatprep.subr.mxu0 0.0
    %2433 = vmatpush1.msra.mxu0 0.0
    %2434 = vmatprep.subr.mxu0 0.0
    %2435 = vmatpush1.msra.mxu0 0.0
    %2436 = vmatprep.subr.mxu0 0.0
    %2437 = vmatpush1.msra.mxu0 0.0
    %2438 = vmatprep.mubr.f32.mxu0 0.0
    %2439 = vmatmul.mubr.f32.gmra.mrb[0].mxu0 %v2302
    %v2440 = vpop.f32.mrb[0].mxu0
    %v2441 = vadd.f32 0.0, %v2440
    %v2442 = vpop.f32.mrb[0].mxu0
    %2443 = vdwg.mxu0
    %2444 = vmatprep.subr.mxu0 0.0
    %2445 = vmatpush1.msra.mxu0 %v1316
    %2446 = vmatprep.subr.mxu0 0.0
    %2447 = vmatpush1.msra.mxu0 %v1317
    %2448 = vmatprep.subr.mxu0 0.0
    %2449 = vmatpush1.msra.mxu0 %v1318
    %2450 = vmatprep.subr.mxu0 0.0
    %2451 = vmatpush1.msra.mxu0 %v1319
    %2452 = vmatprep.subr.mxu0 0.0
    %2453 = vmatpush1.msra.mxu0 0.0
    %2454 = vmatprep.subr.mxu0 0.0
    %2455 = vmatpush1.msra.mxu0 0.0
    %2456 = vmatprep.subr.mxu0 0.0
    %2457 = vmatpush1.msra.mxu0 0.0
    %2458 = vmatprep.subr.mxu0 0.0
    %2459 = vmatpush1.msra.mxu0 0.0
    %2460 = vmatprep.subr.mxu0 0.0
    %2461 = vmatpush1.msra.mxu0 0.0
    %2462 = vmatprep.subr.mxu0 0.0
    %2463 = vmatpush1.msra.mxu0 0.0
    %2464 = vmatprep.subr.mxu0 0.0
    %2465 = vmatpush1.msra.mxu0 0.0
    %2466 = vmatprep.subr.mxu0 0.0
    %2467 = vmatpush1.msra.mxu0 0.0
    %2468 = vmatprep.subr.mxu0 0.0
    %2469 = vmatpush1.msra.mxu0 0.0
    %2470 = vmatprep.subr.mxu0 0.0
    %2471 = vmatpush1.msra.mxu0 0.0
    %2472 = vmatprep.subr.mxu0 0.0
    %2473 = vmatpush1.msra.mxu0 0.0
    %2474 = vmatprep.subr.mxu0 0.0
    %2475 = vmatpush1.msra.mxu0 0.0
    %2476 = vmatprep.subr.mxu0 0.0
    %2477 = vmatpush1.msra.mxu0 0.0
    %2478 = vmatprep.subr.mxu0 0.0
    %2479 = vmatpush1.msra.mxu0 0.0
    %2480 = vmatprep.subr.mxu0 0.0
    %2481 = vmatpush1.msra.mxu0 0.0
    %2482 = vmatprep.subr.mxu0 0.0
    %2483 = vmatpush1.msra.mxu0 0.0
    %2484 = vmatprep.subr.mxu0 0.0
    %2485 = vmatpush1.msra.mxu0 0.0
    %2486 = vmatprep.subr.mxu0 0.0
    %2487 = vmatpush1.msra.mxu0 0.0
    %2488 = vmatprep.subr.mxu0 0.0
    %2489 = vmatpush1.msra.mxu0 0.0
    %2490 = vmatprep.subr.mxu0 0.0
    %2491 = vmatpush1.msra.mxu0 0.0
    %2492 = vmatprep.subr.mxu0 0.0
    %2493 = vmatpush1.msra.mxu0 0.0
    %2494 = vmatprep.subr.mxu0 0.0
    %2495 = vmatpush1.msra.mxu0 0.0
    %2496 = vmatprep.subr.mxu0 0.0
    %2497 = vmatpush1.msra.mxu0 0.0
    %2498 = vmatprep.subr.mxu0 0.0
    %2499 = vmatpush1.msra.mxu0 0.0
    %2500 = vmatprep.subr.mxu0 0.0
    %2501 = vmatpush1.msra.mxu0 0.0
    %2502 = vmatprep.subr.mxu0 0.0
    %2503 = vmatpush1.msra.mxu0 0.0
    %2504 = vmatprep.subr.mxu0 0.0
    %2505 = vmatpush1.msra.mxu0 0.0
    %2506 = vmatprep.subr.mxu0 0.0
    %2507 = vmatpush1.msra.mxu0 0.0
    %2508 = vmatprep.mubr.f32.mxu0 0.0
    %2509 = vmatmul.mubr.f32.gmra.mrb[0].mxu0 %v2302
    %v2510 = vpop.f32.mrb[0].mxu0
    %v2511 = vadd.f32 %v1325, %v2510
    %v2512 = vpop.f32.mrb[0].mxu0
    %2513 = vdwg.mxu0
    %s2514 = scalar_lea.vmem [#allocation3], 32
    %v2515 = vld [vmem:[%s2514] sm:$0xff]
    %v2516 = vadd.f32 %v2515, %v2371
    %v2517 = vxor.u32 %v2516, 2147483648
    %v2518 = vmul.f32 %v2517, 1.442695
    %v2519 = vpow.pop %v2518
    %v2520 = vadd.f32 %v2519, 1.0
    %v2521 = vrcp.pop %v2520
    %v2522 = vmul.f32 1.0, %v2521
    %s2523 = scalar_lea.vmem [#allocation4], 32
    %v2524 = vld [vmem:[%s2523] sm:$0xff]
    %v2525 = vadd.f32 %v2524, %v2441
    %v2526 = vxor.u32 %v2525, 2147483648
    %v2527 = vmul.f32 %v2526, 1.442695
    %v2528 = vpow.pop %v2527
    %v2529 = vadd.f32 %v2528, 1.0
    %v2530 = vrcp.pop %v2529
    %v2531 = vmul.f32 1.0, %v2530
    %s2532 = scalar_lea.vmem [#allocation5], 32
    %v2533 = vld [vmem:[%s2532] sm:$0xff]
    %v2534 = vmul.f32 %v2522, %v2511
    %v2535 = vadd.f32 %v2533, %v2534
    %v2536 = vtanh.pop %v2535
    %v2537 = vsub.f32 1.0, %v2531
    %v2538 = vmul.f32 %v2537, %v2536
    %v2539 = vmul.f32 %v2531, %v2300
    %v2540 = vadd.f32 %v2538, %v2539
    %2541 = vst.msk [vmem:[#allocation7] sm:$0xff] %vm1043, %v2540
    %s2542 = scalar_lea.vmem [#allocation6], 32
    %2543 = vst.msk [vmem:[%s2542] sm:$0xff] %vm1043, %v2540
    %v2544 = vld [vmem:[#allocation7] sm:$0xff]
    %v2546 = vsel %vm1043, %v2544, 0
    %2548 = vmatprep.subr.mxu0 0.0
    %2549 = vmatpush1.msra.mxu0 %v1308
    %2550 = vmatprep.subr.mxu0 0.0
    %2551 = vmatpush1.msra.mxu0 %v1309
    %2552 = vmatprep.subr.mxu0 0.0
    %2553 = vmatpush1.msra.mxu0 %v1310
    %2554 = vmatprep.subr.mxu0 0.0
    %2555 = vmatpush1.msra.mxu0 %v1311
    %2556 = vmatprep.subr.mxu0 0.0
    %2557 = vmatpush1.msra.mxu0 0.0
    %2558 = vmatprep.subr.mxu0 0.0
    %2559 = vmatpush1.msra.mxu0 0.0
    %2560 = vmatprep.subr.mxu0 0.0
    %2561 = vmatpush1.msra.mxu0 0.0
    %2562 = vmatprep.subr.mxu0 0.0
    %2563 = vmatpush1.msra.mxu0 0.0
    %2564 = vmatprep.subr.mxu0 0.0
    %2565 = vmatpush1.msra.mxu0 0.0
    %2566 = vmatprep.subr.mxu0 0.0
    %2567 = vmatpush1.msra.mxu0 0.0
    %2568 = vmatprep.subr.mxu0 0.0
    %2569 = vmatpush1.msra.mxu0 0.0
    %2570 = vmatprep.subr.mxu0 0.0
    %2571 = vmatpush1.msra.mxu0 0.0
    %2572 = vmatprep.subr.mxu0 0.0
    %2573 = vmatpush1.msra.mxu0 0.0
    %2574 = vmatprep.subr.mxu0 0.0
    %2575 = vmatpush1.msra.mxu0 0.0
    %2576 = vmatprep.subr.mxu0 0.0
    %2577 = vmatpush1.msra.mxu0 0.0
    %2578 = vmatprep.subr.mxu0 0.0
    %2579 = vmatpush1.msra.mxu0 0.0
    %2580 = vmatprep.subr.mxu0 0.0
    %2581 = vmatpush1.msra.mxu0 0.0
    %2582 = vmatprep.subr.mxu0 0.0
    %2583 = vmatpush1.msra.mxu0 0.0
    %2584 = vmatprep.subr.mxu0 0.0
    %2585 = vmatpush1.msra.mxu0 0.0
    %2586 = vmatprep.subr.mxu0 0.0
    %2587 = vmatpush1.msra.mxu0 0.0
    %2588 = vmatprep.subr.mxu0 0.0
    %2589 = vmatpush1.msra.mxu0 0.0
    %2590 = vmatprep.subr.mxu0 0.0
    %2591 = vmatpush1.msra.mxu0 0.0
    %2592 = vmatprep.subr.mxu0 0.0
    %2593 = vmatpush1.msra.mxu0 0.0
    %2594 = vmatprep.subr.mxu0 0.0
    %2595 = vmatpush1.msra.mxu0 0.0
    %2596 = vmatprep.subr.mxu0 0.0
    %2597 = vmatpush1.msra.mxu0 0.0
    %2598 = vmatprep.subr.mxu0 0.0
    %2599 = vmatpush1.msra.mxu0 0.0
    %2600 = vmatprep.subr.mxu0 0.0
    %2601 = vmatpush1.msra.mxu0 0.0
    %2602 = vmatprep.subr.mxu0 0.0
    %2603 = vmatpush1.msra.mxu0 0.0
    %2604 = vmatprep.subr.mxu0 0.0
    %2605 = vmatpush1.msra.mxu0 0.0
    %2606 = vmatprep.subr.mxu0 0.0
    %2607 = vmatpush1.msra.mxu0 0.0
    %2608 = vmatprep.subr.mxu0 0.0
    %2609 = vmatpush1.msra.mxu0 0.0
    %2610 = vmatprep.subr.mxu0 0.0
    %2611 = vmatpush1.msra.mxu0 0.0
    %2612 = vmatprep.mubr.f32.mxu0 0.0
    %2613 = vmatmul.mubr.f32.gmra.mrb[0].mxu0 %v2546
    %v2614 = vpop.f32.mrb[0].mxu0
    %v2615 = vadd.f32 0.0, %v2614
    %v2616 = vpop.f32.mrb[0].mxu0
    %2617 = vdwg.mxu0
    %2618 = vmatprep.subr.mxu0 0.0
    %2619 = vmatpush1.msra.mxu0 %v1312
    %2620 = vmatprep.subr.mxu0 0.0
    %2621 = vmatpush1.msra.mxu0 %v1313
    %2622 = vmatprep.subr.mxu0 0.0
    %2623 = vmatpush1.msra.mxu0 %v1314
    %2624 = vmatprep.subr.mxu0 0.0
    %2625 = vmatpush1.msra.mxu0 %v1315
    %2626 = vmatprep.subr.mxu0 0.0
    %2627 = vmatpush1.msra.mxu0 0.0
    %2628 = vmatprep.subr.mxu0 0.0
    %2629 = vmatpush1.msra.mxu0 0.0
    %2630 = vmatprep.subr.mxu0 0.0
    %2631 = vmatpush1.msra.mxu0 0.0
    %2632 = vmatprep.subr.mxu0 0.0
    %2633 = vmatpush1.msra.mxu0 0.0
    %2634 = vmatprep.subr.mxu0 0.0
    %2635 = vmatpush1.msra.mxu0 0.0
    %2636 = vmatprep.subr.mxu0 0.0
    %2637 = vmatpush1.msra.mxu0 0.0
    %2638 = vmatprep.subr.mxu0 0.0
    %2639 = vmatpush1.msra.mxu0 0.0
    %2640 = vmatprep.subr.mxu0 0.0
    %2641 = vmatpush1.msra.mxu0 0.0
    %2642 = vmatprep.subr.mxu0 0.0
    %2643 = vmatpush1.msra.mxu0 0.0
    %2644 = vmatprep.subr.mxu0 0.0
    %2645 = vmatpush1.msra.mxu0 0.0
    %2646 = vmatprep.subr.mxu0 0.0
    %2647 = vmatpush1.msra.mxu0 0.0
    %2648 = vmatprep.subr.mxu0 0.0
    %2649 = vmatpush1.msra.mxu0 0.0
    %2650 = vmatprep.subr.mxu0 0.0
    %2651 = vmatpush1.msra.mxu0 0.0
    %2652 = vmatprep.subr.mxu0 0.0
    %2653 = vmatpush1.msra.mxu0 0.0
    %2654 = vmatprep.subr.mxu0 0.0
    %2655 = vmatpush1.msra.mxu0 0.0
    %2656 = vmatprep.subr.mxu0 0.0
    %2657 = vmatpush1.msra.mxu0 0.0
    %2658 = vmatprep.subr.mxu0 0.0
    %2659 = vmatpush1.msra.mxu0 0.0
    %2660 = vmatprep.subr.mxu0 0.0
    %2661 = vmatpush1.msra.mxu0 0.0
    %2662 = vmatprep.subr.mxu0 0.0
    %2663 = vmatpush1.msra.mxu0 0.0
    %2664 = vmatprep.subr.mxu0 0.0
    %2665 = vmatpush1.msra.mxu0 0.0
    %2666 = vmatprep.subr.mxu0 0.0
    %2667 = vmatpush1.msra.mxu0 0.0
    %2668 = vmatprep.subr.mxu0 0.0
    %2669 = vmatpush1.msra.mxu0 0.0
    %2670 = vmatprep.subr.mxu0 0.0
    %2671 = vmatpush1.msra.mxu0 0.0
    %2672 = vmatprep.subr.mxu0 0.0
    %2673 = vmatpush1.msra.mxu0 0.0
    %2674 = vmatprep.subr.mxu0 0.0
    %2675 = vmatpush1.msra.mxu0 0.0
    %2676 = vmatprep.subr.mxu0 0.0
    %2677 = vmatpush1.msra.mxu0 0.0
    %2678 = vmatprep.subr.mxu0 0.0
    %2679 = vmatpush1.msra.mxu0 0.0
    %2680 = vmatprep.subr.mxu0 0.0
    %2681 = vmatpush1.msra.mxu0 0.0
    %2682 = vmatprep.mubr.f32.mxu0 0.0
    %2683 = vmatmul.mubr.f32.gmra.mrb[0].mxu0 %v2546
    %v2684 = vpop.f32.mrb[0].mxu0
    %v2685 = vadd.f32 0.0, %v2684
    %v2686 = vpop.f32.mrb[0].mxu0
    %2687 = vdwg.mxu0
    %2688 = vmatprep.subr.mxu0 0.0
    %2689 = vmatpush1.msra.mxu0 %v1316
    %2690 = vmatprep.subr.mxu0 0.0
    %2691 = vmatpush1.msra.mxu0 %v1317
    %2692 = vmatprep.subr.mxu0 0.0
    %2693 = vmatpush1.msra.mxu0 %v1318
    %2694 = vmatprep.subr.mxu0 0.0
    %2695 = vmatpush1.msra.mxu0 %v1319
    %2696 = vmatprep.subr.mxu0 0.0
    %2697 = vmatpush1.msra.mxu0 0.0
    %2698 = vmatprep.subr.mxu0 0.0
    %2699 = vmatpush1.msra.mxu0 0.0
    %2700 = vmatprep.subr.mxu0 0.0
    %2701 = vmatpush1.msra.mxu0 0.0
    %2702 = vmatprep.subr.mxu0 0.0
    %2703 = vmatpush1.msra.mxu0 0.0
    %2704 = vmatprep.subr.mxu0 0.0
    %2705 = vmatpush1.msra.mxu0 0.0
    %2706 = vmatprep.subr.mxu0 0.0
    %2707 = vmatpush1.msra.mxu0 0.0
    %2708 = vmatprep.subr.mxu0 0.0
    %2709 = vmatpush1.msra.mxu0 0.0
    %2710 = vmatprep.subr.mxu0 0.0
    %2711 = vmatpush1.msra.mxu0 0.0
    %2712 = vmatprep.subr.mxu0 0.0
    %2713 = vmatpush1.msra.mxu0 0.0
    %2714 = vmatprep.subr.mxu0 0.0
    %2715 = vmatpush1.msra.mxu0 0.0
    %2716 = vmatprep.subr.mxu0 0.0
    %2717 = vmatpush1.msra.mxu0 0.0
    %2718 = vmatprep.subr.mxu0 0.0
    %2719 = vmatpush1.msra.mxu0 0.0
    %2720 = vmatprep.subr.mxu0 0.0
    %2721 = vmatpush1.msra.mxu0 0.0
    %2722 = vmatprep.subr.mxu0 0.0
    %2723 = vmatpush1.msra.mxu0 0.0
    %2724 = vmatprep.subr.mxu0 0.0
    %2725 = vmatpush1.msra.mxu0 0.0
    %2726 = vmatprep.subr.mxu0 0.0
    %2727 = vmatpush1.msra.mxu0 0.0
    %2728 = vmatprep.subr.mxu0 0.0
    %2729 = vmatpush1.msra.mxu0 0.0
    %2730 = vmatprep.subr.mxu0 0.0
    %2731 = vmatpush1.msra.mxu0 0.0
    %2732 = vmatprep.subr.mxu0 0.0
    %2733 = vmatpush1.msra.mxu0 0.0
    %2734 = vmatprep.subr.mxu0 0.0
    %2735 = vmatpush1.msra.mxu0 0.0
    %2736 = vmatprep.subr.mxu0 0.0
    %2737 = vmatpush1.msra.mxu0 0.0
    %2738 = vmatprep.subr.mxu0 0.0
    %2739 = vmatpush1.msra.mxu0 0.0
    %2740 = vmatprep.subr.mxu0 0.0
    %2741 = vmatpush1.msra.mxu0 0.0
    %2742 = vmatprep.subr.mxu0 0.0
    %2743 = vmatpush1.msra.mxu0 0.0
    %2744 = vmatprep.subr.mxu0 0.0
    %2745 = vmatpush1.msra.mxu0 0.0
    %2746 = vmatprep.subr.mxu0 0.0
    %2747 = vmatpush1.msra.mxu0 0.0
    %2748 = vmatprep.subr.mxu0 0.0
    %2749 = vmatpush1.msra.mxu0 0.0
    %2750 = vmatprep.subr.mxu0 0.0
    %2751 = vmatpush1.msra.mxu0 0.0
    %2752 = vmatprep.mubr.f32.mxu0 0.0
    %2753 = vmatmul.mubr.f32.gmra.mrb[0].mxu0 %v2546
    %v2754 = vpop.f32.mrb[0].mxu0
    %v2755 = vadd.f32 %v1325, %v2754
    %v2756 = vpop.f32.mrb[0].mxu0
    %2757 = vdwg.mxu0
    %s2758 = scalar_lea.vmem [#allocation3], 40
    %v2759 = vld [vmem:[%s2758] sm:$0xff]
    %v2760 = vadd.f32 %v2759, %v2615
    %v2761 = vxor.u32 %v2760, 2147483648
    %v2762 = vmul.f32 %v2761, 1.442695
    %v2763 = vpow.pop %v2762
    %v2764 = vadd.f32 %v2763, 1.0
    %v2765 = vrcp.pop %v2764
    %v2766 = vmul.f32 1.0, %v2765
    %s2767 = scalar_lea.vmem [#allocation4], 40
    %v2768 = vld [vmem:[%s2767] sm:$0xff]
    %v2769 = vadd.f32 %v2768, %v2685
    %v2770 = vxor.u32 %v2769, 2147483648
    %v2771 = vmul.f32 %v2770, 1.442695
    %v2772 = vpow.pop %v2771
    %v2773 = vadd.f32 %v2772, 1.0
    %v2774 = vrcp.pop %v2773
    %v2775 = vmul.f32 1.0, %v2774
    %s2776 = scalar_lea.vmem [#allocation5], 40
    %v2777 = vld [vmem:[%s2776] sm:$0xff]
    %v2778 = vmul.f32 %v2766, %v2755
    %v2779 = vadd.f32 %v2777, %v2778
    %v2780 = vtanh.pop %v2779
    %v2781 = vsub.f32 1.0, %v2775
    %v2782 = vmul.f32 %v2781, %v2780
    %v2783 = vmul.f32 %v2775, %v2544
    %v2784 = vadd.f32 %v2782, %v2783
    %2785 = vst.msk [vmem:[#allocation7] sm:$0xff] %vm1043, %v2784
    %s2786 = scalar_lea.vmem [#allocation6], 40
    %2787 = vst.msk [vmem:[%s2786] sm:$0xff] %vm1043, %v2784
    %v2788 = vld [vmem:[#allocation7] sm:$0xff]
    %v2790 = vsel %vm1043, %v2788, 0
    %2792 = vmatprep.subr.mxu0 0.0
    %2793 = vmatpush1.msra.mxu0 %v1308
    %2794 = vmatprep.subr.mxu0 0.0
    %2795 = vmatpush1.msra.mxu0 %v1309
    %2796 = vmatprep.subr.mxu0 0.0
    %2797 = vmatpush1.msra.mxu0 %v1310
    %2798 = vmatprep.subr.mxu0 0.0
    %2799 = vmatpush1.msra.mxu0 %v1311
    %2800 = vmatprep.subr.mxu0 0.0
    %2801 = vmatpush1.msra.mxu0 0.0
    %2802 = vmatprep.subr.mxu0 0.0
    %2803 = vmatpush1.msra.mxu0 0.0
    %2804 = vmatprep.subr.mxu0 0.0
    %2805 = vmatpush1.msra.mxu0 0.0
    %2806 = vmatprep.subr.mxu0 0.0
    %2807 = vmatpush1.msra.mxu0 0.0
    %2808 = vmatprep.subr.mxu0 0.0
    %2809 = vmatpush1.msra.mxu0 0.0
    %2810 = vmatprep.subr.mxu0 0.0
    %2811 = vmatpush1.msra.mxu0 0.0
    %2812 = vmatprep.subr.mxu0 0.0
    %2813 = vmatpush1.msra.mxu0 0.0
    %2814 = vmatprep.subr.mxu0 0.0
    %2815 = vmatpush1.msra.mxu0 0.0
    %2816 = vmatprep.subr.mxu0 0.0
    %2817 = vmatpush1.msra.mxu0 0.0
    %2818 = vmatprep.subr.mxu0 0.0
    %2819 = vmatpush1.msra.mxu0 0.0
    %2820 = vmatprep.subr.mxu0 0.0
    %2821 = vmatpush1.msra.mxu0 0.0
    %2822 = vmatprep.subr.mxu0 0.0
    %2823 = vmatpush1.msra.mxu0 0.0
    %2824 = vmatprep.subr.mxu0 0.0
    %2825 = vmatpush1.msra.mxu0 0.0
    %2826 = vmatprep.subr.mxu0 0.0
    %2827 = vmatpush1.msra.mxu0 0.0
    %2828 = vmatprep.subr.mxu0 0.0
    %2829 = vmatpush1.msra.mxu0 0.0
    %2830 = vmatprep.subr.mxu0 0.0
    %2831 = vmatpush1.msra.mxu0 0.0
    %2832 = vmatprep.subr.mxu0 0.0
    %2833 = vmatpush1.msra.mxu0 0.0
    %2834 = vmatprep.subr.mxu0 0.0
    %2835 = vmatpush1.msra.mxu0 0.0
    %2836 = vmatprep.subr.mxu0 0.0
    %2837 = vmatpush1.msra.mxu0 0.0
    %2838 = vmatprep.subr.mxu0 0.0
    %2839 = vmatpush1.msra.mxu0 0.0
    %2840 = vmatprep.subr.mxu0 0.0
    %2841 = vmatpush1.msra.mxu0 0.0
    %2842 = vmatprep.subr.mxu0 0.0
    %2843 = vmatpush1.msra.mxu0 0.0
    %2844 = vmatprep.subr.mxu0 0.0
    %2845 = vmatpush1.msra.mxu0 0.0
    %2846 = vmatprep.subr.mxu0 0.0
    %2847 = vmatpush1.msra.mxu0 0.0
    %2848 = vmatprep.subr.mxu0 0.0
    %2849 = vmatpush1.msra.mxu0 0.0
    %2850 = vmatprep.subr.mxu0 0.0
    %2851 = vmatpush1.msra.mxu0 0.0
    %2852 = vmatprep.subr.mxu0 0.0
    %2853 = vmatpush1.msra.mxu0 0.0
    %2854 = vmatprep.subr.mxu0 0.0
    %2855 = vmatpush1.msra.mxu0 0.0
    %2856 = vmatprep.mubr.f32.mxu0 0.0
    %2857 = vmatmul.mubr.f32.gmra.mrb[0].mxu0 %v2790
    %v2858 = vpop.f32.mrb[0].mxu0
    %v2859 = vadd.f32 0.0, %v2858
    %v2860 = vpop.f32.mrb[0].mxu0
    %2861 = vdwg.mxu0
    %2862 = vmatprep.subr.mxu0 0.0
    %2863 = vmatpush1.msra.mxu0 %v1312
    %2864 = vmatprep.subr.mxu0 0.0
    %2865 = vmatpush1.msra.mxu0 %v1313
    %2866 = vmatprep.subr.mxu0 0.0
    %2867 = vmatpush1.msra.mxu0 %v1314
    %2868 = vmatprep.subr.mxu0 0.0
    %2869 = vmatpush1.msra.mxu0 %v1315
    %2870 = vmatprep.subr.mxu0 0.0
    %2871 = vmatpush1.msra.mxu0 0.0
    %2872 = vmatprep.subr.mxu0 0.0
    %2873 = vmatpush1.msra.mxu0 0.0
    %2874 = vmatprep.subr.mxu0 0.0
    %2875 = vmatpush1.msra.mxu0 0.0
    %2876 = vmatprep.subr.mxu0 0.0
    %2877 = vmatpush1.msra.mxu0 0.0
    %2878 = vmatprep.subr.mxu0 0.0
    %2879 = vmatpush1.msra.mxu0 0.0
    %2880 = vmatprep.subr.mxu0 0.0
    %2881 = vmatpush1.msra.mxu0 0.0
    %2882 = vmatprep.subr.mxu0 0.0
    %2883 = vmatpush1.msra.mxu0 0.0
    %2884 = vmatprep.subr.mxu0 0.0
    %2885 = vmatpush1.msra.mxu0 0.0
    %2886 = vmatprep.subr.mxu0 0.0
    %2887 = vmatpush1.msra.mxu0 0.0
    %2888 = vmatprep.subr.mxu0 0.0
    %2889 = vmatpush1.msra.mxu0 0.0
    %2890 = vmatprep.subr.mxu0 0.0
    %2891 = vmatpush1.msra.mxu0 0.0
    %2892 = vmatprep.subr.mxu0 0.0
    %2893 = vmatpush1.msra.mxu0 0.0
    %2894 = vmatprep.subr.mxu0 0.0
    %2895 = vmatpush1.msra.mxu0 0.0
    %2896 = vmatprep.subr.mxu0 0.0
    %2897 = vmatpush1.msra.mxu0 0.0
    %2898 = vmatprep.subr.mxu0 0.0
    %2899 = vmatpush1.msra.mxu0 0.0
    %2900 = vmatprep.subr.mxu0 0.0
    %2901 = vmatpush1.msra.mxu0 0.0
    %2902 = vmatprep.subr.mxu0 0.0
    %2903 = vmatpush1.msra.mxu0 0.0
    %2904 = vmatprep.subr.mxu0 0.0
    %2905 = vmatpush1.msra.mxu0 0.0
    %2906 = vmatprep.subr.mxu0 0.0
    %2907 = vmatpush1.msra.mxu0 0.0
    %2908 = vmatprep.subr.mxu0 0.0
    %2909 = vmatpush1.msra.mxu0 0.0
    %2910 = vmatprep.subr.mxu0 0.0
    %2911 = vmatpush1.msra.mxu0 0.0
    %2912 = vmatprep.subr.mxu0 0.0
    %2913 = vmatpush1.msra.mxu0 0.0
    %2914 = vmatprep.subr.mxu0 0.0
    %2915 = vmatpush1.msra.mxu0 0.0
    %2916 = vmatprep.subr.mxu0 0.0
    %2917 = vmatpush1.msra.mxu0 0.0
    %2918 = vmatprep.subr.mxu0 0.0
    %2919 = vmatpush1.msra.mxu0 0.0
    %2920 = vmatprep.subr.mxu0 0.0
    %2921 = vmatpush1.msra.mxu0 0.0
    %2922 = vmatprep.subr.mxu0 0.0
    %2923 = vmatpush1.msra.mxu0 0.0
    %2924 = vmatprep.subr.mxu0 0.0
    %2925 = vmatpush1.msra.mxu0 0.0
    %2926 = vmatprep.mubr.f32.mxu0 0.0
    %2927 = vmatmul.mubr.f32.gmra.mrb[0].mxu0 %v2790
    %v2928 = vpop.f32.mrb[0].mxu0
    %v2929 = vadd.f32 0.0, %v2928
    %v2930 = vpop.f32.mrb[0].mxu0
    %2931 = vdwg.mxu0
    %2932 = vmatprep.subr.mxu0 0.0
    %2933 = vmatpush1.msra.mxu0 %v1316
    %2934 = vmatprep.subr.mxu0 0.0
    %2935 = vmatpush1.msra.mxu0 %v1317
    %2936 = vmatprep.subr.mxu0 0.0
    %2937 = vmatpush1.msra.mxu0 %v1318
    %2938 = vmatprep.subr.mxu0 0.0
    %2939 = vmatpush1.msra.mxu0 %v1319
    %2940 = vmatprep.subr.mxu0 0.0
    %2941 = vmatpush1.msra.mxu0 0.0
    %2942 = vmatprep.subr.mxu0 0.0
    %2943 = vmatpush1.msra.mxu0 0.0
    %2944 = vmatprep.subr.mxu0 0.0
    %2945 = vmatpush1.msra.mxu0 0.0
    %2946 = vmatprep.subr.mxu0 0.0
    %2947 = vmatpush1.msra.mxu0 0.0
    %2948 = vmatprep.subr.mxu0 0.0
    %2949 = vmatpush1.msra.mxu0 0.0
    %2950 = vmatprep.subr.mxu0 0.0
    %2951 = vmatpush1.msra.mxu0 0.0
    %2952 = vmatprep.subr.mxu0 0.0
    %2953 = vmatpush1.msra.mxu0 0.0
    %2954 = vmatprep.subr.mxu0 0.0
    %2955 = vmatpush1.msra.mxu0 0.0
    %2956 = vmatprep.subr.mxu0 0.0
    %2957 = vmatpush1.msra.mxu0 0.0
    %2958 = vmatprep.subr.mxu0 0.0
    %2959 = vmatpush1.msra.mxu0 0.0
    %2960 = vmatprep.subr.mxu0 0.0
    %2961 = vmatpush1.msra.mxu0 0.0
    %2962 = vmatprep.subr.mxu0 0.0
    %2963 = vmatpush1.msra.mxu0 0.0
    %2964 = vmatprep.subr.mxu0 0.0
    %2965 = vmatpush1.msra.mxu0 0.0
    %2966 = vmatprep.subr.mxu0 0.0
    %2967 = vmatpush1.msra.mxu0 0.0
    %2968 = vmatprep.subr.mxu0 0.0
    %2969 = vmatpush1.msra.mxu0 0.0
    %2970 = vmatprep.subr.mxu0 0.0
    %2971 = vmatpush1.msra.mxu0 0.0
    %2972 = vmatprep.subr.mxu0 0.0
    %2973 = vmatpush1.msra.mxu0 0.0
    %2974 = vmatprep.subr.mxu0 0.0
    %2975 = vmatpush1.msra.mxu0 0.0
    %2976 = vmatprep.subr.mxu0 0.0
    %2977 = vmatpush1.msra.mxu0 0.0
    %2978 = vmatprep.subr.mxu0 0.0
    %2979 = vmatpush1.msra.mxu0 0.0
    %2980 = vmatprep.subr.mxu0 0.0
    %2981 = vmatpush1.msra.mxu0 0.0
    %2982 = vmatprep.subr.mxu0 0.0
    %2983 = vmatpush1.msra.mxu0 0.0
    %2984 = vmatprep.subr.mxu0 0.0
    %2985 = vmatpush1.msra.mxu0 0.0
    %2986 = vmatprep.subr.mxu0 0.0
    %2987 = vmatpush1.msra.mxu0 0.0
    %2988 = vmatprep.subr.mxu0 0.0
    %2989 = vmatpush1.msra.mxu0 0.0
    %2990 = vmatprep.subr.mxu0 0.0
    %2991 = vmatpush1.msra.mxu0 0.0
    %2992 = vmatprep.subr.mxu0 0.0
    %2993 = vmatpush1.msra.mxu0 0.0
    %2994 = vmatprep.subr.mxu0 0.0
    %2995 = vmatpush1.msra.mxu0 0.0
    %2996 = vmatprep.mubr.f32.mxu0 0.0
    %2997 = vmatmul.mubr.f32.gmra.mrb[0].mxu0 %v2790
    %v2998 = vpop.f32.mrb[0].mxu0
    %v2999 = vadd.f32 %v1325, %v2998
    %v3000 = vpop.f32.mrb[0].mxu0
    %3001 = vdwg.mxu0
    %s3002 = scalar_lea.vmem [#allocation3], 48
    %v3003 = vld [vmem:[%s3002] sm:$0xff]
    %v3004 = vadd.f32 %v3003, %v2859
    %v3005 = vxor.u32 %v3004, 2147483648
    %v3006 = vmul.f32 %v3005, 1.442695
    %v3007 = vpow.pop %v3006
    %v3008 = vadd.f32 %v3007, 1.0
    %v3009 = vrcp.pop %v3008
    %v3010 = vmul.f32 1.0, %v3009
    %s3011 = scalar_lea.vmem [#allocation4], 48
    %v3012 = vld [vmem:[%s3011] sm:$0xff]
    %v3013 = vadd.f32 %v3012, %v2929
    %v3014 = vxor.u32 %v3013, 2147483648
    %v3015 = vmul.f32 %v3014, 1.442695
    %v3016 = vpow.pop %v3015
    %v3017 = vadd.f32 %v3016, 1.0
    %v3018 = vrcp.pop %v3017
    %v3019 = vmul.f32 1.0, %v3018
    %s3020 = scalar_lea.vmem [#allocation5], 48
    %v3021 = vld [vmem:[%s3020] sm:$0xff]
    %v3022 = vmul.f32 %v3010, %v2999
    %v3023 = vadd.f32 %v3021, %v3022
    %v3024 = vtanh.pop %v3023
    %v3025 = vsub.f32 1.0, %v3019
    %v3026 = vmul.f32 %v3025, %v3024
    %v3027 = vmul.f32 %v3019, %v2788
    %v3028 = vadd.f32 %v3026, %v3027
    %3029 = vst.msk [vmem:[#allocation7] sm:$0xff] %vm1043, %v3028
    %s3030 = scalar_lea.vmem [#allocation6], 48
    %3031 = vst.msk [vmem:[%s3030] sm:$0xff] %vm1043, %v3028
    %v3032 = vld [vmem:[#allocation7] sm:$0xff]
    %v3034 = vsel %vm1043, %v3032, 0
    %3036 = vmatprep.subr.mxu0 0.0
    %3037 = vmatpush1.msra.mxu0 %v1308
    %3038 = vmatprep.subr.mxu0 0.0
    %3039 = vmatpush1.msra.mxu0 %v1309
    %3040 = vmatprep.subr.mxu0 0.0
    %3041 = vmatpush1.msra.mxu0 %v1310
    %3042 = vmatprep.subr.mxu0 0.0
    %3043 = vmatpush1.msra.mxu0 %v1311
    %3044 = vmatprep.subr.mxu0 0.0
    %3045 = vmatpush1.msra.mxu0 0.0
    %3046 = vmatprep.subr.mxu0 0.0
    %3047 = vmatpush1.msra.mxu0 0.0
    %3048 = vmatprep.subr.mxu0 0.0
    %3049 = vmatpush1.msra.mxu0 0.0
    %3050 = vmatprep.subr.mxu0 0.0
    %3051 = vmatpush1.msra.mxu0 0.0
    %3052 = vmatprep.subr.mxu0 0.0
    %3053 = vmatpush1.msra.mxu0 0.0
    %3054 = vmatprep.subr.mxu0 0.0
    %3055 = vmatpush1.msra.mxu0 0.0
    %3056 = vmatprep.subr.mxu0 0.0
    %3057 = vmatpush1.msra.mxu0 0.0
    %3058 = vmatprep.subr.mxu0 0.0
    %3059 = vmatpush1.msra.mxu0 0.0
    %3060 = vmatprep.subr.mxu0 0.0
    %3061 = vmatpush1.msra.mxu0 0.0
    %3062 = vmatprep.subr.mxu0 0.0
    %3063 = vmatpush1.msra.mxu0 0.0
    %3064 = vmatprep.subr.mxu0 0.0
    %3065 = vmatpush1.msra.mxu0 0.0
    %3066 = vmatprep.subr.mxu0 0.0
    %3067 = vmatpush1.msra.mxu0 0.0
    %3068 = vmatprep.subr.mxu0 0.0
    %3069 = vmatpush1.msra.mxu0 0.0
    %3070 = vmatprep.subr.mxu0 0.0
    %3071 = vmatpush1.msra.mxu0 0.0
    %3072 = vmatprep.subr.mxu0 0.0
    %3073 = vmatpush1.msra.mxu0 0.0
    %3074 = vmatprep.subr.mxu0 0.0
    %3075 = vmatpush1.msra.mxu0 0.0
    %3076 = vmatprep.subr.mxu0 0.0
    %3077 = vmatpush1.msra.mxu0 0.0
    %3078 = vmatprep.subr.mxu0 0.0
    %3079 = vmatpush1.msra.mxu0 0.0
    %3080 = vmatprep.subr.mxu0 0.0
    %3081 = vmatpush1.msra.mxu0 0.0
    %3082 = vmatprep.subr.mxu0 0.0
    %3083 = vmatpush1.msra.mxu0 0.0
    %3084 = vmatprep.subr.mxu0 0.0
    %3085 = vmatpush1.msra.mxu0 0.0
    %3086 = vmatprep.subr.mxu0 0.0
    %3087 = vmatpush1.msra.mxu0 0.0
    %3088 = vmatprep.subr.mxu0 0.0
    %3089 = vmatpush1.msra.mxu0 0.0
    %3090 = vmatprep.subr.mxu0 0.0
    %3091 = vmatpush1.msra.mxu0 0.0
    %3092 = vmatprep.subr.mxu0 0.0
    %3093 = vmatpush1.msra.mxu0 0.0
    %3094 = vmatprep.subr.mxu0 0.0
    %3095 = vmatpush1.msra.mxu0 0.0
    %3096 = vmatprep.subr.mxu0 0.0
    %3097 = vmatpush1.msra.mxu0 0.0
    %3098 = vmatprep.subr.mxu0 0.0
    %3099 = vmatpush1.msra.mxu0 0.0
    %3100 = vmatprep.mubr.f32.mxu0 0.0
    %3101 = vmatmul.mubr.f32.gmra.mrb[0].mxu0 %v3034
    %v3102 = vpop.f32.mrb[0].mxu0
    %v3103 = vadd.f32 0.0, %v3102
    %v3104 = vpop.f32.mrb[0].mxu0
    %3105 = vdwg.mxu0
    %3106 = vmatprep.subr.mxu0 0.0
    %3107 = vmatpush1.msra.mxu0 %v1312
    %3108 = vmatprep.subr.mxu0 0.0
    %3109 = vmatpush1.msra.mxu0 %v1313
    %3110 = vmatprep.subr.mxu0 0.0
    %3111 = vmatpush1.msra.mxu0 %v1314
    %3112 = vmatprep.subr.mxu0 0.0
    %3113 = vmatpush1.msra.mxu0 %v1315
    %3114 = vmatprep.subr.mxu0 0.0
    %3115 = vmatpush1.msra.mxu0 0.0
    %3116 = vmatprep.subr.mxu0 0.0
    %3117 = vmatpush1.msra.mxu0 0.0
    %3118 = vmatprep.subr.mxu0 0.0
    %3119 = vmatpush1.msra.mxu0 0.0
    %3120 = vmatprep.subr.mxu0 0.0
    %3121 = vmatpush1.msra.mxu0 0.0
    %3122 = vmatprep.subr.mxu0 0.0
    %3123 = vmatpush1.msra.mxu0 0.0
    %3124 = vmatprep.subr.mxu0 0.0
    %3125 = vmatpush1.msra.mxu0 0.0
    %3126 = vmatprep.subr.mxu0 0.0
    %3127 = vmatpush1.msra.mxu0 0.0
    %3128 = vmatprep.subr.mxu0 0.0
    %3129 = vmatpush1.msra.mxu0 0.0
    %3130 = vmatprep.subr.mxu0 0.0
    %3131 = vmatpush1.msra.mxu0 0.0
    %3132 = vmatprep.subr.mxu0 0.0
    %3133 = vmatpush1.msra.mxu0 0.0
    %3134 = vmatprep.subr.mxu0 0.0
    %3135 = vmatpush1.msra.mxu0 0.0
    %3136 = vmatprep.subr.mxu0 0.0
    %3137 = vmatpush1.msra.mxu0 0.0
    %3138 = vmatprep.subr.mxu0 0.0
    %3139 = vmatpush1.msra.mxu0 0.0
    %3140 = vmatprep.subr.mxu0 0.0
    %3141 = vmatpush1.msra.mxu0 0.0
    %3142 = vmatprep.subr.mxu0 0.0
    %3143 = vmatpush1.msra.mxu0 0.0
    %3144 = vmatprep.subr.mxu0 0.0
    %3145 = vmatpush1.msra.mxu0 0.0
    %3146 = vmatprep.subr.mxu0 0.0
    %3147 = vmatpush1.msra.mxu0 0.0
    %3148 = vmatprep.subr.mxu0 0.0
    %3149 = vmatpush1.msra.mxu0 0.0
    %3150 = vmatprep.subr.mxu0 0.0
    %3151 = vmatpush1.msra.mxu0 0.0
    %3152 = vmatprep.subr.mxu0 0.0
    %3153 = vmatpush1.msra.mxu0 0.0
    %3154 = vmatprep.subr.mxu0 0.0
    %3155 = vmatpush1.msra.mxu0 0.0
    %3156 = vmatprep.subr.mxu0 0.0
    %3157 = vmatpush1.msra.mxu0 0.0
    %3158 = vmatprep.subr.mxu0 0.0
    %3159 = vmatpush1.msra.mxu0 0.0
    %3160 = vmatprep.subr.mxu0 0.0
    %3161 = vmatpush1.msra.mxu0 0.0
    %3162 = vmatprep.subr.mxu0 0.0
    %3163 = vmatpush1.msra.mxu0 0.0
    %3164 = vmatprep.subr.mxu0 0.0
    %3165 = vmatpush1.msra.mxu0 0.0
    %3166 = vmatprep.subr.mxu0 0.0
    %3167 = vmatpush1.msra.mxu0 0.0
    %3168 = vmatprep.subr.mxu0 0.0
    %3169 = vmatpush1.msra.mxu0 0.0
    %3170 = vmatprep.mubr.f32.mxu0 0.0
    %3171 = vmatmul.mubr.f32.gmra.mrb[0].mxu0 %v3034
    %v3172 = vpop.f32.mrb[0].mxu0
    %v3173 = vadd.f32 0.0, %v3172
    %v3174 = vpop.f32.mrb[0].mxu0
    %3175 = vdwg.mxu0
    %3176 = vmatprep.subr.mxu0 0.0
    %3177 = vmatpush1.msra.mxu0 %v1316
    %3178 = vmatprep.subr.mxu0 0.0
    %3179 = vmatpush1.msra.mxu0 %v1317
    %3180 = vmatprep.subr.mxu0 0.0
    %3181 = vmatpush1.msra.mxu0 %v1318
    %3182 = vmatprep.subr.mxu0 0.0
    %3183 = vmatpush1.msra.mxu0 %v1319
    %3184 = vmatprep.subr.mxu0 0.0
    %3185 = vmatpush1.msra.mxu0 0.0
    %3186 = vmatprep.subr.mxu0 0.0
    %3187 = vmatpush1.msra.mxu0 0.0
    %3188 = vmatprep.subr.mxu0 0.0
    %3189 = vmatpush1.msra.mxu0 0.0
    %3190 = vmatprep.subr.mxu0 0.0
    %3191 = vmatpush1.msra.mxu0 0.0
    %3192 = vmatprep.subr.mxu0 0.0
    %3193 = vmatpush1.msra.mxu0 0.0
    %3194 = vmatprep.subr.mxu0 0.0
    %3195 = vmatpush1.msra.mxu0 0.0
    %3196 = vmatprep.subr.mxu0 0.0
    %3197 = vmatpush1.msra.mxu0 0.0
    %3198 = vmatprep.subr.mxu0 0.0
    %3199 = vmatpush1.msra.mxu0 0.0
    %3200 = vmatprep.subr.mxu0 0.0
    %3201 = vmatpush1.msra.mxu0 0.0
    %3202 = vmatprep.subr.mxu0 0.0
    %3203 = vmatpush1.msra.mxu0 0.0
    %3204 = vmatprep.subr.mxu0 0.0
    %3205 = vmatpush1.msra.mxu0 0.0
    %3206 = vmatprep.subr.mxu0 0.0
    %3207 = vmatpush1.msra.mxu0 0.0
    %3208 = vmatprep.subr.mxu0 0.0
    %3209 = vmatpush1.msra.mxu0 0.0
    %3210 = vmatprep.subr.mxu0 0.0
    %3211 = vmatpush1.msra.mxu0 0.0
    %3212 = vmatprep.subr.mxu0 0.0
    %3213 = vmatpush1.msra.mxu0 0.0
    %3214 = vmatprep.subr.mxu0 0.0
    %3215 = vmatpush1.msra.mxu0 0.0
    %3216 = vmatprep.subr.mxu0 0.0
    %3217 = vmatpush1.msra.mxu0 0.0
    %3218 = vmatprep.subr.mxu0 0.0
    %3219 = vmatpush1.msra.mxu0 0.0
    %3220 = vmatprep.subr.mxu0 0.0
    %3221 = vmatpush1.msra.mxu0 0.0
    %3222 = vmatprep.subr.mxu0 0.0
    %3223 = vmatpush1.msra.mxu0 0.0
    %3224 = vmatprep.subr.mxu0 0.0
    %3225 = vmatpush1.msra.mxu0 0.0
    %3226 = vmatprep.subr.mxu0 0.0
    %3227 = vmatpush1.msra.mxu0 0.0
    %3228 = vmatprep.subr.mxu0 0.0
    %3229 = vmatpush1.msra.mxu0 0.0
    %3230 = vmatprep.subr.mxu0 0.0
    %3231 = vmatpush1.msra.mxu0 0.0
    %3232 = vmatprep.subr.mxu0 0.0
    %3233 = vmatpush1.msra.mxu0 0.0
    %3234 = vmatprep.subr.mxu0 0.0
    %3235 = vmatpush1.msra.mxu0 0.0
    %3236 = vmatprep.subr.mxu0 0.0
    %3237 = vmatpush1.msra.mxu0 0.0
    %3238 = vmatprep.subr.mxu0 0.0
    %3239 = vmatpush1.msra.mxu0 0.0
    %3240 = vmatprep.mubr.f32.mxu0 0.0
    %3241 = vmatmul.mubr.f32.gmra.mrb[0].mxu0 %v3034
    %v3242 = vpop.f32.mrb[0].mxu0
    %v3243 = vadd.f32 %v1325, %v3242
    %v3244 = vpop.f32.mrb[0].mxu0
    %3245 = vdwg.mxu0
    %s3246 = scalar_lea.vmem [#allocation3], 56
    %v3247 = vld [vmem:[%s3246] sm:$0xff]
    %v3248 = vadd.f32 %v3247, %v3103
    %v3249 = vxor.u32 %v3248, 2147483648
    %v3250 = vmul.f32 %v3249, 1.442695
    %v3251 = vpow.pop %v3250
    %v3252 = vadd.f32 %v3251, 1.0
    %v3253 = vrcp.pop %v3252
    %v3254 = vmul.f32 1.0, %v3253
    %s3255 = scalar_lea.vmem [#allocation4], 56
    %v3256 = vld [vmem:[%s3255] sm:$0xff]
    %v3257 = vadd.f32 %v3256, %v3173
    %v3258 = vxor.u32 %v3257, 2147483648
    %v3259 = vmul.f32 %v3258, 1.442695
    %v3260 = vpow.pop %v3259
    %v3261 = vadd.f32 %v3260, 1.0
    %v3262 = vrcp.pop %v3261
    %v3263 = vmul.f32 1.0, %v3262
    %s3264 = scalar_lea.vmem [#allocation5], 56
    %v3265 = vld [vmem:[%s3264] sm:$0xff]
    %v3266 = vmul.f32 %v3254, %v3243
    %v3267 = vadd.f32 %v3265, %v3266
    %v3268 = vtanh.pop %v3267
    %v3269 = vsub.f32 1.0, %v3263
    %v3270 = vmul.f32 %v3269, %v3268
    %v3271 = vmul.f32 %v3263, %v3032
    %v3272 = vadd.f32 %v3270, %v3271
    %3273 = vst.msk [vmem:[#allocation7] sm:$0xff] %vm1043, %v3272
    %s3274 = scalar_lea.vmem [#allocation6], 56
    %3275 = vst.msk [vmem:[%s3274] sm:$0xff] %vm1043, %v3272
    %v3276 = vld [vmem:[#allocation7] sm:$0xff]
    %3277 = vst.msk [vmem:[#allocation8] sm:$0xff] %vm1043, %v3276
    %v3278 = vld [vmem:[#allocation6] sm:$0xff]
    %v3279 = vld [vmem:[#allocation6 + $0x8] sm:$0xff]
    %v3280 = vld [vmem:[#allocation6 + $0x10] sm:$0xff]
    %v3281 = vld [vmem:[#allocation6 + $0x18] sm:$0xff]
    %v3282 = vld [vmem:[#allocation6 + $0x20] sm:$0xff]
    %v3283 = vld [vmem:[#allocation6 + $0x28] sm:$0xff]
    %v3284 = vld [vmem:[#allocation6 + $0x30] sm:$0xff]
    %v3285 = vld [vmem:[#allocation6 + $0x38] sm:$0xff]
    %v3286 = vld [vmem:[%s35] sm:$0xff]
    %v3287 = vld [vmem:[%s35 + $0x8] sm:$0xff]
    %v3288 = vld [vmem:[%s35 + $0x10] sm:$0xff]
    %v3289 = vld [vmem:[%s35 + $0x18] sm:$0xff]
    %v3290 = vld [vmem:[%s47] sm:$0x1]
    %v3292 = vlaneseq
    %v3293 = vshrl.u32 %v3292, 7
    %v3294 = vsub.s32 0, %v3293
    %v3295 = vrot.slane %v3290, %v3294
    %v3298 = vsel %vm1043, %v3278, 0
    %v3301 = vsel %vm1043, %v3279, 0
    %v3304 = vsel %vm1043, %v3280, 0
    %v3307 = vsel %vm1043, %v3281, 0
    %v3310 = vsel %vm1043, %v3282, 0
    %v3313 = vsel %vm1043, %v3283, 0
    %v3316 = vsel %vm1043, %v3284, 0
    %v3319 = vsel %vm1043, %v3285, 0
    %3321 = vmatprep.subr.mxu0 0.0
    %3322 = vmatpush1.msra.mxu0 %v3286
    %3323 = vmatprep.subr.mxu0 0.0
    %3324 = vmatpush1.msra.mxu0 %v3287
    %3325 = vmatprep.subr.mxu0 0.0
    %3326 = vmatpush1.msra.mxu0 %v3288
    %3327 = vmatprep.subr.mxu0 0.0
    %3328 = vmatpush1.msra.mxu0 %v3289
    %3329 = vmatprep.subr.mxu0 0.0
    %3330 = vmatpush1.msra.mxu0 0.0
    %3331 = vmatprep.subr.mxu0 0.0
    %3332 = vmatpush1.msra.mxu0 0.0
    %3333 = vmatprep.subr.mxu0 0.0
    %3334 = vmatpush1.msra.mxu0 0.0
    %3335 = vmatprep.subr.mxu0 0.0
    %3336 = vmatpush1.msra.mxu0 0.0
    %3337 = vmatprep.subr.mxu0 0.0
    %3338 = vmatpush1.msra.mxu0 0.0
    %3339 = vmatprep.subr.mxu0 0.0
    %3340 = vmatpush1.msra.mxu0 0.0
    %3341 = vmatprep.subr.mxu0 0.0
    %3342 = vmatpush1.msra.mxu0 0.0
    %3343 = vmatprep.subr.mxu0 0.0
    %3344 = vmatpush1.msra.mxu0 0.0
    %3345 = vmatprep.subr.mxu0 0.0
    %3346 = vmatpush1.msra.mxu0 0.0
    %3347 = vmatprep.subr.mxu0 0.0
    %3348 = vmatpush1.msra.mxu0 0.0
    %3349 = vmatprep.subr.mxu0 0.0
    %3350 = vmatpush1.msra.mxu0 0.0
    %3351 = vmatprep.subr.mxu0 0.0
    %3352 = vmatpush1.msra.mxu0 0.0
    %3353 = vmatprep.subr.mxu0 0.0
    %3354 = vmatpush1.msra.mxu0 0.0
    %3355 = vmatprep.subr.mxu0 0.0
    %3356 = vmatpush1.msra.mxu0 0.0
    %3357 = vmatprep.subr.mxu0 0.0
    %3358 = vmatpush1.msra.mxu0 0.0
    %3359 = vmatprep.subr.mxu0 0.0
    %3360 = vmatpush1.msra.mxu0 0.0
    %3361 = vmatprep.subr.mxu0 0.0
    %3362 = vmatpush1.msra.mxu0 0.0
    %3363 = vmatprep.subr.mxu0 0.0
    %3364 = vmatpush1.msra.mxu0 0.0
    %3365 = vmatprep.subr.mxu0 0.0
    %3366 = vmatpush1.msra.mxu0 0.0
    %3367 = vmatprep.subr.mxu0 0.0
    %3368 = vmatpush1.msra.mxu0 0.0
    %3369 = vmatprep.subr.mxu0 0.0
    %3370 = vmatpush1.msra.mxu0 0.0
    %3371 = vmatprep.subr.mxu0 0.0
    %3372 = vmatpush1.msra.mxu0 0.0
    %3373 = vmatprep.subr.mxu0 0.0
    %3374 = vmatpush1.msra.mxu0 0.0
    %3375 = vmatprep.subr.mxu0 0.0
    %3376 = vmatpush1.msra.mxu0 0.0
    %3377 = vmatprep.subr.mxu0 0.0
    %3378 = vmatpush1.msra.mxu0 0.0
    %3379 = vmatprep.subr.mxu0 0.0
    %3380 = vmatpush1.msra.mxu0 0.0
    %3381 = vmatprep.subr.mxu0 0.0
    %3382 = vmatpush1.msra.mxu0 0.0
    %3383 = vmatprep.subr.mxu0 0.0
    %3384 = vmatpush1.msra.mxu0 0.0
    %3385 = vmatprep.mubr.f32.mxu0 0.0
    %3386 = vmatmul.mubr.f32.gmra.mrb[0].mxu0 %v3298
    %v3387 = vpop.f32.mrb[0].mxu0
    %v3388 = vadd.f32 %v3295, %v3387
    %v3389 = vpop.f32.mrb[0].mxu0
    %3390 = vmatprep.mubr.f32.mxu0 0.0
    %3391 = vmatmul.mubr.f32.gmra.mrb[0].mxu0 %v3301
    %v3392 = vpop.f32.mrb[0].mxu0
    %v3393 = vadd.f32 %v3295, %v3392
    %v3394 = vpop.f32.mrb[0].mxu0
    %3395 = vmatprep.mubr.f32.mxu0 0.0
    %3396 = vmatmul.mubr.f32.gmra.mrb[0].mxu0 %v3304
    %v3397 = vpop.f32.mrb[0].mxu0
    %v3398 = vadd.f32 %v3295, %v3397
    %v3399 = vpop.f32.mrb[0].mxu0
    %3400 = vmatprep.mubr.f32.mxu0 0.0
    %3401 = vmatmul.mubr.f32.gmra.mrb[0].mxu0 %v3307
    %v3402 = vpop.f32.mrb[0].mxu0
    %v3403 = vadd.f32 %v3295, %v3402
    %v3404 = vpop.f32.mrb[0].mxu0
    %3405 = vmatprep.mubr.f32.mxu0 0.0
    %3406 = vmatmul.mubr.f32.gmra.mrb[0].mxu0 %v3310
    %v3407 = vpop.f32.mrb[0].mxu0
    %v3408 = vadd.f32 %v3295, %v3407
    %v3409 = vpop.f32.mrb[0].mxu0
    %3410 = vmatprep.mubr.f32.mxu0 0.0
    %3411 = vmatmul.mubr.f32.gmra.mrb[0].mxu0 %v3313
    %v3412 = vpop.f32.mrb[0].mxu0
    %v3413 = vadd.f32 %v3295, %v3412
    %v3414 = vpop.f32.mrb[0].mxu0
    %3415 = vmatprep.mubr.f32.mxu0 0.0
    %3416 = vmatmul.mubr.f32.gmra.mrb[0].mxu0 %v3316
    %v3417 = vpop.f32.mrb[0].mxu0
    %v3418 = vadd.f32 %v3295, %v3417
    %v3419 = vpop.f32.mrb[0].mxu0
    %3420 = vmatprep.mubr.f32.mxu0 0.0
    %3421 = vmatmul.mubr.f32.gmra.mrb[0].mxu0 %v3319
    %v3422 = vpop.f32.mrb[0].mxu0
    %v3423 = vadd.f32 %v3295, %v3422
    %v3424 = vpop.f32.mrb[0].mxu0
    %3425 = vdwg.mxu0
    %3426 = vst.msk [vmem:[#allocation3] sm:$0xff] %vm1043, %v3388
    %3427 = vst.msk [vmem:[#allocation3 + $0x8] sm:$0xff] %vm1043, %v3393
    %3428 = vst.msk [vmem:[#allocation3 + $0x10] sm:$0xff] %vm1043, %v3398
    %3429 = vst.msk [vmem:[#allocation3 + $0x18] sm:$0xff] %vm1043, %v3403
    %3430 = vst.msk [vmem:[#allocation3 + $0x20] sm:$0xff] %vm1043, %v3408
    %3431 = vst.msk [vmem:[#allocation3 + $0x28] sm:$0xff] %vm1043, %v3413
    %3432 = vst.msk [vmem:[#allocation3 + $0x30] sm:$0xff] %vm1043, %v3418
    %3433 = vst.msk [vmem:[#allocation3 + $0x38] sm:$0xff] %vm1043, %v3423
    %v3434 = vld [vmem:[%s37] sm:$0xff]
    %v3435 = vld [vmem:[%s37 + $0x8] sm:$0xff]
    %v3436 = vld [vmem:[%s37 + $0x10] sm:$0xff]
    %v3437 = vld [vmem:[%s37 + $0x18] sm:$0xff]
    %v3438 = vld [vmem:[%s49] sm:$0x1]
    %v3440 = vlaneseq
    %v3441 = vshrl.u32 %v3440, 7
    %v3442 = vsub.s32 0, %v3441
    %v3443 = vrot.slane %v3438, %v3442
    %3445 = vmatprep.subr.mxu0 0.0
    %3446 = vmatpush1.msra.mxu0 %v3434
    %3447 = vmatprep.subr.mxu0 0.0
    %3448 = vmatpush1.msra.mxu0 %v3435
    %3449 = vmatprep.subr.mxu0 0.0
    %3450 = vmatpush1.msra.mxu0 %v3436
    %3451 = vmatprep.subr.mxu0 0.0
    %3452 = vmatpush1.msra.mxu0 %v3437
    %3453 = vmatprep.subr.mxu0 0.0
    %3454 = vmatpush1.msra.mxu0 0.0
    %3455 = vmatprep.subr.mxu0 0.0
    %3456 = vmatpush1.msra.mxu0 0.0
    %3457 = vmatprep.subr.mxu0 0.0
    %3458 = vmatpush1.msra.mxu0 0.0
    %3459 = vmatprep.subr.mxu0 0.0
    %3460 = vmatpush1.msra.mxu0 0.0
    %3461 = vmatprep.subr.mxu0 0.0
    %3462 = vmatpush1.msra.mxu0 0.0
    %3463 = vmatprep.subr.mxu0 0.0
    %3464 = vmatpush1.msra.mxu0 0.0
    %3465 = vmatprep.subr.mxu0 0.0
    %3466 = vmatpush1.msra.mxu0 0.0
    %3467 = vmatprep.subr.mxu0 0.0
    %3468 = vmatpush1.msra.mxu0 0.0
    %3469 = vmatprep.subr.mxu0 0.0
    %3470 = vmatpush1.msra.mxu0 0.0
    %3471 = vmatprep.subr.mxu0 0.0
    %3472 = vmatpush1.msra.mxu0 0.0
    %3473 = vmatprep.subr.mxu0 0.0
    %3474 = vmatpush1.msra.mxu0 0.0
    %3475 = vmatprep.subr.mxu0 0.0
    %3476 = vmatpush1.msra.mxu0 0.0
    %3477 = vmatprep.subr.mxu0 0.0
    %3478 = vmatpush1.msra.mxu0 0.0
    %3479 = vmatprep.subr.mxu0 0.0
    %3480 = vmatpush1.msra.mxu0 0.0
    %3481 = vmatprep.subr.mxu0 0.0
    %3482 = vmatpush1.msra.mxu0 0.0
    %3483 = vmatprep.subr.mxu0 0.0
    %3484 = vmatpush1.msra.mxu0 0.0
    %3485 = vmatprep.subr.mxu0 0.0
    %3486 = vmatpush1.msra.mxu0 0.0
    %3487 = vmatprep.subr.mxu0 0.0
    %3488 = vmatpush1.msra.mxu0 0.0
    %3489 = vmatprep.subr.mxu0 0.0
    %3490 = vmatpush1.msra.mxu0 0.0
    %3491 = vmatprep.subr.mxu0 0.0
    %3492 = vmatpush1.msra.mxu0 0.0
    %3493 = vmatprep.subr.mxu0 0.0
    %3494 = vmatpush1.msra.mxu0 0.0
    %3495 = vmatprep.subr.mxu0 0.0
    %3496 = vmatpush1.msra.mxu0 0.0
    %3497 = vmatprep.subr.mxu0 0.0
    %3498 = vmatpush1.msra.mxu0 0.0
    %3499 = vmatprep.subr.mxu0 0.0
    %3500 = vmatpush1.msra.mxu0 0.0
    %3501 = vmatprep.subr.mxu0 0.0
    %3502 = vmatpush1.msra.mxu0 0.0
    %3503 = vmatprep.subr.mxu0 0.0
    %3504 = vmatpush1.msra.mxu0 0.0
    %3505 = vmatprep.subr.mxu0 0.0
    %3506 = vmatpush1.msra.mxu0 0.0
    %3507 = vmatprep.subr.mxu0 0.0
    %3508 = vmatpush1.msra.mxu0 0.0
    %3509 = vmatprep.mubr.f32.mxu0 0.0
    %3510 = vmatmul.mubr.f32.gmra.mrb[0].mxu0 %v3298
    %v3511 = vpop.f32.mrb[0].mxu0
    %v3512 = vadd.f32 %v3443, %v3511
    %v3513 = vpop.f32.mrb[0].mxu0
    %3514 = vmatprep.mubr.f32.mxu0 0.0
    %3515 = vmatmul.mubr.f32.gmra.mrb[0].mxu0 %v3301
    %v3516 = vpop.f32.mrb[0].mxu0
    %v3517 = vadd.f32 %v3443, %v3516
    %v3518 = vpop.f32.mrb[0].mxu0
    %3519 = vmatprep.mubr.f32.mxu0 0.0
    %3520 = vmatmul.mubr.f32.gmra.mrb[0].mxu0 %v3304
    %v3521 = vpop.f32.mrb[0].mxu0
    %v3522 = vadd.f32 %v3443, %v3521
    %v3523 = vpop.f32.mrb[0].mxu0
    %3524 = vmatprep.mubr.f32.mxu0 0.0
    %3525 = vmatmul.mubr.f32.gmra.mrb[0].mxu0 %v3307
    %v3526 = vpop.f32.mrb[0].mxu0
    %v3527 = vadd.f32 %v3443, %v3526
    %v3528 = vpop.f32.mrb[0].mxu0
    %3529 = vmatprep.mubr.f32.mxu0 0.0
    %3530 = vmatmul.mubr.f32.gmra.mrb[0].mxu0 %v3310
    %v3531 = vpop.f32.mrb[0].mxu0
    %v3532 = vadd.f32 %v3443, %v3531
    %v3533 = vpop.f32.mrb[0].mxu0
    %3534 = vmatprep.mubr.f32.mxu0 0.0
    %3535 = vmatmul.mubr.f32.gmra.mrb[0].mxu0 %v3313
    %v3536 = vpop.f32.mrb[0].mxu0
    %v3537 = vadd.f32 %v3443, %v3536
    %v3538 = vpop.f32.mrb[0].mxu0
    %3539 = vmatprep.mubr.f32.mxu0 0.0
    %3540 = vmatmul.mubr.f32.gmra.mrb[0].mxu0 %v3316
    %v3541 = vpop.f32.mrb[0].mxu0
    %v3542 = vadd.f32 %v3443, %v3541
    %v3543 = vpop.f32.mrb[0].mxu0
    %3544 = vmatprep.mubr.f32.mxu0 0.0
    %3545 = vmatmul.mubr.f32.gmra.mrb[0].mxu0 %v3319
    %v3546 = vpop.f32.mrb[0].mxu0
    %v3547 = vadd.f32 %v3443, %v3546
    %v3548 = vpop.f32.mrb[0].mxu0
    %3549 = vdwg.mxu0
    %3550 = vst.msk [vmem:[#allocation4] sm:$0xff] %vm1043, %v3512
    %3551 = vst.msk [vmem:[#allocation4 + $0x8] sm:$0xff] %vm1043, %v3517
    %3552 = vst.msk [vmem:[#allocation4 + $0x10] sm:$0xff] %vm1043, %v3522
    %3553 = vst.msk [vmem:[#allocation4 + $0x18] sm:$0xff] %vm1043, %v3527
    %3554 = vst.msk [vmem:[#allocation4 + $0x20] sm:$0xff] %vm1043, %v3532
    %3555 = vst.msk [vmem:[#allocation4 + $0x28] sm:$0xff] %vm1043, %v3537
    %3556 = vst.msk [vmem:[#allocation4 + $0x30] sm:$0xff] %vm1043, %v3542
    %3557 = vst.msk [vmem:[#allocation4 + $0x38] sm:$0xff] %vm1043, %v3547
    %v3558 = vld [vmem:[%s39] sm:$0xff]
    %v3559 = vld [vmem:[%s39 + $0x8] sm:$0xff]
    %v3560 = vld [vmem:[%s39 + $0x10] sm:$0xff]
    %v3561 = vld [vmem:[%s39 + $0x18] sm:$0xff]
    %v3562 = vld [vmem:[%s51] sm:$0x1]
    %v3564 = vlaneseq
    %v3565 = vshrl.u32 %v3564, 7
    %v3566 = vsub.s32 0, %v3565
    %v3567 = vrot.slane %v3562, %v3566
    %3569 = vmatprep.subr.mxu0 0.0
    %3570 = vmatpush1.msra.mxu0 %v3558
    %3571 = vmatprep.subr.mxu0 0.0
    %3572 = vmatpush1.msra.mxu0 %v3559
    %3573 = vmatprep.subr.mxu0 0.0
    %3574 = vmatpush1.msra.mxu0 %v3560
    %3575 = vmatprep.subr.mxu0 0.0
    %3576 = vmatpush1.msra.mxu0 %v3561
    %3577 = vmatprep.subr.mxu0 0.0
    %3578 = vmatpush1.msra.mxu0 0.0
    %3579 = vmatprep.subr.mxu0 0.0
    %3580 = vmatpush1.msra.mxu0 0.0
    %3581 = vmatprep.subr.mxu0 0.0
    %3582 = vmatpush1.msra.mxu0 0.0
    %3583 = vmatprep.subr.mxu0 0.0
    %3584 = vmatpush1.msra.mxu0 0.0
    %3585 = vmatprep.subr.mxu0 0.0
    %3586 = vmatpush1.msra.mxu0 0.0
    %3587 = vmatprep.subr.mxu0 0.0
    %3588 = vmatpush1.msra.mxu0 0.0
    %3589 = vmatprep.subr.mxu0 0.0
    %3590 = vmatpush1.msra.mxu0 0.0
    %3591 = vmatprep.subr.mxu0 0.0
    %3592 = vmatpush1.msra.mxu0 0.0
    %3593 = vmatprep.subr.mxu0 0.0
    %3594 = vmatpush1.msra.mxu0 0.0
    %3595 = vmatprep.subr.mxu0 0.0
    %3596 = vmatpush1.msra.mxu0 0.0
    %3597 = vmatprep.subr.mxu0 0.0
    %3598 = vmatpush1.msra.mxu0 0.0
    %3599 = vmatprep.subr.mxu0 0.0
    %3600 = vmatpush1.msra.mxu0 0.0
    %3601 = vmatprep.subr.mxu0 0.0
    %3602 = vmatpush1.msra.mxu0 0.0
    %3603 = vmatprep.subr.mxu0 0.0
    %3604 = vmatpush1.msra.mxu0 0.0
    %3605 = vmatprep.subr.mxu0 0.0
    %3606 = vmatpush1.msra.mxu0 0.0
    %3607 = vmatprep.subr.mxu0 0.0
    %3608 = vmatpush1.msra.mxu0 0.0
    %3609 = vmatprep.subr.mxu0 0.0
    %3610 = vmatpush1.msra.mxu0 0.0
    %3611 = vmatprep.subr.mxu0 0.0
    %3612 = vmatpush1.msra.mxu0 0.0
    %3613 = vmatprep.subr.mxu0 0.0
    %3614 = vmatpush1.msra.mxu0 0.0
    %3615 = vmatprep.subr.mxu0 0.0
    %3616 = vmatpush1.msra.mxu0 0.0
    %3617 = vmatprep.subr.mxu0 0.0
    %3618 = vmatpush1.msra.mxu0 0.0
    %3619 = vmatprep.subr.mxu0 0.0
    %3620 = vmatpush1.msra.mxu0 0.0
    %3621 = vmatprep.subr.mxu0 0.0
    %3622 = vmatpush1.msra.mxu0 0.0
    %3623 = vmatprep.subr.mxu0 0.0
    %3624 = vmatpush1.msra.mxu0 0.0
    %3625 = vmatprep.subr.mxu0 0.0
    %3626 = vmatpush1.msra.mxu0 0.0
    %3627 = vmatprep.subr.mxu0 0.0
    %3628 = vmatpush1.msra.mxu0 0.0
    %3629 = vmatprep.subr.mxu0 0.0
    %3630 = vmatpush1.msra.mxu0 0.0
    %3631 = vmatprep.subr.mxu0 0.0
    %3632 = vmatpush1.msra.mxu0 0.0
    %3633 = vmatprep.mubr.f32.mxu0 0.0
    %3634 = vmatmul.mubr.f32.gmra.mrb[0].mxu0 %v3298
    %v3635 = vpop.f32.mrb[0].mxu0
    %v3636 = vadd.f32 %v3567, %v3635
    %v3637 = vpop.f32.mrb[0].mxu0
    %3638 = vmatprep.mubr.f32.mxu0 0.0
    %3639 = vmatmul.mubr.f32.gmra.mrb[0].mxu0 %v3301
    %v3640 = vpop.f32.mrb[0].mxu0
    %v3641 = vadd.f32 %v3567, %v3640
    %v3642 = vpop.f32.mrb[0].mxu0
    %3643 = vmatprep.mubr.f32.mxu0 0.0
    %3644 = vmatmul.mubr.f32.gmra.mrb[0].mxu0 %v3304
    %v3645 = vpop.f32.mrb[0].mxu0
    %v3646 = vadd.f32 %v3567, %v3645
    %v3647 = vpop.f32.mrb[0].mxu0
    %3648 = vmatprep.mubr.f32.mxu0 0.0
    %3649 = vmatmul.mubr.f32.gmra.mrb[0].mxu0 %v3307
    %v3650 = vpop.f32.mrb[0].mxu0
    %v3651 = vadd.f32 %v3567, %v3650
    %v3652 = vpop.f32.mrb[0].mxu0
    %3653 = vmatprep.mubr.f32.mxu0 0.0
    %3654 = vmatmul.mubr.f32.gmra.mrb[0].mxu0 %v3310
    %v3655 = vpop.f32.mrb[0].mxu0
    %v3656 = vadd.f32 %v3567, %v3655
    %v3657 = vpop.f32.mrb[0].mxu0
    %3658 = vmatprep.mubr.f32.mxu0 0.0
    %3659 = vmatmul.mubr.f32.gmra.mrb[0].mxu0 %v3313
    %v3660 = vpop.f32.mrb[0].mxu0
    %v3661 = vadd.f32 %v3567, %v3660
    %v3662 = vpop.f32.mrb[0].mxu0
    %3663 = vmatprep.mubr.f32.mxu0 0.0
    %3664 = vmatmul.mubr.f32.gmra.mrb[0].mxu0 %v3316
    %v3665 = vpop.f32.mrb[0].mxu0
    %v3666 = vadd.f32 %v3567, %v3665
    %v3667 = vpop.f32.mrb[0].mxu0
    %3668 = vmatprep.mubr.f32.mxu0 0.0
    %3669 = vmatmul.mubr.f32.gmra.mrb[0].mxu0 %v3319
    %v3670 = vpop.f32.mrb[0].mxu0
    %v3671 = vadd.f32 %v3567, %v3670
    %v3672 = vpop.f32.mrb[0].mxu0
    %3673 = vdwg.mxu0
    %3674 = vst.msk [vmem:[#allocation5] sm:$0xff] %vm1043, %v3636
    %3675 = vst.msk [vmem:[#allocation5 + $0x8] sm:$0xff] %vm1043, %v3641
    %3676 = vst.msk [vmem:[#allocation5 + $0x10] sm:$0xff] %vm1043, %v3646
    %3677 = vst.msk [vmem:[#allocation5 + $0x18] sm:$0xff] %vm1043, %v3651
    %3678 = vst.msk [vmem:[#allocation5 + $0x20] sm:$0xff] %vm1043, %v3656
    %3679 = vst.msk [vmem:[#allocation5 + $0x28] sm:$0xff] %vm1043, %v3661
    %3680 = vst.msk [vmem:[#allocation5 + $0x30] sm:$0xff] %vm1043, %v3666
    %3681 = vst.msk [vmem:[#allocation5 + $0x38] sm:$0xff] %vm1043, %v3671
    %v3682 = vld [vmem:[%s41] sm:$0xff]
    %v3683 = vld [vmem:[%s41 + $0x8] sm:$0xff]
    %v3684 = vld [vmem:[%s41 + $0x10] sm:$0xff]
    %v3685 = vld [vmem:[%s41 + $0x18] sm:$0xff]
    %v3686 = vld [vmem:[%s43] sm:$0xff]
    %v3687 = vld [vmem:[%s43 + $0x8] sm:$0xff]
    %v3688 = vld [vmem:[%s43 + $0x10] sm:$0xff]
    %v3689 = vld [vmem:[%s43 + $0x18] sm:$0xff]
    %v3690 = vld [vmem:[%s45] sm:$0xff]
    %v3691 = vld [vmem:[%s45 + $0x8] sm:$0xff]
    %v3692 = vld [vmem:[%s45 + $0x10] sm:$0xff]
    %v3693 = vld [vmem:[%s45 + $0x18] sm:$0xff]
    %v3694 = vld [vmem:[%s53] sm:$0x1]
    %v3696 = vlaneseq
    %v3697 = vshrl.u32 %v3696, 7
    %v3698 = vsub.s32 0, %v3697
    %v3699 = vrot.slane %v3694, %v3698
    %3701 = vst.msk [vmem:[#allocation7] sm:$0xff] %vm1043, 0.0
    %v3702 = vld [vmem:[#allocation7] sm:$0xff]
    %v3704 = vsel %vm1043, %v3702, 0
    %3706 = vmatprep.subr.mxu0 0.0
    %3707 = vmatpush1.msra.mxu0 %v3682
    %3708 = vmatprep.subr.mxu0 0.0
    %3709 = vmatpush1.msra.mxu0 %v3683
    %3710 = vmatprep.subr.mxu0 0.0
    %3711 = vmatpush1.msra.mxu0 %v3684
    %3712 = vmatprep.subr.mxu0 0.0
    %3713 = vmatpush1.msra.mxu0 %v3685
    %3714 = vmatprep.subr.mxu0 0.0
    %3715 = vmatpush1.msra.mxu0 0.0
    %3716 = vmatprep.subr.mxu0 0.0
    %3717 = vmatpush1.msra.mxu0 0.0
    %3718 = vmatprep.subr.mxu0 0.0
    %3719 = vmatpush1.msra.mxu0 0.0
    %3720 = vmatprep.subr.mxu0 0.0
    %3721 = vmatpush1.msra.mxu0 0.0
    %3722 = vmatprep.subr.mxu0 0.0
    %3723 = vmatpush1.msra.mxu0 0.0
    %3724 = vmatprep.subr.mxu0 0.0
    %3725 = vmatpush1.msra.mxu0 0.0
    %3726 = vmatprep.subr.mxu0 0.0
    %3727 = vmatpush1.msra.mxu0 0.0
    %3728 = vmatprep.subr.mxu0 0.0
    %3729 = vmatpush1.msra.mxu0 0.0
    %3730 = vmatprep.subr.mxu0 0.0
    %3731 = vmatpush1.msra.mxu0 0.0
    %3732 = vmatprep.subr.mxu0 0.0
    %3733 = vmatpush1.msra.mxu0 0.0
    %3734 = vmatprep.subr.mxu0 0.0
    %3735 = vmatpush1.msra.mxu0 0.0
    %3736 = vmatprep.subr.mxu0 0.0
    %3737 = vmatpush1.msra.mxu0 0.0
    %3738 = vmatprep.subr.mxu0 0.0
    %3739 = vmatpush1.msra.mxu0 0.0
    %3740 = vmatprep.subr.mxu0 0.0
    %3741 = vmatpush1.msra.mxu0 0.0
    %3742 = vmatprep.subr.mxu0 0.0
    %3743 = vmatpush1.msra.mxu0 0.0
    %3744 = vmatprep.subr.mxu0 0.0
    %3745 = vmatpush1.msra.mxu0 0.0
    %3746 = vmatprep.subr.mxu0 0.0
    %3747 = vmatpush1.msra.mxu0 0.0
    %3748 = vmatprep.subr.mxu0 0.0
    %3749 = vmatpush1.msra.mxu0 0.0
    %3750 = vmatprep.subr.mxu0 0.0
    %3751 = vmatpush1.msra.mxu0 0.0
    %3752 = vmatprep.subr.mxu0 0.0
    %3753 = vmatpush1.msra.mxu0 0.0
    %3754 = vmatprep.subr.mxu0 0.0
    %3755 = vmatpush1.msra.mxu0 0.0
    %3756 = vmatprep.subr.mxu0 0.0
    %3757 = vmatpush1.msra.mxu0 0.0
    %3758 = vmatprep.subr.mxu0 0.0
    %3759 = vmatpush1.msra.mxu0 0.0
    %3760 = vmatprep.subr.mxu0 0.0
    %3761 = vmatpush1.msra.mxu0 0.0
    %3762 = vmatprep.subr.mxu0 0.0
    %3763 = vmatpush1.msra.mxu0 0.0
    %3764 = vmatprep.subr.mxu0 0.0
    %3765 = vmatpush1.msra.mxu0 0.0
    %3766 = vmatprep.subr.mxu0 0.0
    %3767 = vmatpush1.msra.mxu0 0.0
    %3768 = vmatprep.subr.mxu0 0.0
    %3769 = vmatpush1.msra.mxu0 0.0
    %3770 = vmatprep.mubr.f32.mxu0 0.0
    %3771 = vmatmul.mubr.f32.gmra.mrb[0].mxu0 %v3704
    %v3772 = vpop.f32.mrb[0].mxu0
    %v3773 = vadd.f32 0.0, %v3772
    %v3774 = vpop.f32.mrb[0].mxu0
    %3775 = vdwg.mxu0
    %3776 = vmatprep.subr.mxu0 0.0
    %3777 = vmatpush1.msra.mxu0 %v3686
    %3778 = vmatprep.subr.mxu0 0.0
    %3779 = vmatpush1.msra.mxu0 %v3687
    %3780 = vmatprep.subr.mxu0 0.0
    %3781 = vmatpush1.msra.mxu0 %v3688
    %3782 = vmatprep.subr.mxu0 0.0
    %3783 = vmatpush1.msra.mxu0 %v3689
    %3784 = vmatprep.subr.mxu0 0.0
    %3785 = vmatpush1.msra.mxu0 0.0
    %3786 = vmatprep.subr.mxu0 0.0
    %3787 = vmatpush1.msra.mxu0 0.0
    %3788 = vmatprep.subr.mxu0 0.0
    %3789 = vmatpush1.msra.mxu0 0.0
    %3790 = vmatprep.subr.mxu0 0.0
    %3791 = vmatpush1.msra.mxu0 0.0
    %3792 = vmatprep.subr.mxu0 0.0
    %3793 = vmatpush1.msra.mxu0 0.0
    %3794 = vmatprep.subr.mxu0 0.0
    %3795 = vmatpush1.msra.mxu0 0.0
    %3796 = vmatprep.subr.mxu0 0.0
    %3797 = vmatpush1.msra.mxu0 0.0
    %3798 = vmatprep.subr.mxu0 0.0
    %3799 = vmatpush1.msra.mxu0 0.0
    %3800 = vmatprep.subr.mxu0 0.0
    %3801 = vmatpush1.msra.mxu0 0.0
    %3802 = vmatprep.subr.mxu0 0.0
    %3803 = vmatpush1.msra.mxu0 0.0
    %3804 = vmatprep.subr.mxu0 0.0
    %3805 = vmatpush1.msra.mxu0 0.0
    %3806 = vmatprep.subr.mxu0 0.0
    %3807 = vmatpush1.msra.mxu0 0.0
    %3808 = vmatprep.subr.mxu0 0.0
    %3809 = vmatpush1.msra.mxu0 0.0
    %3810 = vmatprep.subr.mxu0 0.0
    %3811 = vmatpush1.msra.mxu0 0.0
    %3812 = vmatprep.subr.mxu0 0.0
    %3813 = vmatpush1.msra.mxu0 0.0
    %3814 = vmatprep.subr.mxu0 0.0
    %3815 = vmatpush1.msra.mxu0 0.0
    %3816 = vmatprep.subr.mxu0 0.0
    %3817 = vmatpush1.msra.mxu0 0.0
    %3818 = vmatprep.subr.mxu0 0.0
    %3819 = vmatpush1.msra.mxu0 0.0
    %3820 = vmatprep.subr.mxu0 0.0
    %3821 = vmatpush1.msra.mxu0 0.0
    %3822 = vmatprep.subr.mxu0 0.0
    %3823 = vmatpush1.msra.mxu0 0.0
    %3824 = vmatprep.subr.mxu0 0.0
    %3825 = vmatpush1.msra.mxu0 0.0
    %3826 = vmatprep.subr.mxu0 0.0
    %3827 = vmatpush1.msra.mxu0 0.0
    %3828 = vmatprep.subr.mxu0 0.0
    %3829 = vmatpush1.msra.mxu0 0.0
    %3830 = vmatprep.subr.mxu0 0.0
    %3831 = vmatpush1.msra.mxu0 0.0
    %3832 = vmatprep.subr.mxu0 0.0
    %3833 = vmatpush1.msra.mxu0 0.0
    %3834 = vmatprep.subr.mxu0 0.0
    %3835 = vmatpush1.msra.mxu0 0.0
    %3836 = vmatprep.subr.mxu0 0.0
    %3837 = vmatpush1.msra.mxu0 0.0
    %3838 = vmatprep.subr.mxu0 0.0
    %3839 = vmatpush1.msra.mxu0 0.0
    %3840 = vmatprep.mubr.f32.mxu0 0.0
    %3841 = vmatmul.mubr.f32.gmra.mrb[0].mxu0 %v3704
    %v3842 = vpop.f32.mrb[0].mxu0
    %v3843 = vadd.f32 0.0, %v3842
    %v3844 = vpop.f32.mrb[0].mxu0
    %3845 = vdwg.mxu0
    %3846 = vmatprep.subr.mxu0 0.0
    %3847 = vmatpush1.msra.mxu0 %v3690
    %3848 = vmatprep.subr.mxu0 0.0
    %3849 = vmatpush1.msra.mxu0 %v3691
    %3850 = vmatprep.subr.mxu0 0.0
    %3851 = vmatpush1.msra.mxu0 %v3692
    %3852 = vmatprep.subr.mxu0 0.0
    %3853 = vmatpush1.msra.mxu0 %v3693
    %3854 = vmatprep.subr.mxu0 0.0
    %3855 = vmatpush1.msra.mxu0 0.0
    %3856 = vmatprep.subr.mxu0 0.0
    %3857 = vmatpush1.msra.mxu0 0.0
    %3858 = vmatprep.subr.mxu0 0.0
    %3859 = vmatpush1.msra.mxu0 0.0
    %3860 = vmatprep.subr.mxu0 0.0
    %3861 = vmatpush1.msra.mxu0 0.0
    %3862 = vmatprep.subr.mxu0 0.0
    %3863 = vmatpush1.msra.mxu0 0.0
    %3864 = vmatprep.subr.mxu0 0.0
    %3865 = vmatpush1.msra.mxu0 0.0
    %3866 = vmatprep.subr.mxu0 0.0
    %3867 = vmatpush1.msra.mxu0 0.0
    %3868 = vmatprep.subr.mxu0 0.0
    %3869 = vmatpush1.msra.mxu0 0.0
    %3870 = vmatprep.subr.mxu0 0.0
    %3871 = vmatpush1.msra.mxu0 0.0
    %3872 = vmatprep.subr.mxu0 0.0
    %3873 = vmatpush1.msra.mxu0 0.0
    %3874 = vmatprep.subr.mxu0 0.0
    %3875 = vmatpush1.msra.mxu0 0.0
    %3876 = vmatprep.subr.mxu0 0.0
    %3877 = vmatpush1.msra.mxu0 0.0
    %3878 = vmatprep.subr.mxu0 0.0
    %3879 = vmatpush1.msra.mxu0 0.0
    %3880 = vmatprep.subr.mxu0 0.0
    %3881 = vmatpush1.msra.mxu0 0.0
    %3882 = vmatprep.subr.mxu0 0.0
    %3883 = vmatpush1.msra.mxu0 0.0
    %3884 = vmatprep.subr.mxu0 0.0
    %3885 = vmatpush1.msra.mxu0 0.0
    %3886 = vmatprep.subr.mxu0 0.0
    %3887 = vmatpush1.msra.mxu0 0.0
    %3888 = vmatprep.subr.mxu0 0.0
    %3889 = vmatpush1.msra.mxu0 0.0
    %3890 = vmatprep.subr.mxu0 0.0
    %3891 = vmatpush1.msra.mxu0 0.0
    %3892 = vmatprep.subr.mxu0 0.0
    %3893 = vmatpush1.msra.mxu0 0.0
    %3894 = vmatprep.subr.mxu0 0.0
    %3895 = vmatpush1.msra.mxu0 0.0
    %3896 = vmatprep.subr.mxu0 0.0
    %3897 = vmatpush1.msra.mxu0 0.0
    %3898 = vmatprep.subr.mxu0 0.0
    %3899 = vmatpush1.msra.mxu0 0.0
    %3900 = vmatprep.subr.mxu0 0.0
    %3901 = vmatpush1.msra.mxu0 0.0
    %3902 = vmatprep.subr.mxu0 0.0
    %3903 = vmatpush1.msra.mxu0 0.0
    %3904 = vmatprep.subr.mxu0 0.0
    %3905 = vmatpush1.msra.mxu0 0.0
    %3906 = vmatprep.subr.mxu0 0.0
    %3907 = vmatpush1.msra.mxu0 0.0
    %3908 = vmatprep.subr.mxu0 0.0
    %3909 = vmatpush1.msra.mxu0 0.0
    %3910 = vmatprep.mubr.f32.mxu0 0.0
    %3911 = vmatmul.mubr.f32.gmra.mrb[0].mxu0 %v3704
    %v3912 = vpop.f32.mrb[0].mxu0
    %v3913 = vadd.f32 %v3699, %v3912
    %v3914 = vpop.f32.mrb[0].mxu0
    %3915 = vdwg.mxu0
    %v3916 = vld [vmem:[#allocation3] sm:$0xff]
    %v3917 = vadd.f32 %v3916, %v3773
    %v3918 = vxor.u32 %v3917, 2147483648
    %v3919 = vmul.f32 %v3918, 1.442695
    %v3920 = vpow.pop %v3919
    %v3921 = vadd.f32 %v3920, 1.0
    %v3922 = vrcp.pop %v3921
    %v3923 = vmul.f32 1.0, %v3922
    %v3924 = vld [vmem:[#allocation4] sm:$0xff]
    %v3925 = vadd.f32 %v3924, %v3843
    %v3926 = vxor.u32 %v3925, 2147483648
    %v3927 = vmul.f32 %v3926, 1.442695
    %v3928 = vpow.pop %v3927
    %v3929 = vadd.f32 %v3928, 1.0
    %v3930 = vrcp.pop %v3929
    %v3931 = vmul.f32 1.0, %v3930
    %v3932 = vld [vmem:[#allocation5] sm:$0xff]
    %v3933 = vmul.f32 %v3923, %v3913
    %v3934 = vadd.f32 %v3932, %v3933
    %v3935 = vtanh.pop %v3934
    %v3936 = vsub.f32 1.0, %v3931
    %v3937 = vmul.f32 %v3936, %v3935
    %v3938 = vmul.f32 %v3931, %v3702
    %v3939 = vadd.f32 %v3937, %v3938
    %3940 = vst.msk [vmem:[#allocation7] sm:$0xff] %vm1043, %v3939
    %3941 = vst.msk [vmem:[#allocation6] sm:$0xff] %vm1043, %v3939
    %v3942 = vld [vmem:[#allocation7] sm:$0xff]
    %v3944 = vsel %vm1043, %v3942, 0
    %3946 = vmatprep.subr.mxu0 0.0
    %3947 = vmatpush1.msra.mxu0 %v3682
    %3948 = vmatprep.subr.mxu0 0.0
    %3949 = vmatpush1.msra.mxu0 %v3683
    %3950 = vmatprep.subr.mxu0 0.0
    %3951 = vmatpush1.msra.mxu0 %v3684
    %3952 = vmatprep.subr.mxu0 0.0
    %3953 = vmatpush1.msra.mxu0 %v3685
    %3954 = vmatprep.subr.mxu0 0.0
    %3955 = vmatpush1.msra.mxu0 0.0
    %3956 = vmatprep.subr.mxu0 0.0
    %3957 = vmatpush1.msra.mxu0 0.0
    %3958 = vmatprep.subr.mxu0 0.0
    %3959 = vmatpush1.msra.mxu0 0.0
    %3960 = vmatprep.subr.mxu0 0.0
    %3961 = vmatpush1.msra.mxu0 0.0
    %3962 = vmatprep.subr.mxu0 0.0
    %3963 = vmatpush1.msra.mxu0 0.0
    %3964 = vmatprep.subr.mxu0 0.0
    %3965 = vmatpush1.msra.mxu0 0.0
    %3966 = vmatprep.subr.mxu0 0.0
    %3967 = vmatpush1.msra.mxu0 0.0
    %3968 = vmatprep.subr.mxu0 0.0
    %3969 = vmatpush1.msra.mxu0 0.0
    %3970 = vmatprep.subr.mxu0 0.0
    %3971 = vmatpush1.msra.mxu0 0.0
    %3972 = vmatprep.subr.mxu0 0.0
    %3973 = vmatpush1.msra.mxu0 0.0
    %3974 = vmatprep.subr.mxu0 0.0
    %3975 = vmatpush1.msra.mxu0 0.0
    %3976 = vmatprep.subr.mxu0 0.0
    %3977 = vmatpush1.msra.mxu0 0.0
    %3978 = vmatprep.subr.mxu0 0.0
    %3979 = vmatpush1.msra.mxu0 0.0
    %3980 = vmatprep.subr.mxu0 0.0
    %3981 = vmatpush1.msra.mxu0 0.0
    %3982 = vmatprep.subr.mxu0 0.0
    %3983 = vmatpush1.msra.mxu0 0.0
    %3984 = vmatprep.subr.mxu0 0.0
    %3985 = vmatpush1.msra.mxu0 0.0
    %3986 = vmatprep.subr.mxu0 0.0
    %3987 = vmatpush1.msra.mxu0 0.0
    %3988 = vmatprep.subr.mxu0 0.0
    %3989 = vmatpush1.msra.mxu0 0.0
    %3990 = vmatprep.subr.mxu0 0.0
    %3991 = vmatpush1.msra.mxu0 0.0
    %3992 = vmatprep.subr.mxu0 0.0
    %3993 = vmatpush1.msra.mxu0 0.0
    %3994 = vmatprep.subr.mxu0 0.0
    %3995 = vmatpush1.msra.mxu0 0.0
    %3996 = vmatprep.subr.mxu0 0.0
    %3997 = vmatpush1.msra.mxu0 0.0
    %3998 = vmatprep.subr.mxu0 0.0
    %3999 = vmatpush1.msra.mxu0 0.0
    %4000 = vmatprep.subr.mxu0 0.0
    %4001 = vmatpush1.msra.mxu0 0.0
    %4002 = vmatprep.subr.mxu0 0.0
    %4003 = vmatpush1.msra.mxu0 0.0
    %4004 = vmatprep.subr.mxu0 0.0
    %4005 = vmatpush1.msra.mxu0 0.0
    %4006 = vmatprep.subr.mxu0 0.0
    %4007 = vmatpush1.msra.mxu0 0.0
    %4008 = vmatprep.subr.mxu0 0.0
    %4009 = vmatpush1.msra.mxu0 0.0
    %4010 = vmatprep.mubr.f32.mxu0 0.0
    %4011 = vmatmul.mubr.f32.gmra.mrb[0].mxu0 %v3944
    %v4012 = vpop.f32.mrb[0].mxu0
    %v4013 = vadd.f32 0.0, %v4012
    %v4014 = vpop.f32.mrb[0].mxu0
    %4015 = vdwg.mxu0
    %4016 = vmatprep.subr.mxu0 0.0
    %4017 = vmatpush1.msra.mxu0 %v3686
    %4018 = vmatprep.subr.mxu0 0.0
    %4019 = vmatpush1.msra.mxu0 %v3687
    %4020 = vmatprep.subr.mxu0 0.0
    %4021 = vmatpush1.msra.mxu0 %v3688
    %4022 = vmatprep.subr.mxu0 0.0
    %4023 = vmatpush1.msra.mxu0 %v3689
    %4024 = vmatprep.subr.mxu0 0.0
    %4025 = vmatpush1.msra.mxu0 0.0
    %4026 = vmatprep.subr.mxu0 0.0
    %4027 = vmatpush1.msra.mxu0 0.0
    %4028 = vmatprep.subr.mxu0 0.0
    %4029 = vmatpush1.msra.mxu0 0.0
    %4030 = vmatprep.subr.mxu0 0.0
    %4031 = vmatpush1.msra.mxu0 0.0
    %4032 = vmatprep.subr.mxu0 0.0
    %4033 = vmatpush1.msra.mxu0 0.0
    %4034 = vmatprep.subr.mxu0 0.0
    %4035 = vmatpush1.msra.mxu0 0.0
    %4036 = vmatprep.subr.mxu0 0.0
    %4037 = vmatpush1.msra.mxu0 0.0
    %4038 = vmatprep.subr.mxu0 0.0
    %4039 = vmatpush1.msra.mxu0 0.0
    %4040 = vmatprep.subr.mxu0 0.0
    %4041 = vmatpush1.msra.mxu0 0.0
    %4042 = vmatprep.subr.mxu0 0.0
    %4043 = vmatpush1.msra.mxu0 0.0
    %4044 = vmatprep.subr.mxu0 0.0
    %4045 = vmatpush1.msra.mxu0 0.0
    %4046 = vmatprep.subr.mxu0 0.0
    %4047 = vmatpush1.msra.mxu0 0.0
    %4048 = vmatprep.subr.mxu0 0.0
    %4049 = vmatpush1.msra.mxu0 0.0
    %4050 = vmatprep.subr.mxu0 0.0
    %4051 = vmatpush1.msra.mxu0 0.0
    %4052 = vmatprep.subr.mxu0 0.0
    %4053 = vmatpush1.msra.mxu0 0.0
    %4054 = vmatprep.subr.mxu0 0.0
    %4055 = vmatpush1.msra.mxu0 0.0
    %4056 = vmatprep.subr.mxu0 0.0
    %4057 = vmatpush1.msra.mxu0 0.0
    %4058 = vmatprep.subr.mxu0 0.0
    %4059 = vmatpush1.msra.mxu0 0.0
    %4060 = vmatprep.subr.mxu0 0.0
    %4061 = vmatpush1.msra.mxu0 0.0
    %4062 = vmatprep.subr.mxu0 0.0
    %4063 = vmatpush1.msra.mxu0 0.0
    %4064 = vmatprep.subr.mxu0 0.0
    %4065 = vmatpush1.msra.mxu0 0.0
    %4066 = vmatprep.subr.mxu0 0.0
    %4067 = vmatpush1.msra.mxu0 0.0
    %4068 = vmatprep.subr.mxu0 0.0
    %4069 = vmatpush1.msra.mxu0 0.0
    %4070 = vmatprep.subr.mxu0 0.0
    %4071 = vmatpush1.msra.mxu0 0.0
    %4072 = vmatprep.subr.mxu0 0.0
    %4073 = vmatpush1.msra.mxu0 0.0
    %4074 = vmatprep.subr.mxu0 0.0
    %4075 = vmatpush1.msra.mxu0 0.0
    %4076 = vmatprep.subr.mxu0 0.0
    %4077 = vmatpush1.msra.mxu0 0.0
    %4078 = vmatprep.subr.mxu0 0.0
    %4079 = vmatpush1.msra.mxu0 0.0
    %4080 = vmatprep.mubr.f32.mxu0 0.0
    %4081 = vmatmul.mubr.f32.gmra.mrb[0].mxu0 %v3944
    %v4082 = vpop.f32.mrb[0].mxu0
    %v4083 = vadd.f32 0.0, %v4082
    %v4084 = vpop.f32.mrb[0].mxu0
    %4085 = vdwg.mxu0
    %4086 = vmatprep.subr.mxu0 0.0
    %4087 = vmatpush1.msra.mxu0 %v3690
    %4088 = vmatprep.subr.mxu0 0.0
    %4089 = vmatpush1.msra.mxu0 %v3691
    %4090 = vmatprep.subr.mxu0 0.0
    %4091 = vmatpush1.msra.mxu0 %v3692
    %4092 = vmatprep.subr.mxu0 0.0
    %4093 = vmatpush1.msra.mxu0 %v3693
    %4094 = vmatprep.subr.mxu0 0.0
    %4095 = vmatpush1.msra.mxu0 0.0
    %4096 = vmatprep.subr.mxu0 0.0
    %4097 = vmatpush1.msra.mxu0 0.0
    %4098 = vmatprep.subr.mxu0 0.0
    %4099 = vmatpush1.msra.mxu0 0.0
    %4100 = vmatprep.subr.mxu0 0.0
    %4101 = vmatpush1.msra.mxu0 0.0
    %4102 = vmatprep.subr.mxu0 0.0
    %4103 = vmatpush1.msra.mxu0 0.0
    %4104 = vmatprep.subr.mxu0 0.0
    %4105 = vmatpush1.msra.mxu0 0.0
    %4106 = vmatprep.subr.mxu0 0.0
    %4107 = vmatpush1.msra.mxu0 0.0
    %4108 = vmatprep.subr.mxu0 0.0
    %4109 = vmatpush1.msra.mxu0 0.0
    %4110 = vmatprep.subr.mxu0 0.0
    %4111 = vmatpush1.msra.mxu0 0.0
    %4112 = vmatprep.subr.mxu0 0.0
    %4113 = vmatpush1.msra.mxu0 0.0
    %4114 = vmatprep.subr.mxu0 0.0
    %4115 = vmatpush1.msra.mxu0 0.0
    %4116 = vmatprep.subr.mxu0 0.0
    %4117 = vmatpush1.msra.mxu0 0.0
    %4118 = vmatprep.subr.mxu0 0.0
    %4119 = vmatpush1.msra.mxu0 0.0
    %4120 = vmatprep.subr.mxu0 0.0
    %4121 = vmatpush1.msra.mxu0 0.0
    %4122 = vmatprep.subr.mxu0 0.0
    %4123 = vmatpush1.msra.mxu0 0.0
    %4124 = vmatprep.subr.mxu0 0.0
    %4125 = vmatpush1.msra.mxu0 0.0
    %4126 = vmatprep.subr.mxu0 0.0
    %4127 = vmatpush1.msra.mxu0 0.0
    %4128 = vmatprep.subr.mxu0 0.0
    %4129 = vmatpush1.msra.mxu0 0.0
    %4130 = vmatprep.subr.mxu0 0.0
    %4131 = vmatpush1.msra.mxu0 0.0
    %4132 = vmatprep.subr.mxu0 0.0
    %4133 = vmatpush1.msra.mxu0 0.0
    %4134 = vmatprep.subr.mxu0 0.0
    %4135 = vmatpush1.msra.mxu0 0.0
    %4136 = vmatprep.subr.mxu0 0.0
    %4137 = vmatpush1.msra.mxu0 0.0
    %4138 = vmatprep.subr.mxu0 0.0
    %4139 = vmatpush1.msra.mxu0 0.0
    %4140 = vmatprep.subr.mxu0 0.0
    %4141 = vmatpush1.msra.mxu0 0.0
    %4142 = vmatprep.subr.mxu0 0.0
    %4143 = vmatpush1.msra.mxu0 0.0
    %4144 = vmatprep.subr.mxu0 0.0
    %4145 = vmatpush1.msra.mxu0 0.0
    %4146 = vmatprep.subr.mxu0 0.0
    %4147 = vmatpush1.msra.mxu0 0.0
    %4148 = vmatprep.subr.mxu0 0.0
    %4149 = vmatpush1.msra.mxu0 0.0
    %4150 = vmatprep.mubr.f32.mxu0 0.0
    %4151 = vmatmul.mubr.f32.gmra.mrb[0].mxu0 %v3944
    %v4152 = vpop.f32.mrb[0].mxu0
    %v4153 = vadd.f32 %v3699, %v4152
    %v4154 = vpop.f32.mrb[0].mxu0
    %4155 = vdwg.mxu0
    %v4156 = vld [vmem:[%s1782] sm:$0xff]
    %v4157 = vadd.f32 %v4156, %v4013
    %v4158 = vxor.u32 %v4157, 2147483648
    %v4159 = vmul.f32 %v4158, 1.442695
    %v4160 = vpow.pop %v4159
    %v4161 = vadd.f32 %v4160, 1.0
    %v4162 = vrcp.pop %v4161
    %v4163 = vmul.f32 1.0, %v4162
    %v4164 = vld [vmem:[%s1791] sm:$0xff]
    %v4165 = vadd.f32 %v4164, %v4083
    %v4166 = vxor.u32 %v4165, 2147483648
    %v4167 = vmul.f32 %v4166, 1.442695
    %v4168 = vpow.pop %v4167
    %v4169 = vadd.f32 %v4168, 1.0
    %v4170 = vrcp.pop %v4169
    %v4171 = vmul.f32 1.0, %v4170
    %v4172 = vld [vmem:[%s1800] sm:$0xff]
    %v4173 = vmul.f32 %v4163, %v4153
    %v4174 = vadd.f32 %v4172, %v4173
    %v4175 = vtanh.pop %v4174
    %v4176 = vsub.f32 1.0, %v4171
    %v4177 = vmul.f32 %v4176, %v4175
    %v4178 = vmul.f32 %v4171, %v3942
    %v4179 = vadd.f32 %v4177, %v4178
    %4180 = vst.msk [vmem:[#allocation7] sm:$0xff] %vm1043, %v4179
    %4181 = vst.msk [vmem:[%s1810] sm:$0xff] %vm1043, %v4179
    %v4182 = vld [vmem:[#allocation7] sm:$0xff]
    %v4184 = vsel %vm1043, %v4182, 0
    %4186 = vmatprep.subr.mxu0 0.0
    %4187 = vmatpush1.msra.mxu0 %v3682
    %4188 = vmatprep.subr.mxu0 0.0
    %4189 = vmatpush1.msra.mxu0 %v3683
    %4190 = vmatprep.subr.mxu0 0.0
    %4191 = vmatpush1.msra.mxu0 %v3684
    %4192 = vmatprep.subr.mxu0 0.0
    %4193 = vmatpush1.msra.mxu0 %v3685
    %4194 = vmatprep.subr.mxu0 0.0
    %4195 = vmatpush1.msra.mxu0 0.0
    %4196 = vmatprep.subr.mxu0 0.0
    %4197 = vmatpush1.msra.mxu0 0.0
    %4198 = vmatprep.subr.mxu0 0.0
    %4199 = vmatpush1.msra.mxu0 0.0
    %4200 = vmatprep.subr.mxu0 0.0
    %4201 = vmatpush1.msra.mxu0 0.0
    %4202 = vmatprep.subr.mxu0 0.0
    %4203 = vmatpush1.msra.mxu0 0.0
    %4204 = vmatprep.subr.mxu0 0.0
    %4205 = vmatpush1.msra.mxu0 0.0
    %4206 = vmatprep.subr.mxu0 0.0
    %4207 = vmatpush1.msra.mxu0 0.0
    %4208 = vmatprep.subr.mxu0 0.0
    %4209 = vmatpush1.msra.mxu0 0.0
    %4210 = vmatprep.subr.mxu0 0.0
    %4211 = vmatpush1.msra.mxu0 0.0
    %4212 = vmatprep.subr.mxu0 0.0
    %4213 = vmatpush1.msra.mxu0 0.0
    %4214 = vmatprep.subr.mxu0 0.0
    %4215 = vmatpush1.msra.mxu0 0.0
    %4216 = vmatprep.subr.mxu0 0.0
    %4217 = vmatpush1.msra.mxu0 0.0
    %4218 = vmatprep.subr.mxu0 0.0
    %4219 = vmatpush1.msra.mxu0 0.0
    %4220 = vmatprep.subr.mxu0 0.0
    %4221 = vmatpush1.msra.mxu0 0.0
    %4222 = vmatprep.subr.mxu0 0.0
    %4223 = vmatpush1.msra.mxu0 0.0
    %4224 = vmatprep.subr.mxu0 0.0
    %4225 = vmatpush1.msra.mxu0 0.0
    %4226 = vmatprep.subr.mxu0 0.0
    %4227 = vmatpush1.msra.mxu0 0.0
    %4228 = vmatprep.subr.mxu0 0.0
    %4229 = vmatpush1.msra.mxu0 0.0
    %4230 = vmatprep.subr.mxu0 0.0
    %4231 = vmatpush1.msra.mxu0 0.0
    %4232 = vmatprep.subr.mxu0 0.0
    %4233 = vmatpush1.msra.mxu0 0.0
    %4234 = vmatprep.subr.mxu0 0.0
    %4235 = vmatpush1.msra.mxu0 0.0
    %4236 = vmatprep.subr.mxu0 0.0
    %4237 = vmatpush1.msra.mxu0 0.0
    %4238 = vmatprep.subr.mxu0 0.0
    %4239 = vmatpush1.msra.mxu0 0.0
    %4240 = vmatprep.subr.mxu0 0.0
    %4241 = vmatpush1.msra.mxu0 0.0
    %4242 = vmatprep.subr.mxu0 0.0
    %4243 = vmatpush1.msra.mxu0 0.0
    %4244 = vmatprep.subr.mxu0 0.0
    %4245 = vmatpush1.msra.mxu0 0.0
    %4246 = vmatprep.subr.mxu0 0.0
    %4247 = vmatpush1.msra.mxu0 0.0
    %4248 = vmatprep.subr.mxu0 0.0
    %4249 = vmatpush1.msra.mxu0 0.0
    %4250 = vmatprep.mubr.f32.mxu0 0.0
    %4251 = vmatmul.mubr.f32.gmra.mrb[0].mxu0 %v4184
    %v4252 = vpop.f32.mrb[0].mxu0
    %v4253 = vadd.f32 0.0, %v4252
    %v4254 = vpop.f32.mrb[0].mxu0
    %4255 = vdwg.mxu0
    %4256 = vmatprep.subr.mxu0 0.0
    %4257 = vmatpush1.msra.mxu0 %v3686
    %4258 = vmatprep.subr.mxu0 0.0
    %4259 = vmatpush1.msra.mxu0 %v3687
    %4260 = vmatprep.subr.mxu0 0.0
    %4261 = vmatpush1.msra.mxu0 %v3688
    %4262 = vmatprep.subr.mxu0 0.0
    %4263 = vmatpush1.msra.mxu0 %v3689
    %4264 = vmatprep.subr.mxu0 0.0
    %4265 = vmatpush1.msra.mxu0 0.0
    %4266 = vmatprep.subr.mxu0 0.0
    %4267 = vmatpush1.msra.mxu0 0.0
    %4268 = vmatprep.subr.mxu0 0.0
    %4269 = vmatpush1.msra.mxu0 0.0
    %4270 = vmatprep.subr.mxu0 0.0
    %4271 = vmatpush1.msra.mxu0 0.0
    %4272 = vmatprep.subr.mxu0 0.0
    %4273 = vmatpush1.msra.mxu0 0.0
    %4274 = vmatprep.subr.mxu0 0.0
    %4275 = vmatpush1.msra.mxu0 0.0
    %4276 = vmatprep.subr.mxu0 0.0
    %4277 = vmatpush1.msra.mxu0 0.0
    %4278 = vmatprep.subr.mxu0 0.0
    %4279 = vmatpush1.msra.mxu0 0.0
    %4280 = vmatprep.subr.mxu0 0.0
    %4281 = vmatpush1.msra.mxu0 0.0
    %4282 = vmatprep.subr.mxu0 0.0
    %4283 = vmatpush1.msra.mxu0 0.0
    %4284 = vmatprep.subr.mxu0 0.0
    %4285 = vmatpush1.msra.mxu0 0.0
    %4286 = vmatprep.subr.mxu0 0.0
    %4287 = vmatpush1.msra.mxu0 0.0
    %4288 = vmatprep.subr.mxu0 0.0
    %4289 = vmatpush1.msra.mxu0 0.0
    %4290 = vmatprep.subr.mxu0 0.0
    %4291 = vmatpush1.msra.mxu0 0.0
    %4292 = vmatprep.subr.mxu0 0.0
    %4293 = vmatpush1.msra.mxu0 0.0
    %4294 = vmatprep.subr.mxu0 0.0
    %4295 = vmatpush1.msra.mxu0 0.0
    %4296 = vmatprep.subr.mxu0 0.0
    %4297 = vmatpush1.msra.mxu0 0.0
    %4298 = vmatprep.subr.mxu0 0.0
    %4299 = vmatpush1.msra.mxu0 0.0
    %4300 = vmatprep.subr.mxu0 0.0
    %4301 = vmatpush1.msra.mxu0 0.0
    %4302 = vmatprep.subr.mxu0 0.0
    %4303 = vmatpush1.msra.mxu0 0.0
    %4304 = vmatprep.subr.mxu0 0.0
    %4305 = vmatpush1.msra.mxu0 0.0
    %4306 = vmatprep.subr.mxu0 0.0
    %4307 = vmatpush1.msra.mxu0 0.0
    %4308 = vmatprep.subr.mxu0 0.0
    %4309 = vmatpush1.msra.mxu0 0.0
    %4310 = vmatprep.subr.mxu0 0.0
    %4311 = vmatpush1.msra.mxu0 0.0
    %4312 = vmatprep.subr.mxu0 0.0
    %4313 = vmatpush1.msra.mxu0 0.0
    %4314 = vmatprep.subr.mxu0 0.0
    %4315 = vmatpush1.msra.mxu0 0.0
    %4316 = vmatprep.subr.mxu0 0.0
    %4317 = vmatpush1.msra.mxu0 0.0
    %4318 = vmatprep.subr.mxu0 0.0
    %4319 = vmatpush1.msra.mxu0 0.0
    %4320 = vmatprep.mubr.f32.mxu0 0.0
    %4321 = vmatmul.mubr.f32.gmra.mrb[0].mxu0 %v4184
    %v4322 = vpop.f32.mrb[0].mxu0
    %v4323 = vadd.f32 0.0, %v4322
    %v4324 = vpop.f32.mrb[0].mxu0
    %4325 = vdwg.mxu0
    %4326 = vmatprep.subr.mxu0 0.0
    %4327 = vmatpush1.msra.mxu0 %v3690
    %4328 = vmatprep.subr.mxu0 0.0
    %4329 = vmatpush1.msra.mxu0 %v3691
    %4330 = vmatprep.subr.mxu0 0.0
    %4331 = vmatpush1.msra.mxu0 %v3692
    %4332 = vmatprep.subr.mxu0 0.0
    %4333 = vmatpush1.msra.mxu0 %v3693
    %4334 = vmatprep.subr.mxu0 0.0
    %4335 = vmatpush1.msra.mxu0 0.0
    %4336 = vmatprep.subr.mxu0 0.0
    %4337 = vmatpush1.msra.mxu0 0.0
    %4338 = vmatprep.subr.mxu0 0.0
    %4339 = vmatpush1.msra.mxu0 0.0
    %4340 = vmatprep.subr.mxu0 0.0
    %4341 = vmatpush1.msra.mxu0 0.0
    %4342 = vmatprep.subr.mxu0 0.0
    %4343 = vmatpush1.msra.mxu0 0.0
    %4344 = vmatprep.subr.mxu0 0.0
    %4345 = vmatpush1.msra.mxu0 0.0
    %4346 = vmatprep.subr.mxu0 0.0
    %4347 = vmatpush1.msra.mxu0 0.0
    %4348 = vmatprep.subr.mxu0 0.0
    %4349 = vmatpush1.msra.mxu0 0.0
    %4350 = vmatprep.subr.mxu0 0.0
    %4351 = vmatpush1.msra.mxu0 0.0
    %4352 = vmatprep.subr.mxu0 0.0
    %4353 = vmatpush1.msra.mxu0 0.0
    %4354 = vmatprep.subr.mxu0 0.0
    %4355 = vmatpush1.msra.mxu0 0.0
    %4356 = vmatprep.subr.mxu0 0.0
    %4357 = vmatpush1.msra.mxu0 0.0
    %4358 = vmatprep.subr.mxu0 0.0
    %4359 = vmatpush1.msra.mxu0 0.0
    %4360 = vmatprep.subr.mxu0 0.0
    %4361 = vmatpush1.msra.mxu0 0.0
    %4362 = vmatprep.subr.mxu0 0.0
    %4363 = vmatpush1.msra.mxu0 0.0
    %4364 = vmatprep.subr.mxu0 0.0
    %4365 = vmatpush1.msra.mxu0 0.0
    %4366 = vmatprep.subr.mxu0 0.0
    %4367 = vmatpush1.msra.mxu0 0.0
    %4368 = vmatprep.subr.mxu0 0.0
    %4369 = vmatpush1.msra.mxu0 0.0
    %4370 = vmatprep.subr.mxu0 0.0
    %4371 = vmatpush1.msra.mxu0 0.0
    %4372 = vmatprep.subr.mxu0 0.0
    %4373 = vmatpush1.msra.mxu0 0.0
    %4374 = vmatprep.subr.mxu0 0.0
    %4375 = vmatpush1.msra.mxu0 0.0
    %4376 = vmatprep.subr.mxu0 0.0
    %4377 = vmatpush1.msra.mxu0 0.0
    %4378 = vmatprep.subr.mxu0 0.0
    %4379 = vmatpush1.msra.mxu0 0.0
    %4380 = vmatprep.subr.mxu0 0.0
    %4381 = vmatpush1.msra.mxu0 0.0
    %4382 = vmatprep.subr.mxu0 0.0
    %4383 = vmatpush1.msra.mxu0 0.0
    %4384 = vmatprep.subr.mxu0 0.0
    %4385 = vmatpush1.msra.mxu0 0.0
    %4386 = vmatprep.subr.mxu0 0.0
    %4387 = vmatpush1.msra.mxu0 0.0
    %4388 = vmatprep.subr.mxu0 0.0
    %4389 = vmatpush1.msra.mxu0 0.0
    %4390 = vmatprep.mubr.f32.mxu0 0.0
    %4391 = vmatmul.mubr.f32.gmra.mrb[0].mxu0 %v4184
    %v4392 = vpop.f32.mrb[0].mxu0
    %v4393 = vadd.f32 %v3699, %v4392
    %v4394 = vpop.f32.mrb[0].mxu0
    %4395 = vdwg.mxu0
    %v4396 = vld [vmem:[%s2026] sm:$0xff]
    %v4397 = vadd.f32 %v4396, %v4253
    %v4398 = vxor.u32 %v4397, 2147483648
    %v4399 = vmul.f32 %v4398, 1.442695
    %v4400 = vpow.pop %v4399
    %v4401 = vadd.f32 %v4400, 1.0
    %v4402 = vrcp.pop %v4401
    %v4403 = vmul.f32 1.0, %v4402
    %v4404 = vld [vmem:[%s2035] sm:$0xff]
    %v4405 = vadd.f32 %v4404, %v4323
    %v4406 = vxor.u32 %v4405, 2147483648
    %v4407 = vmul.f32 %v4406, 1.442695
    %v4408 = vpow.pop %v4407
    %v4409 = vadd.f32 %v4408, 1.0
    %v4410 = vrcp.pop %v4409
    %v4411 = vmul.f32 1.0, %v4410
    %v4412 = vld [vmem:[%s2044] sm:$0xff]
    %v4413 = vmul.f32 %v4403, %v4393
    %v4414 = vadd.f32 %v4412, %v4413
    %v4415 = vtanh.pop %v4414
    %v4416 = vsub.f32 1.0, %v4411
    %v4417 = vmul.f32 %v4416, %v4415
    %v4418 = vmul.f32 %v4411, %v4182
    %v4419 = vadd.f32 %v4417, %v4418
    %4420 = vst.msk [vmem:[#allocation7] sm:$0xff] %vm1043, %v4419
    %4421 = vst.msk [vmem:[%s2054] sm:$0xff] %vm1043, %v4419
    %v4422 = vld [vmem:[#allocation7] sm:$0xff]
    %v4424 = vsel %vm1043, %v4422, 0
    %4426 = vmatprep.subr.mxu0 0.0
    %4427 = vmatpush1.msra.mxu0 %v3682
    %4428 = vmatprep.subr.mxu0 0.0
    %4429 = vmatpush1.msra.mxu0 %v3683
    %4430 = vmatprep.subr.mxu0 0.0
    %4431 = vmatpush1.msra.mxu0 %v3684
    %4432 = vmatprep.subr.mxu0 0.0
    %4433 = vmatpush1.msra.mxu0 %v3685
    %4434 = vmatprep.subr.mxu0 0.0
    %4435 = vmatpush1.msra.mxu0 0.0
    %4436 = vmatprep.subr.mxu0 0.0
    %4437 = vmatpush1.msra.mxu0 0.0
    %4438 = vmatprep.subr.mxu0 0.0
    %4439 = vmatpush1.msra.mxu0 0.0
    %4440 = vmatprep.subr.mxu0 0.0
    %4441 = vmatpush1.msra.mxu0 0.0
    %4442 = vmatprep.subr.mxu0 0.0
    %4443 = vmatpush1.msra.mxu0 0.0
    %4444 = vmatprep.subr.mxu0 0.0
    %4445 = vmatpush1.msra.mxu0 0.0
    %4446 = vmatprep.subr.mxu0 0.0
    %4447 = vmatpush1.msra.mxu0 0.0
    %4448 = vmatprep.subr.mxu0 0.0
    %4449 = vmatpush1.msra.mxu0 0.0
    %4450 = vmatprep.subr.mxu0 0.0
    %4451 = vmatpush1.msra.mxu0 0.0
    %4452 = vmatprep.subr.mxu0 0.0
    %4453 = vmatpush1.msra.mxu0 0.0
    %4454 = vmatprep.subr.mxu0 0.0
    %4455 = vmatpush1.msra.mxu0 0.0
    %4456 = vmatprep.subr.mxu0 0.0
    %4457 = vmatpush1.msra.mxu0 0.0
    %4458 = vmatprep.subr.mxu0 0.0
    %4459 = vmatpush1.msra.mxu0 0.0
    %4460 = vmatprep.subr.mxu0 0.0
    %4461 = vmatpush1.msra.mxu0 0.0
    %4462 = vmatprep.subr.mxu0 0.0
    %4463 = vmatpush1.msra.mxu0 0.0
    %4464 = vmatprep.subr.mxu0 0.0
    %4465 = vmatpush1.msra.mxu0 0.0
    %4466 = vmatprep.subr.mxu0 0.0
    %4467 = vmatpush1.msra.mxu0 0.0
    %4468 = vmatprep.subr.mxu0 0.0
    %4469 = vmatpush1.msra.mxu0 0.0
    %4470 = vmatprep.subr.mxu0 0.0
    %4471 = vmatpush1.msra.mxu0 0.0
    %4472 = vmatprep.subr.mxu0 0.0
    %4473 = vmatpush1.msra.mxu0 0.0
    %4474 = vmatprep.subr.mxu0 0.0
    %4475 = vmatpush1.msra.mxu0 0.0
    %4476 = vmatprep.subr.mxu0 0.0
    %4477 = vmatpush1.msra.mxu0 0.0
    %4478 = vmatprep.subr.mxu0 0.0
    %4479 = vmatpush1.msra.mxu0 0.0
    %4480 = vmatprep.subr.mxu0 0.0
    %4481 = vmatpush1.msra.mxu0 0.0
    %4482 = vmatprep.subr.mxu0 0.0
    %4483 = vmatpush1.msra.mxu0 0.0
    %4484 = vmatprep.subr.mxu0 0.0
    %4485 = vmatpush1.msra.mxu0 0.0
    %4486 = vmatprep.subr.mxu0 0.0
    %4487 = vmatpush1.msra.mxu0 0.0
    %4488 = vmatprep.subr.mxu0 0.0
    %4489 = vmatpush1.msra.mxu0 0.0
    %4490 = vmatprep.mubr.f32.mxu0 0.0
    %4491 = vmatmul.mubr.f32.gmra.mrb[0].mxu0 %v4424
    %v4492 = vpop.f32.mrb[0].mxu0
    %v4493 = vadd.f32 0.0, %v4492
    %v4494 = vpop.f32.mrb[0].mxu0
    %4495 = vdwg.mxu0
    %4496 = vmatprep.subr.mxu0 0.0
    %4497 = vmatpush1.msra.mxu0 %v3686
    %4498 = vmatprep.subr.mxu0 0.0
    %4499 = vmatpush1.msra.mxu0 %v3687
    %4500 = vmatprep.subr.mxu0 0.0
    %4501 = vmatpush1.msra.mxu0 %v3688
    %4502 = vmatprep.subr.mxu0 0.0
    %4503 = vmatpush1.msra.mxu0 %v3689
    %4504 = vmatprep.subr.mxu0 0.0
    %4505 = vmatpush1.msra.mxu0 0.0
    %4506 = vmatprep.subr.mxu0 0.0
    %4507 = vmatpush1.msra.mxu0 0.0
    %4508 = vmatprep.subr.mxu0 0.0
    %4509 = vmatpush1.msra.mxu0 0.0
    %4510 = vmatprep.subr.mxu0 0.0
    %4511 = vmatpush1.msra.mxu0 0.0
    %4512 = vmatprep.subr.mxu0 0.0
    %4513 = vmatpush1.msra.mxu0 0.0
    %4514 = vmatprep.subr.mxu0 0.0
    %4515 = vmatpush1.msra.mxu0 0.0
    %4516 = vmatprep.subr.mxu0 0.0
    %4517 = vmatpush1.msra.mxu0 0.0
    %4518 = vmatprep.subr.mxu0 0.0
    %4519 = vmatpush1.msra.mxu0 0.0
    %4520 = vmatprep.subr.mxu0 0.0
    %4521 = vmatpush1.msra.mxu0 0.0
    %4522 = vmatprep.subr.mxu0 0.0
    %4523 = vmatpush1.msra.mxu0 0.0
    %4524 = vmatprep.subr.mxu0 0.0
    %4525 = vmatpush1.msra.mxu0 0.0
    %4526 = vmatprep.subr.mxu0 0.0
    %4527 = vmatpush1.msra.mxu0 0.0
    %4528 = vmatprep.subr.mxu0 0.0
    %4529 = vmatpush1.msra.mxu0 0.0
    %4530 = vmatprep.subr.mxu0 0.0
    %4531 = vmatpush1.msra.mxu0 0.0
    %4532 = vmatprep.subr.mxu0 0.0
    %4533 = vmatpush1.msra.mxu0 0.0
    %4534 = vmatprep.subr.mxu0 0.0
    %4535 = vmatpush1.msra.mxu0 0.0
    %4536 = vmatprep.subr.mxu0 0.0
    %4537 = vmatpush1.msra.mxu0 0.0
    %4538 = vmatprep.subr.mxu0 0.0
    %4539 = vmatpush1.msra.mxu0 0.0
    %4540 = vmatprep.subr.mxu0 0.0
    %4541 = vmatpush1.msra.mxu0 0.0
    %4542 = vmatprep.subr.mxu0 0.0
    %4543 = vmatpush1.msra.mxu0 0.0
    %4544 = vmatprep.subr.mxu0 0.0
    %4545 = vmatpush1.msra.mxu0 0.0
    %4546 = vmatprep.subr.mxu0 0.0
    %4547 = vmatpush1.msra.mxu0 0.0
    %4548 = vmatprep.subr.mxu0 0.0
    %4549 = vmatpush1.msra.mxu0 0.0
    %4550 = vmatprep.subr.mxu0 0.0
    %4551 = vmatpush1.msra.mxu0 0.0
    %4552 = vmatprep.subr.mxu0 0.0
    %4553 = vmatpush1.msra.mxu0 0.0
    %4554 = vmatprep.subr.mxu0 0.0
    %4555 = vmatpush1.msra.mxu0 0.0
    %4556 = vmatprep.subr.mxu0 0.0
    %4557 = vmatpush1.msra.mxu0 0.0
    %4558 = vmatprep.subr.mxu0 0.0
    %4559 = vmatpush1.msra.mxu0 0.0
    %4560 = vmatprep.mubr.f32.mxu0 0.0
    %4561 = vmatmul.mubr.f32.gmra.mrb[0].mxu0 %v4424
    %v4562 = vpop.f32.mrb[0].mxu0
    %v4563 = vadd.f32 0.0, %v4562
    %v4564 = vpop.f32.mrb[0].mxu0
    %4565 = vdwg.mxu0
    %4566 = vmatprep.subr.mxu0 0.0
    %4567 = vmatpush1.msra.mxu0 %v3690
    %4568 = vmatprep.subr.mxu0 0.0
    %4569 = vmatpush1.msra.mxu0 %v3691
    %4570 = vmatprep.subr.mxu0 0.0
    %4571 = vmatpush1.msra.mxu0 %v3692
    %4572 = vmatprep.subr.mxu0 0.0
    %4573 = vmatpush1.msra.mxu0 %v3693
    %4574 = vmatprep.subr.mxu0 0.0
    %4575 = vmatpush1.msra.mxu0 0.0
    %4576 = vmatprep.subr.mxu0 0.0
    %4577 = vmatpush1.msra.mxu0 0.0
    %4578 = vmatprep.subr.mxu0 0.0
    %4579 = vmatpush1.msra.mxu0 0.0
    %4580 = vmatprep.subr.mxu0 0.0
    %4581 = vmatpush1.msra.mxu0 0.0
    %4582 = vmatprep.subr.mxu0 0.0
    %4583 = vmatpush1.msra.mxu0 0.0
    %4584 = vmatprep.subr.mxu0 0.0
    %4585 = vmatpush1.msra.mxu0 0.0
    %4586 = vmatprep.subr.mxu0 0.0
    %4587 = vmatpush1.msra.mxu0 0.0
    %4588 = vmatprep.subr.mxu0 0.0
    %4589 = vmatpush1.msra.mxu0 0.0
    %4590 = vmatprep.subr.mxu0 0.0
    %4591 = vmatpush1.msra.mxu0 0.0
    %4592 = vmatprep.subr.mxu0 0.0
    %4593 = vmatpush1.msra.mxu0 0.0
    %4594 = vmatprep.subr.mxu0 0.0
    %4595 = vmatpush1.msra.mxu0 0.0
    %4596 = vmatprep.subr.mxu0 0.0
    %4597 = vmatpush1.msra.mxu0 0.0
    %4598 = vmatprep.subr.mxu0 0.0
    %4599 = vmatpush1.msra.mxu0 0.0
    %4600 = vmatprep.subr.mxu0 0.0
    %4601 = vmatpush1.msra.mxu0 0.0
    %4602 = vmatprep.subr.mxu0 0.0
    %4603 = vmatpush1.msra.mxu0 0.0
    %4604 = vmatprep.subr.mxu0 0.0
    %4605 = vmatpush1.msra.mxu0 0.0
    %4606 = vmatprep.subr.mxu0 0.0
    %4607 = vmatpush1.msra.mxu0 0.0
    %4608 = vmatprep.subr.mxu0 0.0
    %4609 = vmatpush1.msra.mxu0 0.0
    %4610 = vmatprep.subr.mxu0 0.0
    %4611 = vmatpush1.msra.mxu0 0.0
    %4612 = vmatprep.subr.mxu0 0.0
    %4613 = vmatpush1.msra.mxu0 0.0
    %4614 = vmatprep.subr.mxu0 0.0
    %4615 = vmatpush1.msra.mxu0 0.0
    %4616 = vmatprep.subr.mxu0 0.0
    %4617 = vmatpush1.msra.mxu0 0.0
    %4618 = vmatprep.subr.mxu0 0.0
    %4619 = vmatpush1.msra.mxu0 0.0
    %4620 = vmatprep.subr.mxu0 0.0
    %4621 = vmatpush1.msra.mxu0 0.0
    %4622 = vmatprep.subr.mxu0 0.0
    %4623 = vmatpush1.msra.mxu0 0.0
    %4624 = vmatprep.subr.mxu0 0.0
    %4625 = vmatpush1.msra.mxu0 0.0
    %4626 = vmatprep.subr.mxu0 0.0
    %4627 = vmatpush1.msra.mxu0 0.0
    %4628 = vmatprep.subr.mxu0 0.0
    %4629 = vmatpush1.msra.mxu0 0.0
    %4630 = vmatprep.mubr.f32.mxu0 0.0
    %4631 = vmatmul.mubr.f32.gmra.mrb[0].mxu0 %v4424
    %v4632 = vpop.f32.mrb[0].mxu0
    %v4633 = vadd.f32 %v3699, %v4632
    %v4634 = vpop.f32.mrb[0].mxu0
    %4635 = vdwg.mxu0
    %v4636 = vld [vmem:[%s2270] sm:$0xff]
    %v4637 = vadd.f32 %v4636, %v4493
    %v4638 = vxor.u32 %v4637, 2147483648
    %v4639 = vmul.f32 %v4638, 1.442695
    %v4640 = vpow.pop %v4639
    %v4641 = vadd.f32 %v4640, 1.0
    %v4642 = vrcp.pop %v4641
    %v4643 = vmul.f32 1.0, %v4642
    %v4644 = vld [vmem:[%s2279] sm:$0xff]
    %v4645 = vadd.f32 %v4644, %v4563
    %v4646 = vxor.u32 %v4645, 2147483648
    %v4647 = vmul.f32 %v4646, 1.442695
    %v4648 = vpow.pop %v4647
    %v4649 = vadd.f32 %v4648, 1.0
    %v4650 = vrcp.pop %v4649
    %v4651 = vmul.f32 1.0, %v4650
    %v4652 = vld [vmem:[%s2288] sm:$0xff]
    %v4653 = vmul.f32 %v4643, %v4633
    %v4654 = vadd.f32 %v4652, %v4653
    %v4655 = vtanh.pop %v4654
    %v4656 = vsub.f32 1.0, %v4651
    %v4657 = vmul.f32 %v4656, %v4655
    %v4658 = vmul.f32 %v4651, %v4422
    %v4659 = vadd.f32 %v4657, %v4658
    %4660 = vst.msk [vmem:[#allocation7] sm:$0xff] %vm1043, %v4659
    %4661 = vst.msk [vmem:[%s2298] sm:$0xff] %vm1043, %v4659
    %v4662 = vld [vmem:[#allocation7] sm:$0xff]
    %v4664 = vsel %vm1043, %v4662, 0
    %4666 = vmatprep.subr.mxu0 0.0
    %4667 = vmatpush1.msra.mxu0 %v3682
    %4668 = vmatprep.subr.mxu0 0.0
    %4669 = vmatpush1.msra.mxu0 %v3683
    %4670 = vmatprep.subr.mxu0 0.0
    %4671 = vmatpush1.msra.mxu0 %v3684
    %4672 = vmatprep.subr.mxu0 0.0
    %4673 = vmatpush1.msra.mxu0 %v3685
    %4674 = vmatprep.subr.mxu0 0.0
    %4675 = vmatpush1.msra.mxu0 0.0
    %4676 = vmatprep.subr.mxu0 0.0
    %4677 = vmatpush1.msra.mxu0 0.0
    %4678 = vmatprep.subr.mxu0 0.0
    %4679 = vmatpush1.msra.mxu0 0.0
    %4680 = vmatprep.subr.mxu0 0.0
    %4681 = vmatpush1.msra.mxu0 0.0
    %4682 = vmatprep.subr.mxu0 0.0
    %4683 = vmatpush1.msra.mxu0 0.0
    %4684 = vmatprep.subr.mxu0 0.0
    %4685 = vmatpush1.msra.mxu0 0.0
    %4686 = vmatprep.subr.mxu0 0.0
    %4687 = vmatpush1.msra.mxu0 0.0
    %4688 = vmatprep.subr.mxu0 0.0
    %4689 = vmatpush1.msra.mxu0 0.0
    %4690 = vmatprep.subr.mxu0 0.0
    %4691 = vmatpush1.msra.mxu0 0.0
    %4692 = vmatprep.subr.mxu0 0.0
    %4693 = vmatpush1.msra.mxu0 0.0
    %4694 = vmatprep.subr.mxu0 0.0
    %4695 = vmatpush1.msra.mxu0 0.0
    %4696 = vmatprep.subr.mxu0 0.0
    %4697 = vmatpush1.msra.mxu0 0.0
    %4698 = vmatprep.subr.mxu0 0.0
    %4699 = vmatpush1.msra.mxu0 0.0
    %4700 = vmatprep.subr.mxu0 0.0
    %4701 = vmatpush1.msra.mxu0 0.0
    %4702 = vmatprep.subr.mxu0 0.0
    %4703 = vmatpush1.msra.mxu0 0.0
    %4704 = vmatprep.subr.mxu0 0.0
    %4705 = vmatpush1.msra.mxu0 0.0
    %4706 = vmatprep.subr.mxu0 0.0
    %4707 = vmatpush1.msra.mxu0 0.0
    %4708 = vmatprep.subr.mxu0 0.0
    %4709 = vmatpush1.msra.mxu0 0.0
    %4710 = vmatprep.subr.mxu0 0.0
    %4711 = vmatpush1.msra.mxu0 0.0
    %4712 = vmatprep.subr.mxu0 0.0
    %4713 = vmatpush1.msra.mxu0 0.0
    %4714 = vmatprep.subr.mxu0 0.0
    %4715 = vmatpush1.msra.mxu0 0.0
    %4716 = vmatprep.subr.mxu0 0.0
    %4717 = vmatpush1.msra.mxu0 0.0
    %4718 = vmatprep.subr.mxu0 0.0
    %4719 = vmatpush1.msra.mxu0 0.0
    %4720 = vmatprep.subr.mxu0 0.0
    %4721 = vmatpush1.msra.mxu0 0.0
    %4722 = vmatprep.subr.mxu0 0.0
    %4723 = vmatpush1.msra.mxu0 0.0
    %4724 = vmatprep.subr.mxu0 0.0
    %4725 = vmatpush1.msra.mxu0 0.0
    %4726 = vmatprep.subr.mxu0 0.0
    %4727 = vmatpush1.msra.mxu0 0.0
    %4728 = vmatprep.subr.mxu0 0.0
    %4729 = vmatpush1.msra.mxu0 0.0
    %4730 = vmatprep.mubr.f32.mxu0 0.0
    %4731 = vmatmul.mubr.f32.gmra.mrb[0].mxu0 %v4664
    %v4732 = vpop.f32.mrb[0].mxu0
    %v4733 = vadd.f32 0.0, %v4732
    %v4734 = vpop.f32.mrb[0].mxu0
    %4735 = vdwg.mxu0
    %4736 = vmatprep.subr.mxu0 0.0
    %4737 = vmatpush1.msra.mxu0 %v3686
    %4738 = vmatprep.subr.mxu0 0.0
    %4739 = vmatpush1.msra.mxu0 %v3687
    %4740 = vmatprep.subr.mxu0 0.0
    %4741 = vmatpush1.msra.mxu0 %v3688
    %4742 = vmatprep.subr.mxu0 0.0
    %4743 = vmatpush1.msra.mxu0 %v3689
    %4744 = vmatprep.subr.mxu0 0.0
    %4745 = vmatpush1.msra.mxu0 0.0
    %4746 = vmatprep.subr.mxu0 0.0
    %4747 = vmatpush1.msra.mxu0 0.0
    %4748 = vmatprep.subr.mxu0 0.0
    %4749 = vmatpush1.msra.mxu0 0.0
    %4750 = vmatprep.subr.mxu0 0.0
    %4751 = vmatpush1.msra.mxu0 0.0
    %4752 = vmatprep.subr.mxu0 0.0
    %4753 = vmatpush1.msra.mxu0 0.0
    %4754 = vmatprep.subr.mxu0 0.0
    %4755 = vmatpush1.msra.mxu0 0.0
    %4756 = vmatprep.subr.mxu0 0.0
    %4757 = vmatpush1.msra.mxu0 0.0
    %4758 = vmatprep.subr.mxu0 0.0
    %4759 = vmatpush1.msra.mxu0 0.0
    %4760 = vmatprep.subr.mxu0 0.0
    %4761 = vmatpush1.msra.mxu0 0.0
    %4762 = vmatprep.subr.mxu0 0.0
    %4763 = vmatpush1.msra.mxu0 0.0
    %4764 = vmatprep.subr.mxu0 0.0
    %4765 = vmatpush1.msra.mxu0 0.0
    %4766 = vmatprep.subr.mxu0 0.0
    %4767 = vmatpush1.msra.mxu0 0.0
    %4768 = vmatprep.subr.mxu0 0.0
    %4769 = vmatpush1.msra.mxu0 0.0
    %4770 = vmatprep.subr.mxu0 0.0
    %4771 = vmatpush1.msra.mxu0 0.0
    %4772 = vmatprep.subr.mxu0 0.0
    %4773 = vmatpush1.msra.mxu0 0.0
    %4774 = vmatprep.subr.mxu0 0.0
    %4775 = vmatpush1.msra.mxu0 0.0
    %4776 = vmatprep.subr.mxu0 0.0
    %4777 = vmatpush1.msra.mxu0 0.0
    %4778 = vmatprep.subr.mxu0 0.0
    %4779 = vmatpush1.msra.mxu0 0.0
    %4780 = vmatprep.subr.mxu0 0.0
    %4781 = vmatpush1.msra.mxu0 0.0
    %4782 = vmatprep.subr.mxu0 0.0
    %4783 = vmatpush1.msra.mxu0 0.0
    %4784 = vmatprep.subr.mxu0 0.0
    %4785 = vmatpush1.msra.mxu0 0.0
    %4786 = vmatprep.subr.mxu0 0.0
    %4787 = vmatpush1.msra.mxu0 0.0
    %4788 = vmatprep.subr.mxu0 0.0
    %4789 = vmatpush1.msra.mxu0 0.0
    %4790 = vmatprep.subr.mxu0 0.0
    %4791 = vmatpush1.msra.mxu0 0.0
    %4792 = vmatprep.subr.mxu0 0.0
    %4793 = vmatpush1.msra.mxu0 0.0
    %4794 = vmatprep.subr.mxu0 0.0
    %4795 = vmatpush1.msra.mxu0 0.0
    %4796 = vmatprep.subr.mxu0 0.0
    %4797 = vmatpush1.msra.mxu0 0.0
    %4798 = vmatprep.subr.mxu0 0.0
    %4799 = vmatpush1.msra.mxu0 0.0
    %4800 = vmatprep.mubr.f32.mxu0 0.0
    %4801 = vmatmul.mubr.f32.gmra.mrb[0].mxu0 %v4664
    %v4802 = vpop.f32.mrb[0].mxu0
    %v4803 = vadd.f32 0.0, %v4802
    %v4804 = vpop.f32.mrb[0].mxu0
    %4805 = vdwg.mxu0
    %4806 = vmatprep.subr.mxu0 0.0
    %4807 = vmatpush1.msra.mxu0 %v3690
    %4808 = vmatprep.subr.mxu0 0.0
    %4809 = vmatpush1.msra.mxu0 %v3691
    %4810 = vmatprep.subr.mxu0 0.0
    %4811 = vmatpush1.msra.mxu0 %v3692
    %4812 = vmatprep.subr.mxu0 0.0
    %4813 = vmatpush1.msra.mxu0 %v3693
    %4814 = vmatprep.subr.mxu0 0.0
    %4815 = vmatpush1.msra.mxu0 0.0
    %4816 = vmatprep.subr.mxu0 0.0
    %4817 = vmatpush1.msra.mxu0 0.0
    %4818 = vmatprep.subr.mxu0 0.0
    %4819 = vmatpush1.msra.mxu0 0.0
    %4820 = vmatprep.subr.mxu0 0.0
    %4821 = vmatpush1.msra.mxu0 0.0
    %4822 = vmatprep.subr.mxu0 0.0
    %4823 = vmatpush1.msra.mxu0 0.0
    %4824 = vmatprep.subr.mxu0 0.0
    %4825 = vmatpush1.msra.mxu0 0.0
    %4826 = vmatprep.subr.mxu0 0.0
    %4827 = vmatpush1.msra.mxu0 0.0
    %4828 = vmatprep.subr.mxu0 0.0
    %4829 = vmatpush1.msra.mxu0 0.0
    %4830 = vmatprep.subr.mxu0 0.0
    %4831 = vmatpush1.msra.mxu0 0.0
    %4832 = vmatprep.subr.mxu0 0.0
    %4833 = vmatpush1.msra.mxu0 0.0
    %4834 = vmatprep.subr.mxu0 0.0
    %4835 = vmatpush1.msra.mxu0 0.0
    %4836 = vmatprep.subr.mxu0 0.0
    %4837 = vmatpush1.msra.mxu0 0.0
    %4838 = vmatprep.subr.mxu0 0.0
    %4839 = vmatpush1.msra.mxu0 0.0
    %4840 = vmatprep.subr.mxu0 0.0
    %4841 = vmatpush1.msra.mxu0 0.0
    %4842 = vmatprep.subr.mxu0 0.0
    %4843 = vmatpush1.msra.mxu0 0.0
    %4844 = vmatprep.subr.mxu0 0.0
    %4845 = vmatpush1.msra.mxu0 0.0
    %4846 = vmatprep.subr.mxu0 0.0
    %4847 = vmatpush1.msra.mxu0 0.0
    %4848 = vmatprep.subr.mxu0 0.0
    %4849 = vmatpush1.msra.mxu0 0.0
    %4850 = vmatprep.subr.mxu0 0.0
    %4851 = vmatpush1.msra.mxu0 0.0
    %4852 = vmatprep.subr.mxu0 0.0
    %4853 = vmatpush1.msra.mxu0 0.0
    %4854 = vmatprep.subr.mxu0 0.0
    %4855 = vmatpush1.msra.mxu0 0.0
    %4856 = vmatprep.subr.mxu0 0.0
    %4857 = vmatpush1.msra.mxu0 0.0
    %4858 = vmatprep.subr.mxu0 0.0
    %4859 = vmatpush1.msra.mxu0 0.0
    %4860 = vmatprep.subr.mxu0 0.0
    %4861 = vmatpush1.msra.mxu0 0.0
    %4862 = vmatprep.subr.mxu0 0.0
    %4863 = vmatpush1.msra.mxu0 0.0
    %4864 = vmatprep.subr.mxu0 0.0
    %4865 = vmatpush1.msra.mxu0 0.0
    %4866 = vmatprep.subr.mxu0 0.0
    %4867 = vmatpush1.msra.mxu0 0.0
    %4868 = vmatprep.subr.mxu0 0.0
    %4869 = vmatpush1.msra.mxu0 0.0
    %4870 = vmatprep.mubr.f32.mxu0 0.0
    %4871 = vmatmul.mubr.f32.gmra.mrb[0].mxu0 %v4664
    %v4872 = vpop.f32.mrb[0].mxu0
    %v4873 = vadd.f32 %v3699, %v4872
    %v4874 = vpop.f32.mrb[0].mxu0
    %4875 = vdwg.mxu0
    %v4876 = vld [vmem:[%s2514] sm:$0xff]
    %v4877 = vadd.f32 %v4876, %v4733
    %v4878 = vxor.u32 %v4877, 2147483648
    %v4879 = vmul.f32 %v4878, 1.442695
    %v4880 = vpow.pop %v4879
    %v4881 = vadd.f32 %v4880, 1.0
    %v4882 = vrcp.pop %v4881
    %v4883 = vmul.f32 1.0, %v4882
    %v4884 = vld [vmem:[%s2523] sm:$0xff]
    %v4885 = vadd.f32 %v4884, %v4803
    %v4886 = vxor.u32 %v4885, 2147483648
    %v4887 = vmul.f32 %v4886, 1.442695
    %v4888 = vpow.pop %v4887
    %v4889 = vadd.f32 %v4888, 1.0
    %v4890 = vrcp.pop %v4889
    %v4891 = vmul.f32 1.0, %v4890
    %v4892 = vld [vmem:[%s2532] sm:$0xff]
    %v4893 = vmul.f32 %v4883, %v4873
    %v4894 = vadd.f32 %v4892, %v4893
    %v4895 = vtanh.pop %v4894
    %v4896 = vsub.f32 1.0, %v4891
    %v4897 = vmul.f32 %v4896, %v4895
    %v4898 = vmul.f32 %v4891, %v4662
    %v4899 = vadd.f32 %v4897, %v4898
    %4900 = vst.msk [vmem:[#allocation7] sm:$0xff] %vm1043, %v4899
    %4901 = vst.msk [vmem:[%s2542] sm:$0xff] %vm1043, %v4899
    %v4902 = vld [vmem:[#allocation7] sm:$0xff]
    %v4904 = vsel %vm1043, %v4902, 0
    %4906 = vmatprep.subr.mxu0 0.0
    %4907 = vmatpush1.msra.mxu0 %v3682
    %4908 = vmatprep.subr.mxu0 0.0
    %4909 = vmatpush1.msra.mxu0 %v3683
    %4910 = vmatprep.subr.mxu0 0.0
    %4911 = vmatpush1.msra.mxu0 %v3684
    %4912 = vmatprep.subr.mxu0 0.0
    %4913 = vmatpush1.msra.mxu0 %v3685
    %4914 = vmatprep.subr.mxu0 0.0
    %4915 = vmatpush1.msra.mxu0 0.0
    %4916 = vmatprep.subr.mxu0 0.0
    %4917 = vmatpush1.msra.mxu0 0.0
    %4918 = vmatprep.subr.mxu0 0.0
    %4919 = vmatpush1.msra.mxu0 0.0
    %4920 = vmatprep.subr.mxu0 0.0
    %4921 = vmatpush1.msra.mxu0 0.0
    %4922 = vmatprep.subr.mxu0 0.0
    %4923 = vmatpush1.msra.mxu0 0.0
    %4924 = vmatprep.subr.mxu0 0.0
    %4925 = vmatpush1.msra.mxu0 0.0
    %4926 = vmatprep.subr.mxu0 0.0
    %4927 = vmatpush1.msra.mxu0 0.0
    %4928 = vmatprep.subr.mxu0 0.0
    %4929 = vmatpush1.msra.mxu0 0.0
    %4930 = vmatprep.subr.mxu0 0.0
    %4931 = vmatpush1.msra.mxu0 0.0
    %4932 = vmatprep.subr.mxu0 0.0
    %4933 = vmatpush1.msra.mxu0 0.0
    %4934 = vmatprep.subr.mxu0 0.0
    %4935 = vmatpush1.msra.mxu0 0.0
    %4936 = vmatprep.subr.mxu0 0.0
    %4937 = vmatpush1.msra.mxu0 0.0
    %4938 = vmatprep.subr.mxu0 0.0
    %4939 = vmatpush1.msra.mxu0 0.0
    %4940 = vmatprep.subr.mxu0 0.0
    %4941 = vmatpush1.msra.mxu0 0.0
    %4942 = vmatprep.subr.mxu0 0.0
    %4943 = vmatpush1.msra.mxu0 0.0
    %4944 = vmatprep.subr.mxu0 0.0
    %4945 = vmatpush1.msra.mxu0 0.0
    %4946 = vmatprep.subr.mxu0 0.0
    %4947 = vmatpush1.msra.mxu0 0.0
    %4948 = vmatprep.subr.mxu0 0.0
    %4949 = vmatpush1.msra.mxu0 0.0
    %4950 = vmatprep.subr.mxu0 0.0
    %4951 = vmatpush1.msra.mxu0 0.0
    %4952 = vmatprep.subr.mxu0 0.0
    %4953 = vmatpush1.msra.mxu0 0.0
    %4954 = vmatprep.subr.mxu0 0.0
    %4955 = vmatpush1.msra.mxu0 0.0
    %4956 = vmatprep.subr.mxu0 0.0
    %4957 = vmatpush1.msra.mxu0 0.0
    %4958 = vmatprep.subr.mxu0 0.0
    %4959 = vmatpush1.msra.mxu0 0.0
    %4960 = vmatprep.subr.mxu0 0.0
    %4961 = vmatpush1.msra.mxu0 0.0
    %4962 = vmatprep.subr.mxu0 0.0
    %4963 = vmatpush1.msra.mxu0 0.0
    %4964 = vmatprep.subr.mxu0 0.0
    %4965 = vmatpush1.msra.mxu0 0.0
    %4966 = vmatprep.subr.mxu0 0.0
    %4967 = vmatpush1.msra.mxu0 0.0
    %4968 = vmatprep.subr.mxu0 0.0
    %4969 = vmatpush1.msra.mxu0 0.0
    %4970 = vmatprep.mubr.f32.mxu0 0.0
    %4971 = vmatmul.mubr.f32.gmra.mrb[0].mxu0 %v4904
    %v4972 = vpop.f32.mrb[0].mxu0
    %v4973 = vadd.f32 0.0, %v4972
    %v4974 = vpop.f32.mrb[0].mxu0
    %4975 = vdwg.mxu0
    %4976 = vmatprep.subr.mxu0 0.0
    %4977 = vmatpush1.msra.mxu0 %v3686
    %4978 = vmatprep.subr.mxu0 0.0
    %4979 = vmatpush1.msra.mxu0 %v3687
    %4980 = vmatprep.subr.mxu0 0.0
    %4981 = vmatpush1.msra.mxu0 %v3688
    %4982 = vmatprep.subr.mxu0 0.0
    %4983 = vmatpush1.msra.mxu0 %v3689
    %4984 = vmatprep.subr.mxu0 0.0
    %4985 = vmatpush1.msra.mxu0 0.0
    %4986 = vmatprep.subr.mxu0 0.0
    %4987 = vmatpush1.msra.mxu0 0.0
    %4988 = vmatprep.subr.mxu0 0.0
    %4989 = vmatpush1.msra.mxu0 0.0
    %4990 = vmatprep.subr.mxu0 0.0
    %4991 = vmatpush1.msra.mxu0 0.0
    %4992 = vmatprep.subr.mxu0 0.0
    %4993 = vmatpush1.msra.mxu0 0.0
    %4994 = vmatprep.subr.mxu0 0.0
    %4995 = vmatpush1.msra.mxu0 0.0
    %4996 = vmatprep.subr.mxu0 0.0
    %4997 = vmatpush1.msra.mxu0 0.0
    %4998 = vmatprep.subr.mxu0 0.0
    %4999 = vmatpush1.msra.mxu0 0.0
    %5000 = vmatprep.subr.mxu0 0.0
    %5001 = vmatpush1.msra.mxu0 0.0
    %5002 = vmatprep.subr.mxu0 0.0
    %5003 = vmatpush1.msra.mxu0 0.0
    %5004 = vmatprep.subr.mxu0 0.0
    %5005 = vmatpush1.msra.mxu0 0.0
    %5006 = vmatprep.subr.mxu0 0.0
    %5007 = vmatpush1.msra.mxu0 0.0
    %5008 = vmatprep.subr.mxu0 0.0
    %5009 = vmatpush1.msra.mxu0 0.0
    %5010 = vmatprep.subr.mxu0 0.0
    %5011 = vmatpush1.msra.mxu0 0.0
    %5012 = vmatprep.subr.mxu0 0.0
    %5013 = vmatpush1.msra.mxu0 0.0
    %5014 = vmatprep.subr.mxu0 0.0
    %5015 = vmatpush1.msra.mxu0 0.0
    %5016 = vmatprep.subr.mxu0 0.0
    %5017 = vmatpush1.msra.mxu0 0.0
    %5018 = vmatprep.subr.mxu0 0.0
    %5019 = vmatpush1.msra.mxu0 0.0
    %5020 = vmatprep.subr.mxu0 0.0
    %5021 = vmatpush1.msra.mxu0 0.0
    %5022 = vmatprep.subr.mxu0 0.0
    %5023 = vmatpush1.msra.mxu0 0.0
    %5024 = vmatprep.subr.mxu0 0.0
    %5025 = vmatpush1.msra.mxu0 0.0
    %5026 = vmatprep.subr.mxu0 0.0
    %5027 = vmatpush1.msra.mxu0 0.0
    %5028 = vmatprep.subr.mxu0 0.0
    %5029 = vmatpush1.msra.mxu0 0.0
    %5030 = vmatprep.subr.mxu0 0.0
    %5031 = vmatpush1.msra.mxu0 0.0
    %5032 = vmatprep.subr.mxu0 0.0
    %5033 = vmatpush1.msra.mxu0 0.0
    %5034 = vmatprep.subr.mxu0 0.0
    %5035 = vmatpush1.msra.mxu0 0.0
    %5036 = vmatprep.subr.mxu0 0.0
    %5037 = vmatpush1.msra.mxu0 0.0
    %5038 = vmatprep.subr.mxu0 0.0
    %5039 = vmatpush1.msra.mxu0 0.0
    %5040 = vmatprep.mubr.f32.mxu0 0.0
    %5041 = vmatmul.mubr.f32.gmra.mrb[0].mxu0 %v4904
    %v5042 = vpop.f32.mrb[0].mxu0
    %v5043 = vadd.f32 0.0, %v5042
    %v5044 = vpop.f32.mrb[0].mxu0
    %5045 = vdwg.mxu0
    %5046 = vmatprep.subr.mxu0 0.0
    %5047 = vmatpush1.msra.mxu0 %v3690
    %5048 = vmatprep.subr.mxu0 0.0
    %5049 = vmatpush1.msra.mxu0 %v3691
    %5050 = vmatprep.subr.mxu0 0.0
    %5051 = vmatpush1.msra.mxu0 %v3692
    %5052 = vmatprep.subr.mxu0 0.0
    %5053 = vmatpush1.msra.mxu0 %v3693
    %5054 = vmatprep.subr.mxu0 0.0
    %5055 = vmatpush1.msra.mxu0 0.0
    %5056 = vmatprep.subr.mxu0 0.0
    %5057 = vmatpush1.msra.mxu0 0.0
    %5058 = vmatprep.subr.mxu0 0.0
    %5059 = vmatpush1.msra.mxu0 0.0
    %5060 = vmatprep.subr.mxu0 0.0
    %5061 = vmatpush1.msra.mxu0 0.0
    %5062 = vmatprep.subr.mxu0 0.0
    %5063 = vmatpush1.msra.mxu0 0.0
    %5064 = vmatprep.subr.mxu0 0.0
    %5065 = vmatpush1.msra.mxu0 0.0
    %5066 = vmatprep.subr.mxu0 0.0
    %5067 = vmatpush1.msra.mxu0 0.0
    %5068 = vmatprep.subr.mxu0 0.0
    %5069 = vmatpush1.msra.mxu0 0.0
    %5070 = vmatprep.subr.mxu0 0.0
    %5071 = vmatpush1.msra.mxu0 0.0
    %5072 = vmatprep.subr.mxu0 0.0
    %5073 = vmatpush1.msra.mxu0 0.0
    %5074 = vmatprep.subr.mxu0 0.0
    %5075 = vmatpush1.msra.mxu0 0.0
    %5076 = vmatprep.subr.mxu0 0.0
    %5077 = vmatpush1.msra.mxu0 0.0
    %5078 = vmatprep.subr.mxu0 0.0
    %5079 = vmatpush1.msra.mxu0 0.0
    %5080 = vmatprep.subr.mxu0 0.0
    %5081 = vmatpush1.msra.mxu0 0.0
    %5082 = vmatprep.subr.mxu0 0.0
    %5083 = vmatpush1.msra.mxu0 0.0
    %5084 = vmatprep.subr.mxu0 0.0
    %5085 = vmatpush1.msra.mxu0 0.0
    %5086 = vmatprep.subr.mxu0 0.0
    %5087 = vmatpush1.msra.mxu0 0.0
    %5088 = vmatprep.subr.mxu0 0.0
    %5089 = vmatpush1.msra.mxu0 0.0
    %5090 = vmatprep.subr.mxu0 0.0
    %5091 = vmatpush1.msra.mxu0 0.0
    %5092 = vmatprep.subr.mxu0 0.0
    %5093 = vmatpush1.msra.mxu0 0.0
    %5094 = vmatprep.subr.mxu0 0.0
    %5095 = vmatpush1.msra.mxu0 0.0
    %5096 = vmatprep.subr.mxu0 0.0
    %5097 = vmatpush1.msra.mxu0 0.0
    %5098 = vmatprep.subr.mxu0 0.0
    %5099 = vmatpush1.msra.mxu0 0.0
    %5100 = vmatprep.subr.mxu0 0.0
    %5101 = vmatpush1.msra.mxu0 0.0
    %5102 = vmatprep.subr.mxu0 0.0
    %5103 = vmatpush1.msra.mxu0 0.0
    %5104 = vmatprep.subr.mxu0 0.0
    %5105 = vmatpush1.msra.mxu0 0.0
    %5106 = vmatprep.subr.mxu0 0.0
    %5107 = vmatpush1.msra.mxu0 0.0
    %5108 = vmatprep.subr.mxu0 0.0
    %5109 = vmatpush1.msra.mxu0 0.0
    %5110 = vmatprep.mubr.f32.mxu0 0.0
    %5111 = vmatmul.mubr.f32.gmra.mrb[0].mxu0 %v4904
    %v5112 = vpop.f32.mrb[0].mxu0
    %v5113 = vadd.f32 %v3699, %v5112
    %v5114 = vpop.f32.mrb[0].mxu0
    %5115 = vdwg.mxu0
    %v5116 = vld [vmem:[%s2758] sm:$0xff]
    %v5117 = vadd.f32 %v5116, %v4973
    %v5118 = vxor.u32 %v5117, 2147483648
    %v5119 = vmul.f32 %v5118, 1.442695
    %v5120 = vpow.pop %v5119
    %v5121 = vadd.f32 %v5120, 1.0
    %v5122 = vrcp.pop %v5121
    %v5123 = vmul.f32 1.0, %v5122
    %v5124 = vld [vmem:[%s2767] sm:$0xff]
    %v5125 = vadd.f32 %v5124, %v5043
    %v5126 = vxor.u32 %v5125, 2147483648
    %v5127 = vmul.f32 %v5126, 1.442695
    %v5128 = vpow.pop %v5127
    %v5129 = vadd.f32 %v5128, 1.0
    %v5130 = vrcp.pop %v5129
    %v5131 = vmul.f32 1.0, %v5130
    %v5132 = vld [vmem:[%s2776] sm:$0xff]
    %v5133 = vmul.f32 %v5123, %v5113
    %v5134 = vadd.f32 %v5132, %v5133
    %v5135 = vtanh.pop %v5134
    %v5136 = vsub.f32 1.0, %v5131
    %v5137 = vmul.f32 %v5136, %v5135
    %v5138 = vmul.f32 %v5131, %v4902
    %v5139 = vadd.f32 %v5137, %v5138
    %5140 = vst.msk [vmem:[#allocation7] sm:$0xff] %vm1043, %v5139
    %5141 = vst.msk [vmem:[%s2786] sm:$0xff] %vm1043, %v5139
    %v5142 = vld [vmem:[#allocation7] sm:$0xff]
    %v5144 = vsel %vm1043, %v5142, 0
    %5146 = vmatprep.subr.mxu0 0.0
    %5147 = vmatpush1.msra.mxu0 %v3682
    %5148 = vmatprep.subr.mxu0 0.0
    %5149 = vmatpush1.msra.mxu0 %v3683
    %5150 = vmatprep.subr.mxu0 0.0
    %5151 = vmatpush1.msra.mxu0 %v3684
    %5152 = vmatprep.subr.mxu0 0.0
    %5153 = vmatpush1.msra.mxu0 %v3685
    %5154 = vmatprep.subr.mxu0 0.0
    %5155 = vmatpush1.msra.mxu0 0.0
    %5156 = vmatprep.subr.mxu0 0.0
    %5157 = vmatpush1.msra.mxu0 0.0
    %5158 = vmatprep.subr.mxu0 0.0
    %5159 = vmatpush1.msra.mxu0 0.0
    %5160 = vmatprep.subr.mxu0 0.0
    %5161 = vmatpush1.msra.mxu0 0.0
    %5162 = vmatprep.subr.mxu0 0.0
    %5163 = vmatpush1.msra.mxu0 0.0
    %5164 = vmatprep.subr.mxu0 0.0
    %5165 = vmatpush1.msra.mxu0 0.0
    %5166 = vmatprep.subr.mxu0 0.0
    %5167 = vmatpush1.msra.mxu0 0.0
    %5168 = vmatprep.subr.mxu0 0.0
    %5169 = vmatpush1.msra.mxu0 0.0
    %5170 = vmatprep.subr.mxu0 0.0
    %5171 = vmatpush1.msra.mxu0 0.0
    %5172 = vmatprep.subr.mxu0 0.0
    %5173 = vmatpush1.msra.mxu0 0.0
    %5174 = vmatprep.subr.mxu0 0.0
    %5175 = vmatpush1.msra.mxu0 0.0
    %5176 = vmatprep.subr.mxu0 0.0
    %5177 = vmatpush1.msra.mxu0 0.0
    %5178 = vmatprep.subr.mxu0 0.0
    %5179 = vmatpush1.msra.mxu0 0.0
    %5180 = vmatprep.subr.mxu0 0.0
    %5181 = vmatpush1.msra.mxu0 0.0
    %5182 = vmatprep.subr.mxu0 0.0
    %5183 = vmatpush1.msra.mxu0 0.0
    %5184 = vmatprep.subr.mxu0 0.0
    %5185 = vmatpush1.msra.mxu0 0.0
    %5186 = vmatprep.subr.mxu0 0.0
    %5187 = vmatpush1.msra.mxu0 0.0
    %5188 = vmatprep.subr.mxu0 0.0
    %5189 = vmatpush1.msra.mxu0 0.0
    %5190 = vmatprep.subr.mxu0 0.0
    %5191 = vmatpush1.msra.mxu0 0.0
    %5192 = vmatprep.subr.mxu0 0.0
    %5193 = vmatpush1.msra.mxu0 0.0
    %5194 = vmatprep.subr.mxu0 0.0
    %5195 = vmatpush1.msra.mxu0 0.0
    %5196 = vmatprep.subr.mxu0 0.0
    %5197 = vmatpush1.msra.mxu0 0.0
    %5198 = vmatprep.subr.mxu0 0.0
    %5199 = vmatpush1.msra.mxu0 0.0
    %5200 = vmatprep.subr.mxu0 0.0
    %5201 = vmatpush1.msra.mxu0 0.0
    %5202 = vmatprep.subr.mxu0 0.0
    %5203 = vmatpush1.msra.mxu0 0.0
    %5204 = vmatprep.subr.mxu0 0.0
    %5205 = vmatpush1.msra.mxu0 0.0
    %5206 = vmatprep.subr.mxu0 0.0
    %5207 = vmatpush1.msra.mxu0 0.0
    %5208 = vmatprep.subr.mxu0 0.0
    %5209 = vmatpush1.msra.mxu0 0.0
    %5210 = vmatprep.mubr.f32.mxu0 0.0
    %5211 = vmatmul.mubr.f32.gmra.mrb[0].mxu0 %v5144
    %v5212 = vpop.f32.mrb[0].mxu0
    %v5213 = vadd.f32 0.0, %v5212
    %v5214 = vpop.f32.mrb[0].mxu0
    %5215 = vdwg.mxu0
    %5216 = vmatprep.subr.mxu0 0.0
    %5217 = vmatpush1.msra.mxu0 %v3686
    %5218 = vmatprep.subr.mxu0 0.0
    %5219 = vmatpush1.msra.mxu0 %v3687
    %5220 = vmatprep.subr.mxu0 0.0
    %5221 = vmatpush1.msra.mxu0 %v3688
    %5222 = vmatprep.subr.mxu0 0.0
    %5223 = vmatpush1.msra.mxu0 %v3689
    %5224 = vmatprep.subr.mxu0 0.0
    %5225 = vmatpush1.msra.mxu0 0.0
    %5226 = vmatprep.subr.mxu0 0.0
    %5227 = vmatpush1.msra.mxu0 0.0
    %5228 = vmatprep.subr.mxu0 0.0
    %5229 = vmatpush1.msra.mxu0 0.0
    %5230 = vmatprep.subr.mxu0 0.0
    %5231 = vmatpush1.msra.mxu0 0.0
    %5232 = vmatprep.subr.mxu0 0.0
    %5233 = vmatpush1.msra.mxu0 0.0
    %5234 = vmatprep.subr.mxu0 0.0
    %5235 = vmatpush1.msra.mxu0 0.0
    %5236 = vmatprep.subr.mxu0 0.0
    %5237 = vmatpush1.msra.mxu0 0.0
    %5238 = vmatprep.subr.mxu0 0.0
    %5239 = vmatpush1.msra.mxu0 0.0
    %5240 = vmatprep.subr.mxu0 0.0
    %5241 = vmatpush1.msra.mxu0 0.0
    %5242 = vmatprep.subr.mxu0 0.0
    %5243 = vmatpush1.msra.mxu0 0.0
    %5244 = vmatprep.subr.mxu0 0.0
    %5245 = vmatpush1.msra.mxu0 0.0
    %5246 = vmatprep.subr.mxu0 0.0
    %5247 = vmatpush1.msra.mxu0 0.0
    %5248 = vmatprep.subr.mxu0 0.0
    %5249 = vmatpush1.msra.mxu0 0.0
    %5250 = vmatprep.subr.mxu0 0.0
    %5251 = vmatpush1.msra.mxu0 0.0
    %5252 = vmatprep.subr.mxu0 0.0
    %5253 = vmatpush1.msra.mxu0 0.0
    %5254 = vmatprep.subr.mxu0 0.0
    %5255 = vmatpush1.msra.mxu0 0.0
    %5256 = vmatprep.subr.mxu0 0.0
    %5257 = vmatpush1.msra.mxu0 0.0
    %5258 = vmatprep.subr.mxu0 0.0
    %5259 = vmatpush1.msra.mxu0 0.0
    %5260 = vmatprep.subr.mxu0 0.0
    %5261 = vmatpush1.msra.mxu0 0.0
    %5262 = vmatprep.subr.mxu0 0.0
    %5263 = vmatpush1.msra.mxu0 0.0
    %5264 = vmatprep.subr.mxu0 0.0
    %5265 = vmatpush1.msra.mxu0 0.0
    %5266 = vmatprep.subr.mxu0 0.0
    %5267 = vmatpush1.msra.mxu0 0.0
    %5268 = vmatprep.subr.mxu0 0.0
    %5269 = vmatpush1.msra.mxu0 0.0
    %5270 = vmatprep.subr.mxu0 0.0
    %5271 = vmatpush1.msra.mxu0 0.0
    %5272 = vmatprep.subr.mxu0 0.0
    %5273 = vmatpush1.msra.mxu0 0.0
    %5274 = vmatprep.subr.mxu0 0.0
    %5275 = vmatpush1.msra.mxu0 0.0
    %5276 = vmatprep.subr.mxu0 0.0
    %5277 = vmatpush1.msra.mxu0 0.0
    %5278 = vmatprep.subr.mxu0 0.0
    %5279 = vmatpush1.msra.mxu0 0.0
    %5280 = vmatprep.mubr.f32.mxu0 0.0
    %5281 = vmatmul.mubr.f32.gmra.mrb[0].mxu0 %v5144
    %v5282 = vpop.f32.mrb[0].mxu0
    %v5283 = vadd.f32 0.0, %v5282
    %v5284 = vpop.f32.mrb[0].mxu0
    %5285 = vdwg.mxu0
    %5286 = vmatprep.subr.mxu0 0.0
    %5287 = vmatpush1.msra.mxu0 %v3690
    %5288 = vmatprep.subr.mxu0 0.0
    %5289 = vmatpush1.msra.mxu0 %v3691
    %5290 = vmatprep.subr.mxu0 0.0
    %5291 = vmatpush1.msra.mxu0 %v3692
    %5292 = vmatprep.subr.mxu0 0.0
    %5293 = vmatpush1.msra.mxu0 %v3693
    %5294 = vmatprep.subr.mxu0 0.0
    %5295 = vmatpush1.msra.mxu0 0.0
    %5296 = vmatprep.subr.mxu0 0.0
    %5297 = vmatpush1.msra.mxu0 0.0
    %5298 = vmatprep.subr.mxu0 0.0
    %5299 = vmatpush1.msra.mxu0 0.0
    %5300 = vmatprep.subr.mxu0 0.0
    %5301 = vmatpush1.msra.mxu0 0.0
    %5302 = vmatprep.subr.mxu0 0.0
    %5303 = vmatpush1.msra.mxu0 0.0
    %5304 = vmatprep.subr.mxu0 0.0
    %5305 = vmatpush1.msra.mxu0 0.0
    %5306 = vmatprep.subr.mxu0 0.0
    %5307 = vmatpush1.msra.mxu0 0.0
    %5308 = vmatprep.subr.mxu0 0.0
    %5309 = vmatpush1.msra.mxu0 0.0
    %5310 = vmatprep.subr.mxu0 0.0
    %5311 = vmatpush1.msra.mxu0 0.0
    %5312 = vmatprep.subr.mxu0 0.0
    %5313 = vmatpush1.msra.mxu0 0.0
    %5314 = vmatprep.subr.mxu0 0.0
    %5315 = vmatpush1.msra.mxu0 0.0
    %5316 = vmatprep.subr.mxu0 0.0
    %5317 = vmatpush1.msra.mxu0 0.0
    %5318 = vmatprep.subr.mxu0 0.0
    %5319 = vmatpush1.msra.mxu0 0.0
    %5320 = vmatprep.subr.mxu0 0.0
    %5321 = vmatpush1.msra.mxu0 0.0
    %5322 = vmatprep.subr.mxu0 0.0
    %5323 = vmatpush1.msra.mxu0 0.0
    %5324 = vmatprep.subr.mxu0 0.0
    %5325 = vmatpush1.msra.mxu0 0.0
    %5326 = vmatprep.subr.mxu0 0.0
    %5327 = vmatpush1.msra.mxu0 0.0
    %5328 = vmatprep.subr.mxu0 0.0
    %5329 = vmatpush1.msra.mxu0 0.0
    %5330 = vmatprep.subr.mxu0 0.0
    %5331 = vmatpush1.msra.mxu0 0.0
    %5332 = vmatprep.subr.mxu0 0.0
    %5333 = vmatpush1.msra.mxu0 0.0
    %5334 = vmatprep.subr.mxu0 0.0
    %5335 = vmatpush1.msra.mxu0 0.0
    %5336 = vmatprep.subr.mxu0 0.0
    %5337 = vmatpush1.msra.mxu0 0.0
    %5338 = vmatprep.subr.mxu0 0.0
    %5339 = vmatpush1.msra.mxu0 0.0
    %5340 = vmatprep.subr.mxu0 0.0
    %5341 = vmatpush1.msra.mxu0 0.0
    %5342 = vmatprep.subr.mxu0 0.0
    %5343 = vmatpush1.msra.mxu0 0.0
    %5344 = vmatprep.subr.mxu0 0.0
    %5345 = vmatpush1.msra.mxu0 0.0
    %5346 = vmatprep.subr.mxu0 0.0
    %5347 = vmatpush1.msra.mxu0 0.0
    %5348 = vmatprep.subr.mxu0 0.0
    %5349 = vmatpush1.msra.mxu0 0.0
    %5350 = vmatprep.mubr.f32.mxu0 0.0
    %5351 = vmatmul.mubr.f32.gmra.mrb[0].mxu0 %v5144
    %v5352 = vpop.f32.mrb[0].mxu0
    %v5353 = vadd.f32 %v3699, %v5352
    %v5354 = vpop.f32.mrb[0].mxu0
    %5355 = vdwg.mxu0
    %v5356 = vld [vmem:[%s3002] sm:$0xff]
    %v5357 = vadd.f32 %v5356, %v5213
    %v5358 = vxor.u32 %v5357, 2147483648
    %v5359 = vmul.f32 %v5358, 1.442695
    %v5360 = vpow.pop %v5359
    %v5361 = vadd.f32 %v5360, 1.0
    %v5362 = vrcp.pop %v5361
    %v5363 = vmul.f32 1.0, %v5362
    %v5364 = vld [vmem:[%s3011] sm:$0xff]
    %v5365 = vadd.f32 %v5364, %v5283
    %v5366 = vxor.u32 %v5365, 2147483648
    %v5367 = vmul.f32 %v5366, 1.442695
    %v5368 = vpow.pop %v5367
    %v5369 = vadd.f32 %v5368, 1.0
    %v5370 = vrcp.pop %v5369
    %v5371 = vmul.f32 1.0, %v5370
    %v5372 = vld [vmem:[%s3020] sm:$0xff]
    %v5373 = vmul.f32 %v5363, %v5353
    %v5374 = vadd.f32 %v5372, %v5373
    %v5375 = vtanh.pop %v5374
    %v5376 = vsub.f32 1.0, %v5371
    %v5377 = vmul.f32 %v5376, %v5375
    %v5378 = vmul.f32 %v5371, %v5142
    %v5379 = vadd.f32 %v5377, %v5378
    %5380 = vst.msk [vmem:[#allocation7] sm:$0xff] %vm1043, %v5379
    %5381 = vst.msk [vmem:[%s3030] sm:$0xff] %vm1043, %v5379
    %v5382 = vld [vmem:[#allocation7] sm:$0xff]
    %v5384 = vsel %vm1043, %v5382, 0
    %5386 = vmatprep.subr.mxu0 0.0
    %5387 = vmatpush1.msra.mxu0 %v3682
    %5388 = vmatprep.subr.mxu0 0.0
    %5389 = vmatpush1.msra.mxu0 %v3683
    %5390 = vmatprep.subr.mxu0 0.0
    %5391 = vmatpush1.msra.mxu0 %v3684
    %5392 = vmatprep.subr.mxu0 0.0
    %5393 = vmatpush1.msra.mxu0 %v3685
    %5394 = vmatprep.subr.mxu0 0.0
    %5395 = vmatpush1.msra.mxu0 0.0
    %5396 = vmatprep.subr.mxu0 0.0
    %5397 = vmatpush1.msra.mxu0 0.0
    %5398 = vmatprep.subr.mxu0 0.0
    %5399 = vmatpush1.msra.mxu0 0.0
    %5400 = vmatprep.subr.mxu0 0.0
    %5401 = vmatpush1.msra.mxu0 0.0
    %5402 = vmatprep.subr.mxu0 0.0
    %5403 = vmatpush1.msra.mxu0 0.0
    %5404 = vmatprep.subr.mxu0 0.0
    %5405 = vmatpush1.msra.mxu0 0.0
    %5406 = vmatprep.subr.mxu0 0.0
    %5407 = vmatpush1.msra.mxu0 0.0
    %5408 = vmatprep.subr.mxu0 0.0
    %5409 = vmatpush1.msra.mxu0 0.0
    %5410 = vmatprep.subr.mxu0 0.0
    %5411 = vmatpush1.msra.mxu0 0.0
    %5412 = vmatprep.subr.mxu0 0.0
    %5413 = vmatpush1.msra.mxu0 0.0
    %5414 = vmatprep.subr.mxu0 0.0
    %5415 = vmatpush1.msra.mxu0 0.0
    %5416 = vmatprep.subr.mxu0 0.0
    %5417 = vmatpush1.msra.mxu0 0.0
    %5418 = vmatprep.subr.mxu0 0.0
    %5419 = vmatpush1.msra.mxu0 0.0
    %5420 = vmatprep.subr.mxu0 0.0
    %5421 = vmatpush1.msra.mxu0 0.0
    %5422 = vmatprep.subr.mxu0 0.0
    %5423 = vmatpush1.msra.mxu0 0.0
    %5424 = vmatprep.subr.mxu0 0.0
    %5425 = vmatpush1.msra.mxu0 0.0
    %5426 = vmatprep.subr.mxu0 0.0
    %5427 = vmatpush1.msra.mxu0 0.0
    %5428 = vmatprep.subr.mxu0 0.0
    %5429 = vmatpush1.msra.mxu0 0.0
    %5430 = vmatprep.subr.mxu0 0.0
    %5431 = vmatpush1.msra.mxu0 0.0
    %5432 = vmatprep.subr.mxu0 0.0
    %5433 = vmatpush1.msra.mxu0 0.0
    %5434 = vmatprep.subr.mxu0 0.0
    %5435 = vmatpush1.msra.mxu0 0.0
    %5436 = vmatprep.subr.mxu0 0.0
    %5437 = vmatpush1.msra.mxu0 0.0
    %5438 = vmatprep.subr.mxu0 0.0
    %5439 = vmatpush1.msra.mxu0 0.0
    %5440 = vmatprep.subr.mxu0 0.0
    %5441 = vmatpush1.msra.mxu0 0.0
    %5442 = vmatprep.subr.mxu0 0.0
    %5443 = vmatpush1.msra.mxu0 0.0
    %5444 = vmatprep.subr.mxu0 0.0
    %5445 = vmatpush1.msra.mxu0 0.0
    %5446 = vmatprep.subr.mxu0 0.0
    %5447 = vmatpush1.msra.mxu0 0.0
    %5448 = vmatprep.subr.mxu0 0.0
    %5449 = vmatpush1.msra.mxu0 0.0
    %5450 = vmatprep.mubr.f32.mxu0 0.0
    %5451 = vmatmul.mubr.f32.gmra.mrb[0].mxu0 %v5384
    %v5452 = vpop.f32.mrb[0].mxu0
    %v5453 = vadd.f32 0.0, %v5452
    %v5454 = vpop.f32.mrb[0].mxu0
    %5455 = vdwg.mxu0
    %5456 = vmatprep.subr.mxu0 0.0
    %5457 = vmatpush1.msra.mxu0 %v3686
    %5458 = vmatprep.subr.mxu0 0.0
    %5459 = vmatpush1.msra.mxu0 %v3687
    %5460 = vmatprep.subr.mxu0 0.0
    %5461 = vmatpush1.msra.mxu0 %v3688
    %5462 = vmatprep.subr.mxu0 0.0
    %5463 = vmatpush1.msra.mxu0 %v3689
    %5464 = vmatprep.subr.mxu0 0.0
    %5465 = vmatpush1.msra.mxu0 0.0
    %5466 = vmatprep.subr.mxu0 0.0
    %5467 = vmatpush1.msra.mxu0 0.0
    %5468 = vmatprep.subr.mxu0 0.0
    %5469 = vmatpush1.msra.mxu0 0.0
    %5470 = vmatprep.subr.mxu0 0.0
    %5471 = vmatpush1.msra.mxu0 0.0
    %5472 = vmatprep.subr.mxu0 0.0
    %5473 = vmatpush1.msra.mxu0 0.0
    %5474 = vmatprep.subr.mxu0 0.0
    %5475 = vmatpush1.msra.mxu0 0.0
    %5476 = vmatprep.subr.mxu0 0.0
    %5477 = vmatpush1.msra.mxu0 0.0
    %5478 = vmatprep.subr.mxu0 0.0
    %5479 = vmatpush1.msra.mxu0 0.0
    %5480 = vmatprep.subr.mxu0 0.0
    %5481 = vmatpush1.msra.mxu0 0.0
    %5482 = vmatprep.subr.mxu0 0.0
    %5483 = vmatpush1.msra.mxu0 0.0
    %5484 = vmatprep.subr.mxu0 0.0
    %5485 = vmatpush1.msra.mxu0 0.0
    %5486 = vmatprep.subr.mxu0 0.0
    %5487 = vmatpush1.msra.mxu0 0.0
    %5488 = vmatprep.subr.mxu0 0.0
    %5489 = vmatpush1.msra.mxu0 0.0
    %5490 = vmatprep.subr.mxu0 0.0
    %5491 = vmatpush1.msra.mxu0 0.0
    %5492 = vmatprep.subr.mxu0 0.0
    %5493 = vmatpush1.msra.mxu0 0.0
    %5494 = vmatprep.subr.mxu0 0.0
    %5495 = vmatpush1.msra.mxu0 0.0
    %5496 = vmatprep.subr.mxu0 0.0
    %5497 = vmatpush1.msra.mxu0 0.0
    %5498 = vmatprep.subr.mxu0 0.0
    %5499 = vmatpush1.msra.mxu0 0.0
    %5500 = vmatprep.subr.mxu0 0.0
    %5501 = vmatpush1.msra.mxu0 0.0
    %5502 = vmatprep.subr.mxu0 0.0
    %5503 = vmatpush1.msra.mxu0 0.0
    %5504 = vmatprep.subr.mxu0 0.0
    %5505 = vmatpush1.msra.mxu0 0.0
    %5506 = vmatprep.subr.mxu0 0.0
    %5507 = vmatpush1.msra.mxu0 0.0
    %5508 = vmatprep.subr.mxu0 0.0
    %5509 = vmatpush1.msra.mxu0 0.0
    %5510 = vmatprep.subr.mxu0 0.0
    %5511 = vmatpush1.msra.mxu0 0.0
    %5512 = vmatprep.subr.mxu0 0.0
    %5513 = vmatpush1.msra.mxu0 0.0
    %5514 = vmatprep.subr.mxu0 0.0
    %5515 = vmatpush1.msra.mxu0 0.0
    %5516 = vmatprep.subr.mxu0 0.0
    %5517 = vmatpush1.msra.mxu0 0.0
    %5518 = vmatprep.subr.mxu0 0.0
    %5519 = vmatpush1.msra.mxu0 0.0
    %5520 = vmatprep.mubr.f32.mxu0 0.0
    %5521 = vmatmul.mubr.f32.gmra.mrb[0].mxu0 %v5384
    %v5522 = vpop.f32.mrb[0].mxu0
    %v5523 = vadd.f32 0.0, %v5522
    %v5524 = vpop.f32.mrb[0].mxu0
    %5525 = vdwg.mxu0
    %5526 = vmatprep.subr.mxu0 0.0
    %5527 = vmatpush1.msra.mxu0 %v3690
    %5528 = vmatprep.subr.mxu0 0.0
    %5529 = vmatpush1.msra.mxu0 %v3691
    %5530 = vmatprep.subr.mxu0 0.0
    %5531 = vmatpush1.msra.mxu0 %v3692
    %5532 = vmatprep.subr.mxu0 0.0
    %5533 = vmatpush1.msra.mxu0 %v3693
    %5534 = vmatprep.subr.mxu0 0.0
    %5535 = vmatpush1.msra.mxu0 0.0
    %5536 = vmatprep.subr.mxu0 0.0
    %5537 = vmatpush1.msra.mxu0 0.0
    %5538 = vmatprep.subr.mxu0 0.0
    %5539 = vmatpush1.msra.mxu0 0.0
    %5540 = vmatprep.subr.mxu0 0.0
    %5541 = vmatpush1.msra.mxu0 0.0
    %5542 = vmatprep.subr.mxu0 0.0
    %5543 = vmatpush1.msra.mxu0 0.0
    %5544 = vmatprep.subr.mxu0 0.0
    %5545 = vmatpush1.msra.mxu0 0.0
    %5546 = vmatprep.subr.mxu0 0.0
    %5547 = vmatpush1.msra.mxu0 0.0
    %5548 = vmatprep.subr.mxu0 0.0
    %5549 = vmatpush1.msra.mxu0 0.0
    %5550 = vmatprep.subr.mxu0 0.0
    %5551 = vmatpush1.msra.mxu0 0.0
    %5552 = vmatprep.subr.mxu0 0.0
    %5553 = vmatpush1.msra.mxu0 0.0
    %5554 = vmatprep.subr.mxu0 0.0
    %5555 = vmatpush1.msra.mxu0 0.0
    %5556 = vmatprep.subr.mxu0 0.0
    %5557 = vmatpush1.msra.mxu0 0.0
    %5558 = vmatprep.subr.mxu0 0.0
    %5559 = vmatpush1.msra.mxu0 0.0
    %5560 = vmatprep.subr.mxu0 0.0
    %5561 = vmatpush1.msra.mxu0 0.0
    %5562 = vmatprep.subr.mxu0 0.0
    %5563 = vmatpush1.msra.mxu0 0.0
    %5564 = vmatprep.subr.mxu0 0.0
    %5565 = vmatpush1.msra.mxu0 0.0
    %5566 = vmatprep.subr.mxu0 0.0
    %5567 = vmatpush1.msra.mxu0 0.0
    %5568 = vmatprep.subr.mxu0 0.0
    %5569 = vmatpush1.msra.mxu0 0.0
    %5570 = vmatprep.subr.mxu0 0.0
    %5571 = vmatpush1.msra.mxu0 0.0
    %5572 = vmatprep.subr.mxu0 0.0
    %5573 = vmatpush1.msra.mxu0 0.0
    %5574 = vmatprep.subr.mxu0 0.0
    %5575 = vmatpush1.msra.mxu0 0.0
    %5576 = vmatprep.subr.mxu0 0.0
    %5577 = vmatpush1.msra.mxu0 0.0
    %5578 = vmatprep.subr.mxu0 0.0
    %5579 = vmatpush1.msra.mxu0 0.0
    %5580 = vmatprep.subr.mxu0 0.0
    %5581 = vmatpush1.msra.mxu0 0.0
    %5582 = vmatprep.subr.mxu0 0.0
    %5583 = vmatpush1.msra.mxu0 0.0
    %5584 = vmatprep.subr.mxu0 0.0
    %5585 = vmatpush1.msra.mxu0 0.0
    %5586 = vmatprep.subr.mxu0 0.0
    %5587 = vmatpush1.msra.mxu0 0.0
    %5588 = vmatprep.subr.mxu0 0.0
    %5589 = vmatpush1.msra.mxu0 0.0
    %5590 = vmatprep.mubr.f32.mxu0 0.0
    %5591 = vmatmul.mubr.f32.gmra.mrb[0].mxu0 %v5384
    %v5592 = vpop.f32.mrb[0].mxu0
    %v5593 = vadd.f32 %v3699, %v5592
    %v5594 = vpop.f32.mrb[0].mxu0
    %5595 = vdwg.mxu0
    %v5596 = vld [vmem:[%s3246] sm:$0xff]
    %v5597 = vadd.f32 %v5596, %v5453
    %v5598 = vxor.u32 %v5597, 2147483648
    %v5599 = vmul.f32 %v5598, 1.442695
    %v5600 = vpow.pop %v5599
    %v5601 = vadd.f32 %v5600, 1.0
    %v5602 = vrcp.pop %v5601
    %v5603 = vmul.f32 1.0, %v5602
    %v5604 = vld [vmem:[%s3255] sm:$0xff]
    %v5605 = vadd.f32 %v5604, %v5523
    %v5606 = vxor.u32 %v5605, 2147483648
    %v5607 = vmul.f32 %v5606, 1.442695
    %v5608 = vpow.pop %v5607
    %v5609 = vadd.f32 %v5608, 1.0
    %v5610 = vrcp.pop %v5609
    %v5611 = vmul.f32 1.0, %v5610
    %v5612 = vld [vmem:[%s3264] sm:$0xff]
    %v5613 = vmul.f32 %v5603, %v5593
    %v5614 = vadd.f32 %v5612, %v5613
    %v5615 = vtanh.pop %v5614
    %v5616 = vsub.f32 1.0, %v5611
    %v5617 = vmul.f32 %v5616, %v5615
    %v5618 = vmul.f32 %v5611, %v5382
    %v5619 = vadd.f32 %v5617, %v5618
    %5620 = vst.msk [vmem:[#allocation7] sm:$0xff] %vm1043, %v5619
    %5621 = vst.msk [vmem:[%s3274] sm:$0xff] %vm1043, %v5619
    %v5622 = vld [vmem:[#allocation7] sm:$0xff]
    %s5623 = scalar_lea.vmem [#allocation8], 8
    %5624 = vst.msk [vmem:[%s5623] sm:$0xff] %vm1043, %v5622
    %v5625 = vld [vmem:[#allocation6] sm:$0xff]
    %v5626 = vld [vmem:[#allocation6 + $0x8] sm:$0xff]
    %v5627 = vld [vmem:[#allocation6 + $0x10] sm:$0xff]
    %v5628 = vld [vmem:[#allocation6 + $0x18] sm:$0xff]
    %v5629 = vld [vmem:[#allocation6 + $0x20] sm:$0xff]
    %v5630 = vld [vmem:[#allocation6 + $0x28] sm:$0xff]
    %v5631 = vld [vmem:[#allocation6 + $0x30] sm:$0xff]
    %v5632 = vld [vmem:[#allocation6 + $0x38] sm:$0xff]
    %v5633 = vld [vmem:[%s55] sm:$0xff]
    %v5634 = vld [vmem:[%s55 + $0x8] sm:$0xff]
    %v5635 = vld [vmem:[%s55 + $0x10] sm:$0xff]
    %v5636 = vld [vmem:[%s55 + $0x18] sm:$0xff]
    %v5637 = vld [vmem:[%s67] sm:$0x1]
    %v5639 = vlaneseq
    %v5640 = vshrl.u32 %v5639, 7
    %v5641 = vsub.s32 0, %v5640
    %v5642 = vrot.slane %v5637, %v5641
    %v5645 = vsel %vm1043, %v5625, 0
    %v5648 = vsel %vm1043, %v5626, 0
    %v5651 = vsel %vm1043, %v5627, 0
    %v5654 = vsel %vm1043, %v5628, 0
    %v5657 = vsel %vm1043, %v5629, 0
    %v5660 = vsel %vm1043, %v5630, 0
    %v5663 = vsel %vm1043, %v5631, 0
    %v5666 = vsel %vm1043, %v5632, 0
    %5668 = vmatprep.subr.mxu0 0.0
    %5669 = vmatpush1.msra.mxu0 %v5633
    %5670 = vmatprep.subr.mxu0 0.0
    %5671 = vmatpush1.msra.mxu0 %v5634
    %5672 = vmatprep.subr.mxu0 0.0
    %5673 = vmatpush1.msra.mxu0 %v5635
    %5674 = vmatprep.subr.mxu0 0.0
    %5675 = vmatpush1.msra.mxu0 %v5636
    %5676 = vmatprep.subr.mxu0 0.0
    %5677 = vmatpush1.msra.mxu0 0.0
    %5678 = vmatprep.subr.mxu0 0.0
    %5679 = vmatpush1.msra.mxu0 0.0
    %5680 = vmatprep.subr.mxu0 0.0
    %5681 = vmatpush1.msra.mxu0 0.0
    %5682 = vmatprep.subr.mxu0 0.0
    %5683 = vmatpush1.msra.mxu0 0.0
    %5684 = vmatprep.subr.mxu0 0.0
    %5685 = vmatpush1.msra.mxu0 0.0
    %5686 = vmatprep.subr.mxu0 0.0
    %5687 = vmatpush1.msra.mxu0 0.0
    %5688 = vmatprep.subr.mxu0 0.0
    %5689 = vmatpush1.msra.mxu0 0.0
    %5690 = vmatprep.subr.mxu0 0.0
    %5691 = vmatpush1.msra.mxu0 0.0
    %5692 = vmatprep.subr.mxu0 0.0
    %5693 = vmatpush1.msra.mxu0 0.0
    %5694 = vmatprep.subr.mxu0 0.0
    %5695 = vmatpush1.msra.mxu0 0.0
    %5696 = vmatprep.subr.mxu0 0.0
    %5697 = vmatpush1.msra.mxu0 0.0
    %5698 = vmatprep.subr.mxu0 0.0
    %5699 = vmatpush1.msra.mxu0 0.0
    %5700 = vmatprep.subr.mxu0 0.0
    %5701 = vmatpush1.msra.mxu0 0.0
    %5702 = vmatprep.subr.mxu0 0.0
    %5703 = vmatpush1.msra.mxu0 0.0
    %5704 = vmatprep.subr.mxu0 0.0
    %5705 = vmatpush1.msra.mxu0 0.0
    %5706 = vmatprep.subr.mxu0 0.0
    %5707 = vmatpush1.msra.mxu0 0.0
    %5708 = vmatprep.subr.mxu0 0.0
    %5709 = vmatpush1.msra.mxu0 0.0
    %5710 = vmatprep.subr.mxu0 0.0
    %5711 = vmatpush1.msra.mxu0 0.0
    %5712 = vmatprep.subr.mxu0 0.0
    %5713 = vmatpush1.msra.mxu0 0.0
    %5714 = vmatprep.subr.mxu0 0.0
    %5715 = vmatpush1.msra.mxu0 0.0
    %5716 = vmatprep.subr.mxu0 0.0
    %5717 = vmatpush1.msra.mxu0 0.0
    %5718 = vmatprep.subr.mxu0 0.0
    %5719 = vmatpush1.msra.mxu0 0.0
    %5720 = vmatprep.subr.mxu0 0.0
    %5721 = vmatpush1.msra.mxu0 0.0
    %5722 = vmatprep.subr.mxu0 0.0
    %5723 = vmatpush1.msra.mxu0 0.0
    %5724 = vmatprep.subr.mxu0 0.0
    %5725 = vmatpush1.msra.mxu0 0.0
    %5726 = vmatprep.subr.mxu0 0.0
    %5727 = vmatpush1.msra.mxu0 0.0
    %5728 = vmatprep.subr.mxu0 0.0
    %5729 = vmatpush1.msra.mxu0 0.0
    %5730 = vmatprep.subr.mxu0 0.0
    %5731 = vmatpush1.msra.mxu0 0.0
    %5732 = vmatprep.mubr.f32.mxu0 0.0
    %5733 = vmatmul.mubr.f32.gmra.mrb[0].mxu0 %v5645
    %v5734 = vpop.f32.mrb[0].mxu0
    %v5735 = vadd.f32 %v5642, %v5734
    %v5736 = vpop.f32.mrb[0].mxu0
    %5737 = vmatprep.mubr.f32.mxu0 0.0
    %5738 = vmatmul.mubr.f32.gmra.mrb[0].mxu0 %v5648
    %v5739 = vpop.f32.mrb[0].mxu0
    %v5740 = vadd.f32 %v5642, %v5739
    %v5741 = vpop.f32.mrb[0].mxu0
    %5742 = vmatprep.mubr.f32.mxu0 0.0
    %5743 = vmatmul.mubr.f32.gmra.mrb[0].mxu0 %v5651
    %v5744 = vpop.f32.mrb[0].mxu0
    %v5745 = vadd.f32 %v5642, %v5744
    %v5746 = vpop.f32.mrb[0].mxu0
    %5747 = vmatprep.mubr.f32.mxu0 0.0
    %5748 = vmatmul.mubr.f32.gmra.mrb[0].mxu0 %v5654
    %v5749 = vpop.f32.mrb[0].mxu0
    %v5750 = vadd.f32 %v5642, %v5749
    %v5751 = vpop.f32.mrb[0].mxu0
    %5752 = vmatprep.mubr.f32.mxu0 0.0
    %5753 = vmatmul.mubr.f32.gmra.mrb[0].mxu0 %v5657
    %v5754 = vpop.f32.mrb[0].mxu0
    %v5755 = vadd.f32 %v5642, %v5754
    %v5756 = vpop.f32.mrb[0].mxu0
    %5757 = vmatprep.mubr.f32.mxu0 0.0
    %5758 = vmatmul.mubr.f32.gmra.mrb[0].mxu0 %v5660
    %v5759 = vpop.f32.mrb[0].mxu0
    %v5760 = vadd.f32 %v5642, %v5759
    %v5761 = vpop.f32.mrb[0].mxu0
    %5762 = vmatprep.mubr.f32.mxu0 0.0
    %5763 = vmatmul.mubr.f32.gmra.mrb[0].mxu0 %v5663
    %v5764 = vpop.f32.mrb[0].mxu0
    %v5765 = vadd.f32 %v5642, %v5764
    %v5766 = vpop.f32.mrb[0].mxu0
    %5767 = vmatprep.mubr.f32.mxu0 0.0
    %5768 = vmatmul.mubr.f32.gmra.mrb[0].mxu0 %v5666
    %v5769 = vpop.f32.mrb[0].mxu0
    %v5770 = vadd.f32 %v5642, %v5769
    %v5771 = vpop.f32.mrb[0].mxu0
    %5772 = vdwg.mxu0
    %5773 = vst.msk [vmem:[#allocation3] sm:$0xff] %vm1043, %v5735
    %5774 = vst.msk [vmem:[#allocation3 + $0x8] sm:$0xff] %vm1043, %v5740
    %5775 = vst.msk [vmem:[#allocation3 + $0x10] sm:$0xff] %vm1043, %v5745
    %5776 = vst.msk [vmem:[#allocation3 + $0x18] sm:$0xff] %vm1043, %v5750
    %5777 = vst.msk [vmem:[#allocation3 + $0x20] sm:$0xff] %vm1043, %v5755
    %5778 = vst.msk [vmem:[#allocation3 + $0x28] sm:$0xff] %vm1043, %v5760
    %5779 = vst.msk [vmem:[#allocation3 + $0x30] sm:$0xff] %vm1043, %v5765
    %5780 = vst.msk [vmem:[#allocation3 + $0x38] sm:$0xff] %vm1043, %v5770
    %v5781 = vld [vmem:[%s57] sm:$0xff]
    %v5782 = vld [vmem:[%s57 + $0x8] sm:$0xff]
    %v5783 = vld [vmem:[%s57 + $0x10] sm:$0xff]
    %v5784 = vld [vmem:[%s57 + $0x18] sm:$0xff]
    %v5785 = vld [vmem:[%s69] sm:$0x1]
    %v5787 = vlaneseq
    %v5788 = vshrl.u32 %v5787, 7
    %v5789 = vsub.s32 0, %v5788
    %v5790 = vrot.slane %v5785, %v5789
    %5792 = vmatprep.subr.mxu0 0.0
    %5793 = vmatpush1.msra.mxu0 %v5781
    %5794 = vmatprep.subr.mxu0 0.0
    %5795 = vmatpush1.msra.mxu0 %v5782
    %5796 = vmatprep.subr.mxu0 0.0
    %5797 = vmatpush1.msra.mxu0 %v5783
    %5798 = vmatprep.subr.mxu0 0.0
    %5799 = vmatpush1.msra.mxu0 %v5784
    %5800 = vmatprep.subr.mxu0 0.0
    %5801 = vmatpush1.msra.mxu0 0.0
    %5802 = vmatprep.subr.mxu0 0.0
    %5803 = vmatpush1.msra.mxu0 0.0
    %5804 = vmatprep.subr.mxu0 0.0
    %5805 = vmatpush1.msra.mxu0 0.0
    %5806 = vmatprep.subr.mxu0 0.0
    %5807 = vmatpush1.msra.mxu0 0.0
    %5808 = vmatprep.subr.mxu0 0.0
    %5809 = vmatpush1.msra.mxu0 0.0
    %5810 = vmatprep.subr.mxu0 0.0
    %5811 = vmatpush1.msra.mxu0 0.0
    %5812 = vmatprep.subr.mxu0 0.0
    %5813 = vmatpush1.msra.mxu0 0.0
    %5814 = vmatprep.subr.mxu0 0.0
    %5815 = vmatpush1.msra.mxu0 0.0
    %5816 = vmatprep.subr.mxu0 0.0
    %5817 = vmatpush1.msra.mxu0 0.0
    %5818 = vmatprep.subr.mxu0 0.0
    %5819 = vmatpush1.msra.mxu0 0.0
    %5820 = vmatprep.subr.mxu0 0.0
    %5821 = vmatpush1.msra.mxu0 0.0
    %5822 = vmatprep.subr.mxu0 0.0
    %5823 = vmatpush1.msra.mxu0 0.0
    %5824 = vmatprep.subr.mxu0 0.0
    %5825 = vmatpush1.msra.mxu0 0.0
    %5826 = vmatprep.subr.mxu0 0.0
    %5827 = vmatpush1.msra.mxu0 0.0
    %5828 = vmatprep.subr.mxu0 0.0
    %5829 = vmatpush1.msra.mxu0 0.0
    %5830 = vmatprep.subr.mxu0 0.0
    %5831 = vmatpush1.msra.mxu0 0.0
    %5832 = vmatprep.subr.mxu0 0.0
    %5833 = vmatpush1.msra.mxu0 0.0
    %5834 = vmatprep.subr.mxu0 0.0
    %5835 = vmatpush1.msra.mxu0 0.0
    %5836 = vmatprep.subr.mxu0 0.0
    %5837 = vmatpush1.msra.mxu0 0.0
    %5838 = vmatprep.subr.mxu0 0.0
    %5839 = vmatpush1.msra.mxu0 0.0
    %5840 = vmatprep.subr.mxu0 0.0
    %5841 = vmatpush1.msra.mxu0 0.0
    %5842 = vmatprep.subr.mxu0 0.0
    %5843 = vmatpush1.msra.mxu0 0.0
    %5844 = vmatprep.subr.mxu0 0.0
    %5845 = vmatpush1.msra.mxu0 0.0
    %5846 = vmatprep.subr.mxu0 0.0
    %5847 = vmatpush1.msra.mxu0 0.0
    %5848 = vmatprep.subr.mxu0 0.0
    %5849 = vmatpush1.msra.mxu0 0.0
    %5850 = vmatprep.subr.mxu0 0.0
    %5851 = vmatpush1.msra.mxu0 0.0
    %5852 = vmatprep.subr.mxu0 0.0
    %5853 = vmatpush1.msra.mxu0 0.0
    %5854 = vmatprep.subr.mxu0 0.0
    %5855 = vmatpush1.msra.mxu0 0.0
    %5856 = vmatprep.mubr.f32.mxu0 0.0
    %5857 = vmatmul.mubr.f32.gmra.mrb[0].mxu0 %v5645
    %v5858 = vpop.f32.mrb[0].mxu0
    %v5859 = vadd.f32 %v5790, %v5858
    %v5860 = vpop.f32.mrb[0].mxu0
    %5861 = vmatprep.mubr.f32.mxu0 0.0
    %5862 = vmatmul.mubr.f32.gmra.mrb[0].mxu0 %v5648
    %v5863 = vpop.f32.mrb[0].mxu0
    %v5864 = vadd.f32 %v5790, %v5863
    %v5865 = vpop.f32.mrb[0].mxu0
    %5866 = vmatprep.mubr.f32.mxu0 0.0
    %5867 = vmatmul.mubr.f32.gmra.mrb[0].mxu0 %v5651
    %v5868 = vpop.f32.mrb[0].mxu0
    %v5869 = vadd.f32 %v5790, %v5868
    %v5870 = vpop.f32.mrb[0].mxu0
    %5871 = vmatprep.mubr.f32.mxu0 0.0
    %5872 = vmatmul.mubr.f32.gmra.mrb[0].mxu0 %v5654
    %v5873 = vpop.f32.mrb[0].mxu0
    %v5874 = vadd.f32 %v5790, %v5873
    %v5875 = vpop.f32.mrb[0].mxu0
    %5876 = vmatprep.mubr.f32.mxu0 0.0
    %5877 = vmatmul.mubr.f32.gmra.mrb[0].mxu0 %v5657
    %v5878 = vpop.f32.mrb[0].mxu0
    %v5879 = vadd.f32 %v5790, %v5878
    %v5880 = vpop.f32.mrb[0].mxu0
    %5881 = vmatprep.mubr.f32.mxu0 0.0
    %5882 = vmatmul.mubr.f32.gmra.mrb[0].mxu0 %v5660
    %v5883 = vpop.f32.mrb[0].mxu0
    %v5884 = vadd.f32 %v5790, %v5883
    %v5885 = vpop.f32.mrb[0].mxu0
    %5886 = vmatprep.mubr.f32.mxu0 0.0
    %5887 = vmatmul.mubr.f32.gmra.mrb[0].mxu0 %v5663
    %v5888 = vpop.f32.mrb[0].mxu0
    %v5889 = vadd.f32 %v5790, %v5888
    %v5890 = vpop.f32.mrb[0].mxu0
    %5891 = vmatprep.mubr.f32.mxu0 0.0
    %5892 = vmatmul.mubr.f32.gmra.mrb[0].mxu0 %v5666
    %v5893 = vpop.f32.mrb[0].mxu0
    %v5894 = vadd.f32 %v5790, %v5893
    %v5895 = vpop.f32.mrb[0].mxu0
    %5896 = vdwg.mxu0
    %5897 = vst.msk [vmem:[#allocation4] sm:$0xff] %vm1043, %v5859
    %5898 = vst.msk [vmem:[#allocation4 + $0x8] sm:$0xff] %vm1043, %v5864
    %5899 = vst.msk [vmem:[#allocation4 + $0x10] sm:$0xff] %vm1043, %v5869
    %5900 = vst.msk [vmem:[#allocation4 + $0x18] sm:$0xff] %vm1043, %v5874
    %5901 = vst.msk [vmem:[#allocation4 + $0x20] sm:$0xff] %vm1043, %v5879
    %5902 = vst.msk [vmem:[#allocation4 + $0x28] sm:$0xff] %vm1043, %v5884
    %5903 = vst.msk [vmem:[#allocation4 + $0x30] sm:$0xff] %vm1043, %v5889
    %5904 = vst.msk [vmem:[#allocation4 + $0x38] sm:$0xff] %vm1043, %v5894
    %v5905 = vld [vmem:[%s59] sm:$0xff]
    %v5906 = vld [vmem:[%s59 + $0x8] sm:$0xff]
    %v5907 = vld [vmem:[%s59 + $0x10] sm:$0xff]
    %v5908 = vld [vmem:[%s59 + $0x18] sm:$0xff]
    %v5909 = vld [vmem:[%s71] sm:$0x1]
    %v5911 = vlaneseq
    %v5912 = vshrl.u32 %v5911, 7
    %v5913 = vsub.s32 0, %v5912
    %v5914 = vrot.slane %v5909, %v5913
    %5916 = vmatprep.subr.mxu0 0.0
    %5917 = vmatpush1.msra.mxu0 %v5905
    %5918 = vmatprep.subr.mxu0 0.0
    %5919 = vmatpush1.msra.mxu0 %v5906
    %5920 = vmatprep.subr.mxu0 0.0
    %5921 = vmatpush1.msra.mxu0 %v5907
    %5922 = vmatprep.subr.mxu0 0.0
    %5923 = vmatpush1.msra.mxu0 %v5908
    %5924 = vmatprep.subr.mxu0 0.0
    %5925 = vmatpush1.msra.mxu0 0.0
    %5926 = vmatprep.subr.mxu0 0.0
    %5927 = vmatpush1.msra.mxu0 0.0
    %5928 = vmatprep.subr.mxu0 0.0
    %5929 = vmatpush1.msra.mxu0 0.0
    %5930 = vmatprep.subr.mxu0 0.0
    %5931 = vmatpush1.msra.mxu0 0.0
    %5932 = vmatprep.subr.mxu0 0.0
    %5933 = vmatpush1.msra.mxu0 0.0
    %5934 = vmatprep.subr.mxu0 0.0
    %5935 = vmatpush1.msra.mxu0 0.0
    %5936 = vmatprep.subr.mxu0 0.0
    %5937 = vmatpush1.msra.mxu0 0.0
    %5938 = vmatprep.subr.mxu0 0.0
    %5939 = vmatpush1.msra.mxu0 0.0
    %5940 = vmatprep.subr.mxu0 0.0
    %5941 = vmatpush1.msra.mxu0 0.0
    %5942 = vmatprep.subr.mxu0 0.0
    %5943 = vmatpush1.msra.mxu0 0.0
    %5944 = vmatprep.subr.mxu0 0.0
    %5945 = vmatpush1.msra.mxu0 0.0
    %5946 = vmatprep.subr.mxu0 0.0
    %5947 = vmatpush1.msra.mxu0 0.0
    %5948 = vmatprep.subr.mxu0 0.0
    %5949 = vmatpush1.msra.mxu0 0.0
    %5950 = vmatprep.subr.mxu0 0.0
    %5951 = vmatpush1.msra.mxu0 0.0
    %5952 = vmatprep.subr.mxu0 0.0
    %5953 = vmatpush1.msra.mxu0 0.0
    %5954 = vmatprep.subr.mxu0 0.0
    %5955 = vmatpush1.msra.mxu0 0.0
    %5956 = vmatprep.subr.mxu0 0.0
    %5957 = vmatpush1.msra.mxu0 0.0
    %5958 = vmatprep.subr.mxu0 0.0
    %5959 = vmatpush1.msra.mxu0 0.0
    %5960 = vmatprep.subr.mxu0 0.0
    %5961 = vmatpush1.msra.mxu0 0.0
    %5962 = vmatprep.subr.mxu0 0.0
    %5963 = vmatpush1.msra.mxu0 0.0
    %5964 = vmatprep.subr.mxu0 0.0
    %5965 = vmatpush1.msra.mxu0 0.0
    %5966 = vmatprep.subr.mxu0 0.0
    %5967 = vmatpush1.msra.mxu0 0.0
    %5968 = vmatprep.subr.mxu0 0.0
    %5969 = vmatpush1.msra.mxu0 0.0
    %5970 = vmatprep.subr.mxu0 0.0
    %5971 = vmatpush1.msra.mxu0 0.0
    %5972 = vmatprep.subr.mxu0 0.0
    %5973 = vmatpush1.msra.mxu0 0.0
    %5974 = vmatprep.subr.mxu0 0.0
    %5975 = vmatpush1.msra.mxu0 0.0
    %5976 = vmatprep.subr.mxu0 0.0
    %5977 = vmatpush1.msra.mxu0 0.0
    %5978 = vmatprep.subr.mxu0 0.0
    %5979 = vmatpush1.msra.mxu0 0.0
    %5980 = vmatprep.mubr.f32.mxu0 0.0
    %5981 = vmatmul.mubr.f32.gmra.mrb[0].mxu0 %v5645
    %v5982 = vpop.f32.mrb[0].mxu0
    %v5983 = vadd.f32 %v5914, %v5982
    %v5984 = vpop.f32.mrb[0].mxu0
    %5985 = vmatprep.mubr.f32.mxu0 0.0
    %5986 = vmatmul.mubr.f32.gmra.mrb[0].mxu0 %v5648
    %v5987 = vpop.f32.mrb[0].mxu0
    %v5988 = vadd.f32 %v5914, %v5987
    %v5989 = vpop.f32.mrb[0].mxu0
    %5990 = vmatprep.mubr.f32.mxu0 0.0
    %5991 = vmatmul.mubr.f32.gmra.mrb[0].mxu0 %v5651
    %v5992 = vpop.f32.mrb[0].mxu0
    %v5993 = vadd.f32 %v5914, %v5992
    %v5994 = vpop.f32.mrb[0].mxu0
    %5995 = vmatprep.mubr.f32.mxu0 0.0
    %5996 = vmatmul.mubr.f32.gmra.mrb[0].mxu0 %v5654
    %v5997 = vpop.f32.mrb[0].mxu0
    %v5998 = vadd.f32 %v5914, %v5997
    %v5999 = vpop.f32.mrb[0].mxu0
    %6000 = vmatprep.mubr.f32.mxu0 0.0
    %6001 = vmatmul.mubr.f32.gmra.mrb[0].mxu0 %v5657
    %v6002 = vpop.f32.mrb[0].mxu0
    %v6003 = vadd.f32 %v5914, %v6002
    %v6004 = vpop.f32.mrb[0].mxu0
    %6005 = vmatprep.mubr.f32.mxu0 0.0
    %6006 = vmatmul.mubr.f32.gmra.mrb[0].mxu0 %v5660
    %v6007 = vpop.f32.mrb[0].mxu0
    %v6008 = vadd.f32 %v5914, %v6007
    %v6009 = vpop.f32.mrb[0].mxu0
    %6010 = vmatprep.mubr.f32.mxu0 0.0
    %6011 = vmatmul.mubr.f32.gmra.mrb[0].mxu0 %v5663
    %v6012 = vpop.f32.mrb[0].mxu0
    %v6013 = vadd.f32 %v5914, %v6012
    %v6014 = vpop.f32.mrb[0].mxu0
    %6015 = vmatprep.mubr.f32.mxu0 0.0
    %6016 = vmatmul.mubr.f32.gmra.mrb[0].mxu0 %v5666
    %v6017 = vpop.f32.mrb[0].mxu0
    %v6018 = vadd.f32 %v5914, %v6017
    %v6019 = vpop.f32.mrb[0].mxu0
    %6020 = vdwg.mxu0
    %6021 = vst.msk [vmem:[#allocation5] sm:$0xff] %vm1043, %v5983
    %6022 = vst.msk [vmem:[#allocation5 + $0x8] sm:$0xff] %vm1043, %v5988
    %6023 = vst.msk [vmem:[#allocation5 + $0x10] sm:$0xff] %vm1043, %v5993
    %6024 = vst.msk [vmem:[#allocation5 + $0x18] sm:$0xff] %vm1043, %v5998
    %6025 = vst.msk [vmem:[#allocation5 + $0x20] sm:$0xff] %vm1043, %v6003
    %6026 = vst.msk [vmem:[#allocation5 + $0x28] sm:$0xff] %vm1043, %v6008
    %6027 = vst.msk [vmem:[#allocation5 + $0x30] sm:$0xff] %vm1043, %v6013
    %6028 = vst.msk [vmem:[#allocation5 + $0x38] sm:$0xff] %vm1043, %v6018
    %v6029 = vld [vmem:[%s61] sm:$0xff]
    %v6030 = vld [vmem:[%s61 + $0x8] sm:$0xff]
    %v6031 = vld [vmem:[%s61 + $0x10] sm:$0xff]
    %v6032 = vld [vmem:[%s61 + $0x18] sm:$0xff]
    %v6033 = vld [vmem:[%s63] sm:$0xff]
    %v6034 = vld [vmem:[%s63 + $0x8] sm:$0xff]
    %v6035 = vld [vmem:[%s63 + $0x10] sm:$0xff]
    %v6036 = vld [vmem:[%s63 + $0x18] sm:$0xff]
    %v6037 = vld [vmem:[%s65] sm:$0xff]
    %v6038 = vld [vmem:[%s65 + $0x8] sm:$0xff]
    %v6039 = vld [vmem:[%s65 + $0x10] sm:$0xff]
    %v6040 = vld [vmem:[%s65 + $0x18] sm:$0xff]
    %v6041 = vld [vmem:[%s73] sm:$0x1]
    %v6043 = vlaneseq
    %v6044 = vshrl.u32 %v6043, 7
    %v6045 = vsub.s32 0, %v6044
    %v6046 = vrot.slane %v6041, %v6045
    %6048 = vst.msk [vmem:[#allocation7] sm:$0xff] %vm1043, 0.0
    %v6049 = vld [vmem:[#allocation7] sm:$0xff]
    %v6051 = vsel %vm1043, %v6049, 0
    %6053 = vmatprep.subr.mxu0 0.0
    %6054 = vmatpush1.msra.mxu0 %v6029
    %6055 = vmatprep.subr.mxu0 0.0
    %6056 = vmatpush1.msra.mxu0 %v6030
    %6057 = vmatprep.subr.mxu0 0.0
    %6058 = vmatpush1.msra.mxu0 %v6031
    %6059 = vmatprep.subr.mxu0 0.0
    %6060 = vmatpush1.msra.mxu0 %v6032
    %6061 = vmatprep.subr.mxu0 0.0
    %6062 = vmatpush1.msra.mxu0 0.0
    %6063 = vmatprep.subr.mxu0 0.0
    %6064 = vmatpush1.msra.mxu0 0.0
    %6065 = vmatprep.subr.mxu0 0.0
    %6066 = vmatpush1.msra.mxu0 0.0
    %6067 = vmatprep.subr.mxu0 0.0
    %6068 = vmatpush1.msra.mxu0 0.0
    %6069 = vmatprep.subr.mxu0 0.0
    %6070 = vmatpush1.msra.mxu0 0.0
    %6071 = vmatprep.subr.mxu0 0.0
    %6072 = vmatpush1.msra.mxu0 0.0
    %6073 = vmatprep.subr.mxu0 0.0
    %6074 = vmatpush1.msra.mxu0 0.0
    %6075 = vmatprep.subr.mxu0 0.0
    %6076 = vmatpush1.msra.mxu0 0.0
    %6077 = vmatprep.subr.mxu0 0.0
    %6078 = vmatpush1.msra.mxu0 0.0
    %6079 = vmatprep.subr.mxu0 0.0
    %6080 = vmatpush1.msra.mxu0 0.0
    %6081 = vmatprep.subr.mxu0 0.0
    %6082 = vmatpush1.msra.mxu0 0.0
    %6083 = vmatprep.subr.mxu0 0.0
    %6084 = vmatpush1.msra.mxu0 0.0
    %6085 = vmatprep.subr.mxu0 0.0
    %6086 = vmatpush1.msra.mxu0 0.0
    %6087 = vmatprep.subr.mxu0 0.0
    %6088 = vmatpush1.msra.mxu0 0.0
    %6089 = vmatprep.subr.mxu0 0.0
    %6090 = vmatpush1.msra.mxu0 0.0
    %6091 = vmatprep.subr.mxu0 0.0
    %6092 = vmatpush1.msra.mxu0 0.0
    %6093 = vmatprep.subr.mxu0 0.0
    %6094 = vmatpush1.msra.mxu0 0.0
    %6095 = vmatprep.subr.mxu0 0.0
    %6096 = vmatpush1.msra.mxu0 0.0
    %6097 = vmatprep.subr.mxu0 0.0
    %6098 = vmatpush1.msra.mxu0 0.0
    %6099 = vmatprep.subr.mxu0 0.0
    %6100 = vmatpush1.msra.mxu0 0.0
    %6101 = vmatprep.subr.mxu0 0.0
    %6102 = vmatpush1.msra.mxu0 0.0
    %6103 = vmatprep.subr.mxu0 0.0
    %6104 = vmatpush1.msra.mxu0 0.0
    %6105 = vmatprep.subr.mxu0 0.0
    %6106 = vmatpush1.msra.mxu0 0.0
    %6107 = vmatprep.subr.mxu0 0.0
    %6108 = vmatpush1.msra.mxu0 0.0
    %6109 = vmatprep.subr.mxu0 0.0
    %6110 = vmatpush1.msra.mxu0 0.0
    %6111 = vmatprep.subr.mxu0 0.0
    %6112 = vmatpush1.msra.mxu0 0.0
    %6113 = vmatprep.subr.mxu0 0.0
    %6114 = vmatpush1.msra.mxu0 0.0
    %6115 = vmatprep.subr.mxu0 0.0
    %6116 = vmatpush1.msra.mxu0 0.0
    %6117 = vmatprep.mubr.f32.mxu0 0.0
    %6118 = vmatmul.mubr.f32.gmra.mrb[0].mxu0 %v6051
    %v6119 = vpop.f32.mrb[0].mxu0
    %v6120 = vadd.f32 0.0, %v6119
    %v6121 = vpop.f32.mrb[0].mxu0
    %6122 = vdwg.mxu0
    %6123 = vmatprep.subr.mxu0 0.0
    %6124 = vmatpush1.msra.mxu0 %v6033
    %6125 = vmatprep.subr.mxu0 0.0
    %6126 = vmatpush1.msra.mxu0 %v6034
    %6127 = vmatprep.subr.mxu0 0.0
    %6128 = vmatpush1.msra.mxu0 %v6035
    %6129 = vmatprep.subr.mxu0 0.0
    %6130 = vmatpush1.msra.mxu0 %v6036
    %6131 = vmatprep.subr.mxu0 0.0
    %6132 = vmatpush1.msra.mxu0 0.0
    %6133 = vmatprep.subr.mxu0 0.0
    %6134 = vmatpush1.msra.mxu0 0.0
    %6135 = vmatprep.subr.mxu0 0.0
    %6136 = vmatpush1.msra.mxu0 0.0
    %6137 = vmatprep.subr.mxu0 0.0
    %6138 = vmatpush1.msra.mxu0 0.0
    %6139 = vmatprep.subr.mxu0 0.0
    %6140 = vmatpush1.msra.mxu0 0.0
    %6141 = vmatprep.subr.mxu0 0.0
    %6142 = vmatpush1.msra.mxu0 0.0
    %6143 = vmatprep.subr.mxu0 0.0
    %6144 = vmatpush1.msra.mxu0 0.0
    %6145 = vmatprep.subr.mxu0 0.0
    %6146 = vmatpush1.msra.mxu0 0.0
    %6147 = vmatprep.subr.mxu0 0.0
    %6148 = vmatpush1.msra.mxu0 0.0
    %6149 = vmatprep.subr.mxu0 0.0
    %6150 = vmatpush1.msra.mxu0 0.0
    %6151 = vmatprep.subr.mxu0 0.0
    %6152 = vmatpush1.msra.mxu0 0.0
    %6153 = vmatprep.subr.mxu0 0.0
    %6154 = vmatpush1.msra.mxu0 0.0
    %6155 = vmatprep.subr.mxu0 0.0
    %6156 = vmatpush1.msra.mxu0 0.0
    %6157 = vmatprep.subr.mxu0 0.0
    %6158 = vmatpush1.msra.mxu0 0.0
    %6159 = vmatprep.subr.mxu0 0.0
    %6160 = vmatpush1.msra.mxu0 0.0
    %6161 = vmatprep.subr.mxu0 0.0
    %6162 = vmatpush1.msra.mxu0 0.0
    %6163 = vmatprep.subr.mxu0 0.0
    %6164 = vmatpush1.msra.mxu0 0.0
    %6165 = vmatprep.subr.mxu0 0.0
    %6166 = vmatpush1.msra.mxu0 0.0
    %6167 = vmatprep.subr.mxu0 0.0
    %6168 = vmatpush1.msra.mxu0 0.0
    %6169 = vmatprep.subr.mxu0 0.0
    %6170 = vmatpush1.msra.mxu0 0.0
    %6171 = vmatprep.subr.mxu0 0.0
    %6172 = vmatpush1.msra.mxu0 0.0
    %6173 = vmatprep.subr.mxu0 0.0
    %6174 = vmatpush1.msra.mxu0 0.0
    %6175 = vmatprep.subr.mxu0 0.0
    %6176 = vmatpush1.msra.mxu0 0.0
    %6177 = vmatprep.subr.mxu0 0.0
    %6178 = vmatpush1.msra.mxu0 0.0
    %6179 = vmatprep.subr.mxu0 0.0
    %6180 = vmatpush1.msra.mxu0 0.0
    %6181 = vmatprep.subr.mxu0 0.0
    %6182 = vmatpush1.msra.mxu0 0.0
    %6183 = vmatprep.subr.mxu0 0.0
    %6184 = vmatpush1.msra.mxu0 0.0
    %6185 = vmatprep.subr.mxu0 0.0
    %6186 = vmatpush1.msra.mxu0 0.0
    %6187 = vmatprep.mubr.f32.mxu0 0.0
    %6188 = vmatmul.mubr.f32.gmra.mrb[0].mxu0 %v6051
    %v6189 = vpop.f32.mrb[0].mxu0
    %v6190 = vadd.f32 0.0, %v6189
    %v6191 = vpop.f32.mrb[0].mxu0
    %6192 = vdwg.mxu0
    %6193 = vmatprep.subr.mxu0 0.0
    %6194 = vmatpush1.msra.mxu0 %v6037
    %6195 = vmatprep.subr.mxu0 0.0
    %6196 = vmatpush1.msra.mxu0 %v6038
    %6197 = vmatprep.subr.mxu0 0.0
    %6198 = vmatpush1.msra.mxu0 %v6039
    %6199 = vmatprep.subr.mxu0 0.0
    %6200 = vmatpush1.msra.mxu0 %v6040
    %6201 = vmatprep.subr.mxu0 0.0
    %6202 = vmatpush1.msra.mxu0 0.0
    %6203 = vmatprep.subr.mxu0 0.0
    %6204 = vmatpush1.msra.mxu0 0.0
    %6205 = vmatprep.subr.mxu0 0.0
    %6206 = vmatpush1.msra.mxu0 0.0
    %6207 = vmatprep.subr.mxu0 0.0
    %6208 = vmatpush1.msra.mxu0 0.0
    %6209 = vmatprep.subr.mxu0 0.0
    %6210 = vmatpush1.msra.mxu0 0.0
    %6211 = vmatprep.subr.mxu0 0.0
    %6212 = vmatpush1.msra.mxu0 0.0
    %6213 = vmatprep.subr.mxu0 0.0
    %6214 = vmatpush1.msra.mxu0 0.0
    %6215 = vmatprep.subr.mxu0 0.0
    %6216 = vmatpush1.msra.mxu0 0.0
    %6217 = vmatprep.subr.mxu0 0.0
    %6218 = vmatpush1.msra.mxu0 0.0
    %6219 = vmatprep.subr.mxu0 0.0
    %6220 = vmatpush1.msra.mxu0 0.0
    %6221 = vmatprep.subr.mxu0 0.0
    %6222 = vmatpush1.msra.mxu0 0.0
    %6223 = vmatprep.subr.mxu0 0.0
    %6224 = vmatpush1.msra.mxu0 0.0
    %6225 = vmatprep.subr.mxu0 0.0
    %6226 = vmatpush1.msra.mxu0 0.0
    %6227 = vmatprep.subr.mxu0 0.0
    %6228 = vmatpush1.msra.mxu0 0.0
    %6229 = vmatprep.subr.mxu0 0.0
    %6230 = vmatpush1.msra.mxu0 0.0
    %6231 = vmatprep.subr.mxu0 0.0
    %6232 = vmatpush1.msra.mxu0 0.0
    %6233 = vmatprep.subr.mxu0 0.0
    %6234 = vmatpush1.msra.mxu0 0.0
    %6235 = vmatprep.subr.mxu0 0.0
    %6236 = vmatpush1.msra.mxu0 0.0
    %6237 = vmatprep.subr.mxu0 0.0
    %6238 = vmatpush1.msra.mxu0 0.0
    %6239 = vmatprep.subr.mxu0 0.0
    %6240 = vmatpush1.msra.mxu0 0.0
    %6241 = vmatprep.subr.mxu0 0.0
    %6242 = vmatpush1.msra.mxu0 0.0
    %6243 = vmatprep.subr.mxu0 0.0
    %6244 = vmatpush1.msra.mxu0 0.0
    %6245 = vmatprep.subr.mxu0 0.0
    %6246 = vmatpush1.msra.mxu0 0.0
    %6247 = vmatprep.subr.mxu0 0.0
    %6248 = vmatpush1.msra.mxu0 0.0
    %6249 = vmatprep.subr.mxu0 0.0
    %6250 = vmatpush1.msra.mxu0 0.0
    %6251 = vmatprep.subr.mxu0 0.0
    %6252 = vmatpush1.msra.mxu0 0.0
    %6253 = vmatprep.subr.mxu0 0.0
    %6254 = vmatpush1.msra.mxu0 0.0
    %6255 = vmatprep.subr.mxu0 0.0
    %6256 = vmatpush1.msra.mxu0 0.0
    %6257 = vmatprep.mubr.f32.mxu0 0.0
    %6258 = vmatmul.mubr.f32.gmra.mrb[0].mxu0 %v6051
    %v6259 = vpop.f32.mrb[0].mxu0
    %v6260 = vadd.f32 %v6046, %v6259
    %v6261 = vpop.f32.mrb[0].mxu0
    %6262 = vdwg.mxu0
    %v6263 = vld [vmem:[#allocation3] sm:$0xff]
    %v6264 = vadd.f32 %v6263, %v6120
    %v6265 = vxor.u32 %v6264, 2147483648
    %v6266 = vmul.f32 %v6265, 1.442695
    %v6267 = vpow.pop %v6266
    %v6268 = vadd.f32 %v6267, 1.0
    %v6269 = vrcp.pop %v6268
    %v6270 = vmul.f32 1.0, %v6269
    %v6271 = vld [vmem:[#allocation4] sm:$0xff]
    %v6272 = vadd.f32 %v6271, %v6190
    %v6273 = vxor.u32 %v6272, 2147483648
    %v6274 = vmul.f32 %v6273, 1.442695
    %v6275 = vpow.pop %v6274
    %v6276 = vadd.f32 %v6275, 1.0
    %v6277 = vrcp.pop %v6276
    %v6278 = vmul.f32 1.0, %v6277
    %v6279 = vld [vmem:[#allocation5] sm:$0xff]
    %v6280 = vmul.f32 %v6270, %v6260
    %v6281 = vadd.f32 %v6279, %v6280
    %v6282 = vtanh.pop %v6281
    %v6283 = vsub.f32 1.0, %v6278
    %v6284 = vmul.f32 %v6283, %v6282
    %v6285 = vmul.f32 %v6278, %v6049
    %v6286 = vadd.f32 %v6284, %v6285
    %6287 = vst.msk [vmem:[#allocation7] sm:$0xff] %vm1043, %v6286
    %6288 = vst.msk [vmem:[#allocation6] sm:$0xff] %vm1043, %v6286
    %v6289 = vld [vmem:[#allocation7] sm:$0xff]
    %v6291 = vsel %vm1043, %v6289, 0
    %6293 = vmatprep.subr.mxu0 0.0
    %6294 = vmatpush1.msra.mxu0 %v6029
    %6295 = vmatprep.subr.mxu0 0.0
    %6296 = vmatpush1.msra.mxu0 %v6030
    %6297 = vmatprep.subr.mxu0 0.0
    %6298 = vmatpush1.msra.mxu0 %v6031
    %6299 = vmatprep.subr.mxu0 0.0
    %6300 = vmatpush1.msra.mxu0 %v6032
    %6301 = vmatprep.subr.mxu0 0.0
    %6302 = vmatpush1.msra.mxu0 0.0
    %6303 = vmatprep.subr.mxu0 0.0
    %6304 = vmatpush1.msra.mxu0 0.0
    %6305 = vmatprep.subr.mxu0 0.0
    %6306 = vmatpush1.msra.mxu0 0.0
    %6307 = vmatprep.subr.mxu0 0.0
    %6308 = vmatpush1.msra.mxu0 0.0
    %6309 = vmatprep.subr.mxu0 0.0
    %6310 = vmatpush1.msra.mxu0 0.0
    %6311 = vmatprep.subr.mxu0 0.0
    %6312 = vmatpush1.msra.mxu0 0.0
    %6313 = vmatprep.subr.mxu0 0.0
    %6314 = vmatpush1.msra.mxu0 0.0
    %6315 = vmatprep.subr.mxu0 0.0
    %6316 = vmatpush1.msra.mxu0 0.0
    %6317 = vmatprep.subr.mxu0 0.0
    %6318 = vmatpush1.msra.mxu0 0.0
    %6319 = vmatprep.subr.mxu0 0.0
    %6320 = vmatpush1.msra.mxu0 0.0
    %6321 = vmatprep.subr.mxu0 0.0
    %6322 = vmatpush1.msra.mxu0 0.0
    %6323 = vmatprep.subr.mxu0 0.0
    %6324 = vmatpush1.msra.mxu0 0.0
    %6325 = vmatprep.subr.mxu0 0.0
    %6326 = vmatpush1.msra.mxu0 0.0
    %6327 = vmatprep.subr.mxu0 0.0
    %6328 = vmatpush1.msra.mxu0 0.0
    %6329 = vmatprep.subr.mxu0 0.0
    %6330 = vmatpush1.msra.mxu0 0.0
    %6331 = vmatprep.subr.mxu0 0.0
    %6332 = vmatpush1.msra.mxu0 0.0
    %6333 = vmatprep.subr.mxu0 0.0
    %6334 = vmatpush1.msra.mxu0 0.0
    %6335 = vmatprep.subr.mxu0 0.0
    %6336 = vmatpush1.msra.mxu0 0.0
    %6337 = vmatprep.subr.mxu0 0.0
    %6338 = vmatpush1.msra.mxu0 0.0
    %6339 = vmatprep.subr.mxu0 0.0
    %6340 = vmatpush1.msra.mxu0 0.0
    %6341 = vmatprep.subr.mxu0 0.0
    %6342 = vmatpush1.msra.mxu0 0.0
    %6343 = vmatprep.subr.mxu0 0.0
    %6344 = vmatpush1.msra.mxu0 0.0
    %6345 = vmatprep.subr.mxu0 0.0
    %6346 = vmatpush1.msra.mxu0 0.0
    %6347 = vmatprep.subr.mxu0 0.0
    %6348 = vmatpush1.msra.mxu0 0.0
    %6349 = vmatprep.subr.mxu0 0.0
    %6350 = vmatpush1.msra.mxu0 0.0
    %6351 = vmatprep.subr.mxu0 0.0
    %6352 = vmatpush1.msra.mxu0 0.0
    %6353 = vmatprep.subr.mxu0 0.0
    %6354 = vmatpush1.msra.mxu0 0.0
    %6355 = vmatprep.subr.mxu0 0.0
    %6356 = vmatpush1.msra.mxu0 0.0
    %6357 = vmatprep.mubr.f32.mxu0 0.0
    %6358 = vmatmul.mubr.f32.gmra.mrb[0].mxu0 %v6291
    %v6359 = vpop.f32.mrb[0].mxu0
    %v6360 = vadd.f32 0.0, %v6359
    %v6361 = vpop.f32.mrb[0].mxu0
    %6362 = vdwg.mxu0
    %6363 = vmatprep.subr.mxu0 0.0
    %6364 = vmatpush1.msra.mxu0 %v6033
    %6365 = vmatprep.subr.mxu0 0.0
    %6366 = vmatpush1.msra.mxu0 %v6034
    %6367 = vmatprep.subr.mxu0 0.0
    %6368 = vmatpush1.msra.mxu0 %v6035
    %6369 = vmatprep.subr.mxu0 0.0
    %6370 = vmatpush1.msra.mxu0 %v6036
    %6371 = vmatprep.subr.mxu0 0.0
    %6372 = vmatpush1.msra.mxu0 0.0
    %6373 = vmatprep.subr.mxu0 0.0
    %6374 = vmatpush1.msra.mxu0 0.0
    %6375 = vmatprep.subr.mxu0 0.0
    %6376 = vmatpush1.msra.mxu0 0.0
    %6377 = vmatprep.subr.mxu0 0.0
    %6378 = vmatpush1.msra.mxu0 0.0
    %6379 = vmatprep.subr.mxu0 0.0
    %6380 = vmatpush1.msra.mxu0 0.0
    %6381 = vmatprep.subr.mxu0 0.0
    %6382 = vmatpush1.msra.mxu0 0.0
    %6383 = vmatprep.subr.mxu0 0.0
    %6384 = vmatpush1.msra.mxu0 0.0
    %6385 = vmatprep.subr.mxu0 0.0
    %6386 = vmatpush1.msra.mxu0 0.0
    %6387 = vmatprep.subr.mxu0 0.0
    %6388 = vmatpush1.msra.mxu0 0.0
    %6389 = vmatprep.subr.mxu0 0.0
    %6390 = vmatpush1.msra.mxu0 0.0
    %6391 = vmatprep.subr.mxu0 0.0
    %6392 = vmatpush1.msra.mxu0 0.0
    %6393 = vmatprep.subr.mxu0 0.0
    %6394 = vmatpush1.msra.mxu0 0.0
    %6395 = vmatprep.subr.mxu0 0.0
    %6396 = vmatpush1.msra.mxu0 0.0
    %6397 = vmatprep.subr.mxu0 0.0
    %6398 = vmatpush1.msra.mxu0 0.0
    %6399 = vmatprep.subr.mxu0 0.0
    %6400 = vmatpush1.msra.mxu0 0.0
    %6401 = vmatprep.subr.mxu0 0.0
    %6402 = vmatpush1.msra.mxu0 0.0
    %6403 = vmatprep.subr.mxu0 0.0
    %6404 = vmatpush1.msra.mxu0 0.0
    %6405 = vmatprep.subr.mxu0 0.0
    %6406 = vmatpush1.msra.mxu0 0.0
    %6407 = vmatprep.subr.mxu0 0.0
    %6408 = vmatpush1.msra.mxu0 0.0
    %6409 = vmatprep.subr.mxu0 0.0
    %6410 = vmatpush1.msra.mxu0 0.0
    %6411 = vmatprep.subr.mxu0 0.0
    %6412 = vmatpush1.msra.mxu0 0.0
    %6413 = vmatprep.subr.mxu0 0.0
    %6414 = vmatpush1.msra.mxu0 0.0
    %6415 = vmatprep.subr.mxu0 0.0
    %6416 = vmatpush1.msra.mxu0 0.0
    %6417 = vmatprep.subr.mxu0 0.0
    %6418 = vmatpush1.msra.mxu0 0.0
    %6419 = vmatprep.subr.mxu0 0.0
    %6420 = vmatpush1.msra.mxu0 0.0
    %6421 = vmatprep.subr.mxu0 0.0
    %6422 = vmatpush1.msra.mxu0 0.0
    %6423 = vmatprep.subr.mxu0 0.0
    %6424 = vmatpush1.msra.mxu0 0.0
    %6425 = vmatprep.subr.mxu0 0.0
    %6426 = vmatpush1.msra.mxu0 0.0
    %6427 = vmatprep.mubr.f32.mxu0 0.0
    %6428 = vmatmul.mubr.f32.gmra.mrb[0].mxu0 %v6291
    %v6429 = vpop.f32.mrb[0].mxu0
    %v6430 = vadd.f32 0.0, %v6429
    %v6431 = vpop.f32.mrb[0].mxu0
    %6432 = vdwg.mxu0
    %6433 = vmatprep.subr.mxu0 0.0
    %6434 = vmatpush1.msra.mxu0 %v6037
    %6435 = vmatprep.subr.mxu0 0.0
    %6436 = vmatpush1.msra.mxu0 %v6038
    %6437 = vmatprep.subr.mxu0 0.0
    %6438 = vmatpush1.msra.mxu0 %v6039
    %6439 = vmatprep.subr.mxu0 0.0
    %6440 = vmatpush1.msra.mxu0 %v6040
    %6441 = vmatprep.subr.mxu0 0.0
    %6442 = vmatpush1.msra.mxu0 0.0
    %6443 = vmatprep.subr.mxu0 0.0
    %6444 = vmatpush1.msra.mxu0 0.0
    %6445 = vmatprep.subr.mxu0 0.0
    %6446 = vmatpush1.msra.mxu0 0.0
    %6447 = vmatprep.subr.mxu0 0.0
    %6448 = vmatpush1.msra.mxu0 0.0
    %6449 = vmatprep.subr.mxu0 0.0
    %6450 = vmatpush1.msra.mxu0 0.0
    %6451 = vmatprep.subr.mxu0 0.0
    %6452 = vmatpush1.msra.mxu0 0.0
    %6453 = vmatprep.subr.mxu0 0.0
    %6454 = vmatpush1.msra.mxu0 0.0
    %6455 = vmatprep.subr.mxu0 0.0
    %6456 = vmatpush1.msra.mxu0 0.0
    %6457 = vmatprep.subr.mxu0 0.0
    %6458 = vmatpush1.msra.mxu0 0.0
    %6459 = vmatprep.subr.mxu0 0.0
    %6460 = vmatpush1.msra.mxu0 0.0
    %6461 = vmatprep.subr.mxu0 0.0
    %6462 = vmatpush1.msra.mxu0 0.0
    %6463 = vmatprep.subr.mxu0 0.0
    %6464 = vmatpush1.msra.mxu0 0.0
    %6465 = vmatprep.subr.mxu0 0.0
    %6466 = vmatpush1.msra.mxu0 0.0
    %6467 = vmatprep.subr.mxu0 0.0
    %6468 = vmatpush1.msra.mxu0 0.0
    %6469 = vmatprep.subr.mxu0 0.0
    %6470 = vmatpush1.msra.mxu0 0.0
    %6471 = vmatprep.subr.mxu0 0.0
    %6472 = vmatpush1.msra.mxu0 0.0
    %6473 = vmatprep.subr.mxu0 0.0
    %6474 = vmatpush1.msra.mxu0 0.0
    %6475 = vmatprep.subr.mxu0 0.0
    %6476 = vmatpush1.msra.mxu0 0.0
    %6477 = vmatprep.subr.mxu0 0.0
    %6478 = vmatpush1.msra.mxu0 0.0
    %6479 = vmatprep.subr.mxu0 0.0
    %6480 = vmatpush1.msra.mxu0 0.0
    %6481 = vmatprep.subr.mxu0 0.0
    %6482 = vmatpush1.msra.mxu0 0.0
    %6483 = vmatprep.subr.mxu0 0.0
    %6484 = vmatpush1.msra.mxu0 0.0
    %6485 = vmatprep.subr.mxu0 0.0
    %6486 = vmatpush1.msra.mxu0 0.0
    %6487 = vmatprep.subr.mxu0 0.0
    %6488 = vmatpush1.msra.mxu0 0.0
    %6489 = vmatprep.subr.mxu0 0.0
    %6490 = vmatpush1.msra.mxu0 0.0
    %6491 = vmatprep.subr.mxu0 0.0
    %6492 = vmatpush1.msra.mxu0 0.0
    %6493 = vmatprep.subr.mxu0 0.0
    %6494 = vmatpush1.msra.mxu0 0.0
    %6495 = vmatprep.subr.mxu0 0.0
    %6496 = vmatpush1.msra.mxu0 0.0
    %6497 = vmatprep.mubr.f32.mxu0 0.0
    %6498 = vmatmul.mubr.f32.gmra.mrb[0].mxu0 %v6291
    %v6499 = vpop.f32.mrb[0].mxu0
    %v6500 = vadd.f32 %v6046, %v6499
    %v6501 = vpop.f32.mrb[0].mxu0
    %6502 = vdwg.mxu0
    %v6503 = vld [vmem:[%s1782] sm:$0xff]
    %v6504 = vadd.f32 %v6503, %v6360
    %v6505 = vxor.u32 %v6504, 2147483648
    %v6506 = vmul.f32 %v6505, 1.442695
    %v6507 = vpow.pop %v6506
    %v6508 = vadd.f32 %v6507, 1.0
    %v6509 = vrcp.pop %v6508
    %v6510 = vmul.f32 1.0, %v6509
    %v6511 = vld [vmem:[%s1791] sm:$0xff]
    %v6512 = vadd.f32 %v6511, %v6430
    %v6513 = vxor.u32 %v6512, 2147483648
    %v6514 = vmul.f32 %v6513, 1.442695
    %v6515 = vpow.pop %v6514
    %v6516 = vadd.f32 %v6515, 1.0
    %v6517 = vrcp.pop %v6516
    %v6518 = vmul.f32 1.0, %v6517
    %v6519 = vld [vmem:[%s1800] sm:$0xff]
    %v6520 = vmul.f32 %v6510, %v6500
    %v6521 = vadd.f32 %v6519, %v6520
    %v6522 = vtanh.pop %v6521
    %v6523 = vsub.f32 1.0, %v6518
    %v6524 = vmul.f32 %v6523, %v6522
    %v6525 = vmul.f32 %v6518, %v6289
    %v6526 = vadd.f32 %v6524, %v6525
    %6527 = vst.msk [vmem:[#allocation7] sm:$0xff] %vm1043, %v6526
    %6528 = vst.msk [vmem:[%s1810] sm:$0xff] %vm1043, %v6526
    %v6529 = vld [vmem:[#allocation7] sm:$0xff]
    %v6531 = vsel %vm1043, %v6529, 0
    %6533 = vmatprep.subr.mxu0 0.0
    %6534 = vmatpush1.msra.mxu0 %v6029
    %6535 = vmatprep.subr.mxu0 0.0
    %6536 = vmatpush1.msra.mxu0 %v6030
    %6537 = vmatprep.subr.mxu0 0.0
    %6538 = vmatpush1.msra.mxu0 %v6031
    %6539 = vmatprep.subr.mxu0 0.0
    %6540 = vmatpush1.msra.mxu0 %v6032
    %6541 = vmatprep.subr.mxu0 0.0
    %6542 = vmatpush1.msra.mxu0 0.0
    %6543 = vmatprep.subr.mxu0 0.0
    %6544 = vmatpush1.msra.mxu0 0.0
    %6545 = vmatprep.subr.mxu0 0.0
    %6546 = vmatpush1.msra.mxu0 0.0
    %6547 = vmatprep.subr.mxu0 0.0
    %6548 = vmatpush1.msra.mxu0 0.0
    %6549 = vmatprep.subr.mxu0 0.0
    %6550 = vmatpush1.msra.mxu0 0.0
    %6551 = vmatprep.subr.mxu0 0.0
    %6552 = vmatpush1.msra.mxu0 0.0
    %6553 = vmatprep.subr.mxu0 0.0
    %6554 = vmatpush1.msra.mxu0 0.0
    %6555 = vmatprep.subr.mxu0 0.0
    %6556 = vmatpush1.msra.mxu0 0.0
    %6557 = vmatprep.subr.mxu0 0.0
    %6558 = vmatpush1.msra.mxu0 0.0
    %6559 = vmatprep.subr.mxu0 0.0
    %6560 = vmatpush1.msra.mxu0 0.0
    %6561 = vmatprep.subr.mxu0 0.0
    %6562 = vmatpush1.msra.mxu0 0.0
    %6563 = vmatprep.subr.mxu0 0.0
    %6564 = vmatpush1.msra.mxu0 0.0
    %6565 = vmatprep.subr.mxu0 0.0
    %6566 = vmatpush1.msra.mxu0 0.0
    %6567 = vmatprep.subr.mxu0 0.0
    %6568 = vmatpush1.msra.mxu0 0.0
    %6569 = vmatprep.subr.mxu0 0.0
    %6570 = vmatpush1.msra.mxu0 0.0
    %6571 = vmatprep.subr.mxu0 0.0
    %6572 = vmatpush1.msra.mxu0 0.0
    %6573 = vmatprep.subr.mxu0 0.0
    %6574 = vmatpush1.msra.mxu0 0.0
    %6575 = vmatprep.subr.mxu0 0.0
    %6576 = vmatpush1.msra.mxu0 0.0
    %6577 = vmatprep.subr.mxu0 0.0
    %6578 = vmatpush1.msra.mxu0 0.0
    %6579 = vmatprep.subr.mxu0 0.0
    %6580 = vmatpush1.msra.mxu0 0.0
    %6581 = vmatprep.subr.mxu0 0.0
    %6582 = vmatpush1.msra.mxu0 0.0
    %6583 = vmatprep.subr.mxu0 0.0
    %6584 = vmatpush1.msra.mxu0 0.0
    %6585 = vmatprep.subr.mxu0 0.0
    %6586 = vmatpush1.msra.mxu0 0.0
    %6587 = vmatprep.subr.mxu0 0.0
    %6588 = vmatpush1.msra.mxu0 0.0
    %6589 = vmatprep.subr.mxu0 0.0
    %6590 = vmatpush1.msra.mxu0 0.0
    %6591 = vmatprep.subr.mxu0 0.0
    %6592 = vmatpush1.msra.mxu0 0.0
    %6593 = vmatprep.subr.mxu0 0.0
    %6594 = vmatpush1.msra.mxu0 0.0
    %6595 = vmatprep.subr.mxu0 0.0
    %6596 = vmatpush1.msra.mxu0 0.0
    %6597 = vmatprep.mubr.f32.mxu0 0.0
    %6598 = vmatmul.mubr.f32.gmra.mrb[0].mxu0 %v6531
    %v6599 = vpop.f32.mrb[0].mxu0
    %v6600 = vadd.f32 0.0, %v6599
    %v6601 = vpop.f32.mrb[0].mxu0
    %6602 = vdwg.mxu0
    %6603 = vmatprep.subr.mxu0 0.0
    %6604 = vmatpush1.msra.mxu0 %v6033
    %6605 = vmatprep.subr.mxu0 0.0
    %6606 = vmatpush1.msra.mxu0 %v6034
    %6607 = vmatprep.subr.mxu0 0.0
    %6608 = vmatpush1.msra.mxu0 %v6035
    %6609 = vmatprep.subr.mxu0 0.0
    %6610 = vmatpush1.msra.mxu0 %v6036
    %6611 = vmatprep.subr.mxu0 0.0
    %6612 = vmatpush1.msra.mxu0 0.0
    %6613 = vmatprep.subr.mxu0 0.0
    %6614 = vmatpush1.msra.mxu0 0.0
    %6615 = vmatprep.subr.mxu0 0.0
    %6616 = vmatpush1.msra.mxu0 0.0
    %6617 = vmatprep.subr.mxu0 0.0
    %6618 = vmatpush1.msra.mxu0 0.0
    %6619 = vmatprep.subr.mxu0 0.0
    %6620 = vmatpush1.msra.mxu0 0.0
    %6621 = vmatprep.subr.mxu0 0.0
    %6622 = vmatpush1.msra.mxu0 0.0
    %6623 = vmatprep.subr.mxu0 0.0
    %6624 = vmatpush1.msra.mxu0 0.0
    %6625 = vmatprep.subr.mxu0 0.0
    %6626 = vmatpush1.msra.mxu0 0.0
    %6627 = vmatprep.subr.mxu0 0.0
    %6628 = vmatpush1.msra.mxu0 0.0
    %6629 = vmatprep.subr.mxu0 0.0
    %6630 = vmatpush1.msra.mxu0 0.0
    %6631 = vmatprep.subr.mxu0 0.0
    %6632 = vmatpush1.msra.mxu0 0.0
    %6633 = vmatprep.subr.mxu0 0.0
    %6634 = vmatpush1.msra.mxu0 0.0
    %6635 = vmatprep.subr.mxu0 0.0
    %6636 = vmatpush1.msra.mxu0 0.0
    %6637 = vmatprep.subr.mxu0 0.0
    %6638 = vmatpush1.msra.mxu0 0.0
    %6639 = vmatprep.subr.mxu0 0.0
    %6640 = vmatpush1.msra.mxu0 0.0
    %6641 = vmatprep.subr.mxu0 0.0
    %6642 = vmatpush1.msra.mxu0 0.0
    %6643 = vmatprep.subr.mxu0 0.0
    %6644 = vmatpush1.msra.mxu0 0.0
    %6645 = vmatprep.subr.mxu0 0.0
    %6646 = vmatpush1.msra.mxu0 0.0
    %6647 = vmatprep.subr.mxu0 0.0
    %6648 = vmatpush1.msra.mxu0 0.0
    %6649 = vmatprep.subr.mxu0 0.0
    %6650 = vmatpush1.msra.mxu0 0.0
    %6651 = vmatprep.subr.mxu0 0.0
    %6652 = vmatpush1.msra.mxu0 0.0
    %6653 = vmatprep.subr.mxu0 0.0
    %6654 = vmatpush1.msra.mxu0 0.0
    %6655 = vmatprep.subr.mxu0 0.0
    %6656 = vmatpush1.msra.mxu0 0.0
    %6657 = vmatprep.subr.mxu0 0.0
    %6658 = vmatpush1.msra.mxu0 0.0
    %6659 = vmatprep.subr.mxu0 0.0
    %6660 = vmatpush1.msra.mxu0 0.0
    %6661 = vmatprep.subr.mxu0 0.0
    %6662 = vmatpush1.msra.mxu0 0.0
    %6663 = vmatprep.subr.mxu0 0.0
    %6664 = vmatpush1.msra.mxu0 0.0
    %6665 = vmatprep.subr.mxu0 0.0
    %6666 = vmatpush1.msra.mxu0 0.0
    %6667 = vmatprep.mubr.f32.mxu0 0.0
    %6668 = vmatmul.mubr.f32.gmra.mrb[0].mxu0 %v6531
    %v6669 = vpop.f32.mrb[0].mxu0
    %v6670 = vadd.f32 0.0, %v6669
    %v6671 = vpop.f32.mrb[0].mxu0
    %6672 = vdwg.mxu0
    %6673 = vmatprep.subr.mxu0 0.0
    %6674 = vmatpush1.msra.mxu0 %v6037
    %6675 = vmatprep.subr.mxu0 0.0
    %6676 = vmatpush1.msra.mxu0 %v6038
    %6677 = vmatprep.subr.mxu0 0.0
    %6678 = vmatpush1.msra.mxu0 %v6039
    %6679 = vmatprep.subr.mxu0 0.0
    %6680 = vmatpush1.msra.mxu0 %v6040
    %6681 = vmatprep.subr.mxu0 0.0
    %6682 = vmatpush1.msra.mxu0 0.0
    %6683 = vmatprep.subr.mxu0 0.0
    %6684 = vmatpush1.msra.mxu0 0.0
    %6685 = vmatprep.subr.mxu0 0.0
    %6686 = vmatpush1.msra.mxu0 0.0
    %6687 = vmatprep.subr.mxu0 0.0
    %6688 = vmatpush1.msra.mxu0 0.0
    %6689 = vmatprep.subr.mxu0 0.0
    %6690 = vmatpush1.msra.mxu0 0.0
    %6691 = vmatprep.subr.mxu0 0.0
    %6692 = vmatpush1.msra.mxu0 0.0
    %6693 = vmatprep.subr.mxu0 0.0
    %6694 = vmatpush1.msra.mxu0 0.0
    %6695 = vmatprep.subr.mxu0 0.0
    %6696 = vmatpush1.msra.mxu0 0.0
    %6697 = vmatprep.subr.mxu0 0.0
    %6698 = vmatpush1.msra.mxu0 0.0
    %6699 = vmatprep.subr.mxu0 0.0
    %6700 = vmatpush1.msra.mxu0 0.0
    %6701 = vmatprep.subr.mxu0 0.0
    %6702 = vmatpush1.msra.mxu0 0.0
    %6703 = vmatprep.subr.mxu0 0.0
    %6704 = vmatpush1.msra.mxu0 0.0
    %6705 = vmatprep.subr.mxu0 0.0
    %6706 = vmatpush1.msra.mxu0 0.0
    %6707 = vmatprep.subr.mxu0 0.0
    %6708 = vmatpush1.msra.mxu0 0.0
    %6709 = vmatprep.subr.mxu0 0.0
    %6710 = vmatpush1.msra.mxu0 0.0
    %6711 = vmatprep.subr.mxu0 0.0
    %6712 = vmatpush1.msra.mxu0 0.0
    %6713 = vmatprep.subr.mxu0 0.0
    %6714 = vmatpush1.msra.mxu0 0.0
    %6715 = vmatprep.subr.mxu0 0.0
    %6716 = vmatpush1.msra.mxu0 0.0
    %6717 = vmatprep.subr.mxu0 0.0
    %6718 = vmatpush1.msra.mxu0 0.0
    %6719 = vmatprep.subr.mxu0 0.0
    %6720 = vmatpush1.msra.mxu0 0.0
    %6721 = vmatprep.subr.mxu0 0.0
    %6722 = vmatpush1.msra.mxu0 0.0
    %6723 = vmatprep.subr.mxu0 0.0
    %6724 = vmatpush1.msra.mxu0 0.0
    %6725 = vmatprep.subr.mxu0 0.0
    %6726 = vmatpush1.msra.mxu0 0.0
    %6727 = vmatprep.subr.mxu0 0.0
    %6728 = vmatpush1.msra.mxu0 0.0
    %6729 = vmatprep.subr.mxu0 0.0
    %6730 = vmatpush1.msra.mxu0 0.0
    %6731 = vmatprep.subr.mxu0 0.0
    %6732 = vmatpush1.msra.mxu0 0.0
    %6733 = vmatprep.subr.mxu0 0.0
    %6734 = vmatpush1.msra.mxu0 0.0
    %6735 = vmatprep.subr.mxu0 0.0
    %6736 = vmatpush1.msra.mxu0 0.0
    %6737 = vmatprep.mubr.f32.mxu0 0.0
    %6738 = vmatmul.mubr.f32.gmra.mrb[0].mxu0 %v6531
    %v6739 = vpop.f32.mrb[0].mxu0
    %v6740 = vadd.f32 %v6046, %v6739
    %v6741 = vpop.f32.mrb[0].mxu0
    %6742 = vdwg.mxu0
    %v6743 = vld [vmem:[%s2026] sm:$0xff]
    %v6744 = vadd.f32 %v6743, %v6600
    %v6745 = vxor.u32 %v6744, 2147483648
    %v6746 = vmul.f32 %v6745, 1.442695
    %v6747 = vpow.pop %v6746
    %v6748 = vadd.f32 %v6747, 1.0
    %v6749 = vrcp.pop %v6748
    %v6750 = vmul.f32 1.0, %v6749
    %v6751 = vld [vmem:[%s2035] sm:$0xff]
    %v6752 = vadd.f32 %v6751, %v6670
    %v6753 = vxor.u32 %v6752, 2147483648
    %v6754 = vmul.f32 %v6753, 1.442695
    %v6755 = vpow.pop %v6754
    %v6756 = vadd.f32 %v6755, 1.0
    %v6757 = vrcp.pop %v6756
    %v6758 = vmul.f32 1.0, %v6757
    %v6759 = vld [vmem:[%s2044] sm:$0xff]
    %v6760 = vmul.f32 %v6750, %v6740
    %v6761 = vadd.f32 %v6759, %v6760
    %v6762 = vtanh.pop %v6761
    %v6763 = vsub.f32 1.0, %v6758
    %v6764 = vmul.f32 %v6763, %v6762
    %v6765 = vmul.f32 %v6758, %v6529
    %v6766 = vadd.f32 %v6764, %v6765
    %6767 = vst.msk [vmem:[#allocation7] sm:$0xff] %vm1043, %v6766
    %6768 = vst.msk [vmem:[%s2054] sm:$0xff] %vm1043, %v6766
    %v6769 = vld [vmem:[#allocation7] sm:$0xff]
    %v6771 = vsel %vm1043, %v6769, 0
    %6773 = vmatprep.subr.mxu0 0.0
    %6774 = vmatpush1.msra.mxu0 %v6029
    %6775 = vmatprep.subr.mxu0 0.0
    %6776 = vmatpush1.msra.mxu0 %v6030
    %6777 = vmatprep.subr.mxu0 0.0
    %6778 = vmatpush1.msra.mxu0 %v6031
    %6779 = vmatprep.subr.mxu0 0.0
    %6780 = vmatpush1.msra.mxu0 %v6032
    %6781 = vmatprep.subr.mxu0 0.0
    %6782 = vmatpush1.msra.mxu0 0.0
    %6783 = vmatprep.subr.mxu0 0.0
    %6784 = vmatpush1.msra.mxu0 0.0
    %6785 = vmatprep.subr.mxu0 0.0
    %6786 = vmatpush1.msra.mxu0 0.0
    %6787 = vmatprep.subr.mxu0 0.0
    %6788 = vmatpush1.msra.mxu0 0.0
    %6789 = vmatprep.subr.mxu0 0.0
    %6790 = vmatpush1.msra.mxu0 0.0
    %6791 = vmatprep.subr.mxu0 0.0
    %6792 = vmatpush1.msra.mxu0 0.0
    %6793 = vmatprep.subr.mxu0 0.0
    %6794 = vmatpush1.msra.mxu0 0.0
    %6795 = vmatprep.subr.mxu0 0.0
    %6796 = vmatpush1.msra.mxu0 0.0
    %6797 = vmatprep.subr.mxu0 0.0
    %6798 = vmatpush1.msra.mxu0 0.0
    %6799 = vmatprep.subr.mxu0 0.0
    %6800 = vmatpush1.msra.mxu0 0.0
    %6801 = vmatprep.subr.mxu0 0.0
    %6802 = vmatpush1.msra.mxu0 0.0
    %6803 = vmatprep.subr.mxu0 0.0
    %6804 = vmatpush1.msra.mxu0 0.0
    %6805 = vmatprep.subr.mxu0 0.0
    %6806 = vmatpush1.msra.mxu0 0.0
    %6807 = vmatprep.subr.mxu0 0.0
    %6808 = vmatpush1.msra.mxu0 0.0
    %6809 = vmatprep.subr.mxu0 0.0
    %6810 = vmatpush1.msra.mxu0 0.0
    %6811 = vmatprep.subr.mxu0 0.0
    %6812 = vmatpush1.msra.mxu0 0.0
    %6813 = vmatprep.subr.mxu0 0.0
    %6814 = vmatpush1.msra.mxu0 0.0
    %6815 = vmatprep.subr.mxu0 0.0
    %6816 = vmatpush1.msra.mxu0 0.0
    %6817 = vmatprep.subr.mxu0 0.0
    %6818 = vmatpush1.msra.mxu0 0.0
    %6819 = vmatprep.subr.mxu0 0.0
    %6820 = vmatpush1.msra.mxu0 0.0
    %6821 = vmatprep.subr.mxu0 0.0
    %6822 = vmatpush1.msra.mxu0 0.0
    %6823 = vmatprep.subr.mxu0 0.0
    %6824 = vmatpush1.msra.mxu0 0.0
    %6825 = vmatprep.subr.mxu0 0.0
    %6826 = vmatpush1.msra.mxu0 0.0
    %6827 = vmatprep.subr.mxu0 0.0
    %6828 = vmatpush1.msra.mxu0 0.0
    %6829 = vmatprep.subr.mxu0 0.0
    %6830 = vmatpush1.msra.mxu0 0.0
    %6831 = vmatprep.subr.mxu0 0.0
    %6832 = vmatpush1.msra.mxu0 0.0
    %6833 = vmatprep.subr.mxu0 0.0
    %6834 = vmatpush1.msra.mxu0 0.0
    %6835 = vmatprep.subr.mxu0 0.0
    %6836 = vmatpush1.msra.mxu0 0.0
    %6837 = vmatprep.mubr.f32.mxu0 0.0
    %6838 = vmatmul.mubr.f32.gmra.mrb[0].mxu0 %v6771
    %v6839 = vpop.f32.mrb[0].mxu0
    %v6840 = vadd.f32 0.0, %v6839
    %v6841 = vpop.f32.mrb[0].mxu0
    %6842 = vdwg.mxu0
    %6843 = vmatprep.subr.mxu0 0.0
    %6844 = vmatpush1.msra.mxu0 %v6033
    %6845 = vmatprep.subr.mxu0 0.0
    %6846 = vmatpush1.msra.mxu0 %v6034
    %6847 = vmatprep.subr.mxu0 0.0
    %6848 = vmatpush1.msra.mxu0 %v6035
    %6849 = vmatprep.subr.mxu0 0.0
    %6850 = vmatpush1.msra.mxu0 %v6036
    %6851 = vmatprep.subr.mxu0 0.0
    %6852 = vmatpush1.msra.mxu0 0.0
    %6853 = vmatprep.subr.mxu0 0.0
    %6854 = vmatpush1.msra.mxu0 0.0
    %6855 = vmatprep.subr.mxu0 0.0
    %6856 = vmatpush1.msra.mxu0 0.0
    %6857 = vmatprep.subr.mxu0 0.0
    %6858 = vmatpush1.msra.mxu0 0.0
    %6859 = vmatprep.subr.mxu0 0.0
    %6860 = vmatpush1.msra.mxu0 0.0
    %6861 = vmatprep.subr.mxu0 0.0
    %6862 = vmatpush1.msra.mxu0 0.0
    %6863 = vmatprep.subr.mxu0 0.0
    %6864 = vmatpush1.msra.mxu0 0.0
    %6865 = vmatprep.subr.mxu0 0.0
    %6866 = vmatpush1.msra.mxu0 0.0
    %6867 = vmatprep.subr.mxu0 0.0
    %6868 = vmatpush1.msra.mxu0 0.0
    %6869 = vmatprep.subr.mxu0 0.0
    %6870 = vmatpush1.msra.mxu0 0.0
    %6871 = vmatprep.subr.mxu0 0.0
    %6872 = vmatpush1.msra.mxu0 0.0
    %6873 = vmatprep.subr.mxu0 0.0
    %6874 = vmatpush1.msra.mxu0 0.0
    %6875 = vmatprep.subr.mxu0 0.0
    %6876 = vmatpush1.msra.mxu0 0.0
    %6877 = vmatprep.subr.mxu0 0.0
    %6878 = vmatpush1.msra.mxu0 0.0
    %6879 = vmatprep.subr.mxu0 0.0
    %6880 = vmatpush1.msra.mxu0 0.0
    %6881 = vmatprep.subr.mxu0 0.0
    %6882 = vmatpush1.msra.mxu0 0.0
    %6883 = vmatprep.subr.mxu0 0.0
    %6884 = vmatpush1.msra.mxu0 0.0
    %6885 = vmatprep.subr.mxu0 0.0
    %6886 = vmatpush1.msra.mxu0 0.0
    %6887 = vmatprep.subr.mxu0 0.0
    %6888 = vmatpush1.msra.mxu0 0.0
    %6889 = vmatprep.subr.mxu0 0.0
    %6890 = vmatpush1.msra.mxu0 0.0
    %6891 = vmatprep.subr.mxu0 0.0
    %6892 = vmatpush1.msra.mxu0 0.0
    %6893 = vmatprep.subr.mxu0 0.0
    %6894 = vmatpush1.msra.mxu0 0.0
    %6895 = vmatprep.subr.mxu0 0.0
    %6896 = vmatpush1.msra.mxu0 0.0
    %6897 = vmatprep.subr.mxu0 0.0
    %6898 = vmatpush1.msra.mxu0 0.0
    %6899 = vmatprep.subr.mxu0 0.0
    %6900 = vmatpush1.msra.mxu0 0.0
    %6901 = vmatprep.subr.mxu0 0.0
    %6902 = vmatpush1.msra.mxu0 0.0
    %6903 = vmatprep.subr.mxu0 0.0
    %6904 = vmatpush1.msra.mxu0 0.0
    %6905 = vmatprep.subr.mxu0 0.0
    %6906 = vmatpush1.msra.mxu0 0.0
    %6907 = vmatprep.mubr.f32.mxu0 0.0
    %6908 = vmatmul.mubr.f32.gmra.mrb[0].mxu0 %v6771
    %v6909 = vpop.f32.mrb[0].mxu0
    %v6910 = vadd.f32 0.0, %v6909
    %v6911 = vpop.f32.mrb[0].mxu0
    %6912 = vdwg.mxu0
    %6913 = vmatprep.subr.mxu0 0.0
    %6914 = vmatpush1.msra.mxu0 %v6037
    %6915 = vmatprep.subr.mxu0 0.0
    %6916 = vmatpush1.msra.mxu0 %v6038
    %6917 = vmatprep.subr.mxu0 0.0
    %6918 = vmatpush1.msra.mxu0 %v6039
    %6919 = vmatprep.subr.mxu0 0.0
    %6920 = vmatpush1.msra.mxu0 %v6040
    %6921 = vmatprep.subr.mxu0 0.0
    %6922 = vmatpush1.msra.mxu0 0.0
    %6923 = vmatprep.subr.mxu0 0.0
    %6924 = vmatpush1.msra.mxu0 0.0
    %6925 = vmatprep.subr.mxu0 0.0
    %6926 = vmatpush1.msra.mxu0 0.0
    %6927 = vmatprep.subr.mxu0 0.0
    %6928 = vmatpush1.msra.mxu0 0.0
    %6929 = vmatprep.subr.mxu0 0.0
    %6930 = vmatpush1.msra.mxu0 0.0
    %6931 = vmatprep.subr.mxu0 0.0
    %6932 = vmatpush1.msra.mxu0 0.0
    %6933 = vmatprep.subr.mxu0 0.0
    %6934 = vmatpush1.msra.mxu0 0.0
    %6935 = vmatprep.subr.mxu0 0.0
    %6936 = vmatpush1.msra.mxu0 0.0
    %6937 = vmatprep.subr.mxu0 0.0
    %6938 = vmatpush1.msra.mxu0 0.0
    %6939 = vmatprep.subr.mxu0 0.0
    %6940 = vmatpush1.msra.mxu0 0.0
    %6941 = vmatprep.subr.mxu0 0.0
    %6942 = vmatpush1.msra.mxu0 0.0
    %6943 = vmatprep.subr.mxu0 0.0
    %6944 = vmatpush1.msra.mxu0 0.0
    %6945 = vmatprep.subr.mxu0 0.0
    %6946 = vmatpush1.msra.mxu0 0.0
    %6947 = vmatprep.subr.mxu0 0.0
    %6948 = vmatpush1.msra.mxu0 0.0
    %6949 = vmatprep.subr.mxu0 0.0
    %6950 = vmatpush1.msra.mxu0 0.0
    %6951 = vmatprep.subr.mxu0 0.0
    %6952 = vmatpush1.msra.mxu0 0.0
    %6953 = vmatprep.subr.mxu0 0.0
    %6954 = vmatpush1.msra.mxu0 0.0
    %6955 = vmatprep.subr.mxu0 0.0
    %6956 = vmatpush1.msra.mxu0 0.0
    %6957 = vmatprep.subr.mxu0 0.0
    %6958 = vmatpush1.msra.mxu0 0.0
    %6959 = vmatprep.subr.mxu0 0.0
    %6960 = vmatpush1.msra.mxu0 0.0
    %6961 = vmatprep.subr.mxu0 0.0
    %6962 = vmatpush1.msra.mxu0 0.0
    %6963 = vmatprep.subr.mxu0 0.0
    %6964 = vmatpush1.msra.mxu0 0.0
    %6965 = vmatprep.subr.mxu0 0.0
    %6966 = vmatpush1.msra.mxu0 0.0
    %6967 = vmatprep.subr.mxu0 0.0
    %6968 = vmatpush1.msra.mxu0 0.0
    %6969 = vmatprep.subr.mxu0 0.0
    %6970 = vmatpush1.msra.mxu0 0.0
    %6971 = vmatprep.subr.mxu0 0.0
    %6972 = vmatpush1.msra.mxu0 0.0
    %6973 = vmatprep.subr.mxu0 0.0
    %6974 = vmatpush1.msra.mxu0 0.0
    %6975 = vmatprep.subr.mxu0 0.0
    %6976 = vmatpush1.msra.mxu0 0.0
    %6977 = vmatprep.mubr.f32.mxu0 0.0
    %6978 = vmatmul.mubr.f32.gmra.mrb[0].mxu0 %v6771
    %v6979 = vpop.f32.mrb[0].mxu0
    %v6980 = vadd.f32 %v6046, %v6979
    %v6981 = vpop.f32.mrb[0].mxu0
    %6982 = vdwg.mxu0
    %v6983 = vld [vmem:[%s2270] sm:$0xff]
    %v6984 = vadd.f32 %v6983, %v6840
    %v6985 = vxor.u32 %v6984, 2147483648
    %v6986 = vmul.f32 %v6985, 1.442695
    %v6987 = vpow.pop %v6986
    %v6988 = vadd.f32 %v6987, 1.0
    %v6989 = vrcp.pop %v6988
    %v6990 = vmul.f32 1.0, %v6989
    %v6991 = vld [vmem:[%s2279] sm:$0xff]
    %v6992 = vadd.f32 %v6991, %v6910
    %v6993 = vxor.u32 %v6992, 2147483648
    %v6994 = vmul.f32 %v6993, 1.442695
    %v6995 = vpow.pop %v6994
    %v6996 = vadd.f32 %v6995, 1.0
    %v6997 = vrcp.pop %v6996
    %v6998 = vmul.f32 1.0, %v6997
    %v6999 = vld [vmem:[%s2288] sm:$0xff]
    %v7000 = vmul.f32 %v6990, %v6980
    %v7001 = vadd.f32 %v6999, %v7000
    %v7002 = vtanh.pop %v7001
    %v7003 = vsub.f32 1.0, %v6998
    %v7004 = vmul.f32 %v7003, %v7002
    %v7005 = vmul.f32 %v6998, %v6769
    %v7006 = vadd.f32 %v7004, %v7005
    %7007 = vst.msk [vmem:[#allocation7] sm:$0xff] %vm1043, %v7006
    %7008 = vst.msk [vmem:[%s2298] sm:$0xff] %vm1043, %v7006
    %v7009 = vld [vmem:[#allocation7] sm:$0xff]
    %v7011 = vsel %vm1043, %v7009, 0
    %7013 = vmatprep.subr.mxu0 0.0
    %7014 = vmatpush1.msra.mxu0 %v6029
    %7015 = vmatprep.subr.mxu0 0.0
    %7016 = vmatpush1.msra.mxu0 %v6030
    %7017 = vmatprep.subr.mxu0 0.0
    %7018 = vmatpush1.msra.mxu0 %v6031
    %7019 = vmatprep.subr.mxu0 0.0
    %7020 = vmatpush1.msra.mxu0 %v6032
    %7021 = vmatprep.subr.mxu0 0.0
    %7022 = vmatpush1.msra.mxu0 0.0
    %7023 = vmatprep.subr.mxu0 0.0
    %7024 = vmatpush1.msra.mxu0 0.0
    %7025 = vmatprep.subr.mxu0 0.0
    %7026 = vmatpush1.msra.mxu0 0.0
    %7027 = vmatprep.subr.mxu0 0.0
    %7028 = vmatpush1.msra.mxu0 0.0
    %7029 = vmatprep.subr.mxu0 0.0
    %7030 = vmatpush1.msra.mxu0 0.0
    %7031 = vmatprep.subr.mxu0 0.0
    %7032 = vmatpush1.msra.mxu0 0.0
    %7033 = vmatprep.subr.mxu0 0.0
    %7034 = vmatpush1.msra.mxu0 0.0
    %7035 = vmatprep.subr.mxu0 0.0
    %7036 = vmatpush1.msra.mxu0 0.0
    %7037 = vmatprep.subr.mxu0 0.0
    %7038 = vmatpush1.msra.mxu0 0.0
    %7039 = vmatprep.subr.mxu0 0.0
    %7040 = vmatpush1.msra.mxu0 0.0
    %7041 = vmatprep.subr.mxu0 0.0
    %7042 = vmatpush1.msra.mxu0 0.0
    %7043 = vmatprep.subr.mxu0 0.0
    %7044 = vmatpush1.msra.mxu0 0.0
    %7045 = vmatprep.subr.mxu0 0.0
    %7046 = vmatpush1.msra.mxu0 0.0
    %7047 = vmatprep.subr.mxu0 0.0
    %7048 = vmatpush1.msra.mxu0 0.0
    %7049 = vmatprep.subr.mxu0 0.0
    %7050 = vmatpush1.msra.mxu0 0.0
    %7051 = vmatprep.subr.mxu0 0.0
    %7052 = vmatpush1.msra.mxu0 0.0
    %7053 = vmatprep.subr.mxu0 0.0
    %7054 = vmatpush1.msra.mxu0 0.0
    %7055 = vmatprep.subr.mxu0 0.0
    %7056 = vmatpush1.msra.mxu0 0.0
    %7057 = vmatprep.subr.mxu0 0.0
    %7058 = vmatpush1.msra.mxu0 0.0
    %7059 = vmatprep.subr.mxu0 0.0
    %7060 = vmatpush1.msra.mxu0 0.0
    %7061 = vmatprep.subr.mxu0 0.0
    %7062 = vmatpush1.msra.mxu0 0.0
    %7063 = vmatprep.subr.mxu0 0.0
    %7064 = vmatpush1.msra.mxu0 0.0
    %7065 = vmatprep.subr.mxu0 0.0
    %7066 = vmatpush1.msra.mxu0 0.0
    %7067 = vmatprep.subr.mxu0 0.0
    %7068 = vmatpush1.msra.mxu0 0.0
    %7069 = vmatprep.subr.mxu0 0.0
    %7070 = vmatpush1.msra.mxu0 0.0
    %7071 = vmatprep.subr.mxu0 0.0
    %7072 = vmatpush1.msra.mxu0 0.0
    %7073 = vmatprep.subr.mxu0 0.0
    %7074 = vmatpush1.msra.mxu0 0.0
    %7075 = vmatprep.subr.mxu0 0.0
    %7076 = vmatpush1.msra.mxu0 0.0
    %7077 = vmatprep.mubr.f32.mxu0 0.0
    %7078 = vmatmul.mubr.f32.gmra.mrb[0].mxu0 %v7011
    %v7079 = vpop.f32.mrb[0].mxu0
    %v7080 = vadd.f32 0.0, %v7079
    %v7081 = vpop.f32.mrb[0].mxu0
    %7082 = vdwg.mxu0
    %7083 = vmatprep.subr.mxu0 0.0
    %7084 = vmatpush1.msra.mxu0 %v6033
    %7085 = vmatprep.subr.mxu0 0.0
    %7086 = vmatpush1.msra.mxu0 %v6034
    %7087 = vmatprep.subr.mxu0 0.0
    %7088 = vmatpush1.msra.mxu0 %v6035
    %7089 = vmatprep.subr.mxu0 0.0
    %7090 = vmatpush1.msra.mxu0 %v6036
    %7091 = vmatprep.subr.mxu0 0.0
    %7092 = vmatpush1.msra.mxu0 0.0
    %7093 = vmatprep.subr.mxu0 0.0
    %7094 = vmatpush1.msra.mxu0 0.0
    %7095 = vmatprep.subr.mxu0 0.0
    %7096 = vmatpush1.msra.mxu0 0.0
    %7097 = vmatprep.subr.mxu0 0.0
    %7098 = vmatpush1.msra.mxu0 0.0
    %7099 = vmatprep.subr.mxu0 0.0
    %7100 = vmatpush1.msra.mxu0 0.0
    %7101 = vmatprep.subr.mxu0 0.0
    %7102 = vmatpush1.msra.mxu0 0.0
    %7103 = vmatprep.subr.mxu0 0.0
    %7104 = vmatpush1.msra.mxu0 0.0
    %7105 = vmatprep.subr.mxu0 0.0
    %7106 = vmatpush1.msra.mxu0 0.0
    %7107 = vmatprep.subr.mxu0 0.0
    %7108 = vmatpush1.msra.mxu0 0.0
    %7109 = vmatprep.subr.mxu0 0.0
    %7110 = vmatpush1.msra.mxu0 0.0
    %7111 = vmatprep.subr.mxu0 0.0
    %7112 = vmatpush1.msra.mxu0 0.0
    %7113 = vmatprep.subr.mxu0 0.0
    %7114 = vmatpush1.msra.mxu0 0.0
    %7115 = vmatprep.subr.mxu0 0.0
    %7116 = vmatpush1.msra.mxu0 0.0
    %7117 = vmatprep.subr.mxu0 0.0
    %7118 = vmatpush1.msra.mxu0 0.0
    %7119 = vmatprep.subr.mxu0 0.0
    %7120 = vmatpush1.msra.mxu0 0.0
    %7121 = vmatprep.subr.mxu0 0.0
    %7122 = vmatpush1.msra.mxu0 0.0
    %7123 = vmatprep.subr.mxu0 0.0
    %7124 = vmatpush1.msra.mxu0 0.0
    %7125 = vmatprep.subr.mxu0 0.0
    %7126 = vmatpush1.msra.mxu0 0.0
    %7127 = vmatprep.subr.mxu0 0.0
    %7128 = vmatpush1.msra.mxu0 0.0
    %7129 = vmatprep.subr.mxu0 0.0
    %7130 = vmatpush1.msra.mxu0 0.0
    %7131 = vmatprep.subr.mxu0 0.0
    %7132 = vmatpush1.msra.mxu0 0.0
    %7133 = vmatprep.subr.mxu0 0.0
    %7134 = vmatpush1.msra.mxu0 0.0
    %7135 = vmatprep.subr.mxu0 0.0
    %7136 = vmatpush1.msra.mxu0 0.0
    %7137 = vmatprep.subr.mxu0 0.0
    %7138 = vmatpush1.msra.mxu0 0.0
    %7139 = vmatprep.subr.mxu0 0.0
    %7140 = vmatpush1.msra.mxu0 0.0
    %7141 = vmatprep.subr.mxu0 0.0
    %7142 = vmatpush1.msra.mxu0 0.0
    %7143 = vmatprep.subr.mxu0 0.0
    %7144 = vmatpush1.msra.mxu0 0.0
    %7145 = vmatprep.subr.mxu0 0.0
    %7146 = vmatpush1.msra.mxu0 0.0
    %7147 = vmatprep.mubr.f32.mxu0 0.0
    %7148 = vmatmul.mubr.f32.gmra.mrb[0].mxu0 %v7011
    %v7149 = vpop.f32.mrb[0].mxu0
    %v7150 = vadd.f32 0.0, %v7149
    %v7151 = vpop.f32.mrb[0].mxu0
    %7152 = vdwg.mxu0
    %7153 = vmatprep.subr.mxu0 0.0
    %7154 = vmatpush1.msra.mxu0 %v6037
    %7155 = vmatprep.subr.mxu0 0.0
    %7156 = vmatpush1.msra.mxu0 %v6038
    %7157 = vmatprep.subr.mxu0 0.0
    %7158 = vmatpush1.msra.mxu0 %v6039
    %7159 = vmatprep.subr.mxu0 0.0
    %7160 = vmatpush1.msra.mxu0 %v6040
    %7161 = vmatprep.subr.mxu0 0.0
    %7162 = vmatpush1.msra.mxu0 0.0
    %7163 = vmatprep.subr.mxu0 0.0
    %7164 = vmatpush1.msra.mxu0 0.0
    %7165 = vmatprep.subr.mxu0 0.0
    %7166 = vmatpush1.msra.mxu0 0.0
    %7167 = vmatprep.subr.mxu0 0.0
    %7168 = vmatpush1.msra.mxu0 0.0
    %7169 = vmatprep.subr.mxu0 0.0
    %7170 = vmatpush1.msra.mxu0 0.0
    %7171 = vmatprep.subr.mxu0 0.0
    %7172 = vmatpush1.msra.mxu0 0.0
    %7173 = vmatprep.subr.mxu0 0.0
    %7174 = vmatpush1.msra.mxu0 0.0
    %7175 = vmatprep.subr.mxu0 0.0
    %7176 = vmatpush1.msra.mxu0 0.0
    %7177 = vmatprep.subr.mxu0 0.0
    %7178 = vmatpush1.msra.mxu0 0.0
    %7179 = vmatprep.subr.mxu0 0.0
    %7180 = vmatpush1.msra.mxu0 0.0
    %7181 = vmatprep.subr.mxu0 0.0
    %7182 = vmatpush1.msra.mxu0 0.0
    %7183 = vmatprep.subr.mxu0 0.0
    %7184 = vmatpush1.msra.mxu0 0.0
    %7185 = vmatprep.subr.mxu0 0.0
    %7186 = vmatpush1.msra.mxu0 0.0
    %7187 = vmatprep.subr.mxu0 0.0
    %7188 = vmatpush1.msra.mxu0 0.0
    %7189 = vmatprep.subr.mxu0 0.0
    %7190 = vmatpush1.msra.mxu0 0.0
    %7191 = vmatprep.subr.mxu0 0.0
    %7192 = vmatpush1.msra.mxu0 0.0
    %7193 = vmatprep.subr.mxu0 0.0
    %7194 = vmatpush1.msra.mxu0 0.0
    %7195 = vmatprep.subr.mxu0 0.0
    %7196 = vmatpush1.msra.mxu0 0.0
    %7197 = vmatprep.subr.mxu0 0.0
    %7198 = vmatpush1.msra.mxu0 0.0
    %7199 = vmatprep.subr.mxu0 0.0
    %7200 = vmatpush1.msra.mxu0 0.0
    %7201 = vmatprep.subr.mxu0 0.0
    %7202 = vmatpush1.msra.mxu0 0.0
    %7203 = vmatprep.subr.mxu0 0.0
    %7204 = vmatpush1.msra.mxu0 0.0
    %7205 = vmatprep.subr.mxu0 0.0
    %7206 = vmatpush1.msra.mxu0 0.0
    %7207 = vmatprep.subr.mxu0 0.0
    %7208 = vmatpush1.msra.mxu0 0.0
    %7209 = vmatprep.subr.mxu0 0.0
    %7210 = vmatpush1.msra.mxu0 0.0
    %7211 = vmatprep.subr.mxu0 0.0
    %7212 = vmatpush1.msra.mxu0 0.0
    %7213 = vmatprep.subr.mxu0 0.0
    %7214 = vmatpush1.msra.mxu0 0.0
    %7215 = vmatprep.subr.mxu0 0.0
    %7216 = vmatpush1.msra.mxu0 0.0
    %7217 = vmatprep.mubr.f32.mxu0 0.0
    %7218 = vmatmul.mubr.f32.gmra.mrb[0].mxu0 %v7011
    %v7219 = vpop.f32.mrb[0].mxu0
    %v7220 = vadd.f32 %v6046, %v7219
    %v7221 = vpop.f32.mrb[0].mxu0
    %7222 = vdwg.mxu0
    %v7223 = vld [vmem:[%s2514] sm:$0xff]
    %v7224 = vadd.f32 %v7223, %v7080
    %v7225 = vxor.u32 %v7224, 2147483648
    %v7226 = vmul.f32 %v7225, 1.442695
    %v7227 = vpow.pop %v7226
    %v7228 = vadd.f32 %v7227, 1.0
    %v7229 = vrcp.pop %v7228
    %v7230 = vmul.f32 1.0, %v7229
    %v7231 = vld [vmem:[%s2523] sm:$0xff]
    %v7232 = vadd.f32 %v7231, %v7150
    %v7233 = vxor.u32 %v7232, 2147483648
    %v7234 = vmul.f32 %v7233, 1.442695
    %v7235 = vpow.pop %v7234
    %v7236 = vadd.f32 %v7235, 1.0
    %v7237 = vrcp.pop %v7236
    %v7238 = vmul.f32 1.0, %v7237
    %v7239 = vld [vmem:[%s2532] sm:$0xff]
    %v7240 = vmul.f32 %v7230, %v7220
    %v7241 = vadd.f32 %v7239, %v7240
    %v7242 = vtanh.pop %v7241
    %v7243 = vsub.f32 1.0, %v7238
    %v7244 = vmul.f32 %v7243, %v7242
    %v7245 = vmul.f32 %v7238, %v7009
    %v7246 = vadd.f32 %v7244, %v7245
    %7247 = vst.msk [vmem:[#allocation7] sm:$0xff] %vm1043, %v7246
    %7248 = vst.msk [vmem:[%s2542] sm:$0xff] %vm1043, %v7246
    %v7249 = vld [vmem:[#allocation7] sm:$0xff]
    %v7251 = vsel %vm1043, %v7249, 0
    %7253 = vmatprep.subr.mxu0 0.0
    %7254 = vmatpush1.msra.mxu0 %v6029
    %7255 = vmatprep.subr.mxu0 0.0
    %7256 = vmatpush1.msra.mxu0 %v6030
    %7257 = vmatprep.subr.mxu0 0.0
    %7258 = vmatpush1.msra.mxu0 %v6031
    %7259 = vmatprep.subr.mxu0 0.0
    %7260 = vmatpush1.msra.mxu0 %v6032
    %7261 = vmatprep.subr.mxu0 0.0
    %7262 = vmatpush1.msra.mxu0 0.0
    %7263 = vmatprep.subr.mxu0 0.0
    %7264 = vmatpush1.msra.mxu0 0.0
    %7265 = vmatprep.subr.mxu0 0.0
    %7266 = vmatpush1.msra.mxu0 0.0
    %7267 = vmatprep.subr.mxu0 0.0
    %7268 = vmatpush1.msra.mxu0 0.0
    %7269 = vmatprep.subr.mxu0 0.0
    %7270 = vmatpush1.msra.mxu0 0.0
    %7271 = vmatprep.subr.mxu0 0.0
    %7272 = vmatpush1.msra.mxu0 0.0
    %7273 = vmatprep.subr.mxu0 0.0
    %7274 = vmatpush1.msra.mxu0 0.0
    %7275 = vmatprep.subr.mxu0 0.0
    %7276 = vmatpush1.msra.mxu0 0.0
    %7277 = vmatprep.subr.mxu0 0.0
    %7278 = vmatpush1.msra.mxu0 0.0
    %7279 = vmatprep.subr.mxu0 0.0
    %7280 = vmatpush1.msra.mxu0 0.0
    %7281 = vmatprep.subr.mxu0 0.0
    %7282 = vmatpush1.msra.mxu0 0.0
    %7283 = vmatprep.subr.mxu0 0.0
    %7284 = vmatpush1.msra.mxu0 0.0
    %7285 = vmatprep.subr.mxu0 0.0
    %7286 = vmatpush1.msra.mxu0 0.0
    %7287 = vmatprep.subr.mxu0 0.0
    %7288 = vmatpush1.msra.mxu0 0.0
    %7289 = vmatprep.subr.mxu0 0.0
    %7290 = vmatpush1.msra.mxu0 0.0
    %7291 = vmatprep.subr.mxu0 0.0
    %7292 = vmatpush1.msra.mxu0 0.0
    %7293 = vmatprep.subr.mxu0 0.0
    %7294 = vmatpush1.msra.mxu0 0.0
    %7295 = vmatprep.subr.mxu0 0.0
    %7296 = vmatpush1.msra.mxu0 0.0
    %7297 = vmatprep.subr.mxu0 0.0
    %7298 = vmatpush1.msra.mxu0 0.0
    %7299 = vmatprep.subr.mxu0 0.0
    %7300 = vmatpush1.msra.mxu0 0.0
    %7301 = vmatprep.subr.mxu0 0.0
    %7302 = vmatpush1.msra.mxu0 0.0
    %7303 = vmatprep.subr.mxu0 0.0
    %7304 = vmatpush1.msra.mxu0 0.0
    %7305 = vmatprep.subr.mxu0 0.0
    %7306 = vmatpush1.msra.mxu0 0.0
    %7307 = vmatprep.subr.mxu0 0.0
    %7308 = vmatpush1.msra.mxu0 0.0
    %7309 = vmatprep.subr.mxu0 0.0
    %7310 = vmatpush1.msra.mxu0 0.0
    %7311 = vmatprep.subr.mxu0 0.0
    %7312 = vmatpush1.msra.mxu0 0.0
    %7313 = vmatprep.subr.mxu0 0.0
    %7314 = vmatpush1.msra.mxu0 0.0
    %7315 = vmatprep.subr.mxu0 0.0
    %7316 = vmatpush1.msra.mxu0 0.0
    %7317 = vmatprep.mubr.f32.mxu0 0.0
    %7318 = vmatmul.mubr.f32.gmra.mrb[0].mxu0 %v7251
    %v7319 = vpop.f32.mrb[0].mxu0
    %v7320 = vadd.f32 0.0, %v7319
    %v7321 = vpop.f32.mrb[0].mxu0
    %7322 = vdwg.mxu0
    %7323 = vmatprep.subr.mxu0 0.0
    %7324 = vmatpush1.msra.mxu0 %v6033
    %7325 = vmatprep.subr.mxu0 0.0
    %7326 = vmatpush1.msra.mxu0 %v6034
    %7327 = vmatprep.subr.mxu0 0.0
    %7328 = vmatpush1.msra.mxu0 %v6035
    %7329 = vmatprep.subr.mxu0 0.0
    %7330 = vmatpush1.msra.mxu0 %v6036
    %7331 = vmatprep.subr.mxu0 0.0
    %7332 = vmatpush1.msra.mxu0 0.0
    %7333 = vmatprep.subr.mxu0 0.0
    %7334 = vmatpush1.msra.mxu0 0.0
    %7335 = vmatprep.subr.mxu0 0.0
    %7336 = vmatpush1.msra.mxu0 0.0
    %7337 = vmatprep.subr.mxu0 0.0
    %7338 = vmatpush1.msra.mxu0 0.0
    %7339 = vmatprep.subr.mxu0 0.0
    %7340 = vmatpush1.msra.mxu0 0.0
    %7341 = vmatprep.subr.mxu0 0.0
    %7342 = vmatpush1.msra.mxu0 0.0
    %7343 = vmatprep.subr.mxu0 0.0
    %7344 = vmatpush1.msra.mxu0 0.0
    %7345 = vmatprep.subr.mxu0 0.0
    %7346 = vmatpush1.msra.mxu0 0.0
    %7347 = vmatprep.subr.mxu0 0.0
    %7348 = vmatpush1.msra.mxu0 0.0
    %7349 = vmatprep.subr.mxu0 0.0
    %7350 = vmatpush1.msra.mxu0 0.0
    %7351 = vmatprep.subr.mxu0 0.0
    %7352 = vmatpush1.msra.mxu0 0.0
    %7353 = vmatprep.subr.mxu0 0.0
    %7354 = vmatpush1.msra.mxu0 0.0
    %7355 = vmatprep.subr.mxu0 0.0
    %7356 = vmatpush1.msra.mxu0 0.0
    %7357 = vmatprep.subr.mxu0 0.0
    %7358 = vmatpush1.msra.mxu0 0.0
    %7359 = vmatprep.subr.mxu0 0.0
    %7360 = vmatpush1.msra.mxu0 0.0
    %7361 = vmatprep.subr.mxu0 0.0
    %7362 = vmatpush1.msra.mxu0 0.0
    %7363 = vmatprep.subr.mxu0 0.0
    %7364 = vmatpush1.msra.mxu0 0.0
    %7365 = vmatprep.subr.mxu0 0.0
    %7366 = vmatpush1.msra.mxu0 0.0
    %7367 = vmatprep.subr.mxu0 0.0
    %7368 = vmatpush1.msra.mxu0 0.0
    %7369 = vmatprep.subr.mxu0 0.0
    %7370 = vmatpush1.msra.mxu0 0.0
    %7371 = vmatprep.subr.mxu0 0.0
    %7372 = vmatpush1.msra.mxu0 0.0
    %7373 = vmatprep.subr.mxu0 0.0
    %7374 = vmatpush1.msra.mxu0 0.0
    %7375 = vmatprep.subr.mxu0 0.0
    %7376 = vmatpush1.msra.mxu0 0.0
    %7377 = vmatprep.subr.mxu0 0.0
    %7378 = vmatpush1.msra.mxu0 0.0
    %7379 = vmatprep.subr.mxu0 0.0
    %7380 = vmatpush1.msra.mxu0 0.0
    %7381 = vmatprep.subr.mxu0 0.0
    %7382 = vmatpush1.msra.mxu0 0.0
    %7383 = vmatprep.subr.mxu0 0.0
    %7384 = vmatpush1.msra.mxu0 0.0
    %7385 = vmatprep.subr.mxu0 0.0
    %7386 = vmatpush1.msra.mxu0 0.0
    %7387 = vmatprep.mubr.f32.mxu0 0.0
    %7388 = vmatmul.mubr.f32.gmra.mrb[0].mxu0 %v7251
    %v7389 = vpop.f32.mrb[0].mxu0
    %v7390 = vadd.f32 0.0, %v7389
    %v7391 = vpop.f32.mrb[0].mxu0
    %7392 = vdwg.mxu0
    %7393 = vmatprep.subr.mxu0 0.0
    %7394 = vmatpush1.msra.mxu0 %v6037
    %7395 = vmatprep.subr.mxu0 0.0
    %7396 = vmatpush1.msra.mxu0 %v6038
    %7397 = vmatprep.subr.mxu0 0.0
    %7398 = vmatpush1.msra.mxu0 %v6039
    %7399 = vmatprep.subr.mxu0 0.0
    %7400 = vmatpush1.msra.mxu0 %v6040
    %7401 = vmatprep.subr.mxu0 0.0
    %7402 = vmatpush1.msra.mxu0 0.0
    %7403 = vmatprep.subr.mxu0 0.0
    %7404 = vmatpush1.msra.mxu0 0.0
    %7405 = vmatprep.subr.mxu0 0.0
    %7406 = vmatpush1.msra.mxu0 0.0
    %7407 = vmatprep.subr.mxu0 0.0
    %7408 = vmatpush1.msra.mxu0 0.0
    %7409 = vmatprep.subr.mxu0 0.0
    %7410 = vmatpush1.msra.mxu0 0.0
    %7411 = vmatprep.subr.mxu0 0.0
    %7412 = vmatpush1.msra.mxu0 0.0
    %7413 = vmatprep.subr.mxu0 0.0
    %7414 = vmatpush1.msra.mxu0 0.0
    %7415 = vmatprep.subr.mxu0 0.0
    %7416 = vmatpush1.msra.mxu0 0.0
    %7417 = vmatprep.subr.mxu0 0.0
    %7418 = vmatpush1.msra.mxu0 0.0
    %7419 = vmatprep.subr.mxu0 0.0
    %7420 = vmatpush1.msra.mxu0 0.0
    %7421 = vmatprep.subr.mxu0 0.0
    %7422 = vmatpush1.msra.mxu0 0.0
    %7423 = vmatprep.subr.mxu0 0.0
    %7424 = vmatpush1.msra.mxu0 0.0
    %7425 = vmatprep.subr.mxu0 0.0
    %7426 = vmatpush1.msra.mxu0 0.0
    %7427 = vmatprep.subr.mxu0 0.0
    %7428 = vmatpush1.msra.mxu0 0.0
    %7429 = vmatprep.subr.mxu0 0.0
    %7430 = vmatpush1.msra.mxu0 0.0
    %7431 = vmatprep.subr.mxu0 0.0
    %7432 = vmatpush1.msra.mxu0 0.0
    %7433 = vmatprep.subr.mxu0 0.0
    %7434 = vmatpush1.msra.mxu0 0.0
    %7435 = vmatprep.subr.mxu0 0.0
    %7436 = vmatpush1.msra.mxu0 0.0
    %7437 = vmatprep.subr.mxu0 0.0
    %7438 = vmatpush1.msra.mxu0 0.0
    %7439 = vmatprep.subr.mxu0 0.0
    %7440 = vmatpush1.msra.mxu0 0.0
    %7441 = vmatprep.subr.mxu0 0.0
    %7442 = vmatpush1.msra.mxu0 0.0
    %7443 = vmatprep.subr.mxu0 0.0
    %7444 = vmatpush1.msra.mxu0 0.0
    %7445 = vmatprep.subr.mxu0 0.0
    %7446 = vmatpush1.msra.mxu0 0.0
    %7447 = vmatprep.subr.mxu0 0.0
    %7448 = vmatpush1.msra.mxu0 0.0
    %7449 = vmatprep.subr.mxu0 0.0
    %7450 = vmatpush1.msra.mxu0 0.0
    %7451 = vmatprep.subr.mxu0 0.0
    %7452 = vmatpush1.msra.mxu0 0.0
    %7453 = vmatprep.subr.mxu0 0.0
    %7454 = vmatpush1.msra.mxu0 0.0
    %7455 = vmatprep.subr.mxu0 0.0
    %7456 = vmatpush1.msra.mxu0 0.0
    %7457 = vmatprep.mubr.f32.mxu0 0.0
    %7458 = vmatmul.mubr.f32.gmra.mrb[0].mxu0 %v7251
    %v7459 = vpop.f32.mrb[0].mxu0
    %v7460 = vadd.f32 %v6046, %v7459
    %v7461 = vpop.f32.mrb[0].mxu0
    %7462 = vdwg.mxu0
    %v7463 = vld [vmem:[%s2758] sm:$0xff]
    %v7464 = vadd.f32 %v7463, %v7320
    %v7465 = vxor.u32 %v7464, 2147483648
    %v7466 = vmul.f32 %v7465, 1.442695
    %v7467 = vpow.pop %v7466
    %v7468 = vadd.f32 %v7467, 1.0
    %v7469 = vrcp.pop %v7468
    %v7470 = vmul.f32 1.0, %v7469
    %v7471 = vld [vmem:[%s2767] sm:$0xff]
    %v7472 = vadd.f32 %v7471, %v7390
    %v7473 = vxor.u32 %v7472, 2147483648
    %v7474 = vmul.f32 %v7473, 1.442695
    %v7475 = vpow.pop %v7474
    %v7476 = vadd.f32 %v7475, 1.0
    %v7477 = vrcp.pop %v7476
    %v7478 = vmul.f32 1.0, %v7477
    %v7479 = vld [vmem:[%s2776] sm:$0xff]
    %v7480 = vmul.f32 %v7470, %v7460
    %v7481 = vadd.f32 %v7479, %v7480
    %v7482 = vtanh.pop %v7481
    %v7483 = vsub.f32 1.0, %v7478
    %v7484 = vmul.f32 %v7483, %v7482
    %v7485 = vmul.f32 %v7478, %v7249
    %v7486 = vadd.f32 %v7484, %v7485
    %7487 = vst.msk [vmem:[#allocation7] sm:$0xff] %vm1043, %v7486
    %7488 = vst.msk [vmem:[%s2786] sm:$0xff] %vm1043, %v7486
    %v7489 = vld [vmem:[#allocation7] sm:$0xff]
    %v7491 = vsel %vm1043, %v7489, 0
    %7493 = vmatprep.subr.mxu0 0.0
    %7494 = vmatpush1.msra.mxu0 %v6029
    %7495 = vmatprep.subr.mxu0 0.0
    %7496 = vmatpush1.msra.mxu0 %v6030
    %7497 = vmatprep.subr.mxu0 0.0
    %7498 = vmatpush1.msra.mxu0 %v6031
    %7499 = vmatprep.subr.mxu0 0.0
    %7500 = vmatpush1.msra.mxu0 %v6032
    %7501 = vmatprep.subr.mxu0 0.0
    %7502 = vmatpush1.msra.mxu0 0.0
    %7503 = vmatprep.subr.mxu0 0.0
    %7504 = vmatpush1.msra.mxu0 0.0
    %7505 = vmatprep.subr.mxu0 0.0
    %7506 = vmatpush1.msra.mxu0 0.0
    %7507 = vmatprep.subr.mxu0 0.0
    %7508 = vmatpush1.msra.mxu0 0.0
    %7509 = vmatprep.subr.mxu0 0.0
    %7510 = vmatpush1.msra.mxu0 0.0
    %7511 = vmatprep.subr.mxu0 0.0
    %7512 = vmatpush1.msra.mxu0 0.0
    %7513 = vmatprep.subr.mxu0 0.0
    %7514 = vmatpush1.msra.mxu0 0.0
    %7515 = vmatprep.subr.mxu0 0.0
    %7516 = vmatpush1.msra.mxu0 0.0
    %7517 = vmatprep.subr.mxu0 0.0
    %7518 = vmatpush1.msra.mxu0 0.0
    %7519 = vmatprep.subr.mxu0 0.0
    %7520 = vmatpush1.msra.mxu0 0.0
    %7521 = vmatprep.subr.mxu0 0.0
    %7522 = vmatpush1.msra.mxu0 0.0
    %7523 = vmatprep.subr.mxu0 0.0
    %7524 = vmatpush1.msra.mxu0 0.0
    %7525 = vmatprep.subr.mxu0 0.0
    %7526 = vmatpush1.msra.mxu0 0.0
    %7527 = vmatprep.subr.mxu0 0.0
    %7528 = vmatpush1.msra.mxu0 0.0
    %7529 = vmatprep.subr.mxu0 0.0
    %7530 = vmatpush1.msra.mxu0 0.0
    %7531 = vmatprep.subr.mxu0 0.0
    %7532 = vmatpush1.msra.mxu0 0.0
    %7533 = vmatprep.subr.mxu0 0.0
    %7534 = vmatpush1.msra.mxu0 0.0
    %7535 = vmatprep.subr.mxu0 0.0
    %7536 = vmatpush1.msra.mxu0 0.0
    %7537 = vmatprep.subr.mxu0 0.0
    %7538 = vmatpush1.msra.mxu0 0.0
    %7539 = vmatprep.subr.mxu0 0.0
    %7540 = vmatpush1.msra.mxu0 0.0
    %7541 = vmatprep.subr.mxu0 0.0
    %7542 = vmatpush1.msra.mxu0 0.0
    %7543 = vmatprep.subr.mxu0 0.0
    %7544 = vmatpush1.msra.mxu0 0.0
    %7545 = vmatprep.subr.mxu0 0.0
    %7546 = vmatpush1.msra.mxu0 0.0
    %7547 = vmatprep.subr.mxu0 0.0
    %7548 = vmatpush1.msra.mxu0 0.0
    %7549 = vmatprep.subr.mxu0 0.0
    %7550 = vmatpush1.msra.mxu0 0.0
    %7551 = vmatprep.subr.mxu0 0.0
    %7552 = vmatpush1.msra.mxu0 0.0
    %7553 = vmatprep.subr.mxu0 0.0
    %7554 = vmatpush1.msra.mxu0 0.0
    %7555 = vmatprep.subr.mxu0 0.0
    %7556 = vmatpush1.msra.mxu0 0.0
    %7557 = vmatprep.mubr.f32.mxu0 0.0
    %7558 = vmatmul.mubr.f32.gmra.mrb[0].mxu0 %v7491
    %v7559 = vpop.f32.mrb[0].mxu0
    %v7560 = vadd.f32 0.0, %v7559
    %v7561 = vpop.f32.mrb[0].mxu0
    %7562 = vdwg.mxu0
    %7563 = vmatprep.subr.mxu0 0.0
    %7564 = vmatpush1.msra.mxu0 %v6033
    %7565 = vmatprep.subr.mxu0 0.0
    %7566 = vmatpush1.msra.mxu0 %v6034
    %7567 = vmatprep.subr.mxu0 0.0
    %7568 = vmatpush1.msra.mxu0 %v6035
    %7569 = vmatprep.subr.mxu0 0.0
    %7570 = vmatpush1.msra.mxu0 %v6036
    %7571 = vmatprep.subr.mxu0 0.0
    %7572 = vmatpush1.msra.mxu0 0.0
    %7573 = vmatprep.subr.mxu0 0.0
    %7574 = vmatpush1.msra.mxu0 0.0
    %7575 = vmatprep.subr.mxu0 0.0
    %7576 = vmatpush1.msra.mxu0 0.0
    %7577 = vmatprep.subr.mxu0 0.0
    %7578 = vmatpush1.msra.mxu0 0.0
    %7579 = vmatprep.subr.mxu0 0.0
    %7580 = vmatpush1.msra.mxu0 0.0
    %7581 = vmatprep.subr.mxu0 0.0
    %7582 = vmatpush1.msra.mxu0 0.0
    %7583 = vmatprep.subr.mxu0 0.0
    %7584 = vmatpush1.msra.mxu0 0.0
    %7585 = vmatprep.subr.mxu0 0.0
    %7586 = vmatpush1.msra.mxu0 0.0
    %7587 = vmatprep.subr.mxu0 0.0
    %7588 = vmatpush1.msra.mxu0 0.0
    %7589 = vmatprep.subr.mxu0 0.0
    %7590 = vmatpush1.msra.mxu0 0.0
    %7591 = vmatprep.subr.mxu0 0.0
    %7592 = vmatpush1.msra.mxu0 0.0
    %7593 = vmatprep.subr.mxu0 0.0
    %7594 = vmatpush1.msra.mxu0 0.0
    %7595 = vmatprep.subr.mxu0 0.0
    %7596 = vmatpush1.msra.mxu0 0.0
    %7597 = vmatprep.subr.mxu0 0.0
    %7598 = vmatpush1.msra.mxu0 0.0
    %7599 = vmatprep.subr.mxu0 0.0
    %7600 = vmatpush1.msra.mxu0 0.0
    %7601 = vmatprep.subr.mxu0 0.0
    %7602 = vmatpush1.msra.mxu0 0.0
    %7603 = vmatprep.subr.mxu0 0.0
    %7604 = vmatpush1.msra.mxu0 0.0
    %7605 = vmatprep.subr.mxu0 0.0
    %7606 = vmatpush1.msra.mxu0 0.0
    %7607 = vmatprep.subr.mxu0 0.0
    %7608 = vmatpush1.msra.mxu0 0.0
    %7609 = vmatprep.subr.mxu0 0.0
    %7610 = vmatpush1.msra.mxu0 0.0
    %7611 = vmatprep.subr.mxu0 0.0
    %7612 = vmatpush1.msra.mxu0 0.0
    %7613 = vmatprep.subr.mxu0 0.0
    %7614 = vmatpush1.msra.mxu0 0.0
    %7615 = vmatprep.subr.mxu0 0.0
    %7616 = vmatpush1.msra.mxu0 0.0
    %7617 = vmatprep.subr.mxu0 0.0
    %7618 = vmatpush1.msra.mxu0 0.0
    %7619 = vmatprep.subr.mxu0 0.0
    %7620 = vmatpush1.msra.mxu0 0.0
    %7621 = vmatprep.subr.mxu0 0.0
    %7622 = vmatpush1.msra.mxu0 0.0
    %7623 = vmatprep.subr.mxu0 0.0
    %7624 = vmatpush1.msra.mxu0 0.0
    %7625 = vmatprep.subr.mxu0 0.0
    %7626 = vmatpush1.msra.mxu0 0.0
    %7627 = vmatprep.mubr.f32.mxu0 0.0
    %7628 = vmatmul.mubr.f32.gmra.mrb[0].mxu0 %v7491
    %v7629 = vpop.f32.mrb[0].mxu0
    %v7630 = vadd.f32 0.0, %v7629
    %v7631 = vpop.f32.mrb[0].mxu0
    %7632 = vdwg.mxu0
    %7633 = vmatprep.subr.mxu0 0.0
    %7634 = vmatpush1.msra.mxu0 %v6037
    %7635 = vmatprep.subr.mxu0 0.0
    %7636 = vmatpush1.msra.mxu0 %v6038
    %7637 = vmatprep.subr.mxu0 0.0
    %7638 = vmatpush1.msra.mxu0 %v6039
    %7639 = vmatprep.subr.mxu0 0.0
    %7640 = vmatpush1.msra.mxu0 %v6040
    %7641 = vmatprep.subr.mxu0 0.0
    %7642 = vmatpush1.msra.mxu0 0.0
    %7643 = vmatprep.subr.mxu0 0.0
    %7644 = vmatpush1.msra.mxu0 0.0
    %7645 = vmatprep.subr.mxu0 0.0
    %7646 = vmatpush1.msra.mxu0 0.0
    %7647 = vmatprep.subr.mxu0 0.0
    %7648 = vmatpush1.msra.mxu0 0.0
    %7649 = vmatprep.subr.mxu0 0.0
    %7650 = vmatpush1.msra.mxu0 0.0
    %7651 = vmatprep.subr.mxu0 0.0
    %7652 = vmatpush1.msra.mxu0 0.0
    %7653 = vmatprep.subr.mxu0 0.0
    %7654 = vmatpush1.msra.mxu0 0.0
    %7655 = vmatprep.subr.mxu0 0.0
    %7656 = vmatpush1.msra.mxu0 0.0
    %7657 = vmatprep.subr.mxu0 0.0
    %7658 = vmatpush1.msra.mxu0 0.0
    %7659 = vmatprep.subr.mxu0 0.0
    %7660 = vmatpush1.msra.mxu0 0.0
    %7661 = vmatprep.subr.mxu0 0.0
    %7662 = vmatpush1.msra.mxu0 0.0
    %7663 = vmatprep.subr.mxu0 0.0
    %7664 = vmatpush1.msra.mxu0 0.0
    %7665 = vmatprep.subr.mxu0 0.0
    %7666 = vmatpush1.msra.mxu0 0.0
    %7667 = vmatprep.subr.mxu0 0.0
    %7668 = vmatpush1.msra.mxu0 0.0
    %7669 = vmatprep.subr.mxu0 0.0
    %7670 = vmatpush1.msra.mxu0 0.0
    %7671 = vmatprep.subr.mxu0 0.0
    %7672 = vmatpush1.msra.mxu0 0.0
    %7673 = vmatprep.subr.mxu0 0.0
    %7674 = vmatpush1.msra.mxu0 0.0
    %7675 = vmatprep.subr.mxu0 0.0
    %7676 = vmatpush1.msra.mxu0 0.0
    %7677 = vmatprep.subr.mxu0 0.0
    %7678 = vmatpush1.msra.mxu0 0.0
    %7679 = vmatprep.subr.mxu0 0.0
    %7680 = vmatpush1.msra.mxu0 0.0
    %7681 = vmatprep.subr.mxu0 0.0
    %7682 = vmatpush1.msra.mxu0 0.0
    %7683 = vmatprep.subr.mxu0 0.0
    %7684 = vmatpush1.msra.mxu0 0.0
    %7685 = vmatprep.subr.mxu0 0.0
    %7686 = vmatpush1.msra.mxu0 0.0
    %7687 = vmatprep.subr.mxu0 0.0
    %7688 = vmatpush1.msra.mxu0 0.0
    %7689 = vmatprep.subr.mxu0 0.0
    %7690 = vmatpush1.msra.mxu0 0.0
    %7691 = vmatprep.subr.mxu0 0.0
    %7692 = vmatpush1.msra.mxu0 0.0
    %7693 = vmatprep.subr.mxu0 0.0
    %7694 = vmatpush1.msra.mxu0 0.0
    %7695 = vmatprep.subr.mxu0 0.0
    %7696 = vmatpush1.msra.mxu0 0.0
    %7697 = vmatprep.mubr.f32.mxu0 0.0
    %7698 = vmatmul.mubr.f32.gmra.mrb[0].mxu0 %v7491
    %v7699 = vpop.f32.mrb[0].mxu0
    %v7700 = vadd.f32 %v6046, %v7699
    %v7701 = vpop.f32.mrb[0].mxu0
    %7702 = vdwg.mxu0
    %v7703 = vld [vmem:[%s3002] sm:$0xff]
    %v7704 = vadd.f32 %v7703, %v7560
    %v7705 = vxor.u32 %v7704, 2147483648
    %v7706 = vmul.f32 %v7705, 1.442695
    %v7707 = vpow.pop %v7706
    %v7708 = vadd.f32 %v7707, 1.0
    %v7709 = vrcp.pop %v7708
    %v7710 = vmul.f32 1.0, %v7709
    %v7711 = vld [vmem:[%s3011] sm:$0xff]
    %v7712 = vadd.f32 %v7711, %v7630
    %v7713 = vxor.u32 %v7712, 2147483648
    %v7714 = vmul.f32 %v7713, 1.442695
    %v7715 = vpow.pop %v7714
    %v7716 = vadd.f32 %v7715, 1.0
    %v7717 = vrcp.pop %v7716
    %v7718 = vmul.f32 1.0, %v7717
    %v7719 = vld [vmem:[%s3020] sm:$0xff]
    %v7720 = vmul.f32 %v7710, %v7700
    %v7721 = vadd.f32 %v7719, %v7720
    %v7722 = vtanh.pop %v7721
    %v7723 = vsub.f32 1.0, %v7718
    %v7724 = vmul.f32 %v7723, %v7722
    %v7725 = vmul.f32 %v7718, %v7489
    %v7726 = vadd.f32 %v7724, %v7725
    %7727 = vst.msk [vmem:[#allocation7] sm:$0xff] %vm1043, %v7726
    %7728 = vst.msk [vmem:[%s3030] sm:$0xff] %vm1043, %v7726
    %v7729 = vld [vmem:[#allocation7] sm:$0xff]
    %v7731 = vsel %vm1043, %v7729, 0
    %7733 = vmatprep.subr.mxu0 0.0
    %7734 = vmatpush1.msra.mxu0 %v6029
    %7735 = vmatprep.subr.mxu0 0.0
    %7736 = vmatpush1.msra.mxu0 %v6030
    %7737 = vmatprep.subr.mxu0 0.0
    %7738 = vmatpush1.msra.mxu0 %v6031
    %7739 = vmatprep.subr.mxu0 0.0
    %7740 = vmatpush1.msra.mxu0 %v6032
    %7741 = vmatprep.subr.mxu0 0.0
    %7742 = vmatpush1.msra.mxu0 0.0
    %7743 = vmatprep.subr.mxu0 0.0
    %7744 = vmatpush1.msra.mxu0 0.0
    %7745 = vmatprep.subr.mxu0 0.0
    %7746 = vmatpush1.msra.mxu0 0.0
    %7747 = vmatprep.subr.mxu0 0.0
    %7748 = vmatpush1.msra.mxu0 0.0
    %7749 = vmatprep.subr.mxu0 0.0
    %7750 = vmatpush1.msra.mxu0 0.0
    %7751 = vmatprep.subr.mxu0 0.0
    %7752 = vmatpush1.msra.mxu0 0.0
    %7753 = vmatprep.subr.mxu0 0.0
    %7754 = vmatpush1.msra.mxu0 0.0
    %7755 = vmatprep.subr.mxu0 0.0
    %7756 = vmatpush1.msra.mxu0 0.0
    %7757 = vmatprep.subr.mxu0 0.0
    %7758 = vmatpush1.msra.mxu0 0.0
    %7759 = vmatprep.subr.mxu0 0.0
    %7760 = vmatpush1.msra.mxu0 0.0
    %7761 = vmatprep.subr.mxu0 0.0
    %7762 = vmatpush1.msra.mxu0 0.0
    %7763 = vmatprep.subr.mxu0 0.0
    %7764 = vmatpush1.msra.mxu0 0.0
    %7765 = vmatprep.subr.mxu0 0.0
    %7766 = vmatpush1.msra.mxu0 0.0
    %7767 = vmatprep.subr.mxu0 0.0
    %7768 = vmatpush1.msra.mxu0 0.0
    %7769 = vmatprep.subr.mxu0 0.0
    %7770 = vmatpush1.msra.mxu0 0.0
    %7771 = vmatprep.subr.mxu0 0.0
    %7772 = vmatpush1.msra.mxu0 0.0
    %7773 = vmatprep.subr.mxu0 0.0
    %7774 = vmatpush1.msra.mxu0 0.0
    %7775 = vmatprep.subr.mxu0 0.0
    %7776 = vmatpush1.msra.mxu0 0.0
    %7777 = vmatprep.subr.mxu0 0.0
    %7778 = vmatpush1.msra.mxu0 0.0
    %7779 = vmatprep.subr.mxu0 0.0
    %7780 = vmatpush1.msra.mxu0 0.0
    %7781 = vmatprep.subr.mxu0 0.0
    %7782 = vmatpush1.msra.mxu0 0.0
    %7783 = vmatprep.subr.mxu0 0.0
    %7784 = vmatpush1.msra.mxu0 0.0
    %7785 = vmatprep.subr.mxu0 0.0
    %7786 = vmatpush1.msra.mxu0 0.0
    %7787 = vmatprep.subr.mxu0 0.0
    %7788 = vmatpush1.msra.mxu0 0.0
    %7789 = vmatprep.subr.mxu0 0.0
    %7790 = vmatpush1.msra.mxu0 0.0
    %7791 = vmatprep.subr.mxu0 0.0
    %7792 = vmatpush1.msra.mxu0 0.0
    %7793 = vmatprep.subr.mxu0 0.0
    %7794 = vmatpush1.msra.mxu0 0.0
    %7795 = vmatprep.subr.mxu0 0.0
    %7796 = vmatpush1.msra.mxu0 0.0
    %7797 = vmatprep.mubr.f32.mxu0 0.0
    %7798 = vmatmul.mubr.f32.gmra.mrb[0].mxu0 %v7731
    %v7799 = vpop.f32.mrb[0].mxu0
    %v7800 = vadd.f32 0.0, %v7799
    %v7801 = vpop.f32.mrb[0].mxu0
    %7802 = vdwg.mxu0
    %7803 = vmatprep.subr.mxu0 0.0
    %7804 = vmatpush1.msra.mxu0 %v6033
    %7805 = vmatprep.subr.mxu0 0.0
    %7806 = vmatpush1.msra.mxu0 %v6034
    %7807 = vmatprep.subr.mxu0 0.0
    %7808 = vmatpush1.msra.mxu0 %v6035
    %7809 = vmatprep.subr.mxu0 0.0
    %7810 = vmatpush1.msra.mxu0 %v6036
    %7811 = vmatprep.subr.mxu0 0.0
    %7812 = vmatpush1.msra.mxu0 0.0
    %7813 = vmatprep.subr.mxu0 0.0
    %7814 = vmatpush1.msra.mxu0 0.0
    %7815 = vmatprep.subr.mxu0 0.0
    %7816 = vmatpush1.msra.mxu0 0.0
    %7817 = vmatprep.subr.mxu0 0.0
    %7818 = vmatpush1.msra.mxu0 0.0
    %7819 = vmatprep.subr.mxu0 0.0
    %7820 = vmatpush1.msra.mxu0 0.0
    %7821 = vmatprep.subr.mxu0 0.0
    %7822 = vmatpush1.msra.mxu0 0.0
    %7823 = vmatprep.subr.mxu0 0.0
    %7824 = vmatpush1.msra.mxu0 0.0
    %7825 = vmatprep.subr.mxu0 0.0
    %7826 = vmatpush1.msra.mxu0 0.0
    %7827 = vmatprep.subr.mxu0 0.0
    %7828 = vmatpush1.msra.mxu0 0.0
    %7829 = vmatprep.subr.mxu0 0.0
    %7830 = vmatpush1.msra.mxu0 0.0
    %7831 = vmatprep.subr.mxu0 0.0
    %7832 = vmatpush1.msra.mxu0 0.0
    %7833 = vmatprep.subr.mxu0 0.0
    %7834 = vmatpush1.msra.mxu0 0.0
    %7835 = vmatprep.subr.mxu0 0.0
    %7836 = vmatpush1.msra.mxu0 0.0
    %7837 = vmatprep.subr.mxu0 0.0
    %7838 = vmatpush1.msra.mxu0 0.0
    %7839 = vmatprep.subr.mxu0 0.0
    %7840 = vmatpush1.msra.mxu0 0.0
    %7841 = vmatprep.subr.mxu0 0.0
    %7842 = vmatpush1.msra.mxu0 0.0
    %7843 = vmatprep.subr.mxu0 0.0
    %7844 = vmatpush1.msra.mxu0 0.0
    %7845 = vmatprep.subr.mxu0 0.0
    %7846 = vmatpush1.msra.mxu0 0.0
    %7847 = vmatprep.subr.mxu0 0.0
    %7848 = vmatpush1.msra.mxu0 0.0
    %7849 = vmatprep.subr.mxu0 0.0
    %7850 = vmatpush1.msra.mxu0 0.0
    %7851 = vmatprep.subr.mxu0 0.0
    %7852 = vmatpush1.msra.mxu0 0.0
    %7853 = vmatprep.subr.mxu0 0.0
    %7854 = vmatpush1.msra.mxu0 0.0
    %7855 = vmatprep.subr.mxu0 0.0
    %7856 = vmatpush1.msra.mxu0 0.0
    %7857 = vmatprep.subr.mxu0 0.0
    %7858 = vmatpush1.msra.mxu0 0.0
    %7859 = vmatprep.subr.mxu0 0.0
    %7860 = vmatpush1.msra.mxu0 0.0
    %7861 = vmatprep.subr.mxu0 0.0
    %7862 = vmatpush1.msra.mxu0 0.0
    %7863 = vmatprep.subr.mxu0 0.0
    %7864 = vmatpush1.msra.mxu0 0.0
    %7865 = vmatprep.subr.mxu0 0.0
    %7866 = vmatpush1.msra.mxu0 0.0
    %7867 = vmatprep.mubr.f32.mxu0 0.0
    %7868 = vmatmul.mubr.f32.gmra.mrb[0].mxu0 %v7731
    %v7869 = vpop.f32.mrb[0].mxu0
    %v7870 = vadd.f32 0.0, %v7869
    %v7871 = vpop.f32.mrb[0].mxu0
    %7872 = vdwg.mxu0
    %7873 = vmatprep.subr.mxu0 0.0
    %7874 = vmatpush1.msra.mxu0 %v6037
    %7875 = vmatprep.subr.mxu0 0.0
    %7876 = vmatpush1.msra.mxu0 %v6038
    %7877 = vmatprep.subr.mxu0 0.0
    %7878 = vmatpush1.msra.mxu0 %v6039
    %7879 = vmatprep.subr.mxu0 0.0
    %7880 = vmatpush1.msra.mxu0 %v6040
    %7881 = vmatprep.subr.mxu0 0.0
    %7882 = vmatpush1.msra.mxu0 0.0
    %7883 = vmatprep.subr.mxu0 0.0
    %7884 = vmatpush1.msra.mxu0 0.0
    %7885 = vmatprep.subr.mxu0 0.0
    %7886 = vmatpush1.msra.mxu0 0.0
    %7887 = vmatprep.subr.mxu0 0.0
    %7888 = vmatpush1.msra.mxu0 0.0
    %7889 = vmatprep.subr.mxu0 0.0
    %7890 = vmatpush1.msra.mxu0 0.0
    %7891 = vmatprep.subr.mxu0 0.0
    %7892 = vmatpush1.msra.mxu0 0.0
    %7893 = vmatprep.subr.mxu0 0.0
    %7894 = vmatpush1.msra.mxu0 0.0
    %7895 = vmatprep.subr.mxu0 0.0
    %7896 = vmatpush1.msra.mxu0 0.0
    %7897 = vmatprep.subr.mxu0 0.0
    %7898 = vmatpush1.msra.mxu0 0.0
    %7899 = vmatprep.subr.mxu0 0.0
    %7900 = vmatpush1.msra.mxu0 0.0
    %7901 = vmatprep.subr.mxu0 0.0
    %7902 = vmatpush1.msra.mxu0 0.0
    %7903 = vmatprep.subr.mxu0 0.0
    %7904 = vmatpush1.msra.mxu0 0.0
    %7905 = vmatprep.subr.mxu0 0.0
    %7906 = vmatpush1.msra.mxu0 0.0
    %7907 = vmatprep.subr.mxu0 0.0
    %7908 = vmatpush1.msra.mxu0 0.0
    %7909 = vmatprep.subr.mxu0 0.0
    %7910 = vmatpush1.msra.mxu0 0.0
    %7911 = vmatprep.subr.mxu0 0.0
    %7912 = vmatpush1.msra.mxu0 0.0
    %7913 = vmatprep.subr.mxu0 0.0
    %7914 = vmatpush1.msra.mxu0 0.0
    %7915 = vmatprep.subr.mxu0 0.0
    %7916 = vmatpush1.msra.mxu0 0.0
    %7917 = vmatprep.subr.mxu0 0.0
    %7918 = vmatpush1.msra.mxu0 0.0
    %7919 = vmatprep.subr.mxu0 0.0
    %7920 = vmatpush1.msra.mxu0 0.0
    %7921 = vmatprep.subr.mxu0 0.0
    %7922 = vmatpush1.msra.mxu0 0.0
    %7923 = vmatprep.subr.mxu0 0.0
    %7924 = vmatpush1.msra.mxu0 0.0
    %7925 = vmatprep.subr.mxu0 0.0
    %7926 = vmatpush1.msra.mxu0 0.0
    %7927 = vmatprep.subr.mxu0 0.0
    %7928 = vmatpush1.msra.mxu0 0.0
    %7929 = vmatprep.subr.mxu0 0.0
    %7930 = vmatpush1.msra.mxu0 0.0
    %7931 = vmatprep.subr.mxu0 0.0
    %7932 = vmatpush1.msra.mxu0 0.0
    %7933 = vmatprep.subr.mxu0 0.0
    %7934 = vmatpush1.msra.mxu0 0.0
    %7935 = vmatprep.subr.mxu0 0.0
    %7936 = vmatpush1.msra.mxu0 0.0
    %7937 = vmatprep.mubr.f32.mxu0 0.0
    %7938 = vmatmul.mubr.f32.gmra.mrb[0].mxu0 %v7731
    %v7939 = vpop.f32.mrb[0].mxu0
    %v7940 = vadd.f32 %v6046, %v7939
    %v7941 = vpop.f32.mrb[0].mxu0
    %7942 = vdwg.mxu0
    %v7943 = vld [vmem:[%s3246] sm:$0xff]
    %v7944 = vadd.f32 %v7943, %v7800
    %v7945 = vxor.u32 %v7944, 2147483648
    %v7946 = vmul.f32 %v7945, 1.442695
    %v7947 = vpow.pop %v7946
    %v7948 = vadd.f32 %v7947, 1.0
    %v7949 = vrcp.pop %v7948
    %v7950 = vmul.f32 1.0, %v7949
    %v7951 = vld [vmem:[%s3255] sm:$0xff]
    %v7952 = vadd.f32 %v7951, %v7870
    %v7953 = vxor.u32 %v7952, 2147483648
    %v7954 = vmul.f32 %v7953, 1.442695
    %v7955 = vpow.pop %v7954
    %v7956 = vadd.f32 %v7955, 1.0
    %v7957 = vrcp.pop %v7956
    %v7958 = vmul.f32 1.0, %v7957
    %v7959 = vld [vmem:[%s3264] sm:$0xff]
    %v7960 = vmul.f32 %v7950, %v7940
    %v7961 = vadd.f32 %v7959, %v7960
    %v7962 = vtanh.pop %v7961
    %v7963 = vsub.f32 1.0, %v7958
    %v7964 = vmul.f32 %v7963, %v7962
    %v7965 = vmul.f32 %v7958, %v7729
    %v7966 = vadd.f32 %v7964, %v7965
    %7967 = vst.msk [vmem:[#allocation7] sm:$0xff] %vm1043, %v7966
    %7968 = vst.msk [vmem:[%s3274] sm:$0xff] %vm1043, %v7966
    %v7969 = vld [vmem:[#allocation7] sm:$0xff]
    %s7970 = scalar_lea.vmem [#allocation8], 16
    %7971 = vst.msk [vmem:[%s7970] sm:$0xff] %vm1043, %v7969
    %v7972 = vld [vmem:[#allocation6] sm:$0xff]
    %v7973 = vld [vmem:[#allocation6 + $0x8] sm:$0xff]
    %v7974 = vld [vmem:[#allocation6 + $0x10] sm:$0xff]
    %v7975 = vld [vmem:[#allocation6 + $0x18] sm:$0xff]
    %v7976 = vld [vmem:[#allocation6 + $0x20] sm:$0xff]
    %v7977 = vld [vmem:[#allocation6 + $0x28] sm:$0xff]
    %v7978 = vld [vmem:[#allocation6 + $0x30] sm:$0xff]
    %v7979 = vld [vmem:[#allocation6 + $0x38] sm:$0xff]
    %v7980 = vld [vmem:[%s75] sm:$0xff]
    %v7981 = vld [vmem:[%s75 + $0x8] sm:$0xff]
    %v7982 = vld [vmem:[%s75 + $0x10] sm:$0xff]
    %v7983 = vld [vmem:[%s75 + $0x18] sm:$0xff]
    %v7984 = vld [vmem:[%s77] sm:$0x1]
    %v7986 = vlaneseq
    %v7987 = vshrl.u32 %v7986, 7
    %v7988 = vsub.s32 0, %v7987
    %v7989 = vrot.slane %v7984, %v7988
    %v7992 = vsel %vm1043, %v7972, 0
    %v7995 = vsel %vm1043, %v7973, 0
    %v7998 = vsel %vm1043, %v7974, 0
    %v8001 = vsel %vm1043, %v7975, 0
    %v8004 = vsel %vm1043, %v7976, 0
    %v8007 = vsel %vm1043, %v7977, 0
    %v8010 = vsel %vm1043, %v7978, 0
    %v8013 = vsel %vm1043, %v7979, 0
    %8015 = vmatprep.subr.mxu0 0.0
    %8016 = vmatpush1.msra.mxu0 %v7980
    %8017 = vmatprep.subr.mxu0 0.0
    %8018 = vmatpush1.msra.mxu0 %v7981
    %8019 = vmatprep.subr.mxu0 0.0
    %8020 = vmatpush1.msra.mxu0 %v7982
    %8021 = vmatprep.subr.mxu0 0.0
    %8022 = vmatpush1.msra.mxu0 %v7983
    %8023 = vmatprep.subr.mxu0 0.0
    %8024 = vmatpush1.msra.mxu0 0.0
    %8025 = vmatprep.subr.mxu0 0.0
    %8026 = vmatpush1.msra.mxu0 0.0
    %8027 = vmatprep.subr.mxu0 0.0
    %8028 = vmatpush1.msra.mxu0 0.0
    %8029 = vmatprep.subr.mxu0 0.0
    %8030 = vmatpush1.msra.mxu0 0.0
    %8031 = vmatprep.subr.mxu0 0.0
    %8032 = vmatpush1.msra.mxu0 0.0
    %8033 = vmatprep.subr.mxu0 0.0
    %8034 = vmatpush1.msra.mxu0 0.0
    %8035 = vmatprep.subr.mxu0 0.0
    %8036 = vmatpush1.msra.mxu0 0.0
    %8037 = vmatprep.subr.mxu0 0.0
    %8038 = vmatpush1.msra.mxu0 0.0
    %8039 = vmatprep.subr.mxu0 0.0
    %8040 = vmatpush1.msra.mxu0 0.0
    %8041 = vmatprep.subr.mxu0 0.0
    %8042 = vmatpush1.msra.mxu0 0.0
    %8043 = vmatprep.subr.mxu0 0.0
    %8044 = vmatpush1.msra.mxu0 0.0
    %8045 = vmatprep.subr.mxu0 0.0
    %8046 = vmatpush1.msra.mxu0 0.0
    %8047 = vmatprep.subr.mxu0 0.0
    %8048 = vmatpush1.msra.mxu0 0.0
    %8049 = vmatprep.subr.mxu0 0.0
    %8050 = vmatpush1.msra.mxu0 0.0
    %8051 = vmatprep.subr.mxu0 0.0
    %8052 = vmatpush1.msra.mxu0 0.0
    %8053 = vmatprep.subr.mxu0 0.0
    %8054 = vmatpush1.msra.mxu0 0.0
    %8055 = vmatprep.subr.mxu0 0.0
    %8056 = vmatpush1.msra.mxu0 0.0
    %8057 = vmatprep.subr.mxu0 0.0
    %8058 = vmatpush1.msra.mxu0 0.0
    %8059 = vmatprep.subr.mxu0 0.0
    %8060 = vmatpush1.msra.mxu0 0.0
    %8061 = vmatprep.subr.mxu0 0.0
    %8062 = vmatpush1.msra.mxu0 0.0
    %8063 = vmatprep.subr.mxu0 0.0
    %8064 = vmatpush1.msra.mxu0 0.0
    %8065 = vmatprep.subr.mxu0 0.0
    %8066 = vmatpush1.msra.mxu0 0.0
    %8067 = vmatprep.subr.mxu0 0.0
    %8068 = vmatpush1.msra.mxu0 0.0
    %8069 = vmatprep.subr.mxu0 0.0
    %8070 = vmatpush1.msra.mxu0 0.0
    %8071 = vmatprep.subr.mxu0 0.0
    %8072 = vmatpush1.msra.mxu0 0.0
    %8073 = vmatprep.subr.mxu0 0.0
    %8074 = vmatpush1.msra.mxu0 0.0
    %8075 = vmatprep.subr.mxu0 0.0
    %8076 = vmatpush1.msra.mxu0 0.0
    %8077 = vmatprep.subr.mxu0 0.0
    %8078 = vmatpush1.msra.mxu0 0.0
    %8079 = vmatprep.mubr.f32.mxu0 0.0
    %8080 = vmatmul.mubr.f32.gmra.mrb[0].mxu0 %v7992
    %v8081 = vpop.f32.mrb[0].mxu0
    %v8082 = vadd.f32 %v7989, %v8081
    %v8083 = vpop.f32.mrb[0].mxu0
    %8084 = vmatprep.mubr.f32.mxu0 0.0
    %8085 = vmatmul.mubr.f32.gmra.mrb[0].mxu0 %v7995
    %v8086 = vpop.f32.mrb[0].mxu0
    %v8087 = vadd.f32 %v7989, %v8086
    %v8088 = vpop.f32.mrb[0].mxu0
    %8089 = vmatprep.mubr.f32.mxu0 0.0
    %8090 = vmatmul.mubr.f32.gmra.mrb[0].mxu0 %v7998
    %v8091 = vpop.f32.mrb[0].mxu0
    %v8092 = vadd.f32 %v7989, %v8091
    %v8093 = vpop.f32.mrb[0].mxu0
    %8094 = vmatprep.mubr.f32.mxu0 0.0
    %8095 = vmatmul.mubr.f32.gmra.mrb[0].mxu0 %v8001
    %v8096 = vpop.f32.mrb[0].mxu0
    %v8097 = vadd.f32 %v7989, %v8096
    %v8098 = vpop.f32.mrb[0].mxu0
    %8099 = vmatprep.mubr.f32.mxu0 0.0
    %8100 = vmatmul.mubr.f32.gmra.mrb[0].mxu0 %v8004
    %v8101 = vpop.f32.mrb[0].mxu0
    %v8102 = vadd.f32 %v7989, %v8101
    %v8103 = vpop.f32.mrb[0].mxu0
    %8104 = vmatprep.mubr.f32.mxu0 0.0
    %8105 = vmatmul.mubr.f32.gmra.mrb[0].mxu0 %v8007
    %v8106 = vpop.f32.mrb[0].mxu0
    %v8107 = vadd.f32 %v7989, %v8106
    %v8108 = vpop.f32.mrb[0].mxu0
    %8109 = vmatprep.mubr.f32.mxu0 0.0
    %8110 = vmatmul.mubr.f32.gmra.mrb[0].mxu0 %v8010
    %v8111 = vpop.f32.mrb[0].mxu0
    %v8112 = vadd.f32 %v7989, %v8111
    %v8113 = vpop.f32.mrb[0].mxu0
    %8114 = vmatprep.mubr.f32.mxu0 0.0
    %8115 = vmatmul.mubr.f32.gmra.mrb[0].mxu0 %v8013
    %v8116 = vpop.f32.mrb[0].mxu0
    %v8117 = vadd.f32 %v7989, %v8116
    %v8118 = vpop.f32.mrb[0].mxu0
    %8119 = vdwg.mxu0
    %v8121 = vcombine.high %v8082, %v8082
    %v8123 = vunpack.c.l.s4 1966171168
    %v8124 = vunpack.c.0.s8 %v8123
    %v8125 = vlaneseq
    %v8126 = vshrl.u32 %v8125, 7
    %v8127 = vsub.s32 %v8124, %v8126
    %v8128 = vrot.slane %v8082, %v8127
    %v8130 = vunpack.c.l.s4 1966171168
    %v8131 = vunpack.c.0.s8 %v8130
    %v8132 = vlaneseq
    %v8133 = vshrl.u32 %v8132, 7
    %v8134 = vsub.s32 %v8131, %v8133
    %v8135 = vrot.slane %v8121, %v8134
    %v8136 = vcombine.high %v8128, %v8128
    %v8137 = vcombine.high %v8135, %v8135
    %v8139 = vunpack.c.l.s4 1966171168
    %v8140 = vunpack.c.0.s8 %v8139
    %v8141 = vlaneseq
    %v8142 = vshrl.u32 %v8141, 7
    %v8143 = vsub.s32 %v8140, %v8142
    %v8144 = vrot.slane %v8128, %v8143
    %v8146 = vunpack.c.l.s4 1966171168
    %v8147 = vunpack.c.0.s8 %v8146
    %v8148 = vlaneseq
    %v8149 = vshrl.u32 %v8148, 7
    %v8150 = vsub.s32 %v8147, %v8149
    %v8151 = vrot.slane %v8135, %v8150
    %v8153 = vunpack.c.l.s4 1966171168
    %v8154 = vunpack.c.0.s8 %v8153
    %v8155 = vlaneseq
    %v8156 = vshrl.u32 %v8155, 7
    %v8157 = vsub.s32 %v8154, %v8156
    %v8158 = vrot.slane %v8136, %v8157
    %v8160 = vunpack.c.l.s4 1966171168
    %v8161 = vunpack.c.0.s8 %v8160
    %v8162 = vlaneseq
    %v8163 = vshrl.u32 %v8162, 7
    %v8164 = vsub.s32 %v8161, %v8163
    %v8165 = vrot.slane %v8137, %v8164
    %v8166 = vcombine.high %v8144, %v8144
    %v8167 = vcombine.high %v8151, %v8151
    %v8168 = vcombine.high %v8158, %v8158
    %v8169 = vcombine.high %v8165, %v8165
    %vm8178 = vcmask 16384
    %8179 = vst.msk [vmem:[%s79] sm:$0x1] %vm8178, %v8144
    %8180 = vst.msk [vmem:[%s79 + $0x8] sm:$0x1] %vm8178, %v8158
    %8181 = vst.msk [vmem:[%s79 + $0x10] sm:$0x1] %vm8178, %v8166
    %8182 = vst.msk [vmem:[%s79 + $0x18] sm:$0x1] %vm8178, %v8168
    %8183 = vst.msk [vmem:[%s79 + $0x20] sm:$0x1] %vm8178, %v8151
    %8184 = vst.msk [vmem:[%s79 + $0x28] sm:$0x1] %vm8178, %v8165
    %8185 = vst.msk [vmem:[%s79 + $0x30] sm:$0x1] %vm8178, %v8167
    %8186 = vst.msk [vmem:[%s79 + $0x38] sm:$0x1] %vm8178, %v8169
    %v8188 = vcombine.high %v8087, %v8087
    %v8190 = vunpack.c.l.s4 1966171168
    %v8191 = vunpack.c.0.s8 %v8190
    %v8192 = vlaneseq
    %v8193 = vshrl.u32 %v8192, 7
    %v8194 = vsub.s32 %v8191, %v8193
    %v8195 = vrot.slane %v8087, %v8194
    %v8197 = vunpack.c.l.s4 1966171168
    %v8198 = vunpack.c.0.s8 %v8197
    %v8199 = vlaneseq
    %v8200 = vshrl.u32 %v8199, 7
    %v8201 = vsub.s32 %v8198, %v8200
    %v8202 = vrot.slane %v8188, %v8201
    %v8203 = vcombine.high %v8195, %v8195
    %v8204 = vcombine.high %v8202, %v8202
    %v8206 = vunpack.c.l.s4 1966171168
    %v8207 = vunpack.c.0.s8 %v8206
    %v8208 = vlaneseq
    %v8209 = vshrl.u32 %v8208, 7
    %v8210 = vsub.s32 %v8207, %v8209
    %v8211 = vrot.slane %v8195, %v8210
    %v8213 = vunpack.c.l.s4 1966171168
    %v8214 = vunpack.c.0.s8 %v8213
    %v8215 = vlaneseq
    %v8216 = vshrl.u32 %v8215, 7
    %v8217 = vsub.s32 %v8214, %v8216
    %v8218 = vrot.slane %v8202, %v8217
    %v8220 = vunpack.c.l.s4 1966171168
    %v8221 = vunpack.c.0.s8 %v8220
    %v8222 = vlaneseq
    %v8223 = vshrl.u32 %v8222, 7
    %v8224 = vsub.s32 %v8221, %v8223
    %v8225 = vrot.slane %v8203, %v8224
    %v8227 = vunpack.c.l.s4 1966171168
    %v8228 = vunpack.c.0.s8 %v8227
    %v8229 = vlaneseq
    %v8230 = vshrl.u32 %v8229, 7
    %v8231 = vsub.s32 %v8228, %v8230
    %v8232 = vrot.slane %v8204, %v8231
    %v8233 = vcombine.high %v8211, %v8211
    %v8234 = vcombine.high %v8218, %v8218
    %v8235 = vcombine.high %v8225, %v8225
    %v8236 = vcombine.high %v8232, %v8232
    %8245 = vst.msk [vmem:[%s79 + $0x1] sm:$0x1] %vm8178, %v8211
    %8246 = vst.msk [vmem:[%s79 + $0x9] sm:$0x1] %vm8178, %v8225
    %8247 = vst.msk [vmem:[%s79 + $0x11] sm:$0x1] %vm8178, %v8233
    %8248 = vst.msk [vmem:[%s79 + $0x19] sm:$0x1] %vm8178, %v8235
    %8249 = vst.msk [vmem:[%s79 + $0x21] sm:$0x1] %vm8178, %v8218
    %8250 = vst.msk [vmem:[%s79 + $0x29] sm:$0x1] %vm8178, %v8232
    %8251 = vst.msk [vmem:[%s79 + $0x31] sm:$0x1] %vm8178, %v8234
    %8252 = vst.msk [vmem:[%s79 + $0x39] sm:$0x1] %vm8178, %v8236
    %v8254 = vcombine.high %v8092, %v8092
    %v8256 = vunpack.c.l.s4 1966171168
    %v8257 = vunpack.c.0.s8 %v8256
    %v8258 = vlaneseq
    %v8259 = vshrl.u32 %v8258, 7
    %v8260 = vsub.s32 %v8257, %v8259
    %v8261 = vrot.slane %v8092, %v8260
    %v8263 = vunpack.c.l.s4 1966171168
    %v8264 = vunpack.c.0.s8 %v8263
    %v8265 = vlaneseq
    %v8266 = vshrl.u32 %v8265, 7
    %v8267 = vsub.s32 %v8264, %v8266
    %v8268 = vrot.slane %v8254, %v8267
    %v8269 = vcombine.high %v8261, %v8261
    %v8270 = vcombine.high %v8268, %v8268
    %v8272 = vunpack.c.l.s4 1966171168
    %v8273 = vunpack.c.0.s8 %v8272
    %v8274 = vlaneseq
    %v8275 = vshrl.u32 %v8274, 7
    %v8276 = vsub.s32 %v8273, %v8275
    %v8277 = vrot.slane %v8261, %v8276
    %v8279 = vunpack.c.l.s4 1966171168
    %v8280 = vunpack.c.0.s8 %v8279
    %v8281 = vlaneseq
    %v8282 = vshrl.u32 %v8281, 7
    %v8283 = vsub.s32 %v8280, %v8282
    %v8284 = vrot.slane %v8268, %v8283
    %v8286 = vunpack.c.l.s4 1966171168
    %v8287 = vunpack.c.0.s8 %v8286
    %v8288 = vlaneseq
    %v8289 = vshrl.u32 %v8288, 7
    %v8290 = vsub.s32 %v8287, %v8289
    %v8291 = vrot.slane %v8269, %v8290
    %v8293 = vunpack.c.l.s4 1966171168
    %v8294 = vunpack.c.0.s8 %v8293
    %v8295 = vlaneseq
    %v8296 = vshrl.u32 %v8295, 7
    %v8297 = vsub.s32 %v8294, %v8296
    %v8298 = vrot.slane %v8270, %v8297
    %v8299 = vcombine.high %v8277, %v8277
    %v8300 = vcombine.high %v8284, %v8284
    %v8301 = vcombine.high %v8291, %v8291
    %v8302 = vcombine.high %v8298, %v8298
    %8311 = vst.msk [vmem:[%s79 + $0x2] sm:$0x1] %vm8178, %v8277
    %8312 = vst.msk [vmem:[%s79 + $0xa] sm:$0x1] %vm8178, %v8291
    %8313 = vst.msk [vmem:[%s79 + $0x12] sm:$0x1] %vm8178, %v8299
    %8314 = vst.msk [vmem:[%s79 + $0x1a] sm:$0x1] %vm8178, %v8301
    %8315 = vst.msk [vmem:[%s79 + $0x22] sm:$0x1] %vm8178, %v8284
    %8316 = vst.msk [vmem:[%s79 + $0x2a] sm:$0x1] %vm8178, %v8298
    %8317 = vst.msk [vmem:[%s79 + $0x32] sm:$0x1] %vm8178, %v8300
    %8318 = vst.msk [vmem:[%s79 + $0x3a] sm:$0x1] %vm8178, %v8302
    %v8320 = vcombine.high %v8097, %v8097
    %v8322 = vunpack.c.l.s4 1966171168
    %v8323 = vunpack.c.0.s8 %v8322
    %v8324 = vlaneseq
    %v8325 = vshrl.u32 %v8324, 7
    %v8326 = vsub.s32 %v8323, %v8325
    %v8327 = vrot.slane %v8097, %v8326
    %v8329 = vunpack.c.l.s4 1966171168
    %v8330 = vunpack.c.0.s8 %v8329
    %v8331 = vlaneseq
    %v8332 = vshrl.u32 %v8331, 7
    %v8333 = vsub.s32 %v8330, %v8332
    %v8334 = vrot.slane %v8320, %v8333
    %v8335 = vcombine.high %v8327, %v8327
    %v8336 = vcombine.high %v8334, %v8334
    %v8338 = vunpack.c.l.s4 1966171168
    %v8339 = vunpack.c.0.s8 %v8338
    %v8340 = vlaneseq
    %v8341 = vshrl.u32 %v8340, 7
    %v8342 = vsub.s32 %v8339, %v8341
    %v8343 = vrot.slane %v8327, %v8342
    %v8345 = vunpack.c.l.s4 1966171168
    %v8346 = vunpack.c.0.s8 %v8345
    %v8347 = vlaneseq
    %v8348 = vshrl.u32 %v8347, 7
    %v8349 = vsub.s32 %v8346, %v8348
    %v8350 = vrot.slane %v8334, %v8349
    %v8352 = vunpack.c.l.s4 1966171168
    %v8353 = vunpack.c.0.s8 %v8352
    %v8354 = vlaneseq
    %v8355 = vshrl.u32 %v8354, 7
    %v8356 = vsub.s32 %v8353, %v8355
    %v8357 = vrot.slane %v8335, %v8356
    %v8359 = vunpack.c.l.s4 1966171168
    %v8360 = vunpack.c.0.s8 %v8359
    %v8361 = vlaneseq
    %v8362 = vshrl.u32 %v8361, 7
    %v8363 = vsub.s32 %v8360, %v8362
    %v8364 = vrot.slane %v8336, %v8363
    %v8365 = vcombine.high %v8343, %v8343
    %v8366 = vcombine.high %v8350, %v8350
    %v8367 = vcombine.high %v8357, %v8357
    %v8368 = vcombine.high %v8364, %v8364
    %8377 = vst.msk [vmem:[%s79 + $0x3] sm:$0x1] %vm8178, %v8343
    %8378 = vst.msk [vmem:[%s79 + $0xb] sm:$0x1] %vm8178, %v8357
    %8379 = vst.msk [vmem:[%s79 + $0x13] sm:$0x1] %vm8178, %v8365
    %8380 = vst.msk [vmem:[%s79 + $0x1b] sm:$0x1] %vm8178, %v8367
    %8381 = vst.msk [vmem:[%s79 + $0x23] sm:$0x1] %vm8178, %v8350
    %8382 = vst.msk [vmem:[%s79 + $0x2b] sm:$0x1] %vm8178, %v8364
    %8383 = vst.msk [vmem:[%s79 + $0x33] sm:$0x1] %vm8178, %v8366
    %8384 = vst.msk [vmem:[%s79 + $0x3b] sm:$0x1] %vm8178, %v8368
    %v8386 = vcombine.high %v8102, %v8102
    %v8388 = vunpack.c.l.s4 1966171168
    %v8389 = vunpack.c.0.s8 %v8388
    %v8390 = vlaneseq
    %v8391 = vshrl.u32 %v8390, 7
    %v8392 = vsub.s32 %v8389, %v8391
    %v8393 = vrot.slane %v8102, %v8392
    %v8395 = vunpack.c.l.s4 1966171168
    %v8396 = vunpack.c.0.s8 %v8395
    %v8397 = vlaneseq
    %v8398 = vshrl.u32 %v8397, 7
    %v8399 = vsub.s32 %v8396, %v8398
    %v8400 = vrot.slane %v8386, %v8399
    %v8401 = vcombine.high %v8393, %v8393
    %v8402 = vcombine.high %v8400, %v8400
    %v8404 = vunpack.c.l.s4 1966171168
    %v8405 = vunpack.c.0.s8 %v8404
    %v8406 = vlaneseq
    %v8407 = vshrl.u32 %v8406, 7
    %v8408 = vsub.s32 %v8405, %v8407
    %v8409 = vrot.slane %v8393, %v8408
    %v8411 = vunpack.c.l.s4 1966171168
    %v8412 = vunpack.c.0.s8 %v8411
    %v8413 = vlaneseq
    %v8414 = vshrl.u32 %v8413, 7
    %v8415 = vsub.s32 %v8412, %v8414
    %v8416 = vrot.slane %v8400, %v8415
    %v8418 = vunpack.c.l.s4 1966171168
    %v8419 = vunpack.c.0.s8 %v8418
    %v8420 = vlaneseq
    %v8421 = vshrl.u32 %v8420, 7
    %v8422 = vsub.s32 %v8419, %v8421
    %v8423 = vrot.slane %v8401, %v8422
    %v8425 = vunpack.c.l.s4 1966171168
    %v8426 = vunpack.c.0.s8 %v8425
    %v8427 = vlaneseq
    %v8428 = vshrl.u32 %v8427, 7
    %v8429 = vsub.s32 %v8426, %v8428
    %v8430 = vrot.slane %v8402, %v8429
    %v8431 = vcombine.high %v8409, %v8409
    %v8432 = vcombine.high %v8416, %v8416
    %v8433 = vcombine.high %v8423, %v8423
    %v8434 = vcombine.high %v8430, %v8430
    %8443 = vst.msk [vmem:[%s79 + $0x4] sm:$0x1] %vm8178, %v8409
    %8444 = vst.msk [vmem:[%s79 + $0xc] sm:$0x1] %vm8178, %v8423
    %8445 = vst.msk [vmem:[%s79 + $0x14] sm:$0x1] %vm8178, %v8431
    %8446 = vst.msk [vmem:[%s79 + $0x1c] sm:$0x1] %vm8178, %v8433
    %8447 = vst.msk [vmem:[%s79 + $0x24] sm:$0x1] %vm8178, %v8416
    %8448 = vst.msk [vmem:[%s79 + $0x2c] sm:$0x1] %vm8178, %v8430
    %8449 = vst.msk [vmem:[%s79 + $0x34] sm:$0x1] %vm8178, %v8432
    %8450 = vst.msk [vmem:[%s79 + $0x3c] sm:$0x1] %vm8178, %v8434
    %v8452 = vcombine.high %v8107, %v8107
    %v8454 = vunpack.c.l.s4 1966171168
    %v8455 = vunpack.c.0.s8 %v8454
    %v8456 = vlaneseq
    %v8457 = vshrl.u32 %v8456, 7
    %v8458 = vsub.s32 %v8455, %v8457
    %v8459 = vrot.slane %v8107, %v8458
    %v8461 = vunpack.c.l.s4 1966171168
    %v8462 = vunpack.c.0.s8 %v8461
    %v8463 = vlaneseq
    %v8464 = vshrl.u32 %v8463, 7
    %v8465 = vsub.s32 %v8462, %v8464
    %v8466 = vrot.slane %v8452, %v8465
    %v8467 = vcombine.high %v8459, %v8459
    %v8468 = vcombine.high %v8466, %v8466
    %v8470 = vunpack.c.l.s4 1966171168
    %v8471 = vunpack.c.0.s8 %v8470
    %v8472 = vlaneseq
    %v8473 = vshrl.u32 %v8472, 7
    %v8474 = vsub.s32 %v8471, %v8473
    %v8475 = vrot.slane %v8459, %v8474
    %v8477 = vunpack.c.l.s4 1966171168
    %v8478 = vunpack.c.0.s8 %v8477
    %v8479 = vlaneseq
    %v8480 = vshrl.u32 %v8479, 7
    %v8481 = vsub.s32 %v8478, %v8480
    %v8482 = vrot.slane %v8466, %v8481
    %v8484 = vunpack.c.l.s4 1966171168
    %v8485 = vunpack.c.0.s8 %v8484
    %v8486 = vlaneseq
    %v8487 = vshrl.u32 %v8486, 7
    %v8488 = vsub.s32 %v8485, %v8487
    %v8489 = vrot.slane %v8467, %v8488
    %v8491 = vunpack.c.l.s4 1966171168
    %v8492 = vunpack.c.0.s8 %v8491
    %v8493 = vlaneseq
    %v8494 = vshrl.u32 %v8493, 7
    %v8495 = vsub.s32 %v8492, %v8494
    %v8496 = vrot.slane %v8468, %v8495
    %v8497 = vcombine.high %v8475, %v8475
    %v8498 = vcombine.high %v8482, %v8482
    %v8499 = vcombine.high %v8489, %v8489
    %v8500 = vcombine.high %v8496, %v8496
    %8509 = vst.msk [vmem:[%s79 + $0x5] sm:$0x1] %vm8178, %v8475
    %8510 = vst.msk [vmem:[%s79 + $0xd] sm:$0x1] %vm8178, %v8489
    %8511 = vst.msk [vmem:[%s79 + $0x15] sm:$0x1] %vm8178, %v8497
    %8512 = vst.msk [vmem:[%s79 + $0x1d] sm:$0x1] %vm8178, %v8499
    %8513 = vst.msk [vmem:[%s79 + $0x25] sm:$0x1] %vm8178, %v8482
    %8514 = vst.msk [vmem:[%s79 + $0x2d] sm:$0x1] %vm8178, %v8496
    %8515 = vst.msk [vmem:[%s79 + $0x35] sm:$0x1] %vm8178, %v8498
    %8516 = vst.msk [vmem:[%s79 + $0x3d] sm:$0x1] %vm8178, %v8500
    %v8518 = vcombine.high %v8112, %v8112
    %v8520 = vunpack.c.l.s4 1966171168
    %v8521 = vunpack.c.0.s8 %v8520
    %v8522 = vlaneseq
    %v8523 = vshrl.u32 %v8522, 7
    %v8524 = vsub.s32 %v8521, %v8523
    %v8525 = vrot.slane %v8112, %v8524
    %v8527 = vunpack.c.l.s4 1966171168
    %v8528 = vunpack.c.0.s8 %v8527
    %v8529 = vlaneseq
    %v8530 = vshrl.u32 %v8529, 7
    %v8531 = vsub.s32 %v8528, %v8530
    %v8532 = vrot.slane %v8518, %v8531
    %v8533 = vcombine.high %v8525, %v8525
    %v8534 = vcombine.high %v8532, %v8532
    %v8536 = vunpack.c.l.s4 1966171168
    %v8537 = vunpack.c.0.s8 %v8536
    %v8538 = vlaneseq
    %v8539 = vshrl.u32 %v8538, 7
    %v8540 = vsub.s32 %v8537, %v8539
    %v8541 = vrot.slane %v8525, %v8540
    %v8543 = vunpack.c.l.s4 1966171168
    %v8544 = vunpack.c.0.s8 %v8543
    %v8545 = vlaneseq
    %v8546 = vshrl.u32 %v8545, 7
    %v8547 = vsub.s32 %v8544, %v8546
    %v8548 = vrot.slane %v8532, %v8547
    %v8550 = vunpack.c.l.s4 1966171168
    %v8551 = vunpack.c.0.s8 %v8550
    %v8552 = vlaneseq
    %v8553 = vshrl.u32 %v8552, 7
    %v8554 = vsub.s32 %v8551, %v8553
    %v8555 = vrot.slane %v8533, %v8554
    %v8557 = vunpack.c.l.s4 1966171168
    %v8558 = vunpack.c.0.s8 %v8557
    %v8559 = vlaneseq
    %v8560 = vshrl.u32 %v8559, 7
    %v8561 = vsub.s32 %v8558, %v8560
    %v8562 = vrot.slane %v8534, %v8561
    %v8563 = vcombine.high %v8541, %v8541
    %v8564 = vcombine.high %v8548, %v8548
    %v8565 = vcombine.high %v8555, %v8555
    %v8566 = vcombine.high %v8562, %v8562
    %8575 = vst.msk [vmem:[%s79 + $0x6] sm:$0x1] %vm8178, %v8541
    %8576 = vst.msk [vmem:[%s79 + $0xe] sm:$0x1] %vm8178, %v8555
    %8577 = vst.msk [vmem:[%s79 + $0x16] sm:$0x1] %vm8178, %v8563
    %8578 = vst.msk [vmem:[%s79 + $0x1e] sm:$0x1] %vm8178, %v8565
    %8579 = vst.msk [vmem:[%s79 + $0x26] sm:$0x1] %vm8178, %v8548
    %8580 = vst.msk [vmem:[%s79 + $0x2e] sm:$0x1] %vm8178, %v8562
    %8581 = vst.msk [vmem:[%s79 + $0x36] sm:$0x1] %vm8178, %v8564
    %8582 = vst.msk [vmem:[%s79 + $0x3e] sm:$0x1] %vm8178, %v8566
    %v8584 = vcombine.high %v8117, %v8117
    %v8586 = vunpack.c.l.s4 1966171168
    %v8587 = vunpack.c.0.s8 %v8586
    %v8588 = vlaneseq
    %v8589 = vshrl.u32 %v8588, 7
    %v8590 = vsub.s32 %v8587, %v8589
    %v8591 = vrot.slane %v8117, %v8590
    %v8593 = vunpack.c.l.s4 1966171168
    %v8594 = vunpack.c.0.s8 %v8593
    %v8595 = vlaneseq
    %v8596 = vshrl.u32 %v8595, 7
    %v8597 = vsub.s32 %v8594, %v8596
    %v8598 = vrot.slane %v8584, %v8597
    %v8599 = vcombine.high %v8591, %v8591
    %v8600 = vcombine.high %v8598, %v8598
    %v8602 = vunpack.c.l.s4 1966171168
    %v8603 = vunpack.c.0.s8 %v8602
    %v8604 = vlaneseq
    %v8605 = vshrl.u32 %v8604, 7
    %v8606 = vsub.s32 %v8603, %v8605
    %v8607 = vrot.slane %v8591, %v8606
    %v8609 = vunpack.c.l.s4 1966171168
    %v8610 = vunpack.c.0.s8 %v8609
    %v8611 = vlaneseq
    %v8612 = vshrl.u32 %v8611, 7
    %v8613 = vsub.s32 %v8610, %v8612
    %v8614 = vrot.slane %v8598, %v8613
    %v8616 = vunpack.c.l.s4 1966171168
    %v8617 = vunpack.c.0.s8 %v8616
    %v8618 = vlaneseq
    %v8619 = vshrl.u32 %v8618, 7
    %v8620 = vsub.s32 %v8617, %v8619
    %v8621 = vrot.slane %v8599, %v8620
    %v8623 = vunpack.c.l.s4 1966171168
    %v8624 = vunpack.c.0.s8 %v8623
    %v8625 = vlaneseq
    %v8626 = vshrl.u32 %v8625, 7
    %v8627 = vsub.s32 %v8624, %v8626
    %v8628 = vrot.slane %v8600, %v8627
    %v8629 = vcombine.high %v8607, %v8607
    %v8630 = vcombine.high %v8614, %v8614
    %v8631 = vcombine.high %v8621, %v8621
    %v8632 = vcombine.high %v8628, %v8628
    %8641 = vst.msk [vmem:[%s79 + $0x7] sm:$0x1] %vm8178, %v8607
    %8642 = vst.msk [vmem:[%s79 + $0xf] sm:$0x1] %vm8178, %v8621
    %8643 = vst.msk [vmem:[%s79 + $0x17] sm:$0x1] %vm8178, %v8629
    %8644 = vst.msk [vmem:[%s79 + $0x1f] sm:$0x1] %vm8178, %v8631
    %8645 = vst.msk [vmem:[%s79 + $0x27] sm:$0x1] %vm8178, %v8614
    %8646 = vst.msk [vmem:[%s79 + $0x2f] sm:$0x1] %vm8178, %v8628
    %8647 = vst.msk [vmem:[%s79 + $0x37] sm:$0x1] %vm8178, %v8630
    %8648 = vst.msk [vmem:[%s79 + $0x3f] sm:$0x1] %vm8178, %v8632
    // Predicated region
    $region158: #{mortonnet_forward.1} parent=1 // pred_check
      _
    $region159: #{mortonnet_forward.1} parent=1 // pred_check_branch
      %8650 = sbr.rel (0) target = $region161
    $region160: #{mortonnet_forward.1} parent=1 // pred_region
      _
    $region161: #{mortonnet_forward.1} parent=1 // pred_fallthru
      _
    // Predicated region
    $region162: #{mortonnet_forward.1} parent=1 // pred_check
      _
    $region163: #{mortonnet_forward.1} parent=1 // pred_check_branch
      %8652 = sbr.rel (0) target = $region165
    $region164: #{mortonnet_forward.1} parent=1 // pred_region
      %s8654 = ssub.s32 384, 384
      %8655 = vsyncadd [#allocation9], %s8654
      %s8656 = sshll.u32 [#allocation8], 4
      %s8657 = int_to_ptr.vmem [resolvable:$true] %s8656
      %8662 = dma.vmem_to_hbm [thread:$0]  %s8657, 384, %s81, [#allocation9], 128, 128, 8
    $region165: #{mortonnet_forward.1} parent=1 // pred_fallthru
      _
    // Predicated region
    $region166: #{mortonnet_forward.1} parent=1 // pred_check
      _
    $region167: #{mortonnet_forward.1} parent=1 // pred_check_branch
      %8664 = sbr.rel (0) target = $region169
    $region168: #{mortonnet_forward.1} parent=1 // pred_region
      _
    $region169: #{mortonnet_forward.1} parent=1 // pred_fallthru
      _
    // Predicated region
    $region170: #{mortonnet_forward.1} parent=1 // pred_check
      _
    $region171: #{mortonnet_forward.1} parent=1 // pred_check_branch
      %8666 = sbr.rel (0) target = $region173
    $region172: #{mortonnet_forward.1} parent=1 // pred_region
      %8667 = dma.done [#allocation9], 384
    $region173: #{mortonnet_forward.1} parent=1 // pred_fallthru
      _
    %8668 = vsyncpa [#allocation9], 1

</llo_original>
